<compile_context>
chip_gen: v6e
topology: v6e:2x2x1
jax: 0.10.0
libtpu: 0.0.40
codegen_flags: <defaults>
</compile_context>

<pallas_src>
import numpy as np
import jax
import jax.numpy as jnp
from jax import lax
from jax.experimental import pallas as pl
from jax.experimental.pallas import tpu as pltpu

D_MODEL = 16
N_HEAD = 4
HEAD_DIM = D_MODEL // N_HEAD
D_FF = 2048          # nn.TransformerEncoderLayer default dim_feedforward
EPS = 1e-5
NUM_LAYERS = 2
OUT_PAD = 128        # lane-dense padded width for the scalar head output
N_LAYER_ARGS = 16
N_FC_ARGS = 6


def _layer_norm(x, gamma, beta):
    mu = jnp.mean(x, axis=-1, keepdims=True)
    var = jnp.mean((x - mu) ** 2, axis=-1, keepdims=True)
    return (x - mu) * lax.rsqrt(var + EPS) * gamma + beta


# ----------------------------- fused Pallas kernel -----------------------------

def _make_fused_kernel(B, S, zr_dim):
    N = B * S
    scale = 1.0 / float(HEAD_DIM) ** 0.5

    def kernel(*refs):
        seq_ids_ref, zr_ids_ref, seq_tab_ref, zr_tab_ref = refs[:4]
        layer_refs = refs[4:4 + N_LAYER_ARGS * NUM_LAYERS]
        (fw1_ref, fb1_ref, fw2_ref, fb2_ref, fw3_ref, fb3_ref) = \
            refs[4 + N_LAYER_ARGS * NUM_LAYERS:
                 4 + N_LAYER_ARGS * NUM_LAYERS + N_FC_ARGS]
        out_ref = refs[-1]

        # ---- fused embedding gathers: one-hot @ table on the MXU ----
        seq_oh = (seq_ids_ref[...] ==
                  lax.broadcasted_iota(jnp.int32, (N, 3), 1)).astype(jnp.float32)
        x = jnp.dot(seq_oh, seq_tab_ref[...],
                    preferred_element_type=jnp.float32)                  # [N, D]

        zr_oh = (zr_ids_ref[...] ==
                 lax.broadcasted_iota(jnp.int32, (B, zr_dim), 1)).astype(jnp.float32)
        zr_emb = jnp.dot(zr_oh, zr_tab_ref[...],
                         preferred_element_type=jnp.float32)             # [B, D]

        # per-head column masks (hoisted out of the layer loop)
        d_iota = lax.broadcasted_iota(jnp.int32, (1, 1, D_MODEL), 2)
        head_mask = [((d_iota >= h * HEAD_DIM) &
                      (d_iota < (h + 1) * HEAD_DIM)).astype(jnp.float32)
                     for h in range(N_HEAD)]

        # ---- 2x post-norm TransformerEncoderLayer (dropout = identity) ----
        for L in range(NUM_LAYERS):
            (wq_ref, bq_ref, wk_ref, bk_ref, wv_ref, bv_ref, wo_ref, bo_ref,
             n1g_ref, n1b_ref, w1_ref, b1_ref, w2_ref, b2_ref,
             n2g_ref, n2b_ref) = layer_refs[N_LAYER_ARGS * L:N_LAYER_ARGS * (L + 1)]

            # fused-across-heads projections on the flat [B*S, D] activation
            q = (jnp.dot(x, wq_ref[...], preferred_element_type=jnp.float32)
                 + bq_ref[...]).reshape(B, S, D_MODEL)
            k = (jnp.dot(x, wk_ref[...], preferred_element_type=jnp.float32)
                 + bk_ref[...]).reshape(B, S, D_MODEL)
            v = (jnp.dot(x, wv_ref[...], preferred_element_type=jnp.float32)
                 + bv_ref[...]).reshape(B, S, D_MODEL)

            # per-head attention core, batched over B via 3-D einsum; head
            # selection via column masks (no lane slicing / concat needed)
            attn = jnp.zeros((B, S, D_MODEL), jnp.float32)
            for h in range(N_HEAD):
                m = head_mask[h]
                s = jnp.einsum('bqd,bkd->bqk', q * (m * scale), k,
                               preferred_element_type=jnp.float32)       # [B,S,S]
                s = s - jnp.max(s, axis=-1, keepdims=True)
                p = jnp.exp(s)
                p = p * pl.reciprocal(jnp.sum(p, axis=-1, keepdims=True),
                                      approx=True)
                attn = attn + jnp.einsum('bqk,bkd->bqd', p, v * m,
                                         preferred_element_type=jnp.float32)

            attn = attn.reshape(N, D_MODEL)
            attn = (jnp.dot(attn, wo_ref[...], preferred_element_type=jnp.float32)
                    + bo_ref[...])                                        # out proj

            x = _layer_norm(x + attn, n1g_ref[...], n1b_ref[...])         # norm1

            # FFN in bf16 with f32 accumulation, flat [B*S, 2048] intermediate
            h1 = jnp.dot(x.astype(jnp.bfloat16), w1_ref[...],
                         preferred_element_type=jnp.float32) + b1_ref[...]
            h1 = jnp.maximum(h1, 0.0)
            ff = jnp.dot(h1.astype(jnp.bfloat16), w2_ref[...],
                         preferred_element_type=jnp.float32) + b2_ref[...]
            x = _layer_norm(x + ff, n2g_ref[...], n2b_ref[...])           # norm2

        # ---- mean over seq (pooling matmul), zr gate, fused FC/BN(eval)/ReLU ----
        r = lax.broadcasted_iota(jnp.int32, (B, N), 0)
        c = lax.broadcasted_iota(jnp.int32, (B, N), 1)
        pool = ((c >= r * S) & (c < (r + 1) * S)).astype(jnp.float32) * (1.0 / S)
        z = jnp.dot(pool, x, preferred_element_type=jnp.float32) * zr_emb  # [B, D]

        z = jnp.maximum(jnp.dot(z, fw1_ref[...],
                                preferred_element_type=jnp.float32) + fb1_ref[...], 0.0)
        z = jnp.maximum(jnp.dot(z, fw2_ref[...],
                                preferred_element_type=jnp.float32) + fb2_ref[...], 0.0)
        out_ref[...] = (jnp.dot(z, fw3_ref[...],
                                preferred_element_type=jnp.float32) + fb3_ref[...])

    return kernel


# ------------------------ wrappers (pure param glue) ---------------------------

def _layer_args(p):
    D = D_MODEL
    in_w, in_b = p["in_proj_weight"], p["in_proj_bias"]
    return [
        in_w[:D].T, in_b[None, :D],
        in_w[D:2 * D].T, in_b[None, D:2 * D],
        in_w[2 * D:].T, in_b[None, 2 * D:],
        p["out_proj_weight"].T, p["out_proj_bias"][None, :],
        p["norm1_weight"][None, :], p["norm1_bias"][None, :],
        p["linear1_weight"].T.astype(jnp.bfloat16), p["linear1_bias"][None, :],
        p["linear2_weight"].T.astype(jnp.bfloat16), p["linear2_bias"][None, :],
        p["norm2_weight"][None, :], p["norm2_bias"][None, :],
    ]


def _fc_args(fc):
    # fold eval-mode BatchNorm1d into the preceding Linear (exact in eval mode)
    s1 = fc["bn1_weight"] * lax.rsqrt(fc["bn1_var"] + EPS)
    fw1 = fc["fc1_weight"].T * s1[None, :]
    fb1 = (fc["fc1_bias"] - fc["bn1_mean"]) * s1 + fc["bn1_bias"]
    s2 = fc["bn2_weight"] * lax.rsqrt(fc["bn2_var"] + EPS)
    fw2 = fc["fc2_weight"].T * s2[None, :]
    fb2 = (fc["fc2_bias"] - fc["bn2_mean"]) * s2 + fc["bn2_bias"]
    fw3 = jnp.zeros((16, OUT_PAD), jnp.float32).at[:, :1].set(fc["fc3_weight"].T)
    fb3 = jnp.zeros((1, OUT_PAD), jnp.float32).at[0, 0].set(fc["fc3_bias"][0])
    return [fw1, fb1[None, :], fw2, fb2[None, :], fw3, fb3]


@jax.jit
def forward(seq, zr, params):
    B, S = seq.shape
    N = B * S
    zr_dim = params["zr_table"].shape[0]

    args = [seq.reshape(N, 1).astype(jnp.int32),
            zr.reshape(B, 1).astype(jnp.int32),
            params["seq_table"], params["zr_table"]]
    for lp in params["layers"]:
        args += _layer_args(lp)
    args += _fc_args(params["fc"])

    y = pl.pallas_call(
        _make_fused_kernel(B, S, zr_dim),
        out_shape=jax.ShapeDtypeStruct((B, OUT_PAD), jnp.float32),
        in_specs=[pl.BlockSpec(memory_space=pltpu.MemorySpace.VMEM)] * len(args),
        out_specs=pl.BlockSpec(memory_space=pltpu.MemorySpace.VMEM),
    )(*args)
    return y[:, :1]


# ------------------------- pure-JAX reference (f32) ----------------------------

def ref_forward(seq, zr, params):
    seq_emb = jnp.take(params["seq_table"], seq, axis=0)
    zr_emb = jnp.take(params["zr_table"], zr[:, 0], axis=0)
    x = seq_emb
    B, S, D = x.shape
    for p in params["layers"]:
        qkv = x @ p["in_proj_weight"].T + p["in_proj_bias"]
        q, k, v = jnp.split(qkv, 3, axis=-1)
        q = q.reshape(B, S, N_HEAD, HEAD_DIM) / jnp.sqrt(HEAD_DIM).astype(jnp.float32)
        k = k.reshape(B, S, N_HEAD, HEAD_DIM)
        v = v.reshape(B, S, N_HEAD, HEAD_DIM)
        s = jnp.einsum("bqhd,bkhd->bhqk", q, k)
        a = jax.nn.softmax(s, axis=-1)
        o = jnp.einsum("bhqk,bkhd->bqhd", a, v).reshape(B, S, D)
        o = o @ p["out_proj_weight"].T + p["out_proj_bias"]
        x = _layer_norm(x + o, p["norm1_weight"], p["norm1_bias"])
        ff = jnp.maximum(x @ p["linear1_weight"].T + p["linear1_bias"], 0.0)
        ff = ff @ p["linear2_weight"].T + p["linear2_bias"]
        x = _layer_norm(x + ff, p["norm2_weight"], p["norm2_bias"])
    h = jnp.mean(x, axis=1)
    z = h * zr_emb
    fc = params["fc"]
    z = z @ fc["fc1_weight"].T + fc["fc1_bias"]
    z = (z - fc["bn1_mean"]) / jnp.sqrt(fc["bn1_var"] + EPS) * fc["bn1_weight"] + fc["bn1_bias"]
    z = jnp.maximum(z, 0.0)
    z = z @ fc["fc2_weight"].T + fc["fc2_bias"]
    z = (z - fc["bn2_mean"]) / jnp.sqrt(fc["bn2_var"] + EPS) * fc["bn2_weight"] + fc["bn2_bias"]
    z = jnp.maximum(z, 0.0)
    return z @ fc["fc3_weight"].T + fc["fc3_bias"]


# ------------------------------ init --------------------------------------

def init_params(key, zr_dim):
    ks = iter(jax.random.split(key, 80))

    def nrm(shape, scale=0.1):
        return scale * jax.random.normal(next(ks), shape, jnp.float32)

    layers = []
    for _ in range(NUM_LAYERS):
        layers.append({
            "in_proj_weight": nrm((3 * D_MODEL, D_MODEL)),
            "in_proj_bias": nrm((3 * D_MODEL,)),
            "out_proj_weight": nrm((D_MODEL, D_MODEL)),
            "out_proj_bias": nrm((D_MODEL,)),
            "norm1_weight": 1.0 + nrm((D_MODEL,)),
            "norm1_bias": nrm((D_MODEL,)),
            "linear1_weight": nrm((D_FF, D_MODEL)),
            "linear1_bias": nrm((D_FF,)),
            "linear2_weight": nrm((D_MODEL, D_FF)),
            "linear2_bias": nrm((D_MODEL,)),
            "norm2_weight": 1.0 + nrm((D_MODEL,)),
            "norm2_bias": nrm((D_MODEL,)),
        })
    fc = {
        "fc1_weight": nrm((32, D_MODEL)), "fc1_bias": nrm((32,)),
        "bn1_weight": 1.0 + nrm((32,)), "bn1_bias": nrm((32,)),
        "bn1_mean": nrm((32,)), "bn1_var": 1.0 + jnp.abs(nrm((32,))),
        "fc2_weight": nrm((16, 32)), "fc2_bias": nrm((16,)),
        "bn2_weight": 1.0 + nrm((16,)), "bn2_bias": nrm((16,)),
        "bn2_mean": nrm((16,)), "bn2_var": 1.0 + jnp.abs(nrm((16,))),
        "fc3_weight": nrm((1, 16)), "fc3_bias": nrm((1,)),
    }
    return {
        "seq_table": nrm((3, D_MODEL), scale=1.0),
        "zr_table": nrm((zr_dim, D_MODEL), scale=1.0),
        "layers": layers,
        "fc": fc,
    }


if __name__ == "__main__":
    B, S = 2, 8
    ZR_DIM = 10
    key = jax.random.PRNGKey(0)
    kp, ks_, kz = jax.random.split(key, 3)
    params = init_params(kp, ZR_DIM)
    seq = jax.random.randint(ks_, (B, S), 0, 3, dtype=jnp.int32)   # LongTensor of 0..2
    zr = jax.random.randint(kz, (B, 1), 0, ZR_DIM, dtype=jnp.int32)

    y = forward(seq, zr, params)
    jax.block_until_ready(y)
    assert y.shape == (B, 1)

    y_ref = ref_forward(seq, zr, params)
    np.testing.assert_allclose(np.asarray(y), np.asarray(y_ref), rtol=5e-2, atol=5e-2)
    print("KERNEL_OK")
</pallas_src>

<mosaic_0001>
module attributes {stable_mosaic.version = 11 : i64} {
  func.func @kernel(%arg0: memref<16x1xi32, #tpu.memory_space<vmem>>, %arg1: memref<2x1xi32, #tpu.memory_space<vmem>>, %arg2: memref<3x16xf32, #tpu.memory_space<vmem>>, %arg3: memref<10x16xf32, #tpu.memory_space<vmem>>, %arg4: memref<16x16xf32, #tpu.memory_space<vmem>>, %arg5: memref<1x16xf32, #tpu.memory_space<vmem>>, %arg6: memref<16x16xf32, #tpu.memory_space<vmem>>, %arg7: memref<1x16xf32, #tpu.memory_space<vmem>>, %arg8: memref<16x16xf32, #tpu.memory_space<vmem>>, %arg9: memref<1x16xf32, #tpu.memory_space<vmem>>, %arg10: memref<16x16xf32, #tpu.memory_space<vmem>>, %arg11: memref<1x16xf32, #tpu.memory_space<vmem>>, %arg12: memref<1x16xf32, #tpu.memory_space<vmem>>, %arg13: memref<1x16xf32, #tpu.memory_space<vmem>>, %arg14: memref<16x2048xbf16, #tpu.memory_space<vmem>>, %arg15: memref<1x2048xf32, #tpu.memory_space<vmem>>, %arg16: memref<2048x16xbf16, #tpu.memory_space<vmem>>, %arg17: memref<1x16xf32, #tpu.memory_space<vmem>>, %arg18: memref<1x16xf32, #tpu.memory_space<vmem>>, %arg19: memref<1x16xf32, #tpu.memory_space<vmem>>, %arg20: memref<16x16xf32, #tpu.memory_space<vmem>>, %arg21: memref<1x16xf32, #tpu.memory_space<vmem>>, %arg22: memref<16x16xf32, #tpu.memory_space<vmem>>, %arg23: memref<1x16xf32, #tpu.memory_space<vmem>>, %arg24: memref<16x16xf32, #tpu.memory_space<vmem>>, %arg25: memref<1x16xf32, #tpu.memory_space<vmem>>, %arg26: memref<16x16xf32, #tpu.memory_space<vmem>>, %arg27: memref<1x16xf32, #tpu.memory_space<vmem>>, %arg28: memref<1x16xf32, #tpu.memory_space<vmem>>, %arg29: memref<1x16xf32, #tpu.memory_space<vmem>>, %arg30: memref<16x2048xbf16, #tpu.memory_space<vmem>>, %arg31: memref<1x2048xf32, #tpu.memory_space<vmem>>, %arg32: memref<2048x16xbf16, #tpu.memory_space<vmem>>, %arg33: memref<1x16xf32, #tpu.memory_space<vmem>>, %arg34: memref<1x16xf32, #tpu.memory_space<vmem>>, %arg35: memref<1x16xf32, #tpu.memory_space<vmem>>, %arg36: memref<16x32xf32, #tpu.memory_space<vmem>>, %arg37: memref<1x32xf32, #tpu.memory_space<vmem>>, %arg38: memref<32x16xf32, #tpu.memory_space<vmem>>, %arg39: memref<1x16xf32, #tpu.memory_space<vmem>>, %arg40: memref<16x128xf32, #tpu.memory_space<vmem>>, %arg41: memref<1x128xf32, #tpu.memory_space<vmem>>, %arg42: memref<2x128xf32, #tpu.memory_space<vmem>>) attributes {dimension_semantics = [], scalar_prefetch = 0 : i64, scratch_operands = 0 : i64, tpu.core_type = #tpu.core_type<tc>} {
    %c0 = arith.constant 0 : index
    %c0_0 = arith.constant 0 : index
    %0 = vector.load %arg0[%c0, %c0_0] : memref<16x1xi32, #tpu.memory_space<vmem>>, vector<16x1xi32>
    %1 = tpu.iota {dimensions = array<i32: 1>} : vector<16x3xi32>
    %2 = vector.broadcast %0 : vector<16x1xi32> to vector<16x3xi32>
    %3 = arith.cmpi eq, %2, %1 : vector<16x3xi32>
    %4 = arith.extui %3 : vector<16x3xi1> to vector<16x3xi32>
    %5 = arith.sitofp %4 : vector<16x3xi32> to vector<16x3xf32>
    %c0_1 = arith.constant 0 : index
    %c0_2 = arith.constant 0 : index
    %6 = vector.load %arg2[%c0_1, %c0_2] : memref<3x16xf32, #tpu.memory_space<vmem>>, vector<3x16xf32>
    %cst = arith.constant dense<0.000000e+00> : vector<16x16xf32>
    %7 = tpu.matmul %5, %6, %cst {dimension_numbers = #tpu.dot_dimension_numbers<[1], [0], [0], [1], [0, 0, 1, 1], [], []>} : vector<16x3xf32>, vector<3x16xf32>, vector<16x16xf32> -> vector<16x16xf32>
    %c0_3 = arith.constant 0 : index
    %c0_4 = arith.constant 0 : index
    %8 = vector.load %arg1[%c0_3, %c0_4] : memref<2x1xi32, #tpu.memory_space<vmem>>, vector<2x1xi32>
    %9 = tpu.iota {dimensions = array<i32: 1>} : vector<2x10xi32>
    %10 = vector.broadcast %8 : vector<2x1xi32> to vector<2x10xi32>
    %11 = arith.cmpi eq, %10, %9 : vector<2x10xi32>
    %12 = arith.extui %11 : vector<2x10xi1> to vector<2x10xi32>
    %13 = arith.sitofp %12 : vector<2x10xi32> to vector<2x10xf32>
    %c0_5 = arith.constant 0 : index
    %c0_6 = arith.constant 0 : index
    %14 = vector.load %arg3[%c0_5, %c0_6] : memref<10x16xf32, #tpu.memory_space<vmem>>, vector<10x16xf32>
    %cst_7 = arith.constant dense<0.000000e+00> : vector<2x16xf32>
    %15 = tpu.matmul %13, %14, %cst_7 {dimension_numbers = #tpu.dot_dimension_numbers<[1], [0], [0], [1], [0, 0, 1, 1], [], []>} : vector<2x10xf32>, vector<10x16xf32>, vector<2x16xf32> -> vector<2x16xf32>
    %16 = tpu.iota {dimensions = array<i32: 2>} : vector<1x1x16xi32>
    %c0_i32 = arith.constant 0 : i32
    %17 = vector.broadcast %c0_i32 : i32 to vector<1x1x16xi32>
    %18 = arith.cmpi sge, %16, %17 : vector<1x1x16xi32>
    %c4_i32 = arith.constant 4 : i32
    %19 = vector.broadcast %c4_i32 : i32 to vector<1x1x16xi32>
    %20 = arith.cmpi slt, %16, %19 : vector<1x1x16xi32>
    %21 = arith.andi %18, %20 : vector<1x1x16xi1>
    %22 = arith.extui %21 : vector<1x1x16xi1> to vector<1x1x16xi32>
    %23 = arith.sitofp %22 : vector<1x1x16xi32> to vector<1x1x16xf32>
    %c4_i32_8 = arith.constant 4 : i32
    %24 = vector.broadcast %c4_i32_8 : i32 to vector<1x1x16xi32>
    %25 = arith.cmpi sge, %16, %24 : vector<1x1x16xi32>
    %c8_i32 = arith.constant 8 : i32
    %26 = vector.broadcast %c8_i32 : i32 to vector<1x1x16xi32>
    %27 = arith.cmpi slt, %16, %26 : vector<1x1x16xi32>
    %28 = arith.andi %25, %27 : vector<1x1x16xi1>
    %29 = arith.extui %28 : vector<1x1x16xi1> to vector<1x1x16xi32>
    %30 = arith.sitofp %29 : vector<1x1x16xi32> to vector<1x1x16xf32>
    %c8_i32_9 = arith.constant 8 : i32
    %31 = vector.broadcast %c8_i32_9 : i32 to vector<1x1x16xi32>
    %32 = arith.cmpi sge, %16, %31 : vector<1x1x16xi32>
    %c12_i32 = arith.constant 12 : i32
    %33 = vector.broadcast %c12_i32 : i32 to vector<1x1x16xi32>
    %34 = arith.cmpi slt, %16, %33 : vector<1x1x16xi32>
    %35 = arith.andi %32, %34 : vector<1x1x16xi1>
    %36 = arith.extui %35 : vector<1x1x16xi1> to vector<1x1x16xi32>
    %37 = arith.sitofp %36 : vector<1x1x16xi32> to vector<1x1x16xf32>
    %c12_i32_10 = arith.constant 12 : i32
    %38 = vector.broadcast %c12_i32_10 : i32 to vector<1x1x16xi32>
    %39 = arith.cmpi sge, %16, %38 : vector<1x1x16xi32>
    %c16_i32 = arith.constant 16 : i32
    %40 = vector.broadcast %c16_i32 : i32 to vector<1x1x16xi32>
    %41 = arith.cmpi slt, %16, %40 : vector<1x1x16xi32>
    %42 = arith.andi %39, %41 : vector<1x1x16xi1>
    %43 = arith.extui %42 : vector<1x1x16xi1> to vector<1x1x16xi32>
    %44 = arith.sitofp %43 : vector<1x1x16xi32> to vector<1x1x16xf32>
    %c0_11 = arith.constant 0 : index
    %c0_12 = arith.constant 0 : index
    %45 = vector.load %arg4[%c0_11, %c0_12] : memref<16x16xf32, #tpu.memory_space<vmem>>, vector<16x16xf32>
    %cst_13 = arith.constant dense<0.000000e+00> : vector<16x16xf32>
    %46 = tpu.matmul %7, %45, %cst_13 {dimension_numbers = #tpu.dot_dimension_numbers<[1], [0], [0], [1], [0, 0, 1, 1], [], []>} : vector<16x16xf32>, vector<16x16xf32>, vector<16x16xf32> -> vector<16x16xf32>
    %c0_14 = arith.constant 0 : index
    %c0_15 = arith.constant 0 : index
    %47 = vector.load %arg5[%c0_14, %c0_15] : memref<1x16xf32, #tpu.memory_space<vmem>>, vector<1x16xf32>
    %48 = vector.broadcast %47 : vector<1x16xf32> to vector<16x16xf32>
    %49 = arith.addf %46, %48 : vector<16x16xf32>
    %50 = vector.shape_cast %49 : vector<16x16xf32> to vector<2x8x16xf32>
    %c0_16 = arith.constant 0 : index
    %c0_17 = arith.constant 0 : index
    %51 = vector.load %arg6[%c0_16, %c0_17] : memref<16x16xf32, #tpu.memory_space<vmem>>, vector<16x16xf32>
    %cst_18 = arith.constant dense<0.000000e+00> : vector<16x16xf32>
    %52 = tpu.matmul %7, %51, %cst_18 {dimension_numbers = #tpu.dot_dimension_numbers<[1], [0], [0], [1], [0, 0, 1, 1], [], []>} : vector<16x16xf32>, vector<16x16xf32>, vector<16x16xf32> -> vector<16x16xf32>
    %c0_19 = arith.constant 0 : index
    %c0_20 = arith.constant 0 : index
    %53 = vector.load %arg7[%c0_19, %c0_20] : memref<1x16xf32, #tpu.memory_space<vmem>>, vector<1x16xf32>
    %54 = vector.broadcast %53 : vector<1x16xf32> to vector<16x16xf32>
    %55 = arith.addf %52, %54 : vector<16x16xf32>
    %56 = vector.shape_cast %55 : vector<16x16xf32> to vector<2x8x16xf32>
    %c0_21 = arith.constant 0 : index
    %c0_22 = arith.constant 0 : index
    %57 = vector.load %arg8[%c0_21, %c0_22] : memref<16x16xf32, #tpu.memory_space<vmem>>, vector<16x16xf32>
    %cst_23 = arith.constant dense<0.000000e+00> : vector<16x16xf32>
    %58 = tpu.matmul %7, %57, %cst_23 {dimension_numbers = #tpu.dot_dimension_numbers<[1], [0], [0], [1], [0, 0, 1, 1], [], []>} : vector<16x16xf32>, vector<16x16xf32>, vector<16x16xf32> -> vector<16x16xf32>
    %c0_24 = arith.constant 0 : index
    %c0_25 = arith.constant 0 : index
    %59 = vector.load %arg9[%c0_24, %c0_25] : memref<1x16xf32, #tpu.memory_space<vmem>>, vector<1x16xf32>
    %60 = vector.broadcast %59 : vector<1x16xf32> to vector<16x16xf32>
    %61 = arith.addf %58, %60 : vector<16x16xf32>
    %62 = vector.shape_cast %61 : vector<16x16xf32> to vector<2x8x16xf32>
    %cst_26 = arith.constant 0.000000e+00 : f32
    %63 = vector.broadcast %cst_26 : f32 to vector<2x8x16xf32>
    %cst_27 = arith.constant 5.000000e-01 : f32
    %64 = vector.broadcast %cst_27 : f32 to vector<1x1x16xf32>
    %65 = arith.mulf %23, %64 : vector<1x1x16xf32>
    %66 = vector.broadcast %65 : vector<1x1x16xf32> to vector<2x8x16xf32>
    %67 = arith.mulf %50, %66 : vector<2x8x16xf32>
    "tpu.trace_start"() <{level = 10 : i32, message = "bqd,bkd->bqk"}> : () -> ()
    %cst_28 = arith.constant dense<0.000000e+00> : vector<2x8x8xf32>
    %68 = tpu.matmul %67, %56, %cst_28 {dimension_numbers = #tpu.dot_dimension_numbers<[2], [2], [1], [1], [0, 0, 0, 1, 1, 1], [0], [0]>} : vector<2x8x16xf32>, vector<2x8x16xf32>, vector<2x8x8xf32> -> vector<2x8x8xf32>
    "tpu.trace_stop"() : () -> ()
    %cst_29 = arith.constant dense<0xFF800000> : vector<2x8xf32>
    %69 = vector.multi_reduction <maximumf>, %68, %cst_29 [2] : vector<2x8x8xf32> to vector<2x8xf32>
    %70 = vector.shape_cast %69 : vector<2x8xf32> to vector<2x8x1xf32>
    %71 = vector.broadcast %70 : vector<2x8x1xf32> to vector<2x8x8xf32>
    %72 = arith.subf %68, %71 : vector<2x8x8xf32>
    %73 = math.exp %72 : vector<2x8x8xf32>
    %cst_30 = arith.constant dense<0.000000e+00> : vector<2x8xf32>
    %74 = vector.multi_reduction <add>, %73, %cst_30 [2] : vector<2x8x8xf32> to vector<2x8xf32>
    %75 = vector.shape_cast %74 : vector<2x8xf32> to vector<2x8x1xf32>
    %76 = tpu.reciprocal %75 {approx = true} : vector<2x8x1xf32> -> vector<2x8x1xf32>
    %77 = vector.broadcast %76 : vector<2x8x1xf32> to vector<2x8x8xf32>
    %78 = arith.mulf %73, %77 : vector<2x8x8xf32>
    %79 = vector.broadcast %23 : vector<1x1x16xf32> to vector<2x8x16xf32>
    %80 = arith.mulf %62, %79 : vector<2x8x16xf32>
    "tpu.trace_start"() <{level = 10 : i32, message = "bqk,bkd->bqd"}> : () -> ()
    %cst_31 = arith.constant dense<0.000000e+00> : vector<2x8x16xf32>
    %81 = tpu.matmul %78, %80, %cst_31 {dimension_numbers = #tpu.dot_dimension_numbers<[2], [1], [1], [2], [0, 0, 0, 1, 1, 2], [0], [0]>} : vector<2x8x8xf32>, vector<2x8x16xf32>, vector<2x8x16xf32> -> vector<2x8x16xf32>
    "tpu.trace_stop"() : () -> ()
    %82 = arith.addf %63, %81 : vector<2x8x16xf32>
    %cst_32 = arith.constant 5.000000e-01 : f32
    %83 = vector.broadcast %cst_32 : f32 to vector<1x1x16xf32>
    %84 = arith.mulf %30, %83 : vector<1x1x16xf32>
    %85 = vector.broadcast %84 : vector<1x1x16xf32> to vector<2x8x16xf32>
    %86 = arith.mulf %50, %85 : vector<2x8x16xf32>
    "tpu.trace_start"() <{level = 10 : i32, message = "bqd,bkd->bqk"}> : () -> ()
    %cst_33 = arith.constant dense<0.000000e+00> : vector<2x8x8xf32>
    %87 = tpu.matmul %86, %56, %cst_33 {dimension_numbers = #tpu.dot_dimension_numbers<[2], [2], [1], [1], [0, 0, 0, 1, 1, 1], [0], [0]>} : vector<2x8x16xf32>, vector<2x8x16xf32>, vector<2x8x8xf32> -> vector<2x8x8xf32>
    "tpu.trace_stop"() : () -> ()
    %cst_34 = arith.constant dense<0xFF800000> : vector<2x8xf32>
    %88 = vector.multi_reduction <maximumf>, %87, %cst_34 [2] : vector<2x8x8xf32> to vector<2x8xf32>
    %89 = vector.shape_cast %88 : vector<2x8xf32> to vector<2x8x1xf32>
    %90 = vector.broadcast %89 : vector<2x8x1xf32> to vector<2x8x8xf32>
    %91 = arith.subf %87, %90 : vector<2x8x8xf32>
    %92 = math.exp %91 : vector<2x8x8xf32>
    %cst_35 = arith.constant dense<0.000000e+00> : vector<2x8xf32>
    %93 = vector.multi_reduction <add>, %92, %cst_35 [2] : vector<2x8x8xf32> to vector<2x8xf32>
    %94 = vector.shape_cast %93 : vector<2x8xf32> to vector<2x8x1xf32>
    %95 = tpu.reciprocal %94 {approx = true} : vector<2x8x1xf32> -> vector<2x8x1xf32>
    %96 = vector.broadcast %95 : vector<2x8x1xf32> to vector<2x8x8xf32>
    %97 = arith.mulf %92, %96 : vector<2x8x8xf32>
    %98 = vector.broadcast %30 : vector<1x1x16xf32> to vector<2x8x16xf32>
    %99 = arith.mulf %62, %98 : vector<2x8x16xf32>
    "tpu.trace_start"() <{level = 10 : i32, message = "bqk,bkd->bqd"}> : () -> ()
    %cst_36 = arith.constant dense<0.000000e+00> : vector<2x8x16xf32>
    %100 = tpu.matmul %97, %99, %cst_36 {dimension_numbers = #tpu.dot_dimension_numbers<[2], [1], [1], [2], [0, 0, 0, 1, 1, 2], [0], [0]>} : vector<2x8x8xf32>, vector<2x8x16xf32>, vector<2x8x16xf32> -> vector<2x8x16xf32>
    "tpu.trace_stop"() : () -> ()
    %101 = arith.addf %82, %100 : vector<2x8x16xf32>
    %cst_37 = arith.constant 5.000000e-01 : f32
    %102 = vector.broadcast %cst_37 : f32 to vector<1x1x16xf32>
    %103 = arith.mulf %37, %102 : vector<1x1x16xf32>
    %104 = vector.broadcast %103 : vector<1x1x16xf32> to vector<2x8x16xf32>
    %105 = arith.mulf %50, %104 : vector<2x8x16xf32>
    "tpu.trace_start"() <{level = 10 : i32, message = "bqd,bkd->bqk"}> : () -> ()
    %cst_38 = arith.constant dense<0.000000e+00> : vector<2x8x8xf32>
    %106 = tpu.matmul %105, %56, %cst_38 {dimension_numbers = #tpu.dot_dimension_numbers<[2], [2], [1], [1], [0, 0, 0, 1, 1, 1], [0], [0]>} : vector<2x8x16xf32>, vector<2x8x16xf32>, vector<2x8x8xf32> -> vector<2x8x8xf32>
    "tpu.trace_stop"() : () -> ()
    %cst_39 = arith.constant dense<0xFF800000> : vector<2x8xf32>
    %107 = vector.multi_reduction <maximumf>, %106, %cst_39 [2] : vector<2x8x8xf32> to vector<2x8xf32>
    %108 = vector.shape_cast %107 : vector<2x8xf32> to vector<2x8x1xf32>
    %109 = vector.broadcast %108 : vector<2x8x1xf32> to vector<2x8x8xf32>
    %110 = arith.subf %106, %109 : vector<2x8x8xf32>
    %111 = math.exp %110 : vector<2x8x8xf32>
    %cst_40 = arith.constant dense<0.000000e+00> : vector<2x8xf32>
    %112 = vector.multi_reduction <add>, %111, %cst_40 [2] : vector<2x8x8xf32> to vector<2x8xf32>
    %113 = vector.shape_cast %112 : vector<2x8xf32> to vector<2x8x1xf32>
    %114 = tpu.reciprocal %113 {approx = true} : vector<2x8x1xf32> -> vector<2x8x1xf32>
    %115 = vector.broadcast %114 : vector<2x8x1xf32> to vector<2x8x8xf32>
    %116 = arith.mulf %111, %115 : vector<2x8x8xf32>
    %117 = vector.broadcast %37 : vector<1x1x16xf32> to vector<2x8x16xf32>
    %118 = arith.mulf %62, %117 : vector<2x8x16xf32>
    "tpu.trace_start"() <{level = 10 : i32, message = "bqk,bkd->bqd"}> : () -> ()
    %cst_41 = arith.constant dense<0.000000e+00> : vector<2x8x16xf32>
    %119 = tpu.matmul %116, %118, %cst_41 {dimension_numbers = #tpu.dot_dimension_numbers<[2], [1], [1], [2], [0, 0, 0, 1, 1, 2], [0], [0]>} : vector<2x8x8xf32>, vector<2x8x16xf32>, vector<2x8x16xf32> -> vector<2x8x16xf32>
    "tpu.trace_stop"() : () -> ()
    %120 = arith.addf %101, %119 : vector<2x8x16xf32>
    %cst_42 = arith.constant 5.000000e-01 : f32
    %121 = vector.broadcast %cst_42 : f32 to vector<1x1x16xf32>
    %122 = arith.mulf %44, %121 : vector<1x1x16xf32>
    %123 = vector.broadcast %122 : vector<1x1x16xf32> to vector<2x8x16xf32>
    %124 = arith.mulf %50, %123 : vector<2x8x16xf32>
    "tpu.trace_start"() <{level = 10 : i32, message = "bqd,bkd->bqk"}> : () -> ()
    %cst_43 = arith.constant dense<0.000000e+00> : vector<2x8x8xf32>
    %125 = tpu.matmul %124, %56, %cst_43 {dimension_numbers = #tpu.dot_dimension_numbers<[2], [2], [1], [1], [0, 0, 0, 1, 1, 1], [0], [0]>} : vector<2x8x16xf32>, vector<2x8x16xf32>, vector<2x8x8xf32> -> vector<2x8x8xf32>
    "tpu.trace_stop"() : () -> ()
    %cst_44 = arith.constant dense<0xFF800000> : vector<2x8xf32>
    %126 = vector.multi_reduction <maximumf>, %125, %cst_44 [2] : vector<2x8x8xf32> to vector<2x8xf32>
    %127 = vector.shape_cast %126 : vector<2x8xf32> to vector<2x8x1xf32>
    %128 = vector.broadcast %127 : vector<2x8x1xf32> to vector<2x8x8xf32>
    %129 = arith.subf %125, %128 : vector<2x8x8xf32>
    %130 = math.exp %129 : vector<2x8x8xf32>
    %cst_45 = arith.constant dense<0.000000e+00> : vector<2x8xf32>
    %131 = vector.multi_reduction <add>, %130, %cst_45 [2] : vector<2x8x8xf32> to vector<2x8xf32>
    %132 = vector.shape_cast %131 : vector<2x8xf32> to vector<2x8x1xf32>
    %133 = tpu.reciprocal %132 {approx = true} : vector<2x8x1xf32> -> vector<2x8x1xf32>
    %134 = vector.broadcast %133 : vector<2x8x1xf32> to vector<2x8x8xf32>
    %135 = arith.mulf %130, %134 : vector<2x8x8xf32>
    %136 = vector.broadcast %44 : vector<1x1x16xf32> to vector<2x8x16xf32>
    %137 = arith.mulf %62, %136 : vector<2x8x16xf32>
    "tpu.trace_start"() <{level = 10 : i32, message = "bqk,bkd->bqd"}> : () -> ()
    %cst_46 = arith.constant dense<0.000000e+00> : vector<2x8x16xf32>
    %138 = tpu.matmul %135, %137, %cst_46 {dimension_numbers = #tpu.dot_dimension_numbers<[2], [1], [1], [2], [0, 0, 0, 1, 1, 2], [0], [0]>} : vector<2x8x8xf32>, vector<2x8x16xf32>, vector<2x8x16xf32> -> vector<2x8x16xf32>
    "tpu.trace_stop"() : () -> ()
    %139 = arith.addf %120, %138 : vector<2x8x16xf32>
    %140 = vector.shape_cast %139 : vector<2x8x16xf32> to vector<16x16xf32>
    %c0_47 = arith.constant 0 : index
    %c0_48 = arith.constant 0 : index
    %141 = vector.load %arg10[%c0_47, %c0_48] : memref<16x16xf32, #tpu.memory_space<vmem>>, vector<16x16xf32>
    %cst_49 = arith.constant dense<0.000000e+00> : vector<16x16xf32>
    %142 = tpu.matmul %140, %141, %cst_49 {dimension_numbers = #tpu.dot_dimension_numbers<[1], [0], [0], [1], [0, 0, 1, 1], [], []>} : vector<16x16xf32>, vector<16x16xf32>, vector<16x16xf32> -> vector<16x16xf32>
    %c0_50 = arith.constant 0 : index
    %c0_51 = arith.constant 0 : index
    %143 = vector.load %arg11[%c0_50, %c0_51] : memref<1x16xf32, #tpu.memory_space<vmem>>, vector<1x16xf32>
    %144 = vector.broadcast %143 : vector<1x16xf32> to vector<16x16xf32>
    %145 = arith.addf %142, %144 : vector<16x16xf32>
    %146 = arith.addf %7, %145 : vector<16x16xf32>
    %c0_52 = arith.constant 0 : index
    %c0_53 = arith.constant 0 : index
    %147 = vector.load %arg12[%c0_52, %c0_53] : memref<1x16xf32, #tpu.memory_space<vmem>>, vector<1x16xf32>
    %c0_54 = arith.constant 0 : index
    %c0_55 = arith.constant 0 : index
    %148 = vector.load %arg13[%c0_54, %c0_55] : memref<1x16xf32, #tpu.memory_space<vmem>>, vector<1x16xf32>
    %cst_56 = arith.constant dense<0.000000e+00> : vector<16xf32>
    %149 = vector.multi_reduction <add>, %146, %cst_56 [1] : vector<16x16xf32> to vector<16xf32>
    %150 = vector.shape_cast %149 : vector<16xf32> to vector<16x1xf32>
    %cst_57 = arith.constant 1.600000e+01 : f32
    %151 = vector.broadcast %cst_57 : f32 to vector<16x1xf32>
    %152 = arith.divf %150, %151 : vector<16x1xf32>
    %153 = vector.broadcast %152 : vector<16x1xf32> to vector<16x16xf32>
    %154 = arith.subf %146, %153 : vector<16x16xf32>
    %155 = arith.mulf %154, %154 : vector<16x16xf32>
    %cst_58 = arith.constant dense<0.000000e+00> : vector<16xf32>
    %156 = vector.multi_reduction <add>, %155, %cst_58 [1] : vector<16x16xf32> to vector<16xf32>
    %157 = vector.shape_cast %156 : vector<16xf32> to vector<16x1xf32>
    %cst_59 = arith.constant 1.600000e+01 : f32
    %158 = vector.broadcast %cst_59 : f32 to vector<16x1xf32>
    %159 = arith.divf %157, %158 : vector<16x1xf32>
    %160 = vector.broadcast %152 : vector<16x1xf32> to vector<16x16xf32>
    %161 = arith.subf %146, %160 : vector<16x16xf32>
    %cst_60 = arith.constant 9.99999974E-6 : f32
    %162 = vector.broadcast %cst_60 : f32 to vector<16x1xf32>
    %163 = arith.addf %159, %162 : vector<16x1xf32>
    %164 = math.rsqrt %163 : vector<16x1xf32>
    %165 = vector.broadcast %164 : vector<16x1xf32> to vector<16x16xf32>
    %166 = arith.mulf %161, %165 : vector<16x16xf32>
    %167 = vector.broadcast %147 : vector<1x16xf32> to vector<16x16xf32>
    %168 = arith.mulf %166, %167 : vector<16x16xf32>
    %169 = vector.broadcast %148 : vector<1x16xf32> to vector<16x16xf32>
    %170 = arith.addf %168, %169 : vector<16x16xf32>
    %171 = arith.truncf %170 : vector<16x16xf32> to vector<16x16xbf16>
    %c0_61 = arith.constant 0 : index
    %c0_62 = arith.constant 0 : index
    %172 = vector.load %arg14[%c0_61, %c0_62] : memref<16x2048xbf16, #tpu.memory_space<vmem>>, vector<16x2048xbf16>
    %cst_63 = arith.constant dense<0.000000e+00> : vector<16x2048xf32>
    %173 = tpu.matmul %171, %172, %cst_63 {dimension_numbers = #tpu.dot_dimension_numbers<[1], [0], [0], [1], [0, 0, 1, 1], [], []>} : vector<16x16xbf16>, vector<16x2048xbf16>, vector<16x2048xf32> -> vector<16x2048xf32>
    %c0_64 = arith.constant 0 : index
    %c0_65 = arith.constant 0 : index
    %174 = vector.load %arg15[%c0_64, %c0_65] : memref<1x2048xf32, #tpu.memory_space<vmem>>, vector<1x2048xf32>
    %175 = vector.broadcast %174 : vector<1x2048xf32> to vector<16x2048xf32>
    %176 = arith.addf %173, %175 : vector<16x2048xf32>
    %cst_66 = arith.constant 0.000000e+00 : f32
    %177 = vector.broadcast %cst_66 : f32 to vector<16x2048xf32>
    %178 = arith.maximumf %176, %177 : vector<16x2048xf32>
    %179 = arith.truncf %178 : vector<16x2048xf32> to vector<16x2048xbf16>
    %c0_67 = arith.constant 0 : index
    %c0_68 = arith.constant 0 : index
    %180 = vector.load %arg16[%c0_67, %c0_68] : memref<2048x16xbf16, #tpu.memory_space<vmem>>, vector<2048x16xbf16>
    %cst_69 = arith.constant dense<0.000000e+00> : vector<16x16xf32>
    %181 = tpu.matmul %179, %180, %cst_69 {dimension_numbers = #tpu.dot_dimension_numbers<[1], [0], [0], [1], [0, 0, 1, 1], [], []>} : vector<16x2048xbf16>, vector<2048x16xbf16>, vector<16x16xf32> -> vector<16x16xf32>
    %c0_70 = arith.constant 0 : index
    %c0_71 = arith.constant 0 : index
    %182 = vector.load %arg17[%c0_70, %c0_71] : memref<1x16xf32, #tpu.memory_space<vmem>>, vector<1x16xf32>
    %183 = vector.broadcast %182 : vector<1x16xf32> to vector<16x16xf32>
    %184 = arith.addf %181, %183 : vector<16x16xf32>
    %185 = arith.addf %170, %184 : vector<16x16xf32>
    %c0_72 = arith.constant 0 : index
    %c0_73 = arith.constant 0 : index
    %186 = vector.load %arg18[%c0_72, %c0_73] : memref<1x16xf32, #tpu.memory_space<vmem>>, vector<1x16xf32>
    %c0_74 = arith.constant 0 : index
    %c0_75 = arith.constant 0 : index
    %187 = vector.load %arg19[%c0_74, %c0_75] : memref<1x16xf32, #tpu.memory_space<vmem>>, vector<1x16xf32>
    %cst_76 = arith.constant dense<0.000000e+00> : vector<16xf32>
    %188 = vector.multi_reduction <add>, %185, %cst_76 [1] : vector<16x16xf32> to vector<16xf32>
    %189 = vector.shape_cast %188 : vector<16xf32> to vector<16x1xf32>
    %cst_77 = arith.constant 1.600000e+01 : f32
    %190 = vector.broadcast %cst_77 : f32 to vector<16x1xf32>
    %191 = arith.divf %189, %190 : vector<16x1xf32>
    %192 = vector.broadcast %191 : vector<16x1xf32> to vector<16x16xf32>
    %193 = arith.subf %185, %192 : vector<16x16xf32>
    %194 = arith.mulf %193, %193 : vector<16x16xf32>
    %cst_78 = arith.constant dense<0.000000e+00> : vector<16xf32>
    %195 = vector.multi_reduction <add>, %194, %cst_78 [1] : vector<16x16xf32> to vector<16xf32>
    %196 = vector.shape_cast %195 : vector<16xf32> to vector<16x1xf32>
    %cst_79 = arith.constant 1.600000e+01 : f32
    %197 = vector.broadcast %cst_79 : f32 to vector<16x1xf32>
    %198 = arith.divf %196, %197 : vector<16x1xf32>
    %199 = vector.broadcast %191 : vector<16x1xf32> to vector<16x16xf32>
    %200 = arith.subf %185, %199 : vector<16x16xf32>
    %cst_80 = arith.constant 9.99999974E-6 : f32
    %201 = vector.broadcast %cst_80 : f32 to vector<16x1xf32>
    %202 = arith.addf %198, %201 : vector<16x1xf32>
    %203 = math.rsqrt %202 : vector<16x1xf32>
    %204 = vector.broadcast %203 : vector<16x1xf32> to vector<16x16xf32>
    %205 = arith.mulf %200, %204 : vector<16x16xf32>
    %206 = vector.broadcast %186 : vector<1x16xf32> to vector<16x16xf32>
    %207 = arith.mulf %205, %206 : vector<16x16xf32>
    %208 = vector.broadcast %187 : vector<1x16xf32> to vector<16x16xf32>
    %209 = arith.addf %207, %208 : vector<16x16xf32>
    %c0_81 = arith.constant 0 : index
    %c0_82 = arith.constant 0 : index
    %210 = vector.load %arg20[%c0_81, %c0_82] : memref<16x16xf32, #tpu.memory_space<vmem>>, vector<16x16xf32>
    %cst_83 = arith.constant dense<0.000000e+00> : vector<16x16xf32>
    %211 = tpu.matmul %209, %210, %cst_83 {dimension_numbers = #tpu.dot_dimension_numbers<[1], [0], [0], [1], [0, 0, 1, 1], [], []>} : vector<16x16xf32>, vector<16x16xf32>, vector<16x16xf32> -> vector<16x16xf32>
    %c0_84 = arith.constant 0 : index
    %c0_85 = arith.constant 0 : index
    %212 = vector.load %arg21[%c0_84, %c0_85] : memref<1x16xf32, #tpu.memory_space<vmem>>, vector<1x16xf32>
    %213 = vector.broadcast %212 : vector<1x16xf32> to vector<16x16xf32>
    %214 = arith.addf %211, %213 : vector<16x16xf32>
    %215 = vector.shape_cast %214 : vector<16x16xf32> to vector<2x8x16xf32>
    %c0_86 = arith.constant 0 : index
    %c0_87 = arith.constant 0 : index
    %216 = vector.load %arg22[%c0_86, %c0_87] : memref<16x16xf32, #tpu.memory_space<vmem>>, vector<16x16xf32>
    %cst_88 = arith.constant dense<0.000000e+00> : vector<16x16xf32>
    %217 = tpu.matmul %209, %216, %cst_88 {dimension_numbers = #tpu.dot_dimension_numbers<[1], [0], [0], [1], [0, 0, 1, 1], [], []>} : vector<16x16xf32>, vector<16x16xf32>, vector<16x16xf32> -> vector<16x16xf32>
    %c0_89 = arith.constant 0 : index
    %c0_90 = arith.constant 0 : index
    %218 = vector.load %arg23[%c0_89, %c0_90] : memref<1x16xf32, #tpu.memory_space<vmem>>, vector<1x16xf32>
    %219 = vector.broadcast %218 : vector<1x16xf32> to vector<16x16xf32>
    %220 = arith.addf %217, %219 : vector<16x16xf32>
    %221 = vector.shape_cast %220 : vector<16x16xf32> to vector<2x8x16xf32>
    %c0_91 = arith.constant 0 : index
    %c0_92 = arith.constant 0 : index
    %222 = vector.load %arg24[%c0_91, %c0_92] : memref<16x16xf32, #tpu.memory_space<vmem>>, vector<16x16xf32>
    %cst_93 = arith.constant dense<0.000000e+00> : vector<16x16xf32>
    %223 = tpu.matmul %209, %222, %cst_93 {dimension_numbers = #tpu.dot_dimension_numbers<[1], [0], [0], [1], [0, 0, 1, 1], [], []>} : vector<16x16xf32>, vector<16x16xf32>, vector<16x16xf32> -> vector<16x16xf32>
    %c0_94 = arith.constant 0 : index
    %c0_95 = arith.constant 0 : index
    %224 = vector.load %arg25[%c0_94, %c0_95] : memref<1x16xf32, #tpu.memory_space<vmem>>, vector<1x16xf32>
    %225 = vector.broadcast %224 : vector<1x16xf32> to vector<16x16xf32>
    %226 = arith.addf %223, %225 : vector<16x16xf32>
    %227 = vector.shape_cast %226 : vector<16x16xf32> to vector<2x8x16xf32>
    %cst_96 = arith.constant 0.000000e+00 : f32
    %228 = vector.broadcast %cst_96 : f32 to vector<2x8x16xf32>
    %cst_97 = arith.constant 5.000000e-01 : f32
    %229 = vector.broadcast %cst_97 : f32 to vector<1x1x16xf32>
    %230 = arith.mulf %23, %229 : vector<1x1x16xf32>
    %231 = vector.broadcast %230 : vector<1x1x16xf32> to vector<2x8x16xf32>
    %232 = arith.mulf %215, %231 : vector<2x8x16xf32>
    "tpu.trace_start"() <{level = 10 : i32, message = "bqd,bkd->bqk"}> : () -> ()
    %cst_98 = arith.constant dense<0.000000e+00> : vector<2x8x8xf32>
    %233 = tpu.matmul %232, %221, %cst_98 {dimension_numbers = #tpu.dot_dimension_numbers<[2], [2], [1], [1], [0, 0, 0, 1, 1, 1], [0], [0]>} : vector<2x8x16xf32>, vector<2x8x16xf32>, vector<2x8x8xf32> -> vector<2x8x8xf32>
    "tpu.trace_stop"() : () -> ()
    %cst_99 = arith.constant dense<0xFF800000> : vector<2x8xf32>
    %234 = vector.multi_reduction <maximumf>, %233, %cst_99 [2] : vector<2x8x8xf32> to vector<2x8xf32>
    %235 = vector.shape_cast %234 : vector<2x8xf32> to vector<2x8x1xf32>
    %236 = vector.broadcast %235 : vector<2x8x1xf32> to vector<2x8x8xf32>
    %237 = arith.subf %233, %236 : vector<2x8x8xf32>
    %238 = math.exp %237 : vector<2x8x8xf32>
    %cst_100 = arith.constant dense<0.000000e+00> : vector<2x8xf32>
    %239 = vector.multi_reduction <add>, %238, %cst_100 [2] : vector<2x8x8xf32> to vector<2x8xf32>
    %240 = vector.shape_cast %239 : vector<2x8xf32> to vector<2x8x1xf32>
    %241 = tpu.reciprocal %240 {approx = true} : vector<2x8x1xf32> -> vector<2x8x1xf32>
    %242 = vector.broadcast %241 : vector<2x8x1xf32> to vector<2x8x8xf32>
    %243 = arith.mulf %238, %242 : vector<2x8x8xf32>
    %244 = vector.broadcast %23 : vector<1x1x16xf32> to vector<2x8x16xf32>
    %245 = arith.mulf %227, %244 : vector<2x8x16xf32>
    "tpu.trace_start"() <{level = 10 : i32, message = "bqk,bkd->bqd"}> : () -> ()
    %cst_101 = arith.constant dense<0.000000e+00> : vector<2x8x16xf32>
    %246 = tpu.matmul %243, %245, %cst_101 {dimension_numbers = #tpu.dot_dimension_numbers<[2], [1], [1], [2], [0, 0, 0, 1, 1, 2], [0], [0]>} : vector<2x8x8xf32>, vector<2x8x16xf32>, vector<2x8x16xf32> -> vector<2x8x16xf32>
    "tpu.trace_stop"() : () -> ()
    %247 = arith.addf %228, %246 : vector<2x8x16xf32>
    %cst_102 = arith.constant 5.000000e-01 : f32
    %248 = vector.broadcast %cst_102 : f32 to vector<1x1x16xf32>
    %249 = arith.mulf %30, %248 : vector<1x1x16xf32>
    %250 = vector.broadcast %249 : vector<1x1x16xf32> to vector<2x8x16xf32>
    %251 = arith.mulf %215, %250 : vector<2x8x16xf32>
    "tpu.trace_start"() <{level = 10 : i32, message = "bqd,bkd->bqk"}> : () -> ()
    %cst_103 = arith.constant dense<0.000000e+00> : vector<2x8x8xf32>
    %252 = tpu.matmul %251, %221, %cst_103 {dimension_numbers = #tpu.dot_dimension_numbers<[2], [2], [1], [1], [0, 0, 0, 1, 1, 1], [0], [0]>} : vector<2x8x16xf32>, vector<2x8x16xf32>, vector<2x8x8xf32> -> vector<2x8x8xf32>
    "tpu.trace_stop"() : () -> ()
    %cst_104 = arith.constant dense<0xFF800000> : vector<2x8xf32>
    %253 = vector.multi_reduction <maximumf>, %252, %cst_104 [2] : vector<2x8x8xf32> to vector<2x8xf32>
    %254 = vector.shape_cast %253 : vector<2x8xf32> to vector<2x8x1xf32>
    %255 = vector.broadcast %254 : vector<2x8x1xf32> to vector<2x8x8xf32>
    %256 = arith.subf %252, %255 : vector<2x8x8xf32>
    %257 = math.exp %256 : vector<2x8x8xf32>
    %cst_105 = arith.constant dense<0.000000e+00> : vector<2x8xf32>
    %258 = vector.multi_reduction <add>, %257, %cst_105 [2] : vector<2x8x8xf32> to vector<2x8xf32>
    %259 = vector.shape_cast %258 : vector<2x8xf32> to vector<2x8x1xf32>
    %260 = tpu.reciprocal %259 {approx = true} : vector<2x8x1xf32> -> vector<2x8x1xf32>
    %261 = vector.broadcast %260 : vector<2x8x1xf32> to vector<2x8x8xf32>
    %262 = arith.mulf %257, %261 : vector<2x8x8xf32>
    %263 = vector.broadcast %30 : vector<1x1x16xf32> to vector<2x8x16xf32>
    %264 = arith.mulf %227, %263 : vector<2x8x16xf32>
    "tpu.trace_start"() <{level = 10 : i32, message = "bqk,bkd->bqd"}> : () -> ()
    %cst_106 = arith.constant dense<0.000000e+00> : vector<2x8x16xf32>
    %265 = tpu.matmul %262, %264, %cst_106 {dimension_numbers = #tpu.dot_dimension_numbers<[2], [1], [1], [2], [0, 0, 0, 1, 1, 2], [0], [0]>} : vector<2x8x8xf32>, vector<2x8x16xf32>, vector<2x8x16xf32> -> vector<2x8x16xf32>
    "tpu.trace_stop"() : () -> ()
    %266 = arith.addf %247, %265 : vector<2x8x16xf32>
    %cst_107 = arith.constant 5.000000e-01 : f32
    %267 = vector.broadcast %cst_107 : f32 to vector<1x1x16xf32>
    %268 = arith.mulf %37, %267 : vector<1x1x16xf32>
    %269 = vector.broadcast %268 : vector<1x1x16xf32> to vector<2x8x16xf32>
    %270 = arith.mulf %215, %269 : vector<2x8x16xf32>
    "tpu.trace_start"() <{level = 10 : i32, message = "bqd,bkd->bqk"}> : () -> ()
    %cst_108 = arith.constant dense<0.000000e+00> : vector<2x8x8xf32>
    %271 = tpu.matmul %270, %221, %cst_108 {dimension_numbers = #tpu.dot_dimension_numbers<[2], [2], [1], [1], [0, 0, 0, 1, 1, 1], [0], [0]>} : vector<2x8x16xf32>, vector<2x8x16xf32>, vector<2x8x8xf32> -> vector<2x8x8xf32>
    "tpu.trace_stop"() : () -> ()
    %cst_109 = arith.constant dense<0xFF800000> : vector<2x8xf32>
    %272 = vector.multi_reduction <maximumf>, %271, %cst_109 [2] : vector<2x8x8xf32> to vector<2x8xf32>
    %273 = vector.shape_cast %272 : vector<2x8xf32> to vector<2x8x1xf32>
    %274 = vector.broadcast %273 : vector<2x8x1xf32> to vector<2x8x8xf32>
    %275 = arith.subf %271, %274 : vector<2x8x8xf32>
    %276 = math.exp %275 : vector<2x8x8xf32>
    %cst_110 = arith.constant dense<0.000000e+00> : vector<2x8xf32>
    %277 = vector.multi_reduction <add>, %276, %cst_110 [2] : vector<2x8x8xf32> to vector<2x8xf32>
    %278 = vector.shape_cast %277 : vector<2x8xf32> to vector<2x8x1xf32>
    %279 = tpu.reciprocal %278 {approx = true} : vector<2x8x1xf32> -> vector<2x8x1xf32>
    %280 = vector.broadcast %279 : vector<2x8x1xf32> to vector<2x8x8xf32>
    %281 = arith.mulf %276, %280 : vector<2x8x8xf32>
    %282 = vector.broadcast %37 : vector<1x1x16xf32> to vector<2x8x16xf32>
    %283 = arith.mulf %227, %282 : vector<2x8x16xf32>
    "tpu.trace_start"() <{level = 10 : i32, message = "bqk,bkd->bqd"}> : () -> ()
    %cst_111 = arith.constant dense<0.000000e+00> : vector<2x8x16xf32>
    %284 = tpu.matmul %281, %283, %cst_111 {dimension_numbers = #tpu.dot_dimension_numbers<[2], [1], [1], [2], [0, 0, 0, 1, 1, 2], [0], [0]>} : vector<2x8x8xf32>, vector<2x8x16xf32>, vector<2x8x16xf32> -> vector<2x8x16xf32>
    "tpu.trace_stop"() : () -> ()
    %285 = arith.addf %266, %284 : vector<2x8x16xf32>
    %cst_112 = arith.constant 5.000000e-01 : f32
    %286 = vector.broadcast %cst_112 : f32 to vector<1x1x16xf32>
    %287 = arith.mulf %44, %286 : vector<1x1x16xf32>
    %288 = vector.broadcast %287 : vector<1x1x16xf32> to vector<2x8x16xf32>
    %289 = arith.mulf %215, %288 : vector<2x8x16xf32>
    "tpu.trace_start"() <{level = 10 : i32, message = "bqd,bkd->bqk"}> : () -> ()
    %cst_113 = arith.constant dense<0.000000e+00> : vector<2x8x8xf32>
    %290 = tpu.matmul %289, %221, %cst_113 {dimension_numbers = #tpu.dot_dimension_numbers<[2], [2], [1], [1], [0, 0, 0, 1, 1, 1], [0], [0]>} : vector<2x8x16xf32>, vector<2x8x16xf32>, vector<2x8x8xf32> -> vector<2x8x8xf32>
    "tpu.trace_stop"() : () -> ()
    %cst_114 = arith.constant dense<0xFF800000> : vector<2x8xf32>
    %291 = vector.multi_reduction <maximumf>, %290, %cst_114 [2] : vector<2x8x8xf32> to vector<2x8xf32>
    %292 = vector.shape_cast %291 : vector<2x8xf32> to vector<2x8x1xf32>
    %293 = vector.broadcast %292 : vector<2x8x1xf32> to vector<2x8x8xf32>
    %294 = arith.subf %290, %293 : vector<2x8x8xf32>
    %295 = math.exp %294 : vector<2x8x8xf32>
    %cst_115 = arith.constant dense<0.000000e+00> : vector<2x8xf32>
    %296 = vector.multi_reduction <add>, %295, %cst_115 [2] : vector<2x8x8xf32> to vector<2x8xf32>
    %297 = vector.shape_cast %296 : vector<2x8xf32> to vector<2x8x1xf32>
    %298 = tpu.reciprocal %297 {approx = true} : vector<2x8x1xf32> -> vector<2x8x1xf32>
    %299 = vector.broadcast %298 : vector<2x8x1xf32> to vector<2x8x8xf32>
    %300 = arith.mulf %295, %299 : vector<2x8x8xf32>
    %301 = vector.broadcast %44 : vector<1x1x16xf32> to vector<2x8x16xf32>
    %302 = arith.mulf %227, %301 : vector<2x8x16xf32>
    "tpu.trace_start"() <{level = 10 : i32, message = "bqk,bkd->bqd"}> : () -> ()
    %cst_116 = arith.constant dense<0.000000e+00> : vector<2x8x16xf32>
    %303 = tpu.matmul %300, %302, %cst_116 {dimension_numbers = #tpu.dot_dimension_numbers<[2], [1], [1], [2], [0, 0, 0, 1, 1, 2], [0], [0]>} : vector<2x8x8xf32>, vector<2x8x16xf32>, vector<2x8x16xf32> -> vector<2x8x16xf32>
    "tpu.trace_stop"() : () -> ()
    %304 = arith.addf %285, %303 : vector<2x8x16xf32>
    %305 = vector.shape_cast %304 : vector<2x8x16xf32> to vector<16x16xf32>
    %c0_117 = arith.constant 0 : index
    %c0_118 = arith.constant 0 : index
    %306 = vector.load %arg26[%c0_117, %c0_118] : memref<16x16xf32, #tpu.memory_space<vmem>>, vector<16x16xf32>
    %cst_119 = arith.constant dense<0.000000e+00> : vector<16x16xf32>
    %307 = tpu.matmul %305, %306, %cst_119 {dimension_numbers = #tpu.dot_dimension_numbers<[1], [0], [0], [1], [0, 0, 1, 1], [], []>} : vector<16x16xf32>, vector<16x16xf32>, vector<16x16xf32> -> vector<16x16xf32>
    %c0_120 = arith.constant 0 : index
    %c0_121 = arith.constant 0 : index
    %308 = vector.load %arg27[%c0_120, %c0_121] : memref<1x16xf32, #tpu.memory_space<vmem>>, vector<1x16xf32>
    %309 = vector.broadcast %308 : vector<1x16xf32> to vector<16x16xf32>
    %310 = arith.addf %307, %309 : vector<16x16xf32>
    %311 = arith.addf %209, %310 : vector<16x16xf32>
    %c0_122 = arith.constant 0 : index
    %c0_123 = arith.constant 0 : index
    %312 = vector.load %arg28[%c0_122, %c0_123] : memref<1x16xf32, #tpu.memory_space<vmem>>, vector<1x16xf32>
    %c0_124 = arith.constant 0 : index
    %c0_125 = arith.constant 0 : index
    %313 = vector.load %arg29[%c0_124, %c0_125] : memref<1x16xf32, #tpu.memory_space<vmem>>, vector<1x16xf32>
    %cst_126 = arith.constant dense<0.000000e+00> : vector<16xf32>
    %314 = vector.multi_reduction <add>, %311, %cst_126 [1] : vector<16x16xf32> to vector<16xf32>
    %315 = vector.shape_cast %314 : vector<16xf32> to vector<16x1xf32>
    %cst_127 = arith.constant 1.600000e+01 : f32
    %316 = vector.broadcast %cst_127 : f32 to vector<16x1xf32>
    %317 = arith.divf %315, %316 : vector<16x1xf32>
    %318 = vector.broadcast %317 : vector<16x1xf32> to vector<16x16xf32>
    %319 = arith.subf %311, %318 : vector<16x16xf32>
    %320 = arith.mulf %319, %319 : vector<16x16xf32>
    %cst_128 = arith.constant dense<0.000000e+00> : vector<16xf32>
    %321 = vector.multi_reduction <add>, %320, %cst_128 [1] : vector<16x16xf32> to vector<16xf32>
    %322 = vector.shape_cast %321 : vector<16xf32> to vector<16x1xf32>
    %cst_129 = arith.constant 1.600000e+01 : f32
    %323 = vector.broadcast %cst_129 : f32 to vector<16x1xf32>
    %324 = arith.divf %322, %323 : vector<16x1xf32>
    %325 = vector.broadcast %317 : vector<16x1xf32> to vector<16x16xf32>
    %326 = arith.subf %311, %325 : vector<16x16xf32>
    %cst_130 = arith.constant 9.99999974E-6 : f32
    %327 = vector.broadcast %cst_130 : f32 to vector<16x1xf32>
    %328 = arith.addf %324, %327 : vector<16x1xf32>
    %329 = math.rsqrt %328 : vector<16x1xf32>
    %330 = vector.broadcast %329 : vector<16x1xf32> to vector<16x16xf32>
    %331 = arith.mulf %326, %330 : vector<16x16xf32>
    %332 = vector.broadcast %312 : vector<1x16xf32> to vector<16x16xf32>
    %333 = arith.mulf %331, %332 : vector<16x16xf32>
    %334 = vector.broadcast %313 : vector<1x16xf32> to vector<16x16xf32>
    %335 = arith.addf %333, %334 : vector<16x16xf32>
    %336 = arith.truncf %335 : vector<16x16xf32> to vector<16x16xbf16>
    %c0_131 = arith.constant 0 : index
    %c0_132 = arith.constant 0 : index
    %337 = vector.load %arg30[%c0_131, %c0_132] : memref<16x2048xbf16, #tpu.memory_space<vmem>>, vector<16x2048xbf16>
    %cst_133 = arith.constant dense<0.000000e+00> : vector<16x2048xf32>
    %338 = tpu.matmul %336, %337, %cst_133 {dimension_numbers = #tpu.dot_dimension_numbers<[1], [0], [0], [1], [0, 0, 1, 1], [], []>} : vector<16x16xbf16>, vector<16x2048xbf16>, vector<16x2048xf32> -> vector<16x2048xf32>
    %c0_134 = arith.constant 0 : index
    %c0_135 = arith.constant 0 : index
    %339 = vector.load %arg31[%c0_134, %c0_135] : memref<1x2048xf32, #tpu.memory_space<vmem>>, vector<1x2048xf32>
    %340 = vector.broadcast %339 : vector<1x2048xf32> to vector<16x2048xf32>
    %341 = arith.addf %338, %340 : vector<16x2048xf32>
    %cst_136 = arith.constant 0.000000e+00 : f32
    %342 = vector.broadcast %cst_136 : f32 to vector<16x2048xf32>
    %343 = arith.maximumf %341, %342 : vector<16x2048xf32>
    %344 = arith.truncf %343 : vector<16x2048xf32> to vector<16x2048xbf16>
    %c0_137 = arith.constant 0 : index
    %c0_138 = arith.constant 0 : index
    %345 = vector.load %arg32[%c0_137, %c0_138] : memref<2048x16xbf16, #tpu.memory_space<vmem>>, vector<2048x16xbf16>
    %cst_139 = arith.constant dense<0.000000e+00> : vector<16x16xf32>
    %346 = tpu.matmul %344, %345, %cst_139 {dimension_numbers = #tpu.dot_dimension_numbers<[1], [0], [0], [1], [0, 0, 1, 1], [], []>} : vector<16x2048xbf16>, vector<2048x16xbf16>, vector<16x16xf32> -> vector<16x16xf32>
    %c0_140 = arith.constant 0 : index
    %c0_141 = arith.constant 0 : index
    %347 = vector.load %arg33[%c0_140, %c0_141] : memref<1x16xf32, #tpu.memory_space<vmem>>, vector<1x16xf32>
    %348 = vector.broadcast %347 : vector<1x16xf32> to vector<16x16xf32>
    %349 = arith.addf %346, %348 : vector<16x16xf32>
    %350 = arith.addf %335, %349 : vector<16x16xf32>
    %c0_142 = arith.constant 0 : index
    %c0_143 = arith.constant 0 : index
    %351 = vector.load %arg34[%c0_142, %c0_143] : memref<1x16xf32, #tpu.memory_space<vmem>>, vector<1x16xf32>
    %c0_144 = arith.constant 0 : index
    %c0_145 = arith.constant 0 : index
    %352 = vector.load %arg35[%c0_144, %c0_145] : memref<1x16xf32, #tpu.memory_space<vmem>>, vector<1x16xf32>
    %cst_146 = arith.constant dense<0.000000e+00> : vector<16xf32>
    %353 = vector.multi_reduction <add>, %350, %cst_146 [1] : vector<16x16xf32> to vector<16xf32>
    %354 = vector.shape_cast %353 : vector<16xf32> to vector<16x1xf32>
    %cst_147 = arith.constant 1.600000e+01 : f32
    %355 = vector.broadcast %cst_147 : f32 to vector<16x1xf32>
    %356 = arith.divf %354, %355 : vector<16x1xf32>
    %357 = vector.broadcast %356 : vector<16x1xf32> to vector<16x16xf32>
    %358 = arith.subf %350, %357 : vector<16x16xf32>
    %359 = arith.mulf %358, %358 : vector<16x16xf32>
    %cst_148 = arith.constant dense<0.000000e+00> : vector<16xf32>
    %360 = vector.multi_reduction <add>, %359, %cst_148 [1] : vector<16x16xf32> to vector<16xf32>
    %361 = vector.shape_cast %360 : vector<16xf32> to vector<16x1xf32>
    %cst_149 = arith.constant 1.600000e+01 : f32
    %362 = vector.broadcast %cst_149 : f32 to vector<16x1xf32>
    %363 = arith.divf %361, %362 : vector<16x1xf32>
    %364 = vector.broadcast %356 : vector<16x1xf32> to vector<16x16xf32>
    %365 = arith.subf %350, %364 : vector<16x16xf32>
    %cst_150 = arith.constant 9.99999974E-6 : f32
    %366 = vector.broadcast %cst_150 : f32 to vector<16x1xf32>
    %367 = arith.addf %363, %366 : vector<16x1xf32>
    %368 = math.rsqrt %367 : vector<16x1xf32>
    %369 = vector.broadcast %368 : vector<16x1xf32> to vector<16x16xf32>
    %370 = arith.mulf %365, %369 : vector<16x16xf32>
    %371 = vector.broadcast %351 : vector<1x16xf32> to vector<16x16xf32>
    %372 = arith.mulf %370, %371 : vector<16x16xf32>
    %373 = vector.broadcast %352 : vector<1x16xf32> to vector<16x16xf32>
    %374 = arith.addf %372, %373 : vector<16x16xf32>
    %375 = tpu.iota {dimensions = array<i32: 0>} : vector<2x16xi32>
    %376 = tpu.iota {dimensions = array<i32: 1>} : vector<2x16xi32>
    %c8_i32_151 = arith.constant 8 : i32
    %377 = vector.broadcast %c8_i32_151 : i32 to vector<2x16xi32>
    %378 = arith.muli %375, %377 : vector<2x16xi32>
    %379 = arith.cmpi sge, %376, %378 : vector<2x16xi32>
    %c1_i32 = arith.constant 1 : i32
    %380 = vector.broadcast %c1_i32 : i32 to vector<2x16xi32>
    %381 = arith.addi %375, %380 : vector<2x16xi32>
    %c8_i32_152 = arith.constant 8 : i32
    %382 = vector.broadcast %c8_i32_152 : i32 to vector<2x16xi32>
    %383 = arith.muli %381, %382 : vector<2x16xi32>
    %384 = arith.cmpi slt, %376, %383 : vector<2x16xi32>
    %385 = arith.andi %379, %384 : vector<2x16xi1>
    %386 = arith.extui %385 : vector<2x16xi1> to vector<2x16xi32>
    %387 = arith.sitofp %386 : vector<2x16xi32> to vector<2x16xf32>
    %cst_153 = arith.constant 1.250000e-01 : f32
    %388 = vector.broadcast %cst_153 : f32 to vector<2x16xf32>
    %389 = arith.mulf %387, %388 : vector<2x16xf32>
    %cst_154 = arith.constant dense<0.000000e+00> : vector<2x16xf32>
    %390 = tpu.matmul %389, %374, %cst_154 {dimension_numbers = #tpu.dot_dimension_numbers<[1], [0], [0], [1], [0, 0, 1, 1], [], []>} : vector<2x16xf32>, vector<16x16xf32>, vector<2x16xf32> -> vector<2x16xf32>
    %391 = arith.mulf %390, %15 : vector<2x16xf32>
    %c0_155 = arith.constant 0 : index
    %c0_156 = arith.constant 0 : index
    %392 = vector.load %arg36[%c0_155, %c0_156] : memref<16x32xf32, #tpu.memory_space<vmem>>, vector<16x32xf32>
    %cst_157 = arith.constant dense<0.000000e+00> : vector<2x32xf32>
    %393 = tpu.matmul %391, %392, %cst_157 {dimension_numbers = #tpu.dot_dimension_numbers<[1], [0], [0], [1], [0, 0, 1, 1], [], []>} : vector<2x16xf32>, vector<16x32xf32>, vector<2x32xf32> -> vector<2x32xf32>
    %c0_158 = arith.constant 0 : index
    %c0_159 = arith.constant 0 : index
    %394 = vector.load %arg37[%c0_158, %c0_159] : memref<1x32xf32, #tpu.memory_space<vmem>>, vector<1x32xf32>
    %395 = vector.broadcast %394 : vector<1x32xf32> to vector<2x32xf32>
    %396 = arith.addf %393, %395 : vector<2x32xf32>
    %cst_160 = arith.constant 0.000000e+00 : f32
    %397 = vector.broadcast %cst_160 : f32 to vector<2x32xf32>
    %398 = arith.maximumf %396, %397 : vector<2x32xf32>
    %c0_161 = arith.constant 0 : index
    %c0_162 = arith.constant 0 : index
    %399 = vector.load %arg38[%c0_161, %c0_162] : memref<32x16xf32, #tpu.memory_space<vmem>>, vector<32x16xf32>
    %cst_163 = arith.constant dense<0.000000e+00> : vector<2x16xf32>
    %400 = tpu.matmul %398, %399, %cst_163 {dimension_numbers = #tpu.dot_dimension_numbers<[1], [0], [0], [1], [0, 0, 1, 1], [], []>} : vector<2x32xf32>, vector<32x16xf32>, vector<2x16xf32> -> vector<2x16xf32>
    %c0_164 = arith.constant 0 : index
    %c0_165 = arith.constant 0 : index
    %401 = vector.load %arg39[%c0_164, %c0_165] : memref<1x16xf32, #tpu.memory_space<vmem>>, vector<1x16xf32>
    %402 = vector.broadcast %401 : vector<1x16xf32> to vector<2x16xf32>
    %403 = arith.addf %400, %402 : vector<2x16xf32>
    %cst_166 = arith.constant 0.000000e+00 : f32
    %404 = vector.broadcast %cst_166 : f32 to vector<2x16xf32>
    %405 = arith.maximumf %403, %404 : vector<2x16xf32>
    %c0_167 = arith.constant 0 : index
    %c0_168 = arith.constant 0 : index
    %406 = vector.load %arg40[%c0_167, %c0_168] : memref<16x128xf32, #tpu.memory_space<vmem>>, vector<16x128xf32>
    %cst_169 = arith.constant dense<0.000000e+00> : vector<2x128xf32>
    %407 = tpu.matmul %405, %406, %cst_169 {dimension_numbers = #tpu.dot_dimension_numbers<[1], [0], [0], [1], [0, 0, 1, 1], [], []>} : vector<2x16xf32>, vector<16x128xf32>, vector<2x128xf32> -> vector<2x128xf32>
    %c0_170 = arith.constant 0 : index
    %c0_171 = arith.constant 0 : index
    %408 = vector.load %arg41[%c0_170, %c0_171] : memref<1x128xf32, #tpu.memory_space<vmem>>, vector<1x128xf32>
    %409 = vector.broadcast %408 : vector<1x128xf32> to vector<2x128xf32>
    %410 = arith.addf %407, %409 : vector<2x128xf32>
    %c0_172 = arith.constant 0 : index
    %c0_173 = arith.constant 0 : index
    %411 = vector.load %arg42[%c0_172, %c0_173] : memref<2x128xf32, #tpu.memory_space<vmem>>, vector<2x128xf32>
    tpu.vector_store %arg42[%c0_172, %c0_173], %410 {strides = array<i32>} : memref<2x128xf32, #tpu.memory_space<vmem>>, vector<2x128xf32>,
    return
  }
}

</mosaic_0001>

<llo_original>
// kernel: forward.1
$region0: #{forward.1}
  #allocation0 [shape = 'u32[]', space=smem, size = 0x4, offset = 0x4, fixed_abs, tag = 'smem constant byte address 0x4 - core index']
  #allocation1 [shape = 'u32[144,128]{1,0:T(1,128)}', space=vmem, size = 0x12000, scoped, tag = 'internal scratch']
  %s0 = inlined_call_operand.smem [shape: u32[43], index: -1, kind: input, shape index: {}]
  %s1 = sld [smem:[%s0]]
  %s2 = scalar_lea.smem %s0, 1
  %s3 = sld [smem:[%s2]]
  %s4 = scalar_lea.smem %s0, 2
  %s5 = sld [smem:[%s4]]
  %s6 = scalar_lea.smem %s0, 3
  %s7 = sld [smem:[%s6]]
  %s8 = scalar_lea.smem %s0, 4
  %s9 = sld [smem:[%s8]]
  %s10 = scalar_lea.smem %s0, 5
  %s11 = sld [smem:[%s10]]
  %s12 = scalar_lea.smem %s0, 6
  %s13 = sld [smem:[%s12]]
  %s14 = scalar_lea.smem %s0, 7
  %s15 = sld [smem:[%s14]]
  %s16 = scalar_lea.smem %s0, 8
  %s17 = sld [smem:[%s16]]
  %s18 = scalar_lea.smem %s0, 9
  %s19 = sld [smem:[%s18]]
  %s20 = scalar_lea.smem %s0, 10
  %s21 = sld [smem:[%s20]]
  %s22 = scalar_lea.smem %s0, 11
  %s23 = sld [smem:[%s22]]
  %s24 = scalar_lea.smem %s0, 12
  %s25 = sld [smem:[%s24]]
  %s26 = scalar_lea.smem %s0, 13
  %s27 = sld [smem:[%s26]]
  %s28 = scalar_lea.smem %s0, 14
  %s29 = sld [smem:[%s28]]
  %s30 = scalar_lea.smem %s0, 15
  %s31 = sld [smem:[%s30]]
  %s32 = scalar_lea.smem %s0, 16
  %s33 = sld [smem:[%s32]]
  %s34 = scalar_lea.smem %s0, 17
  %s35 = sld [smem:[%s34]]
  %s36 = scalar_lea.smem %s0, 18
  %s37 = sld [smem:[%s36]]
  %s38 = scalar_lea.smem %s0, 19
  %s39 = sld [smem:[%s38]]
  %s40 = scalar_lea.smem %s0, 20
  %s41 = sld [smem:[%s40]]
  %s42 = scalar_lea.smem %s0, 21
  %s43 = sld [smem:[%s42]]
  %s44 = scalar_lea.smem %s0, 22
  %s45 = sld [smem:[%s44]]
  %s46 = scalar_lea.smem %s0, 23
  %s47 = sld [smem:[%s46]]
  %s48 = scalar_lea.smem %s0, 24
  %s49 = sld [smem:[%s48]]
  %s50 = scalar_lea.smem %s0, 25
  %s51 = sld [smem:[%s50]]
  %s52 = scalar_lea.smem %s0, 26
  %s53 = sld [smem:[%s52]]
  %s54 = scalar_lea.smem %s0, 27
  %s55 = sld [smem:[%s54]]
  %s56 = scalar_lea.smem %s0, 28
  %s57 = sld [smem:[%s56]]
  %s58 = scalar_lea.smem %s0, 29
  %s59 = sld [smem:[%s58]]
  %s60 = scalar_lea.smem %s0, 30
  %s61 = sld [smem:[%s60]]
  %s62 = scalar_lea.smem %s0, 31
  %s63 = sld [smem:[%s62]]
  %s64 = scalar_lea.smem %s0, 32
  %s65 = sld [smem:[%s64]]
  %s66 = scalar_lea.smem %s0, 33
  %s67 = sld [smem:[%s66]]
  %s68 = scalar_lea.smem %s0, 34
  %s69 = sld [smem:[%s68]]
  %s70 = scalar_lea.smem %s0, 35
  %s71 = sld [smem:[%s70]]
  %s72 = scalar_lea.smem %s0, 36
  %s73 = sld [smem:[%s72]]
  %s74 = scalar_lea.smem %s0, 37
  %s75 = sld [smem:[%s74]]
  %s76 = scalar_lea.smem %s0, 38
  %s77 = sld [smem:[%s76]]
  %s78 = scalar_lea.smem %s0, 39
  %s79 = sld [smem:[%s78]]
  %s80 = scalar_lea.smem %s0, 40
  %s81 = sld [smem:[%s80]]
  %s82 = scalar_lea.smem %s0, 41
  %s83 = sld [smem:[%s82]]
  %s84 = scalar_lea.smem %s0, 42
  %s85 = sld [smem:[%s84]]
  %s86 = sld [smem:[#allocation0]]
  $region178: #{forward.1} parent=0
    _
  %s88 = ssub.s32 1, %s86
  %s89 = scalar_select 0, %s88, %s86
  // Predicated region
  $region2: #{forward.1} parent=0 // pred_check
    _
  $region3: #{forward.1} parent=0 // pred_check_branch
    %91 = sbr.rel (0) target = $region5
  $region4: #{forward.1} parent=0 // pred_region
    _
  $region5: #{forward.1} parent=0 // pred_fallthru
    _
  // Predicated region
  $region6: #{forward.1} parent=0 // pred_check
    _
  $region7: #{forward.1} parent=0 // pred_check_branch
    %93 = sbr.rel (0) target = $region9
  $region8: #{forward.1} parent=0 // pred_region
    _
  $region9: #{forward.1} parent=0 // pred_fallthru
    _
  // Predicated region
  $region10: #{forward.1} parent=0 // pred_check
    _
  $region11: #{forward.1} parent=0 // pred_check_branch
    %95 = sbr.rel (0) target = $region13
  $region12: #{forward.1} parent=0 // pred_region
    _
  $region13: #{forward.1} parent=0 // pred_fallthru
    _
  // Predicated region
  $region14: #{forward.1} parent=0 // pred_check
    _
  $region15: #{forward.1} parent=0 // pred_check_branch
    %97 = sbr.rel (0) target = $region17
  $region16: #{forward.1} parent=0 // pred_region
    _
  $region17: #{forward.1} parent=0 // pred_fallthru
    _
  // Predicated region
  $region18: #{forward.1} parent=0 // pred_check
    _
  $region19: #{forward.1} parent=0 // pred_check_branch
    %99 = sbr.rel (0) target = $region21
  $region20: #{forward.1} parent=0 // pred_region
    _
  $region21: #{forward.1} parent=0 // pred_fallthru
    _
  // Predicated region
  $region22: #{forward.1} parent=0 // pred_check
    _
  $region23: #{forward.1} parent=0 // pred_check_branch
    %101 = sbr.rel (0) target = $region25
  $region24: #{forward.1} parent=0 // pred_region
    _
  $region25: #{forward.1} parent=0 // pred_fallthru
    _
  // Predicated region
  $region26: #{forward.1} parent=0 // pred_check
    _
  $region27: #{forward.1} parent=0 // pred_check_branch
    %103 = sbr.rel (0) target = $region29
  $region28: #{forward.1} parent=0 // pred_region
    _
  $region29: #{forward.1} parent=0 // pred_fallthru
    _
  // Predicated region
  $region30: #{forward.1} parent=0 // pred_check
    _
  $region31: #{forward.1} parent=0 // pred_check_branch
    %105 = sbr.rel (0) target = $region33
  $region32: #{forward.1} parent=0 // pred_region
    _
  $region33: #{forward.1} parent=0 // pred_fallthru
    _
  // Predicated region
  $region34: #{forward.1} parent=0 // pred_check
    _
  $region35: #{forward.1} parent=0 // pred_check_branch
    %107 = sbr.rel (0) target = $region37
  $region36: #{forward.1} parent=0 // pred_region
    _
  $region37: #{forward.1} parent=0 // pred_fallthru
    _
  // Predicated region
  $region38: #{forward.1} parent=0 // pred_check
    _
  $region39: #{forward.1} parent=0 // pred_check_branch
    %109 = sbr.rel (0) target = $region41
  $region40: #{forward.1} parent=0 // pred_region
    _
  $region41: #{forward.1} parent=0 // pred_fallthru
    _
  // Predicated region
  $region42: #{forward.1} parent=0 // pred_check
    _
  $region43: #{forward.1} parent=0 // pred_check_branch
    %111 = sbr.rel (0) target = $region45
  $region44: #{forward.1} parent=0 // pred_region
    _
  $region45: #{forward.1} parent=0 // pred_fallthru
    _
  // Predicated region
  $region46: #{forward.1} parent=0 // pred_check
    _
  $region47: #{forward.1} parent=0 // pred_check_branch
    %113 = sbr.rel (0) target = $region49
  $region48: #{forward.1} parent=0 // pred_region
    _
  $region49: #{forward.1} parent=0 // pred_fallthru
    _
  // Predicated region
  $region50: #{forward.1} parent=0 // pred_check
    _
  $region51: #{forward.1} parent=0 // pred_check_branch
    %115 = sbr.rel (0) target = $region53
  $region52: #{forward.1} parent=0 // pred_region
    _
  $region53: #{forward.1} parent=0 // pred_fallthru
    _
  // Predicated region
  $region54: #{forward.1} parent=0 // pred_check
    _
  $region55: #{forward.1} parent=0 // pred_check_branch
    %117 = sbr.rel (0) target = $region57
  $region56: #{forward.1} parent=0 // pred_region
    _
  $region57: #{forward.1} parent=0 // pred_fallthru
    _
  // Predicated region
  $region58: #{forward.1} parent=0 // pred_check
    _
  $region59: #{forward.1} parent=0 // pred_check_branch
    %119 = sbr.rel (0) target = $region61
  $region60: #{forward.1} parent=0 // pred_region
    _
  $region61: #{forward.1} parent=0 // pred_fallthru
    _
  // Predicated region
  $region62: #{forward.1} parent=0 // pred_check
    _
  $region63: #{forward.1} parent=0 // pred_check_branch
    %121 = sbr.rel (0) target = $region65
  $region64: #{forward.1} parent=0 // pred_region
    _
  $region65: #{forward.1} parent=0 // pred_fallthru
    _
  // Predicated region
  $region66: #{forward.1} parent=0 // pred_check
    _
  $region67: #{forward.1} parent=0 // pred_check_branch
    %123 = sbr.rel (0) target = $region69
  $region68: #{forward.1} parent=0 // pred_region
    _
  $region69: #{forward.1} parent=0 // pred_fallthru
    _
  // Predicated region
  $region70: #{forward.1} parent=0 // pred_check
    _
  $region71: #{forward.1} parent=0 // pred_check_branch
    %125 = sbr.rel (0) target = $region73
  $region72: #{forward.1} parent=0 // pred_region
    _
  $region73: #{forward.1} parent=0 // pred_fallthru
    _
  // Predicated region
  $region74: #{forward.1} parent=0 // pred_check
    _
  $region75: #{forward.1} parent=0 // pred_check_branch
    %127 = sbr.rel (0) target = $region77
  $region76: #{forward.1} parent=0 // pred_region
    _
  $region77: #{forward.1} parent=0 // pred_fallthru
    _
  // Predicated region
  $region78: #{forward.1} parent=0 // pred_check
    _
  $region79: #{forward.1} parent=0 // pred_check_branch
    %129 = sbr.rel (0) target = $region81
  $region80: #{forward.1} parent=0 // pred_region
    _
  $region81: #{forward.1} parent=0 // pred_fallthru
    _
  // Predicated region
  $region82: #{forward.1} parent=0 // pred_check
    _
  $region83: #{forward.1} parent=0 // pred_check_branch
    %131 = sbr.rel (0) target = $region85
  $region84: #{forward.1} parent=0 // pred_region
    _
  $region85: #{forward.1} parent=0 // pred_fallthru
    _
  // Predicated region
  $region86: #{forward.1} parent=0 // pred_check
    _
  $region87: #{forward.1} parent=0 // pred_check_branch
    %133 = sbr.rel (0) target = $region89
  $region88: #{forward.1} parent=0 // pred_region
    _
  $region89: #{forward.1} parent=0 // pred_fallthru
    _
  // Predicated region
  $region90: #{forward.1} parent=0 // pred_check
    _
  $region91: #{forward.1} parent=0 // pred_check_branch
    %135 = sbr.rel (0) target = $region93
  $region92: #{forward.1} parent=0 // pred_region
    _
  $region93: #{forward.1} parent=0 // pred_fallthru
    _
  // Predicated region
  $region94: #{forward.1} parent=0 // pred_check
    _
  $region95: #{forward.1} parent=0 // pred_check_branch
    %137 = sbr.rel (0) target = $region97
  $region96: #{forward.1} parent=0 // pred_region
    _
  $region97: #{forward.1} parent=0 // pred_fallthru
    _
  // Predicated region
  $region98: #{forward.1} parent=0 // pred_check
    _
  $region99: #{forward.1} parent=0 // pred_check_branch
    %139 = sbr.rel (0) target = $region101
  $region100: #{forward.1} parent=0 // pred_region
    _
  $region101: #{forward.1} parent=0 // pred_fallthru
    _
  // Predicated region
  $region102: #{forward.1} parent=0 // pred_check
    _
  $region103: #{forward.1} parent=0 // pred_check_branch
    %141 = sbr.rel (0) target = $region105
  $region104: #{forward.1} parent=0 // pred_region
    _
  $region105: #{forward.1} parent=0 // pred_fallthru
    _
  // Predicated region
  $region106: #{forward.1} parent=0 // pred_check
    _
  $region107: #{forward.1} parent=0 // pred_check_branch
    %143 = sbr.rel (0) target = $region109
  $region108: #{forward.1} parent=0 // pred_region
    _
  $region109: #{forward.1} parent=0 // pred_fallthru
    _
  // Predicated region
  $region110: #{forward.1} parent=0 // pred_check
    _
  $region111: #{forward.1} parent=0 // pred_check_branch
    %145 = sbr.rel (0) target = $region113
  $region112: #{forward.1} parent=0 // pred_region
    _
  $region113: #{forward.1} parent=0 // pred_fallthru
    _
  // Predicated region
  $region114: #{forward.1} parent=0 // pred_check
    _
  $region115: #{forward.1} parent=0 // pred_check_branch
    %147 = sbr.rel (0) target = $region117
  $region116: #{forward.1} parent=0 // pred_region
    _
  $region117: #{forward.1} parent=0 // pred_fallthru
    _
  // Predicated region
  $region118: #{forward.1} parent=0 // pred_check
    _
  $region119: #{forward.1} parent=0 // pred_check_branch
    %149 = sbr.rel (0) target = $region121
  $region120: #{forward.1} parent=0 // pred_region
    _
  $region121: #{forward.1} parent=0 // pred_fallthru
    _
  // Predicated region
  $region122: #{forward.1} parent=0 // pred_check
    _
  $region123: #{forward.1} parent=0 // pred_check_branch
    %151 = sbr.rel (0) target = $region125
  $region124: #{forward.1} parent=0 // pred_region
    _
  $region125: #{forward.1} parent=0 // pred_fallthru
    _
  // Predicated region
  $region126: #{forward.1} parent=0 // pred_check
    _
  $region127: #{forward.1} parent=0 // pred_check_branch
    %153 = sbr.rel (0) target = $region129
  $region128: #{forward.1} parent=0 // pred_region
    _
  $region129: #{forward.1} parent=0 // pred_fallthru
    _
  // Predicated region
  $region130: #{forward.1} parent=0 // pred_check
    _
  $region131: #{forward.1} parent=0 // pred_check_branch
    %155 = sbr.rel (0) target = $region133
  $region132: #{forward.1} parent=0 // pred_region
    _
  $region133: #{forward.1} parent=0 // pred_fallthru
    _
  // Predicated region
  $region134: #{forward.1} parent=0 // pred_check
    _
  $region135: #{forward.1} parent=0 // pred_check_branch
    %157 = sbr.rel (0) target = $region137
  $region136: #{forward.1} parent=0 // pred_region
    _
  $region137: #{forward.1} parent=0 // pred_fallthru
    _
  // Predicated region
  $region138: #{forward.1} parent=0 // pred_check
    _
  $region139: #{forward.1} parent=0 // pred_check_branch
    %159 = sbr.rel (0) target = $region141
  $region140: #{forward.1} parent=0 // pred_region
    _
  $region141: #{forward.1} parent=0 // pred_fallthru
    _
  // Predicated region
  $region142: #{forward.1} parent=0 // pred_check
    _
  $region143: #{forward.1} parent=0 // pred_check_branch
    %161 = sbr.rel (0) target = $region145
  $region144: #{forward.1} parent=0 // pred_region
    _
  $region145: #{forward.1} parent=0 // pred_fallthru
    _
  // Predicated region
  $region146: #{forward.1} parent=0 // pred_check
    _
  $region147: #{forward.1} parent=0 // pred_check_branch
    %163 = sbr.rel (0) target = $region149
  $region148: #{forward.1} parent=0 // pred_region
    _
  $region149: #{forward.1} parent=0 // pred_fallthru
    _
  // Predicated region
  $region150: #{forward.1} parent=0 // pred_check
    _
  $region151: #{forward.1} parent=0 // pred_check_branch
    %165 = sbr.rel (0) target = $region153
  $region152: #{forward.1} parent=0 // pred_region
    _
  $region153: #{forward.1} parent=0 // pred_fallthru
    _
  // Predicated region
  $region154: #{forward.1} parent=0 // pred_check
    _
  $region155: #{forward.1} parent=0 // pred_check_branch
    %167 = sbr.rel (0) target = $region157
  $region156: #{forward.1} parent=0 // pred_region
    _
  $region157: #{forward.1} parent=0 // pred_fallthru
    _
  // Predicated region
  $region158: #{forward.1} parent=0 // pred_check
    _
  $region159: #{forward.1} parent=0 // pred_check_branch
    %169 = sbr.rel (0) target = $region161
  $region160: #{forward.1} parent=0 // pred_region
    _
  $region161: #{forward.1} parent=0 // pred_fallthru
    _
  // Predicated region
  $region162: #{forward.1} parent=0 // pred_check
    _
  $region163: #{forward.1} parent=0 // pred_check_branch
    %171 = sbr.rel (0) target = $region165
  $region164: #{forward.1} parent=0 // pred_region
    _
  $region165: #{forward.1} parent=0 // pred_fallthru
    _
  // Predicated region
  $region166: #{forward.1} parent=0 // pred_check
    _
  $region167: #{forward.1} parent=0 // pred_check_branch
    %173 = sbr.rel (0) target = $region169
  $region168: #{forward.1} parent=0 // pred_region
    _
  $region169: #{forward.1} parent=0 // pred_fallthru
    _
  %v175 = vld [vmem:[%s1] sm:$0xff]
  %v176 = vld [vmem:[%s1 + $0x8] sm:$0xff]
  %v177 = vlaneseq
  %v178 = vand.u32 %v177, 127
  %179 = vset.pattern.permute.xlu0 0
  %180 = vperm.xlu0 %179, %v175
  %v181 = vpop.permute.xlu0 %180
  %182 = vset.pattern.permute.xlu0 0
  %183 = vperm.xlu0 %182, %v176
  %v184 = vpop.permute.xlu0 %183
  %vm185 = vcmp.eq.s32.totalorder %v181, %v178
  %vm186 = vcmp.eq.s32.totalorder %v184, %v178
  %v187 = vsel %vm185, 1, 0
  %v188 = vsel %vm186, 1, 0
  %v189 = vcvt.s32.f32 %v187
  %v190 = vcvt.s32.f32 %v188
  %v191 = vld [vmem:[%s5] sm:$0x7]
  %vm192 = vcmask 23552
  %v194 = vsel %vm192, %v189, 0
  %v197 = vsel %vm192, %v190, 0
  %vm199 = vcmask 1042432
  %v201 = vsel %vm199, %v191, 0
  %203 = vmatprep.subr.mxu0 0.0
  %204 = vmatpush1.msra.mxu0 0.0
  %205 = vmatprep.subr.mxu0 0.0
  %206 = vmatpush1.msra.mxu0 0.0
  %207 = vmatprep.subr.mxu0 0.0
  %208 = vmatpush1.msra.mxu0 0.0
  %209 = vmatprep.subr.mxu0 0.0
  %210 = vmatpush1.msra.mxu0 0.0
  %211 = vmatprep.subr.mxu0 0.0
  %212 = vmatpush1.msra.mxu0 0.0
  %213 = vmatprep.subr.mxu0 0.0
  %214 = vmatpush1.msra.mxu0 0.0
  %215 = vmatprep.subr.mxu0 0.0
  %216 = vmatpush1.msra.mxu0 0.0
  %217 = vmatprep.subr.mxu0 0.0
  %218 = vmatpush1.msra.mxu0 0.0
  %219 = vmatprep.subr.mxu0 0.0
  %220 = vmatpush1.msra.mxu0 0.0
  %221 = vmatprep.subr.mxu0 0.0
  %222 = vmatpush1.msra.mxu0 0.0
  %223 = vmatprep.subr.mxu0 0.0
  %224 = vmatpush1.msra.mxu0 0.0
  %225 = vmatprep.subr.mxu0 0.0
  %226 = vmatpush1.msra.mxu0 0.0
  %227 = vmatprep.subr.mxu0 0.0
  %228 = vmatpush1.msra.mxu0 0.0
  %229 = vmatprep.subr.mxu0 0.0
  %230 = vmatpush1.msra.mxu0 0.0
  %231 = vmatprep.subr.mxu0 0.0
  %232 = vmatpush1.msra.mxu0 0.0
  %233 = vmatprep.subr.mxu0 0.0
  %234 = vmatpush1.msra.mxu0 %v201
  %235 = vmatprep.subr.mxu0 0.0
  %236 = vmatpush2.msra.mxu0 0.0
  %237 = vmatprep.subr.mxu0 0.0
  %238 = vmatpush2.msra.mxu0 0.0
  %239 = vmatprep.subr.mxu0 0.0
  %240 = vmatpush2.msra.mxu0 0.0
  %241 = vmatprep.subr.mxu0 0.0
  %242 = vmatpush2.msra.mxu0 0.0
  %243 = vmatprep.subr.mxu0 0.0
  %244 = vmatpush2.msra.mxu0 0.0
  %245 = vmatprep.subr.mxu0 0.0
  %246 = vmatpush2.msra.mxu0 0.0
  %247 = vmatprep.subr.mxu0 0.0
  %248 = vmatpush2.msra.mxu0 0.0
  %249 = vmatprep.subr.mxu0 0.0
  %250 = vmatpush2.msra.mxu0 0.0
  %251 = vmatprep.subr.mxu0 0.0
  %252 = vmatpush2.msra.mxu0 0.0
  %253 = vmatprep.subr.mxu0 0.0
  %254 = vmatpush2.msra.mxu0 0.0
  %255 = vmatprep.subr.mxu0 0.0
  %256 = vmatpush2.msra.mxu0 0.0
  %257 = vmatprep.subr.mxu0 0.0
  %258 = vmatpush2.msra.mxu0 0.0
  %259 = vmatprep.subr.mxu0 0.0
  %260 = vmatpush2.msra.mxu0 0.0
  %261 = vmatprep.subr.mxu0 0.0
  %262 = vmatpush2.msra.mxu0 0.0
  %263 = vmatprep.subr.mxu0 0.0
  %264 = vmatpush2.msra.mxu0 0.0
  %265 = vmatprep.subr.mxu0 0.0
  %266 = vmatpush2.msra.mxu0 0.0
  %267 = vmatprep.mubr.f32.mxu0 0.0
  %268 = vmatmul.mubr.f32.gmra.mxu0 %v194
  %v269 = vpop.f32.mrf.mxu0
  %v270 = vadd.f32 0.0, %v269
  %v271 = vpop.f32.mrf.mxu0
  %272 = vmatprep.mubr.f32.mxu0 0.0
  %273 = vmatmul.mubr.f32.gmra.mxu0 %v197
  %v274 = vpop.f32.mrf.mxu0
  %v275 = vadd.f32 0.0, %v274
  %v276 = vpop.f32.mrf.mxu0
  %277 = vdwg.mxu0
  %v278 = vld [vmem:[%s3] sm:$0x3]
  %279 = vset.pattern.permute.xlu0 0
  %280 = vperm.xlu0 %279, %v278
  %v281 = vpop.permute.xlu0 %280
  %vm282 = vcmp.eq.s32.totalorder %v281, %v178
  %v283 = vsel %vm282, 1, 0
  %v284 = vcvt.s32.f32 %v283
  %v285 = vld [vmem:[%s7] sm:$0xff]
  %v286 = vld [vmem:[%s7 + $0x8] sm:$0x3]
  %vm287 = vcmask 80896
  %v289 = vsel %vm287, %v284, 0
  %vm291 = vcmask 1041408
  %v293 = vsel %vm291, %v286, 0
  %295 = vmatprep.subr.mxu0 0.0
  %296 = vmatpush1.msra.mxu0 0.0
  %297 = vmatprep.subr.mxu0 0.0
  %298 = vmatpush1.msra.mxu0 0.0
  %299 = vmatprep.subr.mxu0 0.0
  %300 = vmatpush1.msra.mxu0 0.0
  %301 = vmatprep.subr.mxu0 0.0
  %302 = vmatpush1.msra.mxu0 0.0
  %303 = vmatprep.subr.mxu0 0.0
  %304 = vmatpush1.msra.mxu0 0.0
  %305 = vmatprep.subr.mxu0 0.0
  %306 = vmatpush1.msra.mxu0 0.0
  %307 = vmatprep.subr.mxu0 0.0
  %308 = vmatpush1.msra.mxu0 0.0
  %309 = vmatprep.subr.mxu0 0.0
  %310 = vmatpush1.msra.mxu0 0.0
  %311 = vmatprep.subr.mxu0 0.0
  %312 = vmatpush1.msra.mxu0 0.0
  %313 = vmatprep.subr.mxu0 0.0
  %314 = vmatpush1.msra.mxu0 0.0
  %315 = vmatprep.subr.mxu0 0.0
  %316 = vmatpush1.msra.mxu0 0.0
  %317 = vmatprep.subr.mxu0 0.0
  %318 = vmatpush1.msra.mxu0 0.0
  %319 = vmatprep.subr.mxu0 0.0
  %320 = vmatpush1.msra.mxu0 0.0
  %321 = vmatprep.subr.mxu0 0.0
  %322 = vmatpush1.msra.mxu0 0.0
  %323 = vmatprep.subr.mxu0 0.0
  %324 = vmatpush1.msra.mxu0 %v293
  %325 = vmatprep.subr.mxu0 0.0
  %326 = vmatpush1.msra.mxu0 %v285
  %327 = vmatprep.subr.mxu0 0.0
  %328 = vmatpush2.msra.mxu0 0.0
  %329 = vmatprep.subr.mxu0 0.0
  %330 = vmatpush2.msra.mxu0 0.0
  %331 = vmatprep.subr.mxu0 0.0
  %332 = vmatpush2.msra.mxu0 0.0
  %333 = vmatprep.subr.mxu0 0.0
  %334 = vmatpush2.msra.mxu0 0.0
  %335 = vmatprep.subr.mxu0 0.0
  %336 = vmatpush2.msra.mxu0 0.0
  %337 = vmatprep.subr.mxu0 0.0
  %338 = vmatpush2.msra.mxu0 0.0
  %339 = vmatprep.subr.mxu0 0.0
  %340 = vmatpush2.msra.mxu0 0.0
  %341 = vmatprep.subr.mxu0 0.0
  %342 = vmatpush2.msra.mxu0 0.0
  %343 = vmatprep.subr.mxu0 0.0
  %344 = vmatpush2.msra.mxu0 0.0
  %345 = vmatprep.subr.mxu0 0.0
  %346 = vmatpush2.msra.mxu0 0.0
  %347 = vmatprep.subr.mxu0 0.0
  %348 = vmatpush2.msra.mxu0 0.0
  %349 = vmatprep.subr.mxu0 0.0
  %350 = vmatpush2.msra.mxu0 0.0
  %351 = vmatprep.subr.mxu0 0.0
  %352 = vmatpush2.msra.mxu0 0.0
  %353 = vmatprep.subr.mxu0 0.0
  %354 = vmatpush2.msra.mxu0 0.0
  %355 = vmatprep.subr.mxu0 0.0
  %356 = vmatpush2.msra.mxu0 0.0
  %357 = vmatprep.subr.mxu0 0.0
  %358 = vmatpush2.msra.mxu0 0.0
  %359 = vmatprep.mubr.f32.mxu0 0.0
  %360 = vmatmul.mubr.f32.gmra.mxu0 %v289
  %v361 = vpop.f32.mrf.mxu0
  %v362 = vadd.f32 0.0, %v361
  %v363 = vpop.f32.mrf.mxu0
  %364 = vdwg.mxu0
  %vm365 = vcmp.ge.s32.totalorder %v178, 0
  %vm366 = vcmp.lt.s32.totalorder %v178, 4
  %vm367 = vmand %vm365, %vm366
  %v368 = vsel %vm367, 1, 0
  %v369 = vcvt.s32.f32 %v368
  %vm370 = vcmp.ge.s32.totalorder %v178, 4
  %vm371 = vcmp.lt.s32.totalorder %v178, 8
  %vm372 = vmand %vm370, %vm371
  %v373 = vsel %vm372, 1, 0
  %v374 = vcvt.s32.f32 %v373
  %vm375 = vcmp.ge.s32.totalorder %v178, 8
  %vm376 = vcmp.lt.s32.totalorder %v178, 12
  %vm377 = vmand %vm375, %vm376
  %v378 = vsel %vm377, 1, 0
  %v379 = vcvt.s32.f32 %v378
  %vm380 = vcmp.ge.s32.totalorder %v178, 12
  %vm381 = vcmp.lt.s32.totalorder %v178, 16
  %vm382 = vmand %vm380, %vm381
  %v383 = vsel %vm382, 1, 0
  %v384 = vcvt.s32.f32 %v383
  %v385 = vld [vmem:[%s9] sm:$0xff]
  %v386 = vld [vmem:[%s9 + $0x8] sm:$0xff]
  %v387 = vld [vmem:[%s11] sm:$0x1]
  %v389 = vlaneseq
  %v390 = vshrl.u32 %v389, 7
  %v391 = vsub.s32 0, %v390
  %v392 = vrot.slane %v387, %v391
  %vm394 = vcmask 130048
  %v396 = vsel %vm394, %v270, 0
  %v399 = vsel %vm394, %v275, 0
  %401 = vmatprep.subr.mxu0 0.0
  %402 = vmatpush1.msra.mxu0 0.0
  %403 = vmatprep.subr.mxu0 0.0
  %404 = vmatpush1.msra.mxu0 0.0
  %405 = vmatprep.subr.mxu0 0.0
  %406 = vmatpush1.msra.mxu0 0.0
  %407 = vmatprep.subr.mxu0 0.0
  %408 = vmatpush1.msra.mxu0 0.0
  %409 = vmatprep.subr.mxu0 0.0
  %410 = vmatpush1.msra.mxu0 0.0
  %411 = vmatprep.subr.mxu0 0.0
  %412 = vmatpush1.msra.mxu0 0.0
  %413 = vmatprep.subr.mxu0 0.0
  %414 = vmatpush1.msra.mxu0 0.0
  %415 = vmatprep.subr.mxu0 0.0
  %416 = vmatpush1.msra.mxu0 0.0
  %417 = vmatprep.subr.mxu0 0.0
  %418 = vmatpush1.msra.mxu0 0.0
  %419 = vmatprep.subr.mxu0 0.0
  %420 = vmatpush1.msra.mxu0 0.0
  %421 = vmatprep.subr.mxu0 0.0
  %422 = vmatpush1.msra.mxu0 0.0
  %423 = vmatprep.subr.mxu0 0.0
  %424 = vmatpush1.msra.mxu0 0.0
  %425 = vmatprep.subr.mxu0 0.0
  %426 = vmatpush1.msra.mxu0 0.0
  %427 = vmatprep.subr.mxu0 0.0
  %428 = vmatpush1.msra.mxu0 0.0
  %429 = vmatprep.subr.mxu0 0.0
  %430 = vmatpush1.msra.mxu0 %v386
  %431 = vmatprep.subr.mxu0 0.0
  %432 = vmatpush1.msra.mxu0 %v385
  %433 = vmatprep.subr.mxu0 0.0
  %434 = vmatpush2.msra.mxu0 0.0
  %435 = vmatprep.subr.mxu0 0.0
  %436 = vmatpush2.msra.mxu0 0.0
  %437 = vmatprep.subr.mxu0 0.0
  %438 = vmatpush2.msra.mxu0 0.0
  %439 = vmatprep.subr.mxu0 0.0
  %440 = vmatpush2.msra.mxu0 0.0
  %441 = vmatprep.subr.mxu0 0.0
  %442 = vmatpush2.msra.mxu0 0.0
  %443 = vmatprep.subr.mxu0 0.0
  %444 = vmatpush2.msra.mxu0 0.0
  %445 = vmatprep.subr.mxu0 0.0
  %446 = vmatpush2.msra.mxu0 0.0
  %447 = vmatprep.subr.mxu0 0.0
  %448 = vmatpush2.msra.mxu0 0.0
  %449 = vmatprep.subr.mxu0 0.0
  %450 = vmatpush2.msra.mxu0 0.0
  %451 = vmatprep.subr.mxu0 0.0
  %452 = vmatpush2.msra.mxu0 0.0
  %453 = vmatprep.subr.mxu0 0.0
  %454 = vmatpush2.msra.mxu0 0.0
  %455 = vmatprep.subr.mxu0 0.0
  %456 = vmatpush2.msra.mxu0 0.0
  %457 = vmatprep.subr.mxu0 0.0
  %458 = vmatpush2.msra.mxu0 0.0
  %459 = vmatprep.subr.mxu0 0.0
  %460 = vmatpush2.msra.mxu0 0.0
  %461 = vmatprep.subr.mxu0 0.0
  %462 = vmatpush2.msra.mxu0 0.0
  %463 = vmatprep.subr.mxu0 0.0
  %464 = vmatpush2.msra.mxu0 0.0
  %465 = vmatprep.mubr.f32.mxu0 0.0
  %466 = vmatmul.mubr.f32.gmra.mxu0 %v396
  %v467 = vpop.f32.mrf.mxu0
  %v468 = vadd.f32 %v392, %v467
  %v469 = vpop.f32.mrf.mxu0
  %470 = vmatprep.mubr.f32.mxu0 0.0
  %471 = vmatmul.mubr.f32.gmra.mxu0 %v399
  %v472 = vpop.f32.mrf.mxu0
  %v473 = vadd.f32 %v392, %v472
  %v474 = vpop.f32.mrf.mxu0
  %475 = vdwg.mxu0
  %v476 = vld [vmem:[%s13] sm:$0xff]
  %v477 = vld [vmem:[%s13 + $0x8] sm:$0xff]
  %v478 = vld [vmem:[%s15] sm:$0x1]
  %v480 = vlaneseq
  %v481 = vshrl.u32 %v480, 7
  %v482 = vsub.s32 0, %v481
  %v483 = vrot.slane %v478, %v482
  %485 = vmatprep.subr.mxu0 0.0
  %486 = vmatpush1.msra.mxu0 0.0
  %487 = vmatprep.subr.mxu0 0.0
  %488 = vmatpush1.msra.mxu0 0.0
  %489 = vmatprep.subr.mxu0 0.0
  %490 = vmatpush1.msra.mxu0 0.0
  %491 = vmatprep.subr.mxu0 0.0
  %492 = vmatpush1.msra.mxu0 0.0
  %493 = vmatprep.subr.mxu0 0.0
  %494 = vmatpush1.msra.mxu0 0.0
  %495 = vmatprep.subr.mxu0 0.0
  %496 = vmatpush1.msra.mxu0 0.0
  %497 = vmatprep.subr.mxu0 0.0
  %498 = vmatpush1.msra.mxu0 0.0
  %499 = vmatprep.subr.mxu0 0.0
  %500 = vmatpush1.msra.mxu0 0.0
  %501 = vmatprep.subr.mxu0 0.0
  %502 = vmatpush1.msra.mxu0 0.0
  %503 = vmatprep.subr.mxu0 0.0
  %504 = vmatpush1.msra.mxu0 0.0
  %505 = vmatprep.subr.mxu0 0.0
  %506 = vmatpush1.msra.mxu0 0.0
  %507 = vmatprep.subr.mxu0 0.0
  %508 = vmatpush1.msra.mxu0 0.0
  %509 = vmatprep.subr.mxu0 0.0
  %510 = vmatpush1.msra.mxu0 0.0
  %511 = vmatprep.subr.mxu0 0.0
  %512 = vmatpush1.msra.mxu0 0.0
  %513 = vmatprep.subr.mxu0 0.0
  %514 = vmatpush1.msra.mxu0 %v477
  %515 = vmatprep.subr.mxu0 0.0
  %516 = vmatpush1.msra.mxu0 %v476
  %517 = vmatprep.subr.mxu0 0.0
  %518 = vmatpush2.msra.mxu0 0.0
  %519 = vmatprep.subr.mxu0 0.0
  %520 = vmatpush2.msra.mxu0 0.0
  %521 = vmatprep.subr.mxu0 0.0
  %522 = vmatpush2.msra.mxu0 0.0
  %523 = vmatprep.subr.mxu0 0.0
  %524 = vmatpush2.msra.mxu0 0.0
  %525 = vmatprep.subr.mxu0 0.0
  %526 = vmatpush2.msra.mxu0 0.0
  %527 = vmatprep.subr.mxu0 0.0
  %528 = vmatpush2.msra.mxu0 0.0
  %529 = vmatprep.subr.mxu0 0.0
  %530 = vmatpush2.msra.mxu0 0.0
  %531 = vmatprep.subr.mxu0 0.0
  %532 = vmatpush2.msra.mxu0 0.0
  %533 = vmatprep.subr.mxu0 0.0
  %534 = vmatpush2.msra.mxu0 0.0
  %535 = vmatprep.subr.mxu0 0.0
  %536 = vmatpush2.msra.mxu0 0.0
  %537 = vmatprep.subr.mxu0 0.0
  %538 = vmatpush2.msra.mxu0 0.0
  %539 = vmatprep.subr.mxu0 0.0
  %540 = vmatpush2.msra.mxu0 0.0
  %541 = vmatprep.subr.mxu0 0.0
  %542 = vmatpush2.msra.mxu0 0.0
  %543 = vmatprep.subr.mxu0 0.0
  %544 = vmatpush2.msra.mxu0 0.0
  %545 = vmatprep.subr.mxu0 0.0
  %546 = vmatpush2.msra.mxu0 0.0
  %547 = vmatprep.subr.mxu0 0.0
  %548 = vmatpush2.msra.mxu0 0.0
  %549 = vmatprep.mubr.f32.mxu0 0.0
  %550 = vmatmul.mubr.f32.gmra.mxu0 %v396
  %v551 = vpop.f32.mrf.mxu0
  %v552 = vadd.f32 %v483, %v551
  %v553 = vpop.f32.mrf.mxu0
  %554 = vmatprep.mubr.f32.mxu0 0.0
  %555 = vmatmul.mubr.f32.gmra.mxu0 %v399
  %v556 = vpop.f32.mrf.mxu0
  %v557 = vadd.f32 %v483, %v556
  %v558 = vpop.f32.mrf.mxu0
  %559 = vdwg.mxu0
  %v560 = vld [vmem:[%s17] sm:$0xff]
  %v561 = vld [vmem:[%s17 + $0x8] sm:$0xff]
  %v562 = vld [vmem:[%s19] sm:$0x1]
  %v564 = vlaneseq
  %v565 = vshrl.u32 %v564, 7
  %v566 = vsub.s32 0, %v565
  %v567 = vrot.slane %v562, %v566
  %569 = vmatprep.subr.mxu0 0.0
  %570 = vmatpush1.msra.mxu0 0.0
  %571 = vmatprep.subr.mxu0 0.0
  %572 = vmatpush1.msra.mxu0 0.0
  %573 = vmatprep.subr.mxu0 0.0
  %574 = vmatpush1.msra.mxu0 0.0
  %575 = vmatprep.subr.mxu0 0.0
  %576 = vmatpush1.msra.mxu0 0.0
  %577 = vmatprep.subr.mxu0 0.0
  %578 = vmatpush1.msra.mxu0 0.0
  %579 = vmatprep.subr.mxu0 0.0
  %580 = vmatpush1.msra.mxu0 0.0
  %581 = vmatprep.subr.mxu0 0.0
  %582 = vmatpush1.msra.mxu0 0.0
  %583 = vmatprep.subr.mxu0 0.0
  %584 = vmatpush1.msra.mxu0 0.0
  %585 = vmatprep.subr.mxu0 0.0
  %586 = vmatpush1.msra.mxu0 0.0
  %587 = vmatprep.subr.mxu0 0.0
  %588 = vmatpush1.msra.mxu0 0.0
  %589 = vmatprep.subr.mxu0 0.0
  %590 = vmatpush1.msra.mxu0 0.0
  %591 = vmatprep.subr.mxu0 0.0
  %592 = vmatpush1.msra.mxu0 0.0
  %593 = vmatprep.subr.mxu0 0.0
  %594 = vmatpush1.msra.mxu0 0.0
  %595 = vmatprep.subr.mxu0 0.0
  %596 = vmatpush1.msra.mxu0 0.0
  %597 = vmatprep.subr.mxu0 0.0
  %598 = vmatpush1.msra.mxu0 %v561
  %599 = vmatprep.subr.mxu0 0.0
  %600 = vmatpush1.msra.mxu0 %v560
  %601 = vmatprep.subr.mxu0 0.0
  %602 = vmatpush2.msra.mxu0 0.0
  %603 = vmatprep.subr.mxu0 0.0
  %604 = vmatpush2.msra.mxu0 0.0
  %605 = vmatprep.subr.mxu0 0.0
  %606 = vmatpush2.msra.mxu0 0.0
  %607 = vmatprep.subr.mxu0 0.0
  %608 = vmatpush2.msra.mxu0 0.0
  %609 = vmatprep.subr.mxu0 0.0
  %610 = vmatpush2.msra.mxu0 0.0
  %611 = vmatprep.subr.mxu0 0.0
  %612 = vmatpush2.msra.mxu0 0.0
  %613 = vmatprep.subr.mxu0 0.0
  %614 = vmatpush2.msra.mxu0 0.0
  %615 = vmatprep.subr.mxu0 0.0
  %616 = vmatpush2.msra.mxu0 0.0
  %617 = vmatprep.subr.mxu0 0.0
  %618 = vmatpush2.msra.mxu0 0.0
  %619 = vmatprep.subr.mxu0 0.0
  %620 = vmatpush2.msra.mxu0 0.0
  %621 = vmatprep.subr.mxu0 0.0
  %622 = vmatpush2.msra.mxu0 0.0
  %623 = vmatprep.subr.mxu0 0.0
  %624 = vmatpush2.msra.mxu0 0.0
  %625 = vmatprep.subr.mxu0 0.0
  %626 = vmatpush2.msra.mxu0 0.0
  %627 = vmatprep.subr.mxu0 0.0
  %628 = vmatpush2.msra.mxu0 0.0
  %629 = vmatprep.subr.mxu0 0.0
  %630 = vmatpush2.msra.mxu0 0.0
  %631 = vmatprep.subr.mxu0 0.0
  %632 = vmatpush2.msra.mxu0 0.0
  %633 = vmatprep.mubr.f32.mxu0 0.0
  %634 = vmatmul.mubr.f32.gmra.mxu0 %v396
  %v635 = vpop.f32.mrf.mxu0
  %v636 = vadd.f32 %v567, %v635
  %v637 = vpop.f32.mrf.mxu0
  %638 = vmatprep.mubr.f32.mxu0 0.0
  %639 = vmatmul.mubr.f32.gmra.mxu0 %v399
  %v640 = vpop.f32.mrf.mxu0
  %v641 = vadd.f32 %v567, %v640
  %v642 = vpop.f32.mrf.mxu0
  %643 = vdwg.mxu0
  %v644 = vmul.f32 %v369, 0.5
  %v645 = vmul.f32 %v468, %v644
  %v646 = vmul.f32 %v473, %v644
  %v648 = vsel %vm394, %v645, 0
  %v651 = vsel %vm394, %v552, 0
  %653 = vmatprep.subr.mxu0 0.0
  %654 = vmatpush1.xpose.msra.mxu0 0.0
  %655 = vmatprep.subr.mxu0 0.0
  %656 = vmatpush1.xpose.msra.mxu0 0.0
  %657 = vmatprep.subr.mxu0 0.0
  %658 = vmatpush1.xpose.msra.mxu0 0.0
  %659 = vmatprep.subr.mxu0 0.0
  %660 = vmatpush1.xpose.msra.mxu0 0.0
  %661 = vmatprep.subr.mxu0 0.0
  %662 = vmatpush1.xpose.msra.mxu0 0.0
  %663 = vmatprep.subr.mxu0 0.0
  %664 = vmatpush1.xpose.msra.mxu0 0.0
  %665 = vmatprep.subr.mxu0 0.0
  %666 = vmatpush1.xpose.msra.mxu0 0.0
  %667 = vmatprep.subr.mxu0 0.0
  %668 = vmatpush1.xpose.msra.mxu0 0.0
  %669 = vmatprep.subr.mxu0 0.0
  %670 = vmatpush1.xpose.msra.mxu0 0.0
  %671 = vmatprep.subr.mxu0 0.0
  %672 = vmatpush1.xpose.msra.mxu0 0.0
  %673 = vmatprep.subr.mxu0 0.0
  %674 = vmatpush1.xpose.msra.mxu0 0.0
  %675 = vmatprep.subr.mxu0 0.0
  %676 = vmatpush1.xpose.msra.mxu0 0.0
  %677 = vmatprep.subr.mxu0 0.0
  %678 = vmatpush1.xpose.msra.mxu0 0.0
  %679 = vmatprep.subr.mxu0 0.0
  %680 = vmatpush1.xpose.msra.mxu0 0.0
  %681 = vmatprep.subr.mxu0 0.0
  %682 = vmatpush1.xpose.msra.mxu0 0.0
  %683 = vmatprep.subr.mxu0 0.0
  %684 = vmatpush1.xpose.msra.mxu0 %v651
  %685 = vmatprep.subr.mxu0 0.0
  %686 = vmatpush2.xpose.msra.mxu0 0.0
  %687 = vmatprep.subr.mxu0 0.0
  %688 = vmatpush2.xpose.msra.mxu0 0.0
  %689 = vmatprep.subr.mxu0 0.0
  %690 = vmatpush2.xpose.msra.mxu0 0.0
  %691 = vmatprep.subr.mxu0 0.0
  %692 = vmatpush2.xpose.msra.mxu0 0.0
  %693 = vmatprep.subr.mxu0 0.0
  %694 = vmatpush2.xpose.msra.mxu0 0.0
  %695 = vmatprep.subr.mxu0 0.0
  %696 = vmatpush2.xpose.msra.mxu0 0.0
  %697 = vmatprep.subr.mxu0 0.0
  %698 = vmatpush2.xpose.msra.mxu0 0.0
  %699 = vmatprep.subr.mxu0 0.0
  %700 = vmatpush2.xpose.msra.mxu0 0.0
  %701 = vmatprep.subr.mxu0 0.0
  %702 = vmatpush2.xpose.msra.mxu0 0.0
  %703 = vmatprep.subr.mxu0 0.0
  %704 = vmatpush2.xpose.msra.mxu0 0.0
  %705 = vmatprep.subr.mxu0 0.0
  %706 = vmatpush2.xpose.msra.mxu0 0.0
  %707 = vmatprep.subr.mxu0 0.0
  %708 = vmatpush2.xpose.msra.mxu0 0.0
  %709 = vmatprep.subr.mxu0 0.0
  %710 = vmatpush2.xpose.msra.mxu0 0.0
  %711 = vmatprep.subr.mxu0 0.0
  %712 = vmatpush2.xpose.msra.mxu0 0.0
  %713 = vmatprep.subr.mxu0 0.0
  %714 = vmatpush2.xpose.msra.mxu0 0.0
  %715 = vmatprep.subr.mxu0 0.0
  %716 = vmatpush2.xpose.msra.mxu0 0.0
  %717 = vmatprep.mubr.f32.mxu0 0.0
  %718 = vmatmul.mubr.f32.gmra.mxu0 %v648
  %v719 = vpop.f32.mrf.mxu0
  %v720 = vadd.f32 0.0, %v719
  %v721 = vpop.f32.mrf.mxu0
  %722 = vdwg.mxu0
  %v724 = vsel %vm394, %v646, 0
  %v727 = vsel %vm394, %v557, 0
  %729 = vmatprep.subr.mxu0 0.0
  %730 = vmatpush1.xpose.msra.mxu0 0.0
  %731 = vmatprep.subr.mxu0 0.0
  %732 = vmatpush1.xpose.msra.mxu0 0.0
  %733 = vmatprep.subr.mxu0 0.0
  %734 = vmatpush1.xpose.msra.mxu0 0.0
  %735 = vmatprep.subr.mxu0 0.0
  %736 = vmatpush1.xpose.msra.mxu0 0.0
  %737 = vmatprep.subr.mxu0 0.0
  %738 = vmatpush1.xpose.msra.mxu0 0.0
  %739 = vmatprep.subr.mxu0 0.0
  %740 = vmatpush1.xpose.msra.mxu0 0.0
  %741 = vmatprep.subr.mxu0 0.0
  %742 = vmatpush1.xpose.msra.mxu0 0.0
  %743 = vmatprep.subr.mxu0 0.0
  %744 = vmatpush1.xpose.msra.mxu0 0.0
  %745 = vmatprep.subr.mxu0 0.0
  %746 = vmatpush1.xpose.msra.mxu0 0.0
  %747 = vmatprep.subr.mxu0 0.0
  %748 = vmatpush1.xpose.msra.mxu0 0.0
  %749 = vmatprep.subr.mxu0 0.0
  %750 = vmatpush1.xpose.msra.mxu0 0.0
  %751 = vmatprep.subr.mxu0 0.0
  %752 = vmatpush1.xpose.msra.mxu0 0.0
  %753 = vmatprep.subr.mxu0 0.0
  %754 = vmatpush1.xpose.msra.mxu0 0.0
  %755 = vmatprep.subr.mxu0 0.0
  %756 = vmatpush1.xpose.msra.mxu0 0.0
  %757 = vmatprep.subr.mxu0 0.0
  %758 = vmatpush1.xpose.msra.mxu0 0.0
  %759 = vmatprep.subr.mxu0 0.0
  %760 = vmatpush1.xpose.msra.mxu0 %v727
  %761 = vmatprep.subr.mxu0 0.0
  %762 = vmatpush2.xpose.msra.mxu0 0.0
  %763 = vmatprep.subr.mxu0 0.0
  %764 = vmatpush2.xpose.msra.mxu0 0.0
  %765 = vmatprep.subr.mxu0 0.0
  %766 = vmatpush2.xpose.msra.mxu0 0.0
  %767 = vmatprep.subr.mxu0 0.0
  %768 = vmatpush2.xpose.msra.mxu0 0.0
  %769 = vmatprep.subr.mxu0 0.0
  %770 = vmatpush2.xpose.msra.mxu0 0.0
  %771 = vmatprep.subr.mxu0 0.0
  %772 = vmatpush2.xpose.msra.mxu0 0.0
  %773 = vmatprep.subr.mxu0 0.0
  %774 = vmatpush2.xpose.msra.mxu0 0.0
  %775 = vmatprep.subr.mxu0 0.0
  %776 = vmatpush2.xpose.msra.mxu0 0.0
  %777 = vmatprep.subr.mxu0 0.0
  %778 = vmatpush2.xpose.msra.mxu0 0.0
  %779 = vmatprep.subr.mxu0 0.0
  %780 = vmatpush2.xpose.msra.mxu0 0.0
  %781 = vmatprep.subr.mxu0 0.0
  %782 = vmatpush2.xpose.msra.mxu0 0.0
  %783 = vmatprep.subr.mxu0 0.0
  %784 = vmatpush2.xpose.msra.mxu0 0.0
  %785 = vmatprep.subr.mxu0 0.0
  %786 = vmatpush2.xpose.msra.mxu0 0.0
  %787 = vmatprep.subr.mxu0 0.0
  %788 = vmatpush2.xpose.msra.mxu0 0.0
  %789 = vmatprep.subr.mxu0 0.0
  %790 = vmatpush2.xpose.msra.mxu0 0.0
  %791 = vmatprep.subr.mxu0 0.0
  %792 = vmatpush2.xpose.msra.mxu0 0.0
  %793 = vmatprep.mubr.f32.mxu0 0.0
  %794 = vmatmul.mubr.f32.gmra.mxu0 %v724
  %v795 = vpop.f32.mrf.mxu0
  %v796 = vadd.f32 0.0, %v795
  %v797 = vpop.f32.mrf.mxu0
  %798 = vdwg.mxu0
  %vm799 = vcmask 64512
  %v800 = vsel %vm799, %v720, -inf
  %801 = vmax.xlane.f32.xlu0 %v800
  %v802 = vpop.xlane.xlu0 %801
  %v803 = vsel %vm799, %v796, -inf
  %804 = vmax.xlane.f32.xlu0 %v803
  %v805 = vpop.xlane.xlu0 %804
  %v806 = vsub.f32 %v720, %v802
  %v807 = vsub.f32 %v796, %v805
  %v808 = vmul.f32 %v806, 1.442695
  %v809 = vpow.pop %v808
  %v810 = vmul.f32 %v807, 1.442695
  %v811 = vpow.pop %v810
  %v812 = vsel %vm799, %v809, 0.0
  %813 = vadd.xlane.f32.xlu0 %v812
  %v814 = vpop.xlane.xlu0 %813
  %v815 = vsel %vm799, %v811, 0.0
  %816 = vadd.xlane.f32.xlu0 %v815
  %v817 = vpop.xlane.xlu0 %816
  %v818 = vrcp.pop %v814
  %v819 = vrcp.pop %v817
  %v820 = vmul.f32 %v809, %v818
  %v821 = vmul.f32 %v811, %v819
  %v822 = vmul.f32 %v636, %v369
  %v823 = vmul.f32 %v641, %v369
  %v824 = vmul.f32 %v374, 0.5
  %v825 = vmul.f32 %v468, %v824
  %v826 = vmul.f32 %v473, %v824
  %v828 = vsel %vm394, %v825, 0
  %830 = vmatprep.subr.mxu0 0.0
  %831 = vmatpush1.xpose.msra.mxu0 0.0
  %832 = vmatprep.subr.mxu0 0.0
  %833 = vmatpush1.xpose.msra.mxu0 0.0
  %834 = vmatprep.subr.mxu0 0.0
  %835 = vmatpush1.xpose.msra.mxu0 0.0
  %836 = vmatprep.subr.mxu0 0.0
  %837 = vmatpush1.xpose.msra.mxu0 0.0
  %838 = vmatprep.subr.mxu0 0.0
  %839 = vmatpush1.xpose.msra.mxu0 0.0
  %840 = vmatprep.subr.mxu0 0.0
  %841 = vmatpush1.xpose.msra.mxu0 0.0
  %842 = vmatprep.subr.mxu0 0.0
  %843 = vmatpush1.xpose.msra.mxu0 0.0
  %844 = vmatprep.subr.mxu0 0.0
  %845 = vmatpush1.xpose.msra.mxu0 0.0
  %846 = vmatprep.subr.mxu0 0.0
  %847 = vmatpush1.xpose.msra.mxu0 0.0
  %848 = vmatprep.subr.mxu0 0.0
  %849 = vmatpush1.xpose.msra.mxu0 0.0
  %850 = vmatprep.subr.mxu0 0.0
  %851 = vmatpush1.xpose.msra.mxu0 0.0
  %852 = vmatprep.subr.mxu0 0.0
  %853 = vmatpush1.xpose.msra.mxu0 0.0
  %854 = vmatprep.subr.mxu0 0.0
  %855 = vmatpush1.xpose.msra.mxu0 0.0
  %856 = vmatprep.subr.mxu0 0.0
  %857 = vmatpush1.xpose.msra.mxu0 0.0
  %858 = vmatprep.subr.mxu0 0.0
  %859 = vmatpush1.xpose.msra.mxu0 0.0
  %860 = vmatprep.subr.mxu0 0.0
  %861 = vmatpush1.xpose.msra.mxu0 %v651
  %862 = vmatprep.subr.mxu0 0.0
  %863 = vmatpush2.xpose.msra.mxu0 0.0
  %864 = vmatprep.subr.mxu0 0.0
  %865 = vmatpush2.xpose.msra.mxu0 0.0
  %866 = vmatprep.subr.mxu0 0.0
  %867 = vmatpush2.xpose.msra.mxu0 0.0
  %868 = vmatprep.subr.mxu0 0.0
  %869 = vmatpush2.xpose.msra.mxu0 0.0
  %870 = vmatprep.subr.mxu0 0.0
  %871 = vmatpush2.xpose.msra.mxu0 0.0
  %872 = vmatprep.subr.mxu0 0.0
  %873 = vmatpush2.xpose.msra.mxu0 0.0
  %874 = vmatprep.subr.mxu0 0.0
  %875 = vmatpush2.xpose.msra.mxu0 0.0
  %876 = vmatprep.subr.mxu0 0.0
  %877 = vmatpush2.xpose.msra.mxu0 0.0
  %878 = vmatprep.subr.mxu0 0.0
  %879 = vmatpush2.xpose.msra.mxu0 0.0
  %880 = vmatprep.subr.mxu0 0.0
  %881 = vmatpush2.xpose.msra.mxu0 0.0
  %882 = vmatprep.subr.mxu0 0.0
  %883 = vmatpush2.xpose.msra.mxu0 0.0
  %884 = vmatprep.subr.mxu0 0.0
  %885 = vmatpush2.xpose.msra.mxu0 0.0
  %886 = vmatprep.subr.mxu0 0.0
  %887 = vmatpush2.xpose.msra.mxu0 0.0
  %888 = vmatprep.subr.mxu0 0.0
  %889 = vmatpush2.xpose.msra.mxu0 0.0
  %890 = vmatprep.subr.mxu0 0.0
  %891 = vmatpush2.xpose.msra.mxu0 0.0
  %892 = vmatprep.subr.mxu0 0.0
  %893 = vmatpush2.xpose.msra.mxu0 0.0
  %894 = vmatprep.mubr.f32.mxu0 0.0
  %895 = vmatmul.mubr.f32.gmra.mxu0 %v828
  %v896 = vpop.f32.mrf.mxu0
  %v897 = vadd.f32 0.0, %v896
  %v898 = vpop.f32.mrf.mxu0
  %899 = vdwg.mxu0
  %v901 = vsel %vm394, %v826, 0
  %903 = vmatprep.subr.mxu0 0.0
  %904 = vmatpush1.xpose.msra.mxu0 0.0
  %905 = vmatprep.subr.mxu0 0.0
  %906 = vmatpush1.xpose.msra.mxu0 0.0
  %907 = vmatprep.subr.mxu0 0.0
  %908 = vmatpush1.xpose.msra.mxu0 0.0
  %909 = vmatprep.subr.mxu0 0.0
  %910 = vmatpush1.xpose.msra.mxu0 0.0
  %911 = vmatprep.subr.mxu0 0.0
  %912 = vmatpush1.xpose.msra.mxu0 0.0
  %913 = vmatprep.subr.mxu0 0.0
  %914 = vmatpush1.xpose.msra.mxu0 0.0
  %915 = vmatprep.subr.mxu0 0.0
  %916 = vmatpush1.xpose.msra.mxu0 0.0
  %917 = vmatprep.subr.mxu0 0.0
  %918 = vmatpush1.xpose.msra.mxu0 0.0
  %919 = vmatprep.subr.mxu0 0.0
  %920 = vmatpush1.xpose.msra.mxu0 0.0
  %921 = vmatprep.subr.mxu0 0.0
  %922 = vmatpush1.xpose.msra.mxu0 0.0
  %923 = vmatprep.subr.mxu0 0.0
  %924 = vmatpush1.xpose.msra.mxu0 0.0
  %925 = vmatprep.subr.mxu0 0.0
  %926 = vmatpush1.xpose.msra.mxu0 0.0
  %927 = vmatprep.subr.mxu0 0.0
  %928 = vmatpush1.xpose.msra.mxu0 0.0
  %929 = vmatprep.subr.mxu0 0.0
  %930 = vmatpush1.xpose.msra.mxu0 0.0
  %931 = vmatprep.subr.mxu0 0.0
  %932 = vmatpush1.xpose.msra.mxu0 0.0
  %933 = vmatprep.subr.mxu0 0.0
  %934 = vmatpush1.xpose.msra.mxu0 %v727
  %935 = vmatprep.subr.mxu0 0.0
  %936 = vmatpush2.xpose.msra.mxu0 0.0
  %937 = vmatprep.subr.mxu0 0.0
  %938 = vmatpush2.xpose.msra.mxu0 0.0
  %939 = vmatprep.subr.mxu0 0.0
  %940 = vmatpush2.xpose.msra.mxu0 0.0
  %941 = vmatprep.subr.mxu0 0.0
  %942 = vmatpush2.xpose.msra.mxu0 0.0
  %943 = vmatprep.subr.mxu0 0.0
  %944 = vmatpush2.xpose.msra.mxu0 0.0
  %945 = vmatprep.subr.mxu0 0.0
  %946 = vmatpush2.xpose.msra.mxu0 0.0
  %947 = vmatprep.subr.mxu0 0.0
  %948 = vmatpush2.xpose.msra.mxu0 0.0
  %949 = vmatprep.subr.mxu0 0.0
  %950 = vmatpush2.xpose.msra.mxu0 0.0
  %951 = vmatprep.subr.mxu0 0.0
  %952 = vmatpush2.xpose.msra.mxu0 0.0
  %953 = vmatprep.subr.mxu0 0.0
  %954 = vmatpush2.xpose.msra.mxu0 0.0
  %955 = vmatprep.subr.mxu0 0.0
  %956 = vmatpush2.xpose.msra.mxu0 0.0
  %957 = vmatprep.subr.mxu0 0.0
  %958 = vmatpush2.xpose.msra.mxu0 0.0
  %959 = vmatprep.subr.mxu0 0.0
  %960 = vmatpush2.xpose.msra.mxu0 0.0
  %961 = vmatprep.subr.mxu0 0.0
  %962 = vmatpush2.xpose.msra.mxu0 0.0
  %963 = vmatprep.subr.mxu0 0.0
  %964 = vmatpush2.xpose.msra.mxu0 0.0
  %965 = vmatprep.subr.mxu0 0.0
  %966 = vmatpush2.xpose.msra.mxu0 0.0
  %967 = vmatprep.mubr.f32.mxu0 0.0
  %968 = vmatmul.mubr.f32.gmra.mxu0 %v901
  %v969 = vpop.f32.mrf.mxu0
  %v970 = vadd.f32 0.0, %v969
  %v971 = vpop.f32.mrf.mxu0
  %972 = vdwg.mxu0
  %v973 = vsel %vm799, %v897, -inf
  %974 = vmax.xlane.f32.xlu0 %v973
  %v975 = vpop.xlane.xlu0 %974
  %v976 = vsel %vm799, %v970, -inf
  %977 = vmax.xlane.f32.xlu0 %v976
  %v978 = vpop.xlane.xlu0 %977
  %v979 = vsub.f32 %v897, %v975
  %v980 = vsub.f32 %v970, %v978
  %v981 = vmul.f32 %v979, 1.442695
  %v982 = vpow.pop %v981
  %v983 = vmul.f32 %v980, 1.442695
  %v984 = vpow.pop %v983
  %v985 = vsel %vm799, %v982, 0.0
  %986 = vadd.xlane.f32.xlu0 %v985
  %v987 = vpop.xlane.xlu0 %986
  %v988 = vsel %vm799, %v984, 0.0
  %989 = vadd.xlane.f32.xlu0 %v988
  %v990 = vpop.xlane.xlu0 %989
  %v991 = vrcp.pop %v987
  %v992 = vrcp.pop %v990
  %v993 = vmul.f32 %v982, %v991
  %v994 = vmul.f32 %v984, %v992
  %v995 = vmul.f32 %v636, %v374
  %v996 = vmul.f32 %v641, %v374
  %v998 = vsel %vm799, %v993, 0
  %1000 = vmatprep.subr.mxu0 0.0
  %1001 = vmatpush1.msra.mxu0 0.0
  %1002 = vmatprep.subr.mxu0 0.0
  %1003 = vmatpush1.msra.mxu0 0.0
  %1004 = vmatprep.subr.mxu0 0.0
  %1005 = vmatpush1.msra.mxu0 0.0
  %1006 = vmatprep.subr.mxu0 0.0
  %1007 = vmatpush1.msra.mxu0 0.0
  %1008 = vmatprep.subr.mxu0 0.0
  %1009 = vmatpush1.msra.mxu0 0.0
  %1010 = vmatprep.subr.mxu0 0.0
  %1011 = vmatpush1.msra.mxu0 0.0
  %1012 = vmatprep.subr.mxu0 0.0
  %1013 = vmatpush1.msra.mxu0 0.0
  %1014 = vmatprep.subr.mxu0 0.0
  %1015 = vmatpush1.msra.mxu0 0.0
  %1016 = vmatprep.subr.mxu0 0.0
  %1017 = vmatpush1.msra.mxu0 0.0
  %1018 = vmatprep.subr.mxu0 0.0
  %1019 = vmatpush1.msra.mxu0 0.0
  %1020 = vmatprep.subr.mxu0 0.0
  %1021 = vmatpush1.msra.mxu0 0.0
  %1022 = vmatprep.subr.mxu0 0.0
  %1023 = vmatpush1.msra.mxu0 0.0
  %1024 = vmatprep.subr.mxu0 0.0
  %1025 = vmatpush1.msra.mxu0 0.0
  %1026 = vmatprep.subr.mxu0 0.0
  %1027 = vmatpush1.msra.mxu0 0.0
  %1028 = vmatprep.subr.mxu0 0.0
  %1029 = vmatpush1.msra.mxu0 0.0
  %1030 = vmatprep.subr.mxu0 0.0
  %1031 = vmatpush1.msra.mxu0 %v995
  %1032 = vmatprep.subr.mxu0 0.0
  %1033 = vmatpush2.msra.mxu0 0.0
  %1034 = vmatprep.subr.mxu0 0.0
  %1035 = vmatpush2.msra.mxu0 0.0
  %1036 = vmatprep.subr.mxu0 0.0
  %1037 = vmatpush2.msra.mxu0 0.0
  %1038 = vmatprep.subr.mxu0 0.0
  %1039 = vmatpush2.msra.mxu0 0.0
  %1040 = vmatprep.subr.mxu0 0.0
  %1041 = vmatpush2.msra.mxu0 0.0
  %1042 = vmatprep.subr.mxu0 0.0
  %1043 = vmatpush2.msra.mxu0 0.0
  %1044 = vmatprep.subr.mxu0 0.0
  %1045 = vmatpush2.msra.mxu0 0.0
  %1046 = vmatprep.subr.mxu0 0.0
  %1047 = vmatpush2.msra.mxu0 0.0
  %1048 = vmatprep.subr.mxu0 0.0
  %1049 = vmatpush2.msra.mxu0 0.0
  %1050 = vmatprep.subr.mxu0 0.0
  %1051 = vmatpush2.msra.mxu0 0.0
  %1052 = vmatprep.subr.mxu0 0.0
  %1053 = vmatpush2.msra.mxu0 0.0
  %1054 = vmatprep.subr.mxu0 0.0
  %1055 = vmatpush2.msra.mxu0 0.0
  %1056 = vmatprep.subr.mxu0 0.0
  %1057 = vmatpush2.msra.mxu0 0.0
  %1058 = vmatprep.subr.mxu0 0.0
  %1059 = vmatpush2.msra.mxu0 0.0
  %1060 = vmatprep.subr.mxu0 0.0
  %1061 = vmatpush2.msra.mxu0 0.0
  %1062 = vmatprep.subr.mxu0 0.0
  %1063 = vmatpush2.msra.mxu0 0.0
  %1064 = vmatprep.mubr.f32.mxu0 0.0
  %1065 = vmatmul.mubr.f32.gmra.mxu0 %v998
  %v1066 = vpop.f32.mrf.mxu0
  %v1067 = vadd.f32 0.0, %v1066
  %v1068 = vpop.f32.mrf.mxu0
  %1069 = vdwg.mxu0
  %v1071 = vsel %vm799, %v994, 0
  %1073 = vmatprep.subr.mxu0 0.0
  %1074 = vmatpush1.msra.mxu0 0.0
  %1075 = vmatprep.subr.mxu0 0.0
  %1076 = vmatpush1.msra.mxu0 0.0
  %1077 = vmatprep.subr.mxu0 0.0
  %1078 = vmatpush1.msra.mxu0 0.0
  %1079 = vmatprep.subr.mxu0 0.0
  %1080 = vmatpush1.msra.mxu0 0.0
  %1081 = vmatprep.subr.mxu0 0.0
  %1082 = vmatpush1.msra.mxu0 0.0
  %1083 = vmatprep.subr.mxu0 0.0
  %1084 = vmatpush1.msra.mxu0 0.0
  %1085 = vmatprep.subr.mxu0 0.0
  %1086 = vmatpush1.msra.mxu0 0.0
  %1087 = vmatprep.subr.mxu0 0.0
  %1088 = vmatpush1.msra.mxu0 0.0
  %1089 = vmatprep.subr.mxu0 0.0
  %1090 = vmatpush1.msra.mxu0 0.0
  %1091 = vmatprep.subr.mxu0 0.0
  %1092 = vmatpush1.msra.mxu0 0.0
  %1093 = vmatprep.subr.mxu0 0.0
  %1094 = vmatpush1.msra.mxu0 0.0
  %1095 = vmatprep.subr.mxu0 0.0
  %1096 = vmatpush1.msra.mxu0 0.0
  %1097 = vmatprep.subr.mxu0 0.0
  %1098 = vmatpush1.msra.mxu0 0.0
  %1099 = vmatprep.subr.mxu0 0.0
  %1100 = vmatpush1.msra.mxu0 0.0
  %1101 = vmatprep.subr.mxu0 0.0
  %1102 = vmatpush1.msra.mxu0 0.0
  %1103 = vmatprep.subr.mxu0 0.0
  %1104 = vmatpush1.msra.mxu0 %v996
  %1105 = vmatprep.subr.mxu0 0.0
  %1106 = vmatpush2.msra.mxu0 0.0
  %1107 = vmatprep.subr.mxu0 0.0
  %1108 = vmatpush2.msra.mxu0 0.0
  %1109 = vmatprep.subr.mxu0 0.0
  %1110 = vmatpush2.msra.mxu0 0.0
  %1111 = vmatprep.subr.mxu0 0.0
  %1112 = vmatpush2.msra.mxu0 0.0
  %1113 = vmatprep.subr.mxu0 0.0
  %1114 = vmatpush2.msra.mxu0 0.0
  %1115 = vmatprep.subr.mxu0 0.0
  %1116 = vmatpush2.msra.mxu0 0.0
  %1117 = vmatprep.subr.mxu0 0.0
  %1118 = vmatpush2.msra.mxu0 0.0
  %1119 = vmatprep.subr.mxu0 0.0
  %1120 = vmatpush2.msra.mxu0 0.0
  %1121 = vmatprep.subr.mxu0 0.0
  %1122 = vmatpush2.msra.mxu0 0.0
  %1123 = vmatprep.subr.mxu0 0.0
  %1124 = vmatpush2.msra.mxu0 0.0
  %1125 = vmatprep.subr.mxu0 0.0
  %1126 = vmatpush2.msra.mxu0 0.0
  %1127 = vmatprep.subr.mxu0 0.0
  %1128 = vmatpush2.msra.mxu0 0.0
  %1129 = vmatprep.subr.mxu0 0.0
  %1130 = vmatpush2.msra.mxu0 0.0
  %1131 = vmatprep.subr.mxu0 0.0
  %1132 = vmatpush2.msra.mxu0 0.0
  %1133 = vmatprep.subr.mxu0 0.0
  %1134 = vmatpush2.msra.mxu0 0.0
  %1135 = vmatprep.subr.mxu0 0.0
  %1136 = vmatpush2.msra.mxu0 0.0
  %1137 = vmatprep.mubr.f32.mxu0 0.0
  %1138 = vmatmul.mubr.f32.gmra.mxu0 %v1071
  %v1139 = vpop.f32.mrf.mxu0
  %v1140 = vadd.f32 0.0, %v1139
  %v1141 = vpop.f32.mrf.mxu0
  %1142 = vdwg.mxu0
  %v1144 = vsel %vm799, %v820, 0
  %1146 = vmatprep.subr.mxu0 0.0
  %1147 = vmatpush1.msra.mxu0 0.0
  %1148 = vmatprep.subr.mxu0 0.0
  %1149 = vmatpush1.msra.mxu0 0.0
  %1150 = vmatprep.subr.mxu0 0.0
  %1151 = vmatpush1.msra.mxu0 0.0
  %1152 = vmatprep.subr.mxu0 0.0
  %1153 = vmatpush1.msra.mxu0 0.0
  %1154 = vmatprep.subr.mxu0 0.0
  %1155 = vmatpush1.msra.mxu0 0.0
  %1156 = vmatprep.subr.mxu0 0.0
  %1157 = vmatpush1.msra.mxu0 0.0
  %1158 = vmatprep.subr.mxu0 0.0
  %1159 = vmatpush1.msra.mxu0 0.0
  %1160 = vmatprep.subr.mxu0 0.0
  %1161 = vmatpush1.msra.mxu0 0.0
  %1162 = vmatprep.subr.mxu0 0.0
  %1163 = vmatpush1.msra.mxu0 0.0
  %1164 = vmatprep.subr.mxu0 0.0
  %1165 = vmatpush1.msra.mxu0 0.0
  %1166 = vmatprep.subr.mxu0 0.0
  %1167 = vmatpush1.msra.mxu0 0.0
  %1168 = vmatprep.subr.mxu0 0.0
  %1169 = vmatpush1.msra.mxu0 0.0
  %1170 = vmatprep.subr.mxu0 0.0
  %1171 = vmatpush1.msra.mxu0 0.0
  %1172 = vmatprep.subr.mxu0 0.0
  %1173 = vmatpush1.msra.mxu0 0.0
  %1174 = vmatprep.subr.mxu0 0.0
  %1175 = vmatpush1.msra.mxu0 0.0
  %1176 = vmatprep.subr.mxu0 0.0
  %1177 = vmatpush1.msra.mxu0 %v822
  %1178 = vmatprep.subr.mxu0 0.0
  %1179 = vmatpush2.msra.mxu0 0.0
  %1180 = vmatprep.subr.mxu0 0.0
  %1181 = vmatpush2.msra.mxu0 0.0
  %1182 = vmatprep.subr.mxu0 0.0
  %1183 = vmatpush2.msra.mxu0 0.0
  %1184 = vmatprep.subr.mxu0 0.0
  %1185 = vmatpush2.msra.mxu0 0.0
  %1186 = vmatprep.subr.mxu0 0.0
  %1187 = vmatpush2.msra.mxu0 0.0
  %1188 = vmatprep.subr.mxu0 0.0
  %1189 = vmatpush2.msra.mxu0 0.0
  %1190 = vmatprep.subr.mxu0 0.0
  %1191 = vmatpush2.msra.mxu0 0.0
  %1192 = vmatprep.subr.mxu0 0.0
  %1193 = vmatpush2.msra.mxu0 0.0
  %1194 = vmatprep.subr.mxu0 0.0
  %1195 = vmatpush2.msra.mxu0 0.0
  %1196 = vmatprep.subr.mxu0 0.0
  %1197 = vmatpush2.msra.mxu0 0.0
  %1198 = vmatprep.subr.mxu0 0.0
  %1199 = vmatpush2.msra.mxu0 0.0
  %1200 = vmatprep.subr.mxu0 0.0
  %1201 = vmatpush2.msra.mxu0 0.0
  %1202 = vmatprep.subr.mxu0 0.0
  %1203 = vmatpush2.msra.mxu0 0.0
  %1204 = vmatprep.subr.mxu0 0.0
  %1205 = vmatpush2.msra.mxu0 0.0
  %1206 = vmatprep.subr.mxu0 0.0
  %1207 = vmatpush2.msra.mxu0 0.0
  %1208 = vmatprep.subr.mxu0 0.0
  %1209 = vmatpush2.msra.mxu0 0.0
  %1210 = vmatprep.mubr.f32.mxu0 0.0
  %1211 = vmatmul.mubr.f32.gmra.mxu0 %v1144
  %v1212 = vpop.f32.mrf.mxu0
  %v1213 = vadd.f32 %v1067, %v1212
  %v1214 = vpop.f32.mrf.mxu0
  %1215 = vdwg.mxu0
  %v1217 = vsel %vm799, %v821, 0
  %1219 = vmatprep.subr.mxu0 0.0
  %1220 = vmatpush1.msra.mxu0 0.0
  %1221 = vmatprep.subr.mxu0 0.0
  %1222 = vmatpush1.msra.mxu0 0.0
  %1223 = vmatprep.subr.mxu0 0.0
  %1224 = vmatpush1.msra.mxu0 0.0
  %1225 = vmatprep.subr.mxu0 0.0
  %1226 = vmatpush1.msra.mxu0 0.0
  %1227 = vmatprep.subr.mxu0 0.0
  %1228 = vmatpush1.msra.mxu0 0.0
  %1229 = vmatprep.subr.mxu0 0.0
  %1230 = vmatpush1.msra.mxu0 0.0
  %1231 = vmatprep.subr.mxu0 0.0
  %1232 = vmatpush1.msra.mxu0 0.0
  %1233 = vmatprep.subr.mxu0 0.0
  %1234 = vmatpush1.msra.mxu0 0.0
  %1235 = vmatprep.subr.mxu0 0.0
  %1236 = vmatpush1.msra.mxu0 0.0
  %1237 = vmatprep.subr.mxu0 0.0
  %1238 = vmatpush1.msra.mxu0 0.0
  %1239 = vmatprep.subr.mxu0 0.0
  %1240 = vmatpush1.msra.mxu0 0.0
  %1241 = vmatprep.subr.mxu0 0.0
  %1242 = vmatpush1.msra.mxu0 0.0
  %1243 = vmatprep.subr.mxu0 0.0
  %1244 = vmatpush1.msra.mxu0 0.0
  %1245 = vmatprep.subr.mxu0 0.0
  %1246 = vmatpush1.msra.mxu0 0.0
  %1247 = vmatprep.subr.mxu0 0.0
  %1248 = vmatpush1.msra.mxu0 0.0
  %1249 = vmatprep.subr.mxu0 0.0
  %1250 = vmatpush1.msra.mxu0 %v823
  %1251 = vmatprep.subr.mxu0 0.0
  %1252 = vmatpush2.msra.mxu0 0.0
  %1253 = vmatprep.subr.mxu0 0.0
  %1254 = vmatpush2.msra.mxu0 0.0
  %1255 = vmatprep.subr.mxu0 0.0
  %1256 = vmatpush2.msra.mxu0 0.0
  %1257 = vmatprep.subr.mxu0 0.0
  %1258 = vmatpush2.msra.mxu0 0.0
  %1259 = vmatprep.subr.mxu0 0.0
  %1260 = vmatpush2.msra.mxu0 0.0
  %1261 = vmatprep.subr.mxu0 0.0
  %1262 = vmatpush2.msra.mxu0 0.0
  %1263 = vmatprep.subr.mxu0 0.0
  %1264 = vmatpush2.msra.mxu0 0.0
  %1265 = vmatprep.subr.mxu0 0.0
  %1266 = vmatpush2.msra.mxu0 0.0
  %1267 = vmatprep.subr.mxu0 0.0
  %1268 = vmatpush2.msra.mxu0 0.0
  %1269 = vmatprep.subr.mxu0 0.0
  %1270 = vmatpush2.msra.mxu0 0.0
  %1271 = vmatprep.subr.mxu0 0.0
  %1272 = vmatpush2.msra.mxu0 0.0
  %1273 = vmatprep.subr.mxu0 0.0
  %1274 = vmatpush2.msra.mxu0 0.0
  %1275 = vmatprep.subr.mxu0 0.0
  %1276 = vmatpush2.msra.mxu0 0.0
  %1277 = vmatprep.subr.mxu0 0.0
  %1278 = vmatpush2.msra.mxu0 0.0
  %1279 = vmatprep.subr.mxu0 0.0
  %1280 = vmatpush2.msra.mxu0 0.0
  %1281 = vmatprep.subr.mxu0 0.0
  %1282 = vmatpush2.msra.mxu0 0.0
  %1283 = vmatprep.mubr.f32.mxu0 0.0
  %1284 = vmatmul.mubr.f32.gmra.mxu0 %v1217
  %v1285 = vpop.f32.mrf.mxu0
  %v1286 = vadd.f32 %v1140, %v1285
  %v1287 = vpop.f32.mrf.mxu0
  %1288 = vdwg.mxu0
  %v1289 = vmul.f32 %v379, 0.5
  %v1290 = vmul.f32 %v468, %v1289
  %v1291 = vmul.f32 %v473, %v1289
  %v1293 = vsel %vm394, %v1290, 0
  %1295 = vmatprep.subr.mxu0 0.0
  %1296 = vmatpush1.xpose.msra.mxu0 0.0
  %1297 = vmatprep.subr.mxu0 0.0
  %1298 = vmatpush1.xpose.msra.mxu0 0.0
  %1299 = vmatprep.subr.mxu0 0.0
  %1300 = vmatpush1.xpose.msra.mxu0 0.0
  %1301 = vmatprep.subr.mxu0 0.0
  %1302 = vmatpush1.xpose.msra.mxu0 0.0
  %1303 = vmatprep.subr.mxu0 0.0
  %1304 = vmatpush1.xpose.msra.mxu0 0.0
  %1305 = vmatprep.subr.mxu0 0.0
  %1306 = vmatpush1.xpose.msra.mxu0 0.0
  %1307 = vmatprep.subr.mxu0 0.0
  %1308 = vmatpush1.xpose.msra.mxu0 0.0
  %1309 = vmatprep.subr.mxu0 0.0
  %1310 = vmatpush1.xpose.msra.mxu0 0.0
  %1311 = vmatprep.subr.mxu0 0.0
  %1312 = vmatpush1.xpose.msra.mxu0 0.0
  %1313 = vmatprep.subr.mxu0 0.0
  %1314 = vmatpush1.xpose.msra.mxu0 0.0
  %1315 = vmatprep.subr.mxu0 0.0
  %1316 = vmatpush1.xpose.msra.mxu0 0.0
  %1317 = vmatprep.subr.mxu0 0.0
  %1318 = vmatpush1.xpose.msra.mxu0 0.0
  %1319 = vmatprep.subr.mxu0 0.0
  %1320 = vmatpush1.xpose.msra.mxu0 0.0
  %1321 = vmatprep.subr.mxu0 0.0
  %1322 = vmatpush1.xpose.msra.mxu0 0.0
  %1323 = vmatprep.subr.mxu0 0.0
  %1324 = vmatpush1.xpose.msra.mxu0 0.0
  %1325 = vmatprep.subr.mxu0 0.0
  %1326 = vmatpush1.xpose.msra.mxu0 %v651
  %1327 = vmatprep.subr.mxu0 0.0
  %1328 = vmatpush2.xpose.msra.mxu0 0.0
  %1329 = vmatprep.subr.mxu0 0.0
  %1330 = vmatpush2.xpose.msra.mxu0 0.0
  %1331 = vmatprep.subr.mxu0 0.0
  %1332 = vmatpush2.xpose.msra.mxu0 0.0
  %1333 = vmatprep.subr.mxu0 0.0
  %1334 = vmatpush2.xpose.msra.mxu0 0.0
  %1335 = vmatprep.subr.mxu0 0.0
  %1336 = vmatpush2.xpose.msra.mxu0 0.0
  %1337 = vmatprep.subr.mxu0 0.0
  %1338 = vmatpush2.xpose.msra.mxu0 0.0
  %1339 = vmatprep.subr.mxu0 0.0
  %1340 = vmatpush2.xpose.msra.mxu0 0.0
  %1341 = vmatprep.subr.mxu0 0.0
  %1342 = vmatpush2.xpose.msra.mxu0 0.0
  %1343 = vmatprep.subr.mxu0 0.0
  %1344 = vmatpush2.xpose.msra.mxu0 0.0
  %1345 = vmatprep.subr.mxu0 0.0
  %1346 = vmatpush2.xpose.msra.mxu0 0.0
  %1347 = vmatprep.subr.mxu0 0.0
  %1348 = vmatpush2.xpose.msra.mxu0 0.0
  %1349 = vmatprep.subr.mxu0 0.0
  %1350 = vmatpush2.xpose.msra.mxu0 0.0
  %1351 = vmatprep.subr.mxu0 0.0
  %1352 = vmatpush2.xpose.msra.mxu0 0.0
  %1353 = vmatprep.subr.mxu0 0.0
  %1354 = vmatpush2.xpose.msra.mxu0 0.0
  %1355 = vmatprep.subr.mxu0 0.0
  %1356 = vmatpush2.xpose.msra.mxu0 0.0
  %1357 = vmatprep.subr.mxu0 0.0
  %1358 = vmatpush2.xpose.msra.mxu0 0.0
  %1359 = vmatprep.mubr.f32.mxu0 0.0
  %1360 = vmatmul.mubr.f32.gmra.mxu0 %v1293
  %v1361 = vpop.f32.mrf.mxu0
  %v1362 = vadd.f32 0.0, %v1361
  %v1363 = vpop.f32.mrf.mxu0
  %1364 = vdwg.mxu0
  %v1366 = vsel %vm394, %v1291, 0
  %1368 = vmatprep.subr.mxu0 0.0
  %1369 = vmatpush1.xpose.msra.mxu0 0.0
  %1370 = vmatprep.subr.mxu0 0.0
  %1371 = vmatpush1.xpose.msra.mxu0 0.0
  %1372 = vmatprep.subr.mxu0 0.0
  %1373 = vmatpush1.xpose.msra.mxu0 0.0
  %1374 = vmatprep.subr.mxu0 0.0
  %1375 = vmatpush1.xpose.msra.mxu0 0.0
  %1376 = vmatprep.subr.mxu0 0.0
  %1377 = vmatpush1.xpose.msra.mxu0 0.0
  %1378 = vmatprep.subr.mxu0 0.0
  %1379 = vmatpush1.xpose.msra.mxu0 0.0
  %1380 = vmatprep.subr.mxu0 0.0
  %1381 = vmatpush1.xpose.msra.mxu0 0.0
  %1382 = vmatprep.subr.mxu0 0.0
  %1383 = vmatpush1.xpose.msra.mxu0 0.0
  %1384 = vmatprep.subr.mxu0 0.0
  %1385 = vmatpush1.xpose.msra.mxu0 0.0
  %1386 = vmatprep.subr.mxu0 0.0
  %1387 = vmatpush1.xpose.msra.mxu0 0.0
  %1388 = vmatprep.subr.mxu0 0.0
  %1389 = vmatpush1.xpose.msra.mxu0 0.0
  %1390 = vmatprep.subr.mxu0 0.0
  %1391 = vmatpush1.xpose.msra.mxu0 0.0
  %1392 = vmatprep.subr.mxu0 0.0
  %1393 = vmatpush1.xpose.msra.mxu0 0.0
  %1394 = vmatprep.subr.mxu0 0.0
  %1395 = vmatpush1.xpose.msra.mxu0 0.0
  %1396 = vmatprep.subr.mxu0 0.0
  %1397 = vmatpush1.xpose.msra.mxu0 0.0
  %1398 = vmatprep.subr.mxu0 0.0
  %1399 = vmatpush1.xpose.msra.mxu0 %v727
  %1400 = vmatprep.subr.mxu0 0.0
  %1401 = vmatpush2.xpose.msra.mxu0 0.0
  %1402 = vmatprep.subr.mxu0 0.0
  %1403 = vmatpush2.xpose.msra.mxu0 0.0
  %1404 = vmatprep.subr.mxu0 0.0
  %1405 = vmatpush2.xpose.msra.mxu0 0.0
  %1406 = vmatprep.subr.mxu0 0.0
  %1407 = vmatpush2.xpose.msra.mxu0 0.0
  %1408 = vmatprep.subr.mxu0 0.0
  %1409 = vmatpush2.xpose.msra.mxu0 0.0
  %1410 = vmatprep.subr.mxu0 0.0
  %1411 = vmatpush2.xpose.msra.mxu0 0.0
  %1412 = vmatprep.subr.mxu0 0.0
  %1413 = vmatpush2.xpose.msra.mxu0 0.0
  %1414 = vmatprep.subr.mxu0 0.0
  %1415 = vmatpush2.xpose.msra.mxu0 0.0
  %1416 = vmatprep.subr.mxu0 0.0
  %1417 = vmatpush2.xpose.msra.mxu0 0.0
  %1418 = vmatprep.subr.mxu0 0.0
  %1419 = vmatpush2.xpose.msra.mxu0 0.0
  %1420 = vmatprep.subr.mxu0 0.0
  %1421 = vmatpush2.xpose.msra.mxu0 0.0
  %1422 = vmatprep.subr.mxu0 0.0
  %1423 = vmatpush2.xpose.msra.mxu0 0.0
  %1424 = vmatprep.subr.mxu0 0.0
  %1425 = vmatpush2.xpose.msra.mxu0 0.0
  %1426 = vmatprep.subr.mxu0 0.0
  %1427 = vmatpush2.xpose.msra.mxu0 0.0
  %1428 = vmatprep.subr.mxu0 0.0
  %1429 = vmatpush2.xpose.msra.mxu0 0.0
  %1430 = vmatprep.subr.mxu0 0.0
  %1431 = vmatpush2.xpose.msra.mxu0 0.0
  %1432 = vmatprep.mubr.f32.mxu0 0.0
  %1433 = vmatmul.mubr.f32.gmra.mxu0 %v1366
  %v1434 = vpop.f32.mrf.mxu0
  %v1435 = vadd.f32 0.0, %v1434
  %v1436 = vpop.f32.mrf.mxu0
  %1437 = vdwg.mxu0
  %v1438 = vsel %vm799, %v1362, -inf
  %1439 = vmax.xlane.f32.xlu0 %v1438
  %v1440 = vpop.xlane.xlu0 %1439
  %v1441 = vsel %vm799, %v1435, -inf
  %1442 = vmax.xlane.f32.xlu0 %v1441
  %v1443 = vpop.xlane.xlu0 %1442
  %v1444 = vsub.f32 %v1362, %v1440
  %v1445 = vsub.f32 %v1435, %v1443
  %v1446 = vmul.f32 %v1444, 1.442695
  %v1447 = vpow.pop %v1446
  %v1448 = vmul.f32 %v1445, 1.442695
  %v1449 = vpow.pop %v1448
  %v1450 = vsel %vm799, %v1447, 0.0
  %1451 = vadd.xlane.f32.xlu0 %v1450
  %v1452 = vpop.xlane.xlu0 %1451
  %v1453 = vsel %vm799, %v1449, 0.0
  %1454 = vadd.xlane.f32.xlu0 %v1453
  %v1455 = vpop.xlane.xlu0 %1454
  %v1456 = vrcp.pop %v1452
  %v1457 = vrcp.pop %v1455
  %v1458 = vmul.f32 %v1447, %v1456
  %v1459 = vmul.f32 %v1449, %v1457
  %v1460 = vmul.f32 %v636, %v379
  %v1461 = vmul.f32 %v641, %v379
  %v1463 = vsel %vm799, %v1458, 0
  %1465 = vmatprep.subr.mxu0 0.0
  %1466 = vmatpush1.msra.mxu0 0.0
  %1467 = vmatprep.subr.mxu0 0.0
  %1468 = vmatpush1.msra.mxu0 0.0
  %1469 = vmatprep.subr.mxu0 0.0
  %1470 = vmatpush1.msra.mxu0 0.0
  %1471 = vmatprep.subr.mxu0 0.0
  %1472 = vmatpush1.msra.mxu0 0.0
  %1473 = vmatprep.subr.mxu0 0.0
  %1474 = vmatpush1.msra.mxu0 0.0
  %1475 = vmatprep.subr.mxu0 0.0
  %1476 = vmatpush1.msra.mxu0 0.0
  %1477 = vmatprep.subr.mxu0 0.0
  %1478 = vmatpush1.msra.mxu0 0.0
  %1479 = vmatprep.subr.mxu0 0.0
  %1480 = vmatpush1.msra.mxu0 0.0
  %1481 = vmatprep.subr.mxu0 0.0
  %1482 = vmatpush1.msra.mxu0 0.0
  %1483 = vmatprep.subr.mxu0 0.0
  %1484 = vmatpush1.msra.mxu0 0.0
  %1485 = vmatprep.subr.mxu0 0.0
  %1486 = vmatpush1.msra.mxu0 0.0
  %1487 = vmatprep.subr.mxu0 0.0
  %1488 = vmatpush1.msra.mxu0 0.0
  %1489 = vmatprep.subr.mxu0 0.0
  %1490 = vmatpush1.msra.mxu0 0.0
  %1491 = vmatprep.subr.mxu0 0.0
  %1492 = vmatpush1.msra.mxu0 0.0
  %1493 = vmatprep.subr.mxu0 0.0
  %1494 = vmatpush1.msra.mxu0 0.0
  %1495 = vmatprep.subr.mxu0 0.0
  %1496 = vmatpush1.msra.mxu0 %v1460
  %1497 = vmatprep.subr.mxu0 0.0
  %1498 = vmatpush2.msra.mxu0 0.0
  %1499 = vmatprep.subr.mxu0 0.0
  %1500 = vmatpush2.msra.mxu0 0.0
  %1501 = vmatprep.subr.mxu0 0.0
  %1502 = vmatpush2.msra.mxu0 0.0
  %1503 = vmatprep.subr.mxu0 0.0
  %1504 = vmatpush2.msra.mxu0 0.0
  %1505 = vmatprep.subr.mxu0 0.0
  %1506 = vmatpush2.msra.mxu0 0.0
  %1507 = vmatprep.subr.mxu0 0.0
  %1508 = vmatpush2.msra.mxu0 0.0
  %1509 = vmatprep.subr.mxu0 0.0
  %1510 = vmatpush2.msra.mxu0 0.0
  %1511 = vmatprep.subr.mxu0 0.0
  %1512 = vmatpush2.msra.mxu0 0.0
  %1513 = vmatprep.subr.mxu0 0.0
  %1514 = vmatpush2.msra.mxu0 0.0
  %1515 = vmatprep.subr.mxu0 0.0
  %1516 = vmatpush2.msra.mxu0 0.0
  %1517 = vmatprep.subr.mxu0 0.0
  %1518 = vmatpush2.msra.mxu0 0.0
  %1519 = vmatprep.subr.mxu0 0.0
  %1520 = vmatpush2.msra.mxu0 0.0
  %1521 = vmatprep.subr.mxu0 0.0
  %1522 = vmatpush2.msra.mxu0 0.0
  %1523 = vmatprep.subr.mxu0 0.0
  %1524 = vmatpush2.msra.mxu0 0.0
  %1525 = vmatprep.subr.mxu0 0.0
  %1526 = vmatpush2.msra.mxu0 0.0
  %1527 = vmatprep.subr.mxu0 0.0
  %1528 = vmatpush2.msra.mxu0 0.0
  %1529 = vmatprep.mubr.f32.mxu0 0.0
  %1530 = vmatmul.mubr.f32.gmra.mxu0 %v1463
  %v1531 = vpop.f32.mrf.mxu0
  %v1532 = vadd.f32 0.0, %v1531
  %v1533 = vpop.f32.mrf.mxu0
  %1534 = vdwg.mxu0
  %v1536 = vsel %vm799, %v1459, 0
  %1538 = vmatprep.subr.mxu0 0.0
  %1539 = vmatpush1.msra.mxu0 0.0
  %1540 = vmatprep.subr.mxu0 0.0
  %1541 = vmatpush1.msra.mxu0 0.0
  %1542 = vmatprep.subr.mxu0 0.0
  %1543 = vmatpush1.msra.mxu0 0.0
  %1544 = vmatprep.subr.mxu0 0.0
  %1545 = vmatpush1.msra.mxu0 0.0
  %1546 = vmatprep.subr.mxu0 0.0
  %1547 = vmatpush1.msra.mxu0 0.0
  %1548 = vmatprep.subr.mxu0 0.0
  %1549 = vmatpush1.msra.mxu0 0.0
  %1550 = vmatprep.subr.mxu0 0.0
  %1551 = vmatpush1.msra.mxu0 0.0
  %1552 = vmatprep.subr.mxu0 0.0
  %1553 = vmatpush1.msra.mxu0 0.0
  %1554 = vmatprep.subr.mxu0 0.0
  %1555 = vmatpush1.msra.mxu0 0.0
  %1556 = vmatprep.subr.mxu0 0.0
  %1557 = vmatpush1.msra.mxu0 0.0
  %1558 = vmatprep.subr.mxu0 0.0
  %1559 = vmatpush1.msra.mxu0 0.0
  %1560 = vmatprep.subr.mxu0 0.0
  %1561 = vmatpush1.msra.mxu0 0.0
  %1562 = vmatprep.subr.mxu0 0.0
  %1563 = vmatpush1.msra.mxu0 0.0
  %1564 = vmatprep.subr.mxu0 0.0
  %1565 = vmatpush1.msra.mxu0 0.0
  %1566 = vmatprep.subr.mxu0 0.0
  %1567 = vmatpush1.msra.mxu0 0.0
  %1568 = vmatprep.subr.mxu0 0.0
  %1569 = vmatpush1.msra.mxu0 %v1461
  %1570 = vmatprep.subr.mxu0 0.0
  %1571 = vmatpush2.msra.mxu0 0.0
  %1572 = vmatprep.subr.mxu0 0.0
  %1573 = vmatpush2.msra.mxu0 0.0
  %1574 = vmatprep.subr.mxu0 0.0
  %1575 = vmatpush2.msra.mxu0 0.0
  %1576 = vmatprep.subr.mxu0 0.0
  %1577 = vmatpush2.msra.mxu0 0.0
  %1578 = vmatprep.subr.mxu0 0.0
  %1579 = vmatpush2.msra.mxu0 0.0
  %1580 = vmatprep.subr.mxu0 0.0
  %1581 = vmatpush2.msra.mxu0 0.0
  %1582 = vmatprep.subr.mxu0 0.0
  %1583 = vmatpush2.msra.mxu0 0.0
  %1584 = vmatprep.subr.mxu0 0.0
  %1585 = vmatpush2.msra.mxu0 0.0
  %1586 = vmatprep.subr.mxu0 0.0
  %1587 = vmatpush2.msra.mxu0 0.0
  %1588 = vmatprep.subr.mxu0 0.0
  %1589 = vmatpush2.msra.mxu0 0.0
  %1590 = vmatprep.subr.mxu0 0.0
  %1591 = vmatpush2.msra.mxu0 0.0
  %1592 = vmatprep.subr.mxu0 0.0
  %1593 = vmatpush2.msra.mxu0 0.0
  %1594 = vmatprep.subr.mxu0 0.0
  %1595 = vmatpush2.msra.mxu0 0.0
  %1596 = vmatprep.subr.mxu0 0.0
  %1597 = vmatpush2.msra.mxu0 0.0
  %1598 = vmatprep.subr.mxu0 0.0
  %1599 = vmatpush2.msra.mxu0 0.0
  %1600 = vmatprep.subr.mxu0 0.0
  %1601 = vmatpush2.msra.mxu0 0.0
  %1602 = vmatprep.mubr.f32.mxu0 0.0
  %1603 = vmatmul.mubr.f32.gmra.mxu0 %v1536
  %v1604 = vpop.f32.mrf.mxu0
  %v1605 = vadd.f32 0.0, %v1604
  %v1606 = vpop.f32.mrf.mxu0
  %1607 = vdwg.mxu0
  %v1608 = vadd.f32 %v1213, %v1532
  %v1609 = vadd.f32 %v1286, %v1605
  %v1610 = vmul.f32 %v384, 0.5
  %v1611 = vmul.f32 %v468, %v1610
  %v1612 = vmul.f32 %v473, %v1610
  %v1614 = vsel %vm394, %v1611, 0
  %1616 = vmatprep.subr.mxu0 0.0
  %1617 = vmatpush1.xpose.msra.mxu0 0.0
  %1618 = vmatprep.subr.mxu0 0.0
  %1619 = vmatpush1.xpose.msra.mxu0 0.0
  %1620 = vmatprep.subr.mxu0 0.0
  %1621 = vmatpush1.xpose.msra.mxu0 0.0
  %1622 = vmatprep.subr.mxu0 0.0
  %1623 = vmatpush1.xpose.msra.mxu0 0.0
  %1624 = vmatprep.subr.mxu0 0.0
  %1625 = vmatpush1.xpose.msra.mxu0 0.0
  %1626 = vmatprep.subr.mxu0 0.0
  %1627 = vmatpush1.xpose.msra.mxu0 0.0
  %1628 = vmatprep.subr.mxu0 0.0
  %1629 = vmatpush1.xpose.msra.mxu0 0.0
  %1630 = vmatprep.subr.mxu0 0.0
  %1631 = vmatpush1.xpose.msra.mxu0 0.0
  %1632 = vmatprep.subr.mxu0 0.0
  %1633 = vmatpush1.xpose.msra.mxu0 0.0
  %1634 = vmatprep.subr.mxu0 0.0
  %1635 = vmatpush1.xpose.msra.mxu0 0.0
  %1636 = vmatprep.subr.mxu0 0.0
  %1637 = vmatpush1.xpose.msra.mxu0 0.0
  %1638 = vmatprep.subr.mxu0 0.0
  %1639 = vmatpush1.xpose.msra.mxu0 0.0
  %1640 = vmatprep.subr.mxu0 0.0
  %1641 = vmatpush1.xpose.msra.mxu0 0.0
  %1642 = vmatprep.subr.mxu0 0.0
  %1643 = vmatpush1.xpose.msra.mxu0 0.0
  %1644 = vmatprep.subr.mxu0 0.0
  %1645 = vmatpush1.xpose.msra.mxu0 0.0
  %1646 = vmatprep.subr.mxu0 0.0
  %1647 = vmatpush1.xpose.msra.mxu0 %v651
  %1648 = vmatprep.subr.mxu0 0.0
  %1649 = vmatpush2.xpose.msra.mxu0 0.0
  %1650 = vmatprep.subr.mxu0 0.0
  %1651 = vmatpush2.xpose.msra.mxu0 0.0
  %1652 = vmatprep.subr.mxu0 0.0
  %1653 = vmatpush2.xpose.msra.mxu0 0.0
  %1654 = vmatprep.subr.mxu0 0.0
  %1655 = vmatpush2.xpose.msra.mxu0 0.0
  %1656 = vmatprep.subr.mxu0 0.0
  %1657 = vmatpush2.xpose.msra.mxu0 0.0
  %1658 = vmatprep.subr.mxu0 0.0
  %1659 = vmatpush2.xpose.msra.mxu0 0.0
  %1660 = vmatprep.subr.mxu0 0.0
  %1661 = vmatpush2.xpose.msra.mxu0 0.0
  %1662 = vmatprep.subr.mxu0 0.0
  %1663 = vmatpush2.xpose.msra.mxu0 0.0
  %1664 = vmatprep.subr.mxu0 0.0
  %1665 = vmatpush2.xpose.msra.mxu0 0.0
  %1666 = vmatprep.subr.mxu0 0.0
  %1667 = vmatpush2.xpose.msra.mxu0 0.0
  %1668 = vmatprep.subr.mxu0 0.0
  %1669 = vmatpush2.xpose.msra.mxu0 0.0
  %1670 = vmatprep.subr.mxu0 0.0
  %1671 = vmatpush2.xpose.msra.mxu0 0.0
  %1672 = vmatprep.subr.mxu0 0.0
  %1673 = vmatpush2.xpose.msra.mxu0 0.0
  %1674 = vmatprep.subr.mxu0 0.0
  %1675 = vmatpush2.xpose.msra.mxu0 0.0
  %1676 = vmatprep.subr.mxu0 0.0
  %1677 = vmatpush2.xpose.msra.mxu0 0.0
  %1678 = vmatprep.subr.mxu0 0.0
  %1679 = vmatpush2.xpose.msra.mxu0 0.0
  %1680 = vmatprep.mubr.f32.mxu0 0.0
  %1681 = vmatmul.mubr.f32.gmra.mxu0 %v1614
  %v1682 = vpop.f32.mrf.mxu0
  %v1683 = vadd.f32 0.0, %v1682
  %v1684 = vpop.f32.mrf.mxu0
  %1685 = vdwg.mxu0
  %v1687 = vsel %vm394, %v1612, 0
  %1689 = vmatprep.subr.mxu0 0.0
  %1690 = vmatpush1.xpose.msra.mxu0 0.0
  %1691 = vmatprep.subr.mxu0 0.0
  %1692 = vmatpush1.xpose.msra.mxu0 0.0
  %1693 = vmatprep.subr.mxu0 0.0
  %1694 = vmatpush1.xpose.msra.mxu0 0.0
  %1695 = vmatprep.subr.mxu0 0.0
  %1696 = vmatpush1.xpose.msra.mxu0 0.0
  %1697 = vmatprep.subr.mxu0 0.0
  %1698 = vmatpush1.xpose.msra.mxu0 0.0
  %1699 = vmatprep.subr.mxu0 0.0
  %1700 = vmatpush1.xpose.msra.mxu0 0.0
  %1701 = vmatprep.subr.mxu0 0.0
  %1702 = vmatpush1.xpose.msra.mxu0 0.0
  %1703 = vmatprep.subr.mxu0 0.0
  %1704 = vmatpush1.xpose.msra.mxu0 0.0
  %1705 = vmatprep.subr.mxu0 0.0
  %1706 = vmatpush1.xpose.msra.mxu0 0.0
  %1707 = vmatprep.subr.mxu0 0.0
  %1708 = vmatpush1.xpose.msra.mxu0 0.0
  %1709 = vmatprep.subr.mxu0 0.0
  %1710 = vmatpush1.xpose.msra.mxu0 0.0
  %1711 = vmatprep.subr.mxu0 0.0
  %1712 = vmatpush1.xpose.msra.mxu0 0.0
  %1713 = vmatprep.subr.mxu0 0.0
  %1714 = vmatpush1.xpose.msra.mxu0 0.0
  %1715 = vmatprep.subr.mxu0 0.0
  %1716 = vmatpush1.xpose.msra.mxu0 0.0
  %1717 = vmatprep.subr.mxu0 0.0
  %1718 = vmatpush1.xpose.msra.mxu0 0.0
  %1719 = vmatprep.subr.mxu0 0.0
  %1720 = vmatpush1.xpose.msra.mxu0 %v727
  %1721 = vmatprep.subr.mxu0 0.0
  %1722 = vmatpush2.xpose.msra.mxu0 0.0
  %1723 = vmatprep.subr.mxu0 0.0
  %1724 = vmatpush2.xpose.msra.mxu0 0.0
  %1725 = vmatprep.subr.mxu0 0.0
  %1726 = vmatpush2.xpose.msra.mxu0 0.0
  %1727 = vmatprep.subr.mxu0 0.0
  %1728 = vmatpush2.xpose.msra.mxu0 0.0
  %1729 = vmatprep.subr.mxu0 0.0
  %1730 = vmatpush2.xpose.msra.mxu0 0.0
  %1731 = vmatprep.subr.mxu0 0.0
  %1732 = vmatpush2.xpose.msra.mxu0 0.0
  %1733 = vmatprep.subr.mxu0 0.0
  %1734 = vmatpush2.xpose.msra.mxu0 0.0
  %1735 = vmatprep.subr.mxu0 0.0
  %1736 = vmatpush2.xpose.msra.mxu0 0.0
  %1737 = vmatprep.subr.mxu0 0.0
  %1738 = vmatpush2.xpose.msra.mxu0 0.0
  %1739 = vmatprep.subr.mxu0 0.0
  %1740 = vmatpush2.xpose.msra.mxu0 0.0
  %1741 = vmatprep.subr.mxu0 0.0
  %1742 = vmatpush2.xpose.msra.mxu0 0.0
  %1743 = vmatprep.subr.mxu0 0.0
  %1744 = vmatpush2.xpose.msra.mxu0 0.0
  %1745 = vmatprep.subr.mxu0 0.0
  %1746 = vmatpush2.xpose.msra.mxu0 0.0
  %1747 = vmatprep.subr.mxu0 0.0
  %1748 = vmatpush2.xpose.msra.mxu0 0.0
  %1749 = vmatprep.subr.mxu0 0.0
  %1750 = vmatpush2.xpose.msra.mxu0 0.0
  %1751 = vmatprep.subr.mxu0 0.0
  %1752 = vmatpush2.xpose.msra.mxu0 0.0
  %1753 = vmatprep.mubr.f32.mxu0 0.0
  %1754 = vmatmul.mubr.f32.gmra.mxu0 %v1687
  %v1755 = vpop.f32.mrf.mxu0
  %v1756 = vadd.f32 0.0, %v1755
  %v1757 = vpop.f32.mrf.mxu0
  %1758 = vdwg.mxu0
  %v1759 = vsel %vm799, %v1683, -inf
  %1760 = vmax.xlane.f32.xlu0 %v1759
  %v1761 = vpop.xlane.xlu0 %1760
  %v1762 = vsel %vm799, %v1756, -inf
  %1763 = vmax.xlane.f32.xlu0 %v1762
  %v1764 = vpop.xlane.xlu0 %1763
  %v1765 = vsub.f32 %v1683, %v1761
  %v1766 = vsub.f32 %v1756, %v1764
  %v1767 = vmul.f32 %v1765, 1.442695
  %v1768 = vpow.pop %v1767
  %v1769 = vmul.f32 %v1766, 1.442695
  %v1770 = vpow.pop %v1769
  %v1771 = vsel %vm799, %v1768, 0.0
  %1772 = vadd.xlane.f32.xlu0 %v1771
  %v1773 = vpop.xlane.xlu0 %1772
  %v1774 = vsel %vm799, %v1770, 0.0
  %1775 = vadd.xlane.f32.xlu0 %v1774
  %v1776 = vpop.xlane.xlu0 %1775
  %v1777 = vrcp.pop %v1773
  %v1778 = vrcp.pop %v1776
  %v1779 = vmul.f32 %v1768, %v1777
  %v1780 = vmul.f32 %v1770, %v1778
  %v1781 = vmul.f32 %v636, %v384
  %v1782 = vmul.f32 %v641, %v384
  %v1784 = vsel %vm799, %v1779, 0
  %1786 = vmatprep.subr.mxu0 0.0
  %1787 = vmatpush1.msra.mxu0 0.0
  %1788 = vmatprep.subr.mxu0 0.0
  %1789 = vmatpush1.msra.mxu0 0.0
  %1790 = vmatprep.subr.mxu0 0.0
  %1791 = vmatpush1.msra.mxu0 0.0
  %1792 = vmatprep.subr.mxu0 0.0
  %1793 = vmatpush1.msra.mxu0 0.0
  %1794 = vmatprep.subr.mxu0 0.0
  %1795 = vmatpush1.msra.mxu0 0.0
  %1796 = vmatprep.subr.mxu0 0.0
  %1797 = vmatpush1.msra.mxu0 0.0
  %1798 = vmatprep.subr.mxu0 0.0
  %1799 = vmatpush1.msra.mxu0 0.0
  %1800 = vmatprep.subr.mxu0 0.0
  %1801 = vmatpush1.msra.mxu0 0.0
  %1802 = vmatprep.subr.mxu0 0.0
  %1803 = vmatpush1.msra.mxu0 0.0
  %1804 = vmatprep.subr.mxu0 0.0
  %1805 = vmatpush1.msra.mxu0 0.0
  %1806 = vmatprep.subr.mxu0 0.0
  %1807 = vmatpush1.msra.mxu0 0.0
  %1808 = vmatprep.subr.mxu0 0.0
  %1809 = vmatpush1.msra.mxu0 0.0
  %1810 = vmatprep.subr.mxu0 0.0
  %1811 = vmatpush1.msra.mxu0 0.0
  %1812 = vmatprep.subr.mxu0 0.0
  %1813 = vmatpush1.msra.mxu0 0.0
  %1814 = vmatprep.subr.mxu0 0.0
  %1815 = vmatpush1.msra.mxu0 0.0
  %1816 = vmatprep.subr.mxu0 0.0
  %1817 = vmatpush1.msra.mxu0 %v1781
  %1818 = vmatprep.subr.mxu0 0.0
  %1819 = vmatpush2.msra.mxu0 0.0
  %1820 = vmatprep.subr.mxu0 0.0
  %1821 = vmatpush2.msra.mxu0 0.0
  %1822 = vmatprep.subr.mxu0 0.0
  %1823 = vmatpush2.msra.mxu0 0.0
  %1824 = vmatprep.subr.mxu0 0.0
  %1825 = vmatpush2.msra.mxu0 0.0
  %1826 = vmatprep.subr.mxu0 0.0
  %1827 = vmatpush2.msra.mxu0 0.0
  %1828 = vmatprep.subr.mxu0 0.0
  %1829 = vmatpush2.msra.mxu0 0.0
  %1830 = vmatprep.subr.mxu0 0.0
  %1831 = vmatpush2.msra.mxu0 0.0
  %1832 = vmatprep.subr.mxu0 0.0
  %1833 = vmatpush2.msra.mxu0 0.0
  %1834 = vmatprep.subr.mxu0 0.0
  %1835 = vmatpush2.msra.mxu0 0.0
  %1836 = vmatprep.subr.mxu0 0.0
  %1837 = vmatpush2.msra.mxu0 0.0
  %1838 = vmatprep.subr.mxu0 0.0
  %1839 = vmatpush2.msra.mxu0 0.0
  %1840 = vmatprep.subr.mxu0 0.0
  %1841 = vmatpush2.msra.mxu0 0.0
  %1842 = vmatprep.subr.mxu0 0.0
  %1843 = vmatpush2.msra.mxu0 0.0
  %1844 = vmatprep.subr.mxu0 0.0
  %1845 = vmatpush2.msra.mxu0 0.0
  %1846 = vmatprep.subr.mxu0 0.0
  %1847 = vmatpush2.msra.mxu0 0.0
  %1848 = vmatprep.subr.mxu0 0.0
  %1849 = vmatpush2.msra.mxu0 0.0
  %1850 = vmatprep.mubr.f32.mxu0 0.0
  %1851 = vmatmul.mubr.f32.gmra.mxu0 %v1784
  %v1852 = vpop.f32.mrf.mxu0
  %v1853 = vadd.f32 0.0, %v1852
  %v1854 = vpop.f32.mrf.mxu0
  %1855 = vdwg.mxu0
  %v1857 = vsel %vm799, %v1780, 0
  %1859 = vmatprep.subr.mxu0 0.0
  %1860 = vmatpush1.msra.mxu0 0.0
  %1861 = vmatprep.subr.mxu0 0.0
  %1862 = vmatpush1.msra.mxu0 0.0
  %1863 = vmatprep.subr.mxu0 0.0
  %1864 = vmatpush1.msra.mxu0 0.0
  %1865 = vmatprep.subr.mxu0 0.0
  %1866 = vmatpush1.msra.mxu0 0.0
  %1867 = vmatprep.subr.mxu0 0.0
  %1868 = vmatpush1.msra.mxu0 0.0
  %1869 = vmatprep.subr.mxu0 0.0
  %1870 = vmatpush1.msra.mxu0 0.0
  %1871 = vmatprep.subr.mxu0 0.0
  %1872 = vmatpush1.msra.mxu0 0.0
  %1873 = vmatprep.subr.mxu0 0.0
  %1874 = vmatpush1.msra.mxu0 0.0
  %1875 = vmatprep.subr.mxu0 0.0
  %1876 = vmatpush1.msra.mxu0 0.0
  %1877 = vmatprep.subr.mxu0 0.0
  %1878 = vmatpush1.msra.mxu0 0.0
  %1879 = vmatprep.subr.mxu0 0.0
  %1880 = vmatpush1.msra.mxu0 0.0
  %1881 = vmatprep.subr.mxu0 0.0
  %1882 = vmatpush1.msra.mxu0 0.0
  %1883 = vmatprep.subr.mxu0 0.0
  %1884 = vmatpush1.msra.mxu0 0.0
  %1885 = vmatprep.subr.mxu0 0.0
  %1886 = vmatpush1.msra.mxu0 0.0
  %1887 = vmatprep.subr.mxu0 0.0
  %1888 = vmatpush1.msra.mxu0 0.0
  %1889 = vmatprep.subr.mxu0 0.0
  %1890 = vmatpush1.msra.mxu0 %v1782
  %1891 = vmatprep.subr.mxu0 0.0
  %1892 = vmatpush2.msra.mxu0 0.0
  %1893 = vmatprep.subr.mxu0 0.0
  %1894 = vmatpush2.msra.mxu0 0.0
  %1895 = vmatprep.subr.mxu0 0.0
  %1896 = vmatpush2.msra.mxu0 0.0
  %1897 = vmatprep.subr.mxu0 0.0
  %1898 = vmatpush2.msra.mxu0 0.0
  %1899 = vmatprep.subr.mxu0 0.0
  %1900 = vmatpush2.msra.mxu0 0.0
  %1901 = vmatprep.subr.mxu0 0.0
  %1902 = vmatpush2.msra.mxu0 0.0
  %1903 = vmatprep.subr.mxu0 0.0
  %1904 = vmatpush2.msra.mxu0 0.0
  %1905 = vmatprep.subr.mxu0 0.0
  %1906 = vmatpush2.msra.mxu0 0.0
  %1907 = vmatprep.subr.mxu0 0.0
  %1908 = vmatpush2.msra.mxu0 0.0
  %1909 = vmatprep.subr.mxu0 0.0
  %1910 = vmatpush2.msra.mxu0 0.0
  %1911 = vmatprep.subr.mxu0 0.0
  %1912 = vmatpush2.msra.mxu0 0.0
  %1913 = vmatprep.subr.mxu0 0.0
  %1914 = vmatpush2.msra.mxu0 0.0
  %1915 = vmatprep.subr.mxu0 0.0
  %1916 = vmatpush2.msra.mxu0 0.0
  %1917 = vmatprep.subr.mxu0 0.0
  %1918 = vmatpush2.msra.mxu0 0.0
  %1919 = vmatprep.subr.mxu0 0.0
  %1920 = vmatpush2.msra.mxu0 0.0
  %1921 = vmatprep.subr.mxu0 0.0
  %1922 = vmatpush2.msra.mxu0 0.0
  %1923 = vmatprep.mubr.f32.mxu0 0.0
  %1924 = vmatmul.mubr.f32.gmra.mxu0 %v1857
  %v1925 = vpop.f32.mrf.mxu0
  %v1926 = vadd.f32 0.0, %v1925
  %v1927 = vpop.f32.mrf.mxu0
  %1928 = vdwg.mxu0
  %v1929 = vadd.f32 %v1608, %v1853
  %v1930 = vadd.f32 %v1609, %v1926
  %v1931 = vld [vmem:[%s21] sm:$0xff]
  %v1932 = vld [vmem:[%s21 + $0x8] sm:$0xff]
  %v1933 = vld [vmem:[%s23] sm:$0x1]
  %v1935 = vlaneseq
  %v1936 = vshrl.u32 %v1935, 7
  %v1937 = vsub.s32 0, %v1936
  %v1938 = vrot.slane %v1933, %v1937
  %v1941 = vsel %vm394, %v1929, 0
  %v1944 = vsel %vm394, %v1930, 0
  %1946 = vmatprep.subr.mxu0 0.0
  %1947 = vmatpush1.msra.mxu0 0.0
  %1948 = vmatprep.subr.mxu0 0.0
  %1949 = vmatpush1.msra.mxu0 0.0
  %1950 = vmatprep.subr.mxu0 0.0
  %1951 = vmatpush1.msra.mxu0 0.0
  %1952 = vmatprep.subr.mxu0 0.0
  %1953 = vmatpush1.msra.mxu0 0.0
  %1954 = vmatprep.subr.mxu0 0.0
  %1955 = vmatpush1.msra.mxu0 0.0
  %1956 = vmatprep.subr.mxu0 0.0
  %1957 = vmatpush1.msra.mxu0 0.0
  %1958 = vmatprep.subr.mxu0 0.0
  %1959 = vmatpush1.msra.mxu0 0.0
  %1960 = vmatprep.subr.mxu0 0.0
  %1961 = vmatpush1.msra.mxu0 0.0
  %1962 = vmatprep.subr.mxu0 0.0
  %1963 = vmatpush1.msra.mxu0 0.0
  %1964 = vmatprep.subr.mxu0 0.0
  %1965 = vmatpush1.msra.mxu0 0.0
  %1966 = vmatprep.subr.mxu0 0.0
  %1967 = vmatpush1.msra.mxu0 0.0
  %1968 = vmatprep.subr.mxu0 0.0
  %1969 = vmatpush1.msra.mxu0 0.0
  %1970 = vmatprep.subr.mxu0 0.0
  %1971 = vmatpush1.msra.mxu0 0.0
  %1972 = vmatprep.subr.mxu0 0.0
  %1973 = vmatpush1.msra.mxu0 0.0
  %1974 = vmatprep.subr.mxu0 0.0
  %1975 = vmatpush1.msra.mxu0 %v1932
  %1976 = vmatprep.subr.mxu0 0.0
  %1977 = vmatpush1.msra.mxu0 %v1931
  %1978 = vmatprep.subr.mxu0 0.0
  %1979 = vmatpush2.msra.mxu0 0.0
  %1980 = vmatprep.subr.mxu0 0.0
  %1981 = vmatpush2.msra.mxu0 0.0
  %1982 = vmatprep.subr.mxu0 0.0
  %1983 = vmatpush2.msra.mxu0 0.0
  %1984 = vmatprep.subr.mxu0 0.0
  %1985 = vmatpush2.msra.mxu0 0.0
  %1986 = vmatprep.subr.mxu0 0.0
  %1987 = vmatpush2.msra.mxu0 0.0
  %1988 = vmatprep.subr.mxu0 0.0
  %1989 = vmatpush2.msra.mxu0 0.0
  %1990 = vmatprep.subr.mxu0 0.0
  %1991 = vmatpush2.msra.mxu0 0.0
  %1992 = vmatprep.subr.mxu0 0.0
  %1993 = vmatpush2.msra.mxu0 0.0
  %1994 = vmatprep.subr.mxu0 0.0
  %1995 = vmatpush2.msra.mxu0 0.0
  %1996 = vmatprep.subr.mxu0 0.0
  %1997 = vmatpush2.msra.mxu0 0.0
  %1998 = vmatprep.subr.mxu0 0.0
  %1999 = vmatpush2.msra.mxu0 0.0
  %2000 = vmatprep.subr.mxu0 0.0
  %2001 = vmatpush2.msra.mxu0 0.0
  %2002 = vmatprep.subr.mxu0 0.0
  %2003 = vmatpush2.msra.mxu0 0.0
  %2004 = vmatprep.subr.mxu0 0.0
  %2005 = vmatpush2.msra.mxu0 0.0
  %2006 = vmatprep.subr.mxu0 0.0
  %2007 = vmatpush2.msra.mxu0 0.0
  %2008 = vmatprep.subr.mxu0 0.0
  %2009 = vmatpush2.msra.mxu0 0.0
  %2010 = vmatprep.mubr.f32.mxu0 0.0
  %2011 = vmatmul.mubr.f32.gmra.mxu0 %v1941
  %v2012 = vpop.f32.mrf.mxu0
  %v2013 = vadd.f32 %v1938, %v2012
  %v2014 = vpop.f32.mrf.mxu0
  %2015 = vmatprep.mubr.f32.mxu0 0.0
  %2016 = vmatmul.mubr.f32.gmra.mxu0 %v1944
  %v2017 = vpop.f32.mrf.mxu0
  %v2018 = vadd.f32 %v1938, %v2017
  %v2019 = vpop.f32.mrf.mxu0
  %2020 = vdwg.mxu0
  %v2021 = vadd.f32 %v270, %v2013
  %v2022 = vadd.f32 %v275, %v2018
  %v2023 = vld [vmem:[%s25] sm:$0x1]
  %v2024 = vld [vmem:[%s27] sm:$0x1]
  %v2025 = vsel %vm394, %v2021, 0.0
  %2026 = vadd.xlane.f32.xlu0 %v2025
  %v2027 = vpop.xlane.xlu0 %2026
  %v2028 = vsel %vm394, %v2022, 0.0
  %2029 = vadd.xlane.f32.xlu0 %v2028
  %v2030 = vpop.xlane.xlu0 %2029
  %v2031 = vrcp.pop 16.0
  %v2032 = vmul.f32 %v2027, %v2031
  %v2033 = vmul.f32 %v2030, %v2031
  %v2034 = vsub.f32 %v2021, %v2032
  %v2035 = vsub.f32 %v2022, %v2033
  %v2036 = vmul.f32 %v2034, %v2034
  %v2037 = vmul.f32 %v2035, %v2035
  %v2038 = vsel %vm394, %v2036, 0.0
  %2039 = vadd.xlane.f32.xlu0 %v2038
  %v2040 = vpop.xlane.xlu0 %2039
  %v2041 = vsel %vm394, %v2037, 0.0
  %2042 = vadd.xlane.f32.xlu0 %v2041
  %v2043 = vpop.xlane.xlu0 %2042
  %v2044 = vmul.f32 %v2040, %v2031
  %v2045 = vmul.f32 %v2043, %v2031
  %v2046 = vadd.f32 %v2044, 1e-05
  %v2047 = vadd.f32 %v2045, 1e-05
  %v2048 = vrsqrt.pop %v2046
  %v2049 = vrsqrt.pop %v2047
  %v2050 = vmul.f32 %v2034, %v2048
  %v2051 = vmul.f32 %v2035, %v2049
  %v2053 = vlaneseq
  %v2054 = vshrl.u32 %v2053, 7
  %v2055 = vsub.s32 0, %v2054
  %v2056 = vrot.slane %v2023, %v2055
  %v2058 = vmul.f32 %v2050, %v2056
  %v2059 = vmul.f32 %v2051, %v2056
  %v2061 = vlaneseq
  %v2062 = vshrl.u32 %v2061, 7
  %v2063 = vsub.s32 0, %v2062
  %v2064 = vrot.slane %v2024, %v2063
  %v2066 = vadd.f32 %v2058, %v2064
  %v2067 = vadd.f32 %v2059, %v2064
  %v2068 = vpack.c.bf16 %v2067, %v2066
  %v2069 = vld [vmem:[%s29] sm:$0xff]
  %v2070 = vld [vmem:[%s29 + $0x8] sm:$0xff]
  %v2071 = vld [vmem:[%s29 + $0x10] sm:$0xff]
  %v2072 = vld [vmem:[%s29 + $0x18] sm:$0xff]
  %v2073 = vld [vmem:[%s29 + $0x20] sm:$0xff]
  %v2074 = vld [vmem:[%s29 + $0x28] sm:$0xff]
  %v2075 = vld [vmem:[%s29 + $0x30] sm:$0xff]
  %v2076 = vld [vmem:[%s29 + $0x38] sm:$0xff]
  %v2077 = vld [vmem:[%s29 + $0x40] sm:$0xff]
  %v2078 = vld [vmem:[%s29 + $0x48] sm:$0xff]
  %v2079 = vld [vmem:[%s29 + $0x50] sm:$0xff]
  %v2080 = vld [vmem:[%s29 + $0x58] sm:$0xff]
  %v2081 = vld [vmem:[%s29 + $0x60] sm:$0xff]
  %v2082 = vld [vmem:[%s29 + $0x68] sm:$0xff]
  %v2083 = vld [vmem:[%s29 + $0x70] sm:$0xff]
  %v2084 = vld [vmem:[%s29 + $0x78] sm:$0xff]
  %v2085 = vld [vmem:[%s31] sm:$0xff]
  %v2086 = vld [vmem:[%s31 + $0x8] sm:$0xff]
  %v2089 = vlaneseq
  %v2090 = vshrl.u32 %v2089, 7
  %v2091 = vsub.s32 0, %v2090
  %v2092 = vrot.slane %v2085, %v2091
  %v2093 = vlaneseq
  %v2094 = vshrl.u32 %v2093, 7
  %v2095 = vsub.s32 1, %v2094
  %v2096 = vrot.slane %v2085, %v2095
  %v2097 = vlaneseq
  %v2098 = vshrl.u32 %v2097, 7
  %v2099 = vsub.s32 2, %v2098
  %v2100 = vrot.slane %v2085, %v2099
  %v2101 = vlaneseq
  %v2102 = vshrl.u32 %v2101, 7
  %v2103 = vsub.s32 3, %v2102
  %v2104 = vrot.slane %v2085, %v2103
  %v2105 = vlaneseq
  %v2106 = vshrl.u32 %v2105, 7
  %v2107 = vsub.s32 4, %v2106
  %v2108 = vrot.slane %v2085, %v2107
  %v2109 = vlaneseq
  %v2110 = vshrl.u32 %v2109, 7
  %v2111 = vsub.s32 5, %v2110
  %v2112 = vrot.slane %v2085, %v2111
  %v2113 = vlaneseq
  %v2114 = vshrl.u32 %v2113, 7
  %v2115 = vsub.s32 6, %v2114
  %v2116 = vrot.slane %v2085, %v2115
  %v2117 = vlaneseq
  %v2118 = vshrl.u32 %v2117, 7
  %v2119 = vsub.s32 7, %v2118
  %v2120 = vrot.slane %v2085, %v2119
  %v2121 = vlaneseq
  %v2122 = vshrl.u32 %v2121, 7
  %v2123 = vsub.s32 0, %v2122
  %v2124 = vrot.slane %v2086, %v2123
  %v2125 = vlaneseq
  %v2126 = vshrl.u32 %v2125, 7
  %v2127 = vsub.s32 1, %v2126
  %v2128 = vrot.slane %v2086, %v2127
  %v2129 = vlaneseq
  %v2130 = vshrl.u32 %v2129, 7
  %v2131 = vsub.s32 2, %v2130
  %v2132 = vrot.slane %v2086, %v2131
  %v2133 = vlaneseq
  %v2134 = vshrl.u32 %v2133, 7
  %v2135 = vsub.s32 3, %v2134
  %v2136 = vrot.slane %v2086, %v2135
  %v2137 = vlaneseq
  %v2138 = vshrl.u32 %v2137, 7
  %v2139 = vsub.s32 4, %v2138
  %v2140 = vrot.slane %v2086, %v2139
  %v2141 = vlaneseq
  %v2142 = vshrl.u32 %v2141, 7
  %v2143 = vsub.s32 5, %v2142
  %v2144 = vrot.slane %v2086, %v2143
  %v2145 = vlaneseq
  %v2146 = vshrl.u32 %v2145, 7
  %v2147 = vsub.s32 6, %v2146
  %v2148 = vrot.slane %v2086, %v2147
  %v2149 = vlaneseq
  %v2150 = vshrl.u32 %v2149, 7
  %v2151 = vsub.s32 7, %v2150
  %v2152 = vrot.slane %v2086, %v2151
  %v2185 = vunpack.c.l.b16 %v2069
  %v2186 = vunpack.c.h.b16 %v2069
  %v2187 = vunpack.c.l.b16 %v2070
  %v2188 = vunpack.c.h.b16 %v2070
  %v2189 = vunpack.c.l.b16 %v2071
  %v2190 = vunpack.c.h.b16 %v2071
  %v2191 = vunpack.c.l.b16 %v2072
  %v2192 = vunpack.c.h.b16 %v2072
  %v2193 = vunpack.c.l.b16 %v2073
  %v2194 = vunpack.c.h.b16 %v2073
  %v2195 = vunpack.c.l.b16 %v2074
  %v2196 = vunpack.c.h.b16 %v2074
  %v2197 = vunpack.c.l.b16 %v2075
  %v2198 = vunpack.c.h.b16 %v2075
  %v2199 = vunpack.c.l.b16 %v2076
  %v2200 = vunpack.c.h.b16 %v2076
  %v2201 = vunpack.c.l.b16 %v2077
  %v2202 = vunpack.c.h.b16 %v2077
  %v2203 = vunpack.c.l.b16 %v2078
  %v2204 = vunpack.c.h.b16 %v2078
  %v2205 = vunpack.c.l.b16 %v2079
  %v2206 = vunpack.c.h.b16 %v2079
  %v2207 = vunpack.c.l.b16 %v2080
  %v2208 = vunpack.c.h.b16 %v2080
  %v2209 = vunpack.c.l.b16 %v2081
  %v2210 = vunpack.c.h.b16 %v2081
  %v2211 = vunpack.c.l.b16 %v2082
  %v2212 = vunpack.c.h.b16 %v2082
  %v2213 = vunpack.c.l.b16 %v2083
  %v2214 = vunpack.c.h.b16 %v2083
  %v2215 = vunpack.c.l.b16 %v2084
  %v2216 = vunpack.c.h.b16 %v2084
  %v2217 = vpack.c.b16 %v2201, %v2185
  %v2218 = vpack.c.b16 %v2202, %v2186
  %v2219 = vpack.c.b16 %v2203, %v2187
  %v2220 = vpack.c.b16 %v2204, %v2188
  %v2221 = vpack.c.b16 %v2205, %v2189
  %v2222 = vpack.c.b16 %v2206, %v2190
  %v2223 = vpack.c.b16 %v2207, %v2191
  %v2224 = vpack.c.b16 %v2208, %v2192
  %v2225 = vpack.c.b16 %v2209, %v2193
  %v2226 = vpack.c.b16 %v2210, %v2194
  %v2227 = vpack.c.b16 %v2211, %v2195
  %v2228 = vpack.c.b16 %v2212, %v2196
  %v2229 = vpack.c.b16 %v2213, %v2197
  %v2230 = vpack.c.b16 %v2214, %v2198
  %v2231 = vpack.c.b16 %v2215, %v2199
  %v2232 = vpack.c.b16 %v2216, %v2200
  %v2250 = vsel %vm394, %v2068, 0
  %2252 = vmatprep.subr.bf16.mxu0 0
  %2253 = vmatpush1.bf16.msra.mxu0 0
  %2254 = vmatprep.subr.bf16.mxu0 0
  %2255 = vmatpush1.bf16.msra.mxu0 0
  %2256 = vmatprep.subr.bf16.mxu0 0
  %2257 = vmatpush1.bf16.msra.mxu0 0
  %2258 = vmatprep.subr.bf16.mxu0 0
  %2259 = vmatpush1.bf16.msra.mxu0 0
  %2260 = vmatprep.subr.bf16.mxu0 0
  %2261 = vmatpush1.bf16.msra.mxu0 0
  %2262 = vmatprep.subr.bf16.mxu0 0
  %2263 = vmatpush1.bf16.msra.mxu0 0
  %2264 = vmatprep.subr.bf16.mxu0 0
  %2265 = vmatpush1.bf16.msra.mxu0 0
  %2266 = vmatprep.subr.bf16.mxu0 %v2218
  %2267 = vmatpush1.bf16.msra.mxu0 %v2217
  %2268 = vmatprep.subr.bf16.mxu0 0
  %2269 = vmatpush2.bf16.msra.mxu0 0
  %2270 = vmatprep.subr.bf16.mxu0 0
  %2271 = vmatpush2.bf16.msra.mxu0 0
  %2272 = vmatprep.subr.bf16.mxu0 0
  %2273 = vmatpush2.bf16.msra.mxu0 0
  %2274 = vmatprep.subr.bf16.mxu0 0
  %2275 = vmatpush2.bf16.msra.mxu0 0
  %2276 = vmatprep.subr.bf16.mxu0 0
  %2277 = vmatpush2.bf16.msra.mxu0 0
  %2278 = vmatprep.subr.bf16.mxu0 0
  %2279 = vmatpush2.bf16.msra.mxu0 0
  %2280 = vmatprep.subr.bf16.mxu0 0
  %2281 = vmatpush2.bf16.msra.mxu0 0
  %2282 = vmatprep.subr.bf16.mxu0 0
  %2283 = vmatpush2.bf16.msra.mxu0 0
  %2284 = vmatprep.mubr.bf16.mxu0 0
  %2285 = vmatmul.mubr.bf16.gmra.mxu0 %v2250
  %v2286 = vpop.f32.mrf.mxu0
  %v2287 = vadd.f32 %v2092, %v2286
  %v2288 = vpop.f32.mrf.mxu0
  %v2289 = vadd.f32 %v2096, %v2288
  %v2290 = vpop.f32.mrf.mxu0
  %v2291 = vadd.f32 %v2092, %v2290
  %v2292 = vpop.f32.mrf.mxu0
  %v2293 = vadd.f32 %v2096, %v2292
  %2294 = vdwg.mxu0
  %2295 = vmatprep.subr.bf16.mxu0 0
  %2296 = vmatpush1.bf16.msra.mxu0 0
  %2297 = vmatprep.subr.bf16.mxu0 0
  %2298 = vmatpush1.bf16.msra.mxu0 0
  %2299 = vmatprep.subr.bf16.mxu0 0
  %2300 = vmatpush1.bf16.msra.mxu0 0
  %2301 = vmatprep.subr.bf16.mxu0 0
  %2302 = vmatpush1.bf16.msra.mxu0 0
  %2303 = vmatprep.subr.bf16.mxu0 0
  %2304 = vmatpush1.bf16.msra.mxu0 0
  %2305 = vmatprep.subr.bf16.mxu0 0
  %2306 = vmatpush1.bf16.msra.mxu0 0
  %2307 = vmatprep.subr.bf16.mxu0 0
  %2308 = vmatpush1.bf16.msra.mxu0 0
  %2309 = vmatprep.subr.bf16.mxu0 %v2220
  %2310 = vmatpush1.bf16.msra.mxu0 %v2219
  %2311 = vmatprep.subr.bf16.mxu0 0
  %2312 = vmatpush2.bf16.msra.mxu0 0
  %2313 = vmatprep.subr.bf16.mxu0 0
  %2314 = vmatpush2.bf16.msra.mxu0 0
  %2315 = vmatprep.subr.bf16.mxu0 0
  %2316 = vmatpush2.bf16.msra.mxu0 0
  %2317 = vmatprep.subr.bf16.mxu0 0
  %2318 = vmatpush2.bf16.msra.mxu0 0
  %2319 = vmatprep.subr.bf16.mxu0 0
  %2320 = vmatpush2.bf16.msra.mxu0 0
  %2321 = vmatprep.subr.bf16.mxu0 0
  %2322 = vmatpush2.bf16.msra.mxu0 0
  %2323 = vmatprep.subr.bf16.mxu0 0
  %2324 = vmatpush2.bf16.msra.mxu0 0
  %2325 = vmatprep.subr.bf16.mxu0 0
  %2326 = vmatpush2.bf16.msra.mxu0 0
  %2327 = vmatprep.mubr.bf16.mxu0 0
  %2328 = vmatmul.mubr.bf16.gmra.mxu0 %v2250
  %v2329 = vpop.f32.mrf.mxu0
  %v2330 = vadd.f32 %v2100, %v2329
  %v2331 = vpop.f32.mrf.mxu0
  %v2332 = vadd.f32 %v2104, %v2331
  %v2333 = vpop.f32.mrf.mxu0
  %v2334 = vadd.f32 %v2100, %v2333
  %v2335 = vpop.f32.mrf.mxu0
  %v2336 = vadd.f32 %v2104, %v2335
  %2337 = vdwg.mxu0
  %2338 = vmatprep.subr.bf16.mxu0 0
  %2339 = vmatpush1.bf16.msra.mxu0 0
  %2340 = vmatprep.subr.bf16.mxu0 0
  %2341 = vmatpush1.bf16.msra.mxu0 0
  %2342 = vmatprep.subr.bf16.mxu0 0
  %2343 = vmatpush1.bf16.msra.mxu0 0
  %2344 = vmatprep.subr.bf16.mxu0 0
  %2345 = vmatpush1.bf16.msra.mxu0 0
  %2346 = vmatprep.subr.bf16.mxu0 0
  %2347 = vmatpush1.bf16.msra.mxu0 0
  %2348 = vmatprep.subr.bf16.mxu0 0
  %2349 = vmatpush1.bf16.msra.mxu0 0
  %2350 = vmatprep.subr.bf16.mxu0 0
  %2351 = vmatpush1.bf16.msra.mxu0 0
  %2352 = vmatprep.subr.bf16.mxu0 %v2222
  %2353 = vmatpush1.bf16.msra.mxu0 %v2221
  %2354 = vmatprep.subr.bf16.mxu0 0
  %2355 = vmatpush2.bf16.msra.mxu0 0
  %2356 = vmatprep.subr.bf16.mxu0 0
  %2357 = vmatpush2.bf16.msra.mxu0 0
  %2358 = vmatprep.subr.bf16.mxu0 0
  %2359 = vmatpush2.bf16.msra.mxu0 0
  %2360 = vmatprep.subr.bf16.mxu0 0
  %2361 = vmatpush2.bf16.msra.mxu0 0
  %2362 = vmatprep.subr.bf16.mxu0 0
  %2363 = vmatpush2.bf16.msra.mxu0 0
  %2364 = vmatprep.subr.bf16.mxu0 0
  %2365 = vmatpush2.bf16.msra.mxu0 0
  %2366 = vmatprep.subr.bf16.mxu0 0
  %2367 = vmatpush2.bf16.msra.mxu0 0
  %2368 = vmatprep.subr.bf16.mxu0 0
  %2369 = vmatpush2.bf16.msra.mxu0 0
  %2370 = vmatprep.mubr.bf16.mxu0 0
  %2371 = vmatmul.mubr.bf16.gmra.mxu0 %v2250
  %v2372 = vpop.f32.mrf.mxu0
  %v2373 = vadd.f32 %v2108, %v2372
  %v2374 = vpop.f32.mrf.mxu0
  %v2375 = vadd.f32 %v2112, %v2374
  %v2376 = vpop.f32.mrf.mxu0
  %v2377 = vadd.f32 %v2108, %v2376
  %v2378 = vpop.f32.mrf.mxu0
  %v2379 = vadd.f32 %v2112, %v2378
  %2380 = vdwg.mxu0
  %2381 = vmatprep.subr.bf16.mxu0 0
  %2382 = vmatpush1.bf16.msra.mxu0 0
  %2383 = vmatprep.subr.bf16.mxu0 0
  %2384 = vmatpush1.bf16.msra.mxu0 0
  %2385 = vmatprep.subr.bf16.mxu0 0
  %2386 = vmatpush1.bf16.msra.mxu0 0
  %2387 = vmatprep.subr.bf16.mxu0 0
  %2388 = vmatpush1.bf16.msra.mxu0 0
  %2389 = vmatprep.subr.bf16.mxu0 0
  %2390 = vmatpush1.bf16.msra.mxu0 0
  %2391 = vmatprep.subr.bf16.mxu0 0
  %2392 = vmatpush1.bf16.msra.mxu0 0
  %2393 = vmatprep.subr.bf16.mxu0 0
  %2394 = vmatpush1.bf16.msra.mxu0 0
  %2395 = vmatprep.subr.bf16.mxu0 %v2224
  %2396 = vmatpush1.bf16.msra.mxu0 %v2223
  %2397 = vmatprep.subr.bf16.mxu0 0
  %2398 = vmatpush2.bf16.msra.mxu0 0
  %2399 = vmatprep.subr.bf16.mxu0 0
  %2400 = vmatpush2.bf16.msra.mxu0 0
  %2401 = vmatprep.subr.bf16.mxu0 0
  %2402 = vmatpush2.bf16.msra.mxu0 0
  %2403 = vmatprep.subr.bf16.mxu0 0
  %2404 = vmatpush2.bf16.msra.mxu0 0
  %2405 = vmatprep.subr.bf16.mxu0 0
  %2406 = vmatpush2.bf16.msra.mxu0 0
  %2407 = vmatprep.subr.bf16.mxu0 0
  %2408 = vmatpush2.bf16.msra.mxu0 0
  %2409 = vmatprep.subr.bf16.mxu0 0
  %2410 = vmatpush2.bf16.msra.mxu0 0
  %2411 = vmatprep.subr.bf16.mxu0 0
  %2412 = vmatpush2.bf16.msra.mxu0 0
  %2413 = vmatprep.mubr.bf16.mxu0 0
  %2414 = vmatmul.mubr.bf16.gmra.mxu0 %v2250
  %v2415 = vpop.f32.mrf.mxu0
  %v2416 = vadd.f32 %v2116, %v2415
  %v2417 = vpop.f32.mrf.mxu0
  %v2418 = vadd.f32 %v2120, %v2417
  %v2419 = vpop.f32.mrf.mxu0
  %v2420 = vadd.f32 %v2116, %v2419
  %v2421 = vpop.f32.mrf.mxu0
  %v2422 = vadd.f32 %v2120, %v2421
  %2423 = vdwg.mxu0
  %2424 = vmatprep.subr.bf16.mxu0 0
  %2425 = vmatpush1.bf16.msra.mxu0 0
  %2426 = vmatprep.subr.bf16.mxu0 0
  %2427 = vmatpush1.bf16.msra.mxu0 0
  %2428 = vmatprep.subr.bf16.mxu0 0
  %2429 = vmatpush1.bf16.msra.mxu0 0
  %2430 = vmatprep.subr.bf16.mxu0 0
  %2431 = vmatpush1.bf16.msra.mxu0 0
  %2432 = vmatprep.subr.bf16.mxu0 0
  %2433 = vmatpush1.bf16.msra.mxu0 0
  %2434 = vmatprep.subr.bf16.mxu0 0
  %2435 = vmatpush1.bf16.msra.mxu0 0
  %2436 = vmatprep.subr.bf16.mxu0 0
  %2437 = vmatpush1.bf16.msra.mxu0 0
  %2438 = vmatprep.subr.bf16.mxu0 %v2226
  %2439 = vmatpush1.bf16.msra.mxu0 %v2225
  %2440 = vmatprep.subr.bf16.mxu0 0
  %2441 = vmatpush2.bf16.msra.mxu0 0
  %2442 = vmatprep.subr.bf16.mxu0 0
  %2443 = vmatpush2.bf16.msra.mxu0 0
  %2444 = vmatprep.subr.bf16.mxu0 0
  %2445 = vmatpush2.bf16.msra.mxu0 0
  %2446 = vmatprep.subr.bf16.mxu0 0
  %2447 = vmatpush2.bf16.msra.mxu0 0
  %2448 = vmatprep.subr.bf16.mxu0 0
  %2449 = vmatpush2.bf16.msra.mxu0 0
  %2450 = vmatprep.subr.bf16.mxu0 0
  %2451 = vmatpush2.bf16.msra.mxu0 0
  %2452 = vmatprep.subr.bf16.mxu0 0
  %2453 = vmatpush2.bf16.msra.mxu0 0
  %2454 = vmatprep.subr.bf16.mxu0 0
  %2455 = vmatpush2.bf16.msra.mxu0 0
  %2456 = vmatprep.mubr.bf16.mxu0 0
  %2457 = vmatmul.mubr.bf16.gmra.mxu0 %v2250
  %v2458 = vpop.f32.mrf.mxu0
  %v2459 = vadd.f32 %v2124, %v2458
  %v2460 = vpop.f32.mrf.mxu0
  %v2461 = vadd.f32 %v2128, %v2460
  %v2462 = vpop.f32.mrf.mxu0
  %v2463 = vadd.f32 %v2124, %v2462
  %v2464 = vpop.f32.mrf.mxu0
  %v2465 = vadd.f32 %v2128, %v2464
  %2466 = vdwg.mxu0
  %2467 = vmatprep.subr.bf16.mxu0 0
  %2468 = vmatpush1.bf16.msra.mxu0 0
  %2469 = vmatprep.subr.bf16.mxu0 0
  %2470 = vmatpush1.bf16.msra.mxu0 0
  %2471 = vmatprep.subr.bf16.mxu0 0
  %2472 = vmatpush1.bf16.msra.mxu0 0
  %2473 = vmatprep.subr.bf16.mxu0 0
  %2474 = vmatpush1.bf16.msra.mxu0 0
  %2475 = vmatprep.subr.bf16.mxu0 0
  %2476 = vmatpush1.bf16.msra.mxu0 0
  %2477 = vmatprep.subr.bf16.mxu0 0
  %2478 = vmatpush1.bf16.msra.mxu0 0
  %2479 = vmatprep.subr.bf16.mxu0 0
  %2480 = vmatpush1.bf16.msra.mxu0 0
  %2481 = vmatprep.subr.bf16.mxu0 %v2228
  %2482 = vmatpush1.bf16.msra.mxu0 %v2227
  %2483 = vmatprep.subr.bf16.mxu0 0
  %2484 = vmatpush2.bf16.msra.mxu0 0
  %2485 = vmatprep.subr.bf16.mxu0 0
  %2486 = vmatpush2.bf16.msra.mxu0 0
  %2487 = vmatprep.subr.bf16.mxu0 0
  %2488 = vmatpush2.bf16.msra.mxu0 0
  %2489 = vmatprep.subr.bf16.mxu0 0
  %2490 = vmatpush2.bf16.msra.mxu0 0
  %2491 = vmatprep.subr.bf16.mxu0 0
  %2492 = vmatpush2.bf16.msra.mxu0 0
  %2493 = vmatprep.subr.bf16.mxu0 0
  %2494 = vmatpush2.bf16.msra.mxu0 0
  %2495 = vmatprep.subr.bf16.mxu0 0
  %2496 = vmatpush2.bf16.msra.mxu0 0
  %2497 = vmatprep.subr.bf16.mxu0 0
  %2498 = vmatpush2.bf16.msra.mxu0 0
  %2499 = vmatprep.mubr.bf16.mxu0 0
  %2500 = vmatmul.mubr.bf16.gmra.mxu0 %v2250
  %v2501 = vpop.f32.mrf.mxu0
  %v2502 = vadd.f32 %v2132, %v2501
  %v2503 = vpop.f32.mrf.mxu0
  %v2504 = vadd.f32 %v2136, %v2503
  %v2505 = vpop.f32.mrf.mxu0
  %v2506 = vadd.f32 %v2132, %v2505
  %v2507 = vpop.f32.mrf.mxu0
  %v2508 = vadd.f32 %v2136, %v2507
  %2509 = vdwg.mxu0
  %2510 = vmatprep.subr.bf16.mxu0 0
  %2511 = vmatpush1.bf16.msra.mxu0 0
  %2512 = vmatprep.subr.bf16.mxu0 0
  %2513 = vmatpush1.bf16.msra.mxu0 0
  %2514 = vmatprep.subr.bf16.mxu0 0
  %2515 = vmatpush1.bf16.msra.mxu0 0
  %2516 = vmatprep.subr.bf16.mxu0 0
  %2517 = vmatpush1.bf16.msra.mxu0 0
  %2518 = vmatprep.subr.bf16.mxu0 0
  %2519 = vmatpush1.bf16.msra.mxu0 0
  %2520 = vmatprep.subr.bf16.mxu0 0
  %2521 = vmatpush1.bf16.msra.mxu0 0
  %2522 = vmatprep.subr.bf16.mxu0 0
  %2523 = vmatpush1.bf16.msra.mxu0 0
  %2524 = vmatprep.subr.bf16.mxu0 %v2230
  %2525 = vmatpush1.bf16.msra.mxu0 %v2229
  %2526 = vmatprep.subr.bf16.mxu0 0
  %2527 = vmatpush2.bf16.msra.mxu0 0
  %2528 = vmatprep.subr.bf16.mxu0 0
  %2529 = vmatpush2.bf16.msra.mxu0 0
  %2530 = vmatprep.subr.bf16.mxu0 0
  %2531 = vmatpush2.bf16.msra.mxu0 0
  %2532 = vmatprep.subr.bf16.mxu0 0
  %2533 = vmatpush2.bf16.msra.mxu0 0
  %2534 = vmatprep.subr.bf16.mxu0 0
  %2535 = vmatpush2.bf16.msra.mxu0 0
  %2536 = vmatprep.subr.bf16.mxu0 0
  %2537 = vmatpush2.bf16.msra.mxu0 0
  %2538 = vmatprep.subr.bf16.mxu0 0
  %2539 = vmatpush2.bf16.msra.mxu0 0
  %2540 = vmatprep.subr.bf16.mxu0 0
  %2541 = vmatpush2.bf16.msra.mxu0 0
  %2542 = vmatprep.mubr.bf16.mxu0 0
  %2543 = vmatmul.mubr.bf16.gmra.mxu0 %v2250
  %v2544 = vpop.f32.mrf.mxu0
  %v2545 = vadd.f32 %v2140, %v2544
  %v2546 = vpop.f32.mrf.mxu0
  %v2547 = vadd.f32 %v2144, %v2546
  %v2548 = vpop.f32.mrf.mxu0
  %v2549 = vadd.f32 %v2140, %v2548
  %v2550 = vpop.f32.mrf.mxu0
  %v2551 = vadd.f32 %v2144, %v2550
  %2552 = vdwg.mxu0
  %2553 = vmatprep.subr.bf16.mxu0 0
  %2554 = vmatpush1.bf16.msra.mxu0 0
  %2555 = vmatprep.subr.bf16.mxu0 0
  %2556 = vmatpush1.bf16.msra.mxu0 0
  %2557 = vmatprep.subr.bf16.mxu0 0
  %2558 = vmatpush1.bf16.msra.mxu0 0
  %2559 = vmatprep.subr.bf16.mxu0 0
  %2560 = vmatpush1.bf16.msra.mxu0 0
  %2561 = vmatprep.subr.bf16.mxu0 0
  %2562 = vmatpush1.bf16.msra.mxu0 0
  %2563 = vmatprep.subr.bf16.mxu0 0
  %2564 = vmatpush1.bf16.msra.mxu0 0
  %2565 = vmatprep.subr.bf16.mxu0 0
  %2566 = vmatpush1.bf16.msra.mxu0 0
  %2567 = vmatprep.subr.bf16.mxu0 %v2232
  %2568 = vmatpush1.bf16.msra.mxu0 %v2231
  %2569 = vmatprep.subr.bf16.mxu0 0
  %2570 = vmatpush2.bf16.msra.mxu0 0
  %2571 = vmatprep.subr.bf16.mxu0 0
  %2572 = vmatpush2.bf16.msra.mxu0 0
  %2573 = vmatprep.subr.bf16.mxu0 0
  %2574 = vmatpush2.bf16.msra.mxu0 0
  %2575 = vmatprep.subr.bf16.mxu0 0
  %2576 = vmatpush2.bf16.msra.mxu0 0
  %2577 = vmatprep.subr.bf16.mxu0 0
  %2578 = vmatpush2.bf16.msra.mxu0 0
  %2579 = vmatprep.subr.bf16.mxu0 0
  %2580 = vmatpush2.bf16.msra.mxu0 0
  %2581 = vmatprep.subr.bf16.mxu0 0
  %2582 = vmatpush2.bf16.msra.mxu0 0
  %2583 = vmatprep.subr.bf16.mxu0 0
  %2584 = vmatpush2.bf16.msra.mxu0 0
  %2585 = vmatprep.mubr.bf16.mxu0 0
  %2586 = vmatmul.mubr.bf16.gmra.mxu0 %v2250
  %v2587 = vpop.f32.mrf.mxu0
  %v2588 = vadd.f32 %v2148, %v2587
  %v2589 = vpop.f32.mrf.mxu0
  %v2590 = vadd.f32 %v2152, %v2589
  %v2591 = vpop.f32.mrf.mxu0
  %v2592 = vadd.f32 %v2148, %v2591
  %v2593 = vpop.f32.mrf.mxu0
  %v2594 = vadd.f32 %v2152, %v2593
  %2595 = vdwg.mxu0
  %v2596 = vmax.f32 %v2287, 0.0
  %v2597 = vmax.f32 %v2289, 0.0
  %v2598 = vmax.f32 %v2330, 0.0
  %v2599 = vmax.f32 %v2332, 0.0
  %v2600 = vmax.f32 %v2373, 0.0
  %v2601 = vmax.f32 %v2375, 0.0
  %v2602 = vmax.f32 %v2416, 0.0
  %v2603 = vmax.f32 %v2418, 0.0
  %v2604 = vmax.f32 %v2459, 0.0
  %v2605 = vmax.f32 %v2461, 0.0
  %v2606 = vmax.f32 %v2502, 0.0
  %v2607 = vmax.f32 %v2504, 0.0
  %v2608 = vmax.f32 %v2545, 0.0
  %v2609 = vmax.f32 %v2547, 0.0
  %v2610 = vmax.f32 %v2588, 0.0
  %v2611 = vmax.f32 %v2590, 0.0
  %v2612 = vmax.f32 %v2291, 0.0
  %v2613 = vmax.f32 %v2293, 0.0
  %v2614 = vmax.f32 %v2334, 0.0
  %v2615 = vmax.f32 %v2336, 0.0
  %v2616 = vmax.f32 %v2377, 0.0
  %v2617 = vmax.f32 %v2379, 0.0
  %v2618 = vmax.f32 %v2420, 0.0
  %v2619 = vmax.f32 %v2422, 0.0
  %v2620 = vmax.f32 %v2463, 0.0
  %v2621 = vmax.f32 %v2465, 0.0
  %v2622 = vmax.f32 %v2506, 0.0
  %v2623 = vmax.f32 %v2508, 0.0
  %v2624 = vmax.f32 %v2549, 0.0
  %v2625 = vmax.f32 %v2551, 0.0
  %v2626 = vmax.f32 %v2592, 0.0
  %v2627 = vmax.f32 %v2594, 0.0
  %v2628 = vpack.c.bf16 %v2612, %v2596
  %v2629 = vpack.c.bf16 %v2613, %v2597
  %v2630 = vpack.c.bf16 %v2614, %v2598
  %v2631 = vpack.c.bf16 %v2615, %v2599
  %v2632 = vpack.c.bf16 %v2616, %v2600
  %v2633 = vpack.c.bf16 %v2617, %v2601
  %v2634 = vpack.c.bf16 %v2618, %v2602
  %v2635 = vpack.c.bf16 %v2619, %v2603
  %v2636 = vpack.c.bf16 %v2620, %v2604
  %v2637 = vpack.c.bf16 %v2621, %v2605
  %v2638 = vpack.c.bf16 %v2622, %v2606
  %v2639 = vpack.c.bf16 %v2623, %v2607
  %v2640 = vpack.c.bf16 %v2624, %v2608
  %v2641 = vpack.c.bf16 %v2625, %v2609
  %v2642 = vpack.c.bf16 %v2626, %v2610
  %v2643 = vpack.c.bf16 %v2627, %v2611
  %v2644 = vld [vmem:[%s33] sm:$0xf]
  %v2645 = vld [vmem:[%s33 + $0x4] sm:$0xf]
  %v2646 = vld [vmem:[%s33 + $0x8] sm:$0xf]
  %v2647 = vld [vmem:[%s33 + $0xc] sm:$0xf]
  %v2648 = vld [vmem:[%s33 + $0x10] sm:$0xf]
  %v2649 = vld [vmem:[%s33 + $0x14] sm:$0xf]
  %v2650 = vld [vmem:[%s33 + $0x18] sm:$0xf]
  %v2651 = vld [vmem:[%s33 + $0x1c] sm:$0xf]
  %v2652 = vld [vmem:[%s33 + $0x20] sm:$0xf]
  %v2653 = vld [vmem:[%s33 + $0x24] sm:$0xf]
  %v2654 = vld [vmem:[%s33 + $0x28] sm:$0xf]
  %v2655 = vld [vmem:[%s33 + $0x2c] sm:$0xf]
  %v2656 = vld [vmem:[%s33 + $0x30] sm:$0xf]
  %v2657 = vld [vmem:[%s33 + $0x34] sm:$0xf]
  %v2658 = vld [vmem:[%s33 + $0x38] sm:$0xf]
  %v2659 = vld [vmem:[%s33 + $0x3c] sm:$0xf]
  %v2660 = vld [vmem:[%s33 + $0x40] sm:$0xf]
  %v2661 = vld [vmem:[%s33 + $0x44] sm:$0xf]
  %v2662 = vld [vmem:[%s33 + $0x48] sm:$0xf]
  %v2663 = vld [vmem:[%s33 + $0x4c] sm:$0xf]
  %v2664 = vld [vmem:[%s33 + $0x50] sm:$0xf]
  %v2665 = vld [vmem:[%s33 + $0x54] sm:$0xf]
  %v2666 = vld [vmem:[%s33 + $0x58] sm:$0xf]
  %v2667 = vld [vmem:[%s33 + $0x5c] sm:$0xf]
  %v2668 = vld [vmem:[%s33 + $0x60] sm:$0xf]
  %v2669 = vld [vmem:[%s33 + $0x64] sm:$0xf]
  %v2670 = vld [vmem:[%s33 + $0x68] sm:$0xf]
  %v2671 = vld [vmem:[%s33 + $0x6c] sm:$0xf]
  %v2672 = vld [vmem:[%s33 + $0x70] sm:$0xf]
  %v2673 = vld [vmem:[%s33 + $0x74] sm:$0xf]
  %v2674 = vld [vmem:[%s33 + $0x78] sm:$0xf]
  %v2675 = vld [vmem:[%s33 + $0x7c] sm:$0xf]
  %v2676 = vld [vmem:[%s33 + $0x80] sm:$0xf]
  %v2677 = vld [vmem:[%s33 + $0x84] sm:$0xf]
  %v2678 = vld [vmem:[%s33 + $0x88] sm:$0xf]
  %v2679 = vld [vmem:[%s33 + $0x8c] sm:$0xf]
  %v2680 = vld [vmem:[%s33 + $0x90] sm:$0xf]
  %v2681 = vld [vmem:[%s33 + $0x94] sm:$0xf]
  %v2682 = vld [vmem:[%s33 + $0x98] sm:$0xf]
  %v2683 = vld [vmem:[%s33 + $0x9c] sm:$0xf]
  %v2684 = vld [vmem:[%s33 + $0xa0] sm:$0xf]
  %v2685 = vld [vmem:[%s33 + $0xa4] sm:$0xf]
  %v2686 = vld [vmem:[%s33 + $0xa8] sm:$0xf]
  %v2687 = vld [vmem:[%s33 + $0xac] sm:$0xf]
  %v2688 = vld [vmem:[%s33 + $0xb0] sm:$0xf]
  %v2689 = vld [vmem:[%s33 + $0xb4] sm:$0xf]
  %v2690 = vld [vmem:[%s33 + $0xb8] sm:$0xf]
  %v2691 = vld [vmem:[%s33 + $0xbc] sm:$0xf]
  %v2692 = vld [vmem:[%s33 + $0xc0] sm:$0xf]
  %v2693 = vld [vmem:[%s33 + $0xc4] sm:$0xf]
  %v2694 = vld [vmem:[%s33 + $0xc8] sm:$0xf]
  %v2695 = vld [vmem:[%s33 + $0xcc] sm:$0xf]
  %v2696 = vld [vmem:[%s33 + $0xd0] sm:$0xf]
  %v2697 = vld [vmem:[%s33 + $0xd4] sm:$0xf]
  %v2698 = vld [vmem:[%s33 + $0xd8] sm:$0xf]
  %v2699 = vld [vmem:[%s33 + $0xdc] sm:$0xf]
  %v2700 = vld [vmem:[%s33 + $0xe0] sm:$0xf]
  %v2701 = vld [vmem:[%s33 + $0xe4] sm:$0xf]
  %v2702 = vld [vmem:[%s33 + $0xe8] sm:$0xf]
  %v2703 = vld [vmem:[%s33 + $0xec] sm:$0xf]
  %v2704 = vld [vmem:[%s33 + $0xf0] sm:$0xf]
  %v2705 = vld [vmem:[%s33 + $0xf4] sm:$0xf]
  %v2706 = vld [vmem:[%s33 + $0xf8] sm:$0xf]
  %v2707 = vld [vmem:[%s33 + $0xfc] sm:$0xf]
  %v2708 = vld [vmem:[%s33 + $0x100] sm:$0xf]
  %v2709 = vld [vmem:[%s33 + $0x104] sm:$0xf]
  %v2710 = vld [vmem:[%s33 + $0x108] sm:$0xf]
  %v2711 = vld [vmem:[%s33 + $0x10c] sm:$0xf]
  %v2712 = vld [vmem:[%s33 + $0x110] sm:$0xf]
  %v2713 = vld [vmem:[%s33 + $0x114] sm:$0xf]
  %v2714 = vld [vmem:[%s33 + $0x118] sm:$0xf]
  %v2715 = vld [vmem:[%s33 + $0x11c] sm:$0xf]
  %v2716 = vld [vmem:[%s33 + $0x120] sm:$0xf]
  %v2717 = vld [vmem:[%s33 + $0x124] sm:$0xf]
  %v2718 = vld [vmem:[%s33 + $0x128] sm:$0xf]
  %v2719 = vld [vmem:[%s33 + $0x12c] sm:$0xf]
  %v2720 = vld [vmem:[%s33 + $0x130] sm:$0xf]
  %v2721 = vld [vmem:[%s33 + $0x134] sm:$0xf]
  %v2722 = vld [vmem:[%s33 + $0x138] sm:$0xf]
  %v2723 = vld [vmem:[%s33 + $0x13c] sm:$0xf]
  %v2724 = vld [vmem:[%s33 + $0x140] sm:$0xf]
  %v2725 = vld [vmem:[%s33 + $0x144] sm:$0xf]
  %v2726 = vld [vmem:[%s33 + $0x148] sm:$0xf]
  %v2727 = vld [vmem:[%s33 + $0x14c] sm:$0xf]
  %v2728 = vld [vmem:[%s33 + $0x150] sm:$0xf]
  %v2729 = vld [vmem:[%s33 + $0x154] sm:$0xf]
  %v2730 = vld [vmem:[%s33 + $0x158] sm:$0xf]
  %v2731 = vld [vmem:[%s33 + $0x15c] sm:$0xf]
  %v2732 = vld [vmem:[%s33 + $0x160] sm:$0xf]
  %v2733 = vld [vmem:[%s33 + $0x164] sm:$0xf]
  %v2734 = vld [vmem:[%s33 + $0x168] sm:$0xf]
  %v2735 = vld [vmem:[%s33 + $0x16c] sm:$0xf]
  %v2736 = vld [vmem:[%s33 + $0x170] sm:$0xf]
  %v2737 = vld [vmem:[%s33 + $0x174] sm:$0xf]
  %v2738 = vld [vmem:[%s33 + $0x178] sm:$0xf]
  %v2739 = vld [vmem:[%s33 + $0x17c] sm:$0xf]
  %v2740 = vld [vmem:[%s33 + $0x180] sm:$0xf]
  %v2741 = vld [vmem:[%s33 + $0x184] sm:$0xf]
  %v2742 = vld [vmem:[%s33 + $0x188] sm:$0xf]
  %v2743 = vld [vmem:[%s33 + $0x18c] sm:$0xf]
  %v2744 = vld [vmem:[%s33 + $0x190] sm:$0xf]
  %v2745 = vld [vmem:[%s33 + $0x194] sm:$0xf]
  %v2746 = vld [vmem:[%s33 + $0x198] sm:$0xf]
  %v2747 = vld [vmem:[%s33 + $0x19c] sm:$0xf]
  %v2748 = vld [vmem:[%s33 + $0x1a0] sm:$0xf]
  %v2749 = vld [vmem:[%s33 + $0x1a4] sm:$0xf]
  %v2750 = vld [vmem:[%s33 + $0x1a8] sm:$0xf]
  %v2751 = vld [vmem:[%s33 + $0x1ac] sm:$0xf]
  %v2752 = vld [vmem:[%s33 + $0x1b0] sm:$0xf]
  %v2753 = vld [vmem:[%s33 + $0x1b4] sm:$0xf]
  %v2754 = vld [vmem:[%s33 + $0x1b8] sm:$0xf]
  %v2755 = vld [vmem:[%s33 + $0x1bc] sm:$0xf]
  %v2756 = vld [vmem:[%s33 + $0x1c0] sm:$0xf]
  %v2757 = vld [vmem:[%s33 + $0x1c4] sm:$0xf]
  %v2758 = vld [vmem:[%s33 + $0x1c8] sm:$0xf]
  %v2759 = vld [vmem:[%s33 + $0x1cc] sm:$0xf]
  %v2760 = vld [vmem:[%s33 + $0x1d0] sm:$0xf]
  %v2761 = vld [vmem:[%s33 + $0x1d4] sm:$0xf]
  %v2762 = vld [vmem:[%s33 + $0x1d8] sm:$0xf]
  %v2763 = vld [vmem:[%s33 + $0x1dc] sm:$0xf]
  %v2764 = vld [vmem:[%s33 + $0x1e0] sm:$0xf]
  %v2765 = vld [vmem:[%s33 + $0x1e4] sm:$0xf]
  %v2766 = vld [vmem:[%s33 + $0x1e8] sm:$0xf]
  %v2767 = vld [vmem:[%s33 + $0x1ec] sm:$0xf]
  %v2768 = vld [vmem:[%s33 + $0x1f0] sm:$0xf]
  %v2769 = vld [vmem:[%s33 + $0x1f4] sm:$0xf]
  %v2770 = vld [vmem:[%s33 + $0x1f8] sm:$0xf]
  %v2771 = vld [vmem:[%s33 + $0x1fc] sm:$0xf]
  %v2772 = vld [vmem:[%s33 + $0x200] sm:$0xf]
  %v2773 = vld [vmem:[%s33 + $0x204] sm:$0xf]
  %v2774 = vld [vmem:[%s33 + $0x208] sm:$0xf]
  %v2775 = vld [vmem:[%s33 + $0x20c] sm:$0xf]
  %v2776 = vld [vmem:[%s33 + $0x210] sm:$0xf]
  %v2777 = vld [vmem:[%s33 + $0x214] sm:$0xf]
  %v2778 = vld [vmem:[%s33 + $0x218] sm:$0xf]
  %v2779 = vld [vmem:[%s33 + $0x21c] sm:$0xf]
  %v2780 = vld [vmem:[%s33 + $0x220] sm:$0xf]
  %v2781 = vld [vmem:[%s33 + $0x224] sm:$0xf]
  %v2782 = vld [vmem:[%s33 + $0x228] sm:$0xf]
  %v2783 = vld [vmem:[%s33 + $0x22c] sm:$0xf]
  %v2784 = vld [vmem:[%s33 + $0x230] sm:$0xf]
  %v2785 = vld [vmem:[%s33 + $0x234] sm:$0xf]
  %v2786 = vld [vmem:[%s33 + $0x238] sm:$0xf]
  %v2787 = vld [vmem:[%s33 + $0x23c] sm:$0xf]
  %v2788 = vld [vmem:[%s33 + $0x240] sm:$0xf]
  %v2789 = vld [vmem:[%s33 + $0x244] sm:$0xf]
  %v2790 = vld [vmem:[%s33 + $0x248] sm:$0xf]
  %v2791 = vld [vmem:[%s33 + $0x24c] sm:$0xf]
  %v2792 = vld [vmem:[%s33 + $0x250] sm:$0xf]
  %v2793 = vld [vmem:[%s33 + $0x254] sm:$0xf]
  %v2794 = vld [vmem:[%s33 + $0x258] sm:$0xf]
  %v2795 = vld [vmem:[%s33 + $0x25c] sm:$0xf]
  %v2796 = vld [vmem:[%s33 + $0x260] sm:$0xf]
  %v2797 = vld [vmem:[%s33 + $0x264] sm:$0xf]
  %v2798 = vld [vmem:[%s33 + $0x268] sm:$0xf]
  %v2799 = vld [vmem:[%s33 + $0x26c] sm:$0xf]
  %v2800 = vld [vmem:[%s33 + $0x270] sm:$0xf]
  %v2801 = vld [vmem:[%s33 + $0x274] sm:$0xf]
  %v2802 = vld [vmem:[%s33 + $0x278] sm:$0xf]
  %v2803 = vld [vmem:[%s33 + $0x27c] sm:$0xf]
  %v2804 = vld [vmem:[%s33 + $0x280] sm:$0xf]
  %v2805 = vld [vmem:[%s33 + $0x284] sm:$0xf]
  %v2806 = vld [vmem:[%s33 + $0x288] sm:$0xf]
  %v2807 = vld [vmem:[%s33 + $0x28c] sm:$0xf]
  %v2808 = vld [vmem:[%s33 + $0x290] sm:$0xf]
  %v2809 = vld [vmem:[%s33 + $0x294] sm:$0xf]
  %v2810 = vld [vmem:[%s33 + $0x298] sm:$0xf]
  %v2811 = vld [vmem:[%s33 + $0x29c] sm:$0xf]
  %v2812 = vld [vmem:[%s33 + $0x2a0] sm:$0xf]
  %v2813 = vld [vmem:[%s33 + $0x2a4] sm:$0xf]
  %v2814 = vld [vmem:[%s33 + $0x2a8] sm:$0xf]
  %v2815 = vld [vmem:[%s33 + $0x2ac] sm:$0xf]
  %v2816 = vld [vmem:[%s33 + $0x2b0] sm:$0xf]
  %v2817 = vld [vmem:[%s33 + $0x2b4] sm:$0xf]
  %v2818 = vld [vmem:[%s33 + $0x2b8] sm:$0xf]
  %v2819 = vld [vmem:[%s33 + $0x2bc] sm:$0xf]
  %v2820 = vld [vmem:[%s33 + $0x2c0] sm:$0xf]
  %v2821 = vld [vmem:[%s33 + $0x2c4] sm:$0xf]
  %v2822 = vld [vmem:[%s33 + $0x2c8] sm:$0xf]
  %v2823 = vld [vmem:[%s33 + $0x2cc] sm:$0xf]
  %v2824 = vld [vmem:[%s33 + $0x2d0] sm:$0xf]
  %v2825 = vld [vmem:[%s33 + $0x2d4] sm:$0xf]
  %v2826 = vld [vmem:[%s33 + $0x2d8] sm:$0xf]
  %v2827 = vld [vmem:[%s33 + $0x2dc] sm:$0xf]
  %v2828 = vld [vmem:[%s33 + $0x2e0] sm:$0xf]
  %v2829 = vld [vmem:[%s33 + $0x2e4] sm:$0xf]
  %v2830 = vld [vmem:[%s33 + $0x2e8] sm:$0xf]
  %v2831 = vld [vmem:[%s33 + $0x2ec] sm:$0xf]
  %v2832 = vld [vmem:[%s33 + $0x2f0] sm:$0xf]
  %v2833 = vld [vmem:[%s33 + $0x2f4] sm:$0xf]
  %v2834 = vld [vmem:[%s33 + $0x2f8] sm:$0xf]
  %v2835 = vld [vmem:[%s33 + $0x2fc] sm:$0xf]
  %v2836 = vld [vmem:[%s33 + $0x300] sm:$0xf]
  %v2837 = vld [vmem:[%s33 + $0x304] sm:$0xf]
  %v2838 = vld [vmem:[%s33 + $0x308] sm:$0xf]
  %v2839 = vld [vmem:[%s33 + $0x30c] sm:$0xf]
  %v2840 = vld [vmem:[%s33 + $0x310] sm:$0xf]
  %v2841 = vld [vmem:[%s33 + $0x314] sm:$0xf]
  %v2842 = vld [vmem:[%s33 + $0x318] sm:$0xf]
  %v2843 = vld [vmem:[%s33 + $0x31c] sm:$0xf]
  %v2844 = vld [vmem:[%s33 + $0x320] sm:$0xf]
  %v2845 = vld [vmem:[%s33 + $0x324] sm:$0xf]
  %v2846 = vld [vmem:[%s33 + $0x328] sm:$0xf]
  %v2847 = vld [vmem:[%s33 + $0x32c] sm:$0xf]
  %v2848 = vld [vmem:[%s33 + $0x330] sm:$0xf]
  %v2849 = vld [vmem:[%s33 + $0x334] sm:$0xf]
  %v2850 = vld [vmem:[%s33 + $0x338] sm:$0xf]
  %v2851 = vld [vmem:[%s33 + $0x33c] sm:$0xf]
  %v2852 = vld [vmem:[%s33 + $0x340] sm:$0xf]
  %v2853 = vld [vmem:[%s33 + $0x344] sm:$0xf]
  %v2854 = vld [vmem:[%s33 + $0x348] sm:$0xf]
  %v2855 = vld [vmem:[%s33 + $0x34c] sm:$0xf]
  %v2856 = vld [vmem:[%s33 + $0x350] sm:$0xf]
  %v2857 = vld [vmem:[%s33 + $0x354] sm:$0xf]
  %v2858 = vld [vmem:[%s33 + $0x358] sm:$0xf]
  %v2859 = vld [vmem:[%s33 + $0x35c] sm:$0xf]
  %v2860 = vld [vmem:[%s33 + $0x360] sm:$0xf]
  %v2861 = vld [vmem:[%s33 + $0x364] sm:$0xf]
  %v2862 = vld [vmem:[%s33 + $0x368] sm:$0xf]
  %v2863 = vld [vmem:[%s33 + $0x36c] sm:$0xf]
  %v2864 = vld [vmem:[%s33 + $0x370] sm:$0xf]
  %v2865 = vld [vmem:[%s33 + $0x374] sm:$0xf]
  %v2866 = vld [vmem:[%s33 + $0x378] sm:$0xf]
  %v2867 = vld [vmem:[%s33 + $0x37c] sm:$0xf]
  %v2868 = vld [vmem:[%s33 + $0x380] sm:$0xf]
  %v2869 = vld [vmem:[%s33 + $0x384] sm:$0xf]
  %v2870 = vld [vmem:[%s33 + $0x388] sm:$0xf]
  %v2871 = vld [vmem:[%s33 + $0x38c] sm:$0xf]
  %v2872 = vld [vmem:[%s33 + $0x390] sm:$0xf]
  %v2873 = vld [vmem:[%s33 + $0x394] sm:$0xf]
  %v2874 = vld [vmem:[%s33 + $0x398] sm:$0xf]
  %v2875 = vld [vmem:[%s33 + $0x39c] sm:$0xf]
  %v2876 = vld [vmem:[%s33 + $0x3a0] sm:$0xf]
  %v2877 = vld [vmem:[%s33 + $0x3a4] sm:$0xf]
  %v2878 = vld [vmem:[%s33 + $0x3a8] sm:$0xf]
  %v2879 = vld [vmem:[%s33 + $0x3ac] sm:$0xf]
  %v2880 = vld [vmem:[%s33 + $0x3b0] sm:$0xf]
  %v2881 = vld [vmem:[%s33 + $0x3b4] sm:$0xf]
  %v2882 = vld [vmem:[%s33 + $0x3b8] sm:$0xf]
  %v2883 = vld [vmem:[%s33 + $0x3bc] sm:$0xf]
  %v2884 = vld [vmem:[%s33 + $0x3c0] sm:$0xf]
  %v2885 = vld [vmem:[%s33 + $0x3c4] sm:$0xf]
  %v2886 = vld [vmem:[%s33 + $0x3c8] sm:$0xf]
  %v2887 = vld [vmem:[%s33 + $0x3cc] sm:$0xf]
  %v2888 = vld [vmem:[%s33 + $0x3d0] sm:$0xf]
  %v2889 = vld [vmem:[%s33 + $0x3d4] sm:$0xf]
  %v2890 = vld [vmem:[%s33 + $0x3d8] sm:$0xf]
  %v2891 = vld [vmem:[%s33 + $0x3dc] sm:$0xf]
  %v2892 = vld [vmem:[%s33 + $0x3e0] sm:$0xf]
  %v2893 = vld [vmem:[%s33 + $0x3e4] sm:$0xf]
  %v2894 = vld [vmem:[%s33 + $0x3e8] sm:$0xf]
  %v2895 = vld [vmem:[%s33 + $0x3ec] sm:$0xf]
  %v2896 = vld [vmem:[%s33 + $0x3f0] sm:$0xf]
  %v2897 = vld [vmem:[%s33 + $0x3f4] sm:$0xf]
  %v2898 = vld [vmem:[%s33 + $0x3f8] sm:$0xf]
  %v2899 = vld [vmem:[%s33 + $0x3fc] sm:$0xf]
  %v2900 = vld [vmem:[%s35] sm:$0x1]
  %v2902 = vlaneseq
  %v2903 = vshrl.u32 %v2902, 7
  %v2904 = vsub.s32 0, %v2903
  %v2905 = vrot.slane %v2900, %v2904
  %v3163 = vunpack.c.l.b16 %v2644
  %v3164 = vunpack.c.l.b16 %v2645
  %v3165 = vunpack.c.l.b16 %v2646
  %v3166 = vunpack.c.l.b16 %v2647
  %v3167 = vunpack.c.l.b16 %v2648
  %v3168 = vunpack.c.l.b16 %v2649
  %v3169 = vunpack.c.l.b16 %v2650
  %v3170 = vunpack.c.l.b16 %v2651
  %v3171 = vunpack.c.l.b16 %v2652
  %v3172 = vunpack.c.l.b16 %v2653
  %v3173 = vunpack.c.l.b16 %v2654
  %v3174 = vunpack.c.l.b16 %v2655
  %v3175 = vunpack.c.l.b16 %v2656
  %v3176 = vunpack.c.l.b16 %v2657
  %v3177 = vunpack.c.l.b16 %v2658
  %v3178 = vunpack.c.l.b16 %v2659
  %v3179 = vunpack.c.l.b16 %v2660
  %v3180 = vunpack.c.l.b16 %v2661
  %v3181 = vunpack.c.l.b16 %v2662
  %v3182 = vunpack.c.l.b16 %v2663
  %v3183 = vunpack.c.l.b16 %v2664
  %v3184 = vunpack.c.l.b16 %v2665
  %v3185 = vunpack.c.l.b16 %v2666
  %v3186 = vunpack.c.l.b16 %v2667
  %v3187 = vunpack.c.l.b16 %v2668
  %v3188 = vunpack.c.l.b16 %v2669
  %v3189 = vunpack.c.l.b16 %v2670
  %v3190 = vunpack.c.l.b16 %v2671
  %v3191 = vunpack.c.l.b16 %v2672
  %v3192 = vunpack.c.l.b16 %v2673
  %v3193 = vunpack.c.l.b16 %v2674
  %v3194 = vunpack.c.l.b16 %v2675
  %v3195 = vunpack.c.l.b16 %v2676
  %v3196 = vunpack.c.l.b16 %v2677
  %v3197 = vunpack.c.l.b16 %v2678
  %v3198 = vunpack.c.l.b16 %v2679
  %v3199 = vunpack.c.l.b16 %v2680
  %v3200 = vunpack.c.l.b16 %v2681
  %v3201 = vunpack.c.l.b16 %v2682
  %v3202 = vunpack.c.l.b16 %v2683
  %v3203 = vunpack.c.l.b16 %v2684
  %v3204 = vunpack.c.l.b16 %v2685
  %v3205 = vunpack.c.l.b16 %v2686
  %v3206 = vunpack.c.l.b16 %v2687
  %v3207 = vunpack.c.l.b16 %v2688
  %v3208 = vunpack.c.l.b16 %v2689
  %v3209 = vunpack.c.l.b16 %v2690
  %v3210 = vunpack.c.l.b16 %v2691
  %v3211 = vunpack.c.l.b16 %v2692
  %v3212 = vunpack.c.l.b16 %v2693
  %v3213 = vunpack.c.l.b16 %v2694
  %v3214 = vunpack.c.l.b16 %v2695
  %v3215 = vunpack.c.l.b16 %v2696
  %v3216 = vunpack.c.l.b16 %v2697
  %v3217 = vunpack.c.l.b16 %v2698
  %v3218 = vunpack.c.l.b16 %v2699
  %v3219 = vunpack.c.l.b16 %v2700
  %v3220 = vunpack.c.l.b16 %v2701
  %v3221 = vunpack.c.l.b16 %v2702
  %v3222 = vunpack.c.l.b16 %v2703
  %v3223 = vunpack.c.l.b16 %v2704
  %v3224 = vunpack.c.l.b16 %v2705
  %v3225 = vunpack.c.l.b16 %v2706
  %v3226 = vunpack.c.l.b16 %v2707
  %v3227 = vunpack.c.l.b16 %v2708
  %v3228 = vunpack.c.l.b16 %v2709
  %v3229 = vunpack.c.l.b16 %v2710
  %v3230 = vunpack.c.l.b16 %v2711
  %v3231 = vunpack.c.l.b16 %v2712
  %v3232 = vunpack.c.l.b16 %v2713
  %v3233 = vunpack.c.l.b16 %v2714
  %v3234 = vunpack.c.l.b16 %v2715
  %v3235 = vunpack.c.l.b16 %v2716
  %v3236 = vunpack.c.l.b16 %v2717
  %v3237 = vunpack.c.l.b16 %v2718
  %v3238 = vunpack.c.l.b16 %v2719
  %v3239 = vunpack.c.l.b16 %v2720
  %v3240 = vunpack.c.l.b16 %v2721
  %v3241 = vunpack.c.l.b16 %v2722
  %v3242 = vunpack.c.l.b16 %v2723
  %v3243 = vunpack.c.l.b16 %v2724
  %v3244 = vunpack.c.l.b16 %v2725
  %v3245 = vunpack.c.l.b16 %v2726
  %v3246 = vunpack.c.l.b16 %v2727
  %v3247 = vunpack.c.l.b16 %v2728
  %v3248 = vunpack.c.l.b16 %v2729
  %v3249 = vunpack.c.l.b16 %v2730
  %v3250 = vunpack.c.l.b16 %v2731
  %v3251 = vunpack.c.l.b16 %v2732
  %v3252 = vunpack.c.l.b16 %v2733
  %v3253 = vunpack.c.l.b16 %v2734
  %v3254 = vunpack.c.l.b16 %v2735
  %v3255 = vunpack.c.l.b16 %v2736
  %v3256 = vunpack.c.l.b16 %v2737
  %v3257 = vunpack.c.l.b16 %v2738
  %v3258 = vunpack.c.l.b16 %v2739
  %v3259 = vunpack.c.l.b16 %v2740
  %v3260 = vunpack.c.l.b16 %v2741
  %v3261 = vunpack.c.l.b16 %v2742
  %v3262 = vunpack.c.l.b16 %v2743
  %v3263 = vunpack.c.l.b16 %v2744
  %v3264 = vunpack.c.l.b16 %v2745
  %v3265 = vunpack.c.l.b16 %v2746
  %v3266 = vunpack.c.l.b16 %v2747
  %v3267 = vunpack.c.l.b16 %v2748
  %v3268 = vunpack.c.l.b16 %v2749
  %v3269 = vunpack.c.l.b16 %v2750
  %v3270 = vunpack.c.l.b16 %v2751
  %v3271 = vunpack.c.l.b16 %v2752
  %v3272 = vunpack.c.l.b16 %v2753
  %v3273 = vunpack.c.l.b16 %v2754
  %v3274 = vunpack.c.l.b16 %v2755
  %v3275 = vunpack.c.l.b16 %v2756
  %v3276 = vunpack.c.l.b16 %v2757
  %v3277 = vunpack.c.l.b16 %v2758
  %v3278 = vunpack.c.l.b16 %v2759
  %v3279 = vunpack.c.l.b16 %v2760
  %v3280 = vunpack.c.l.b16 %v2761
  %v3281 = vunpack.c.l.b16 %v2762
  %v3282 = vunpack.c.l.b16 %v2763
  %v3283 = vunpack.c.l.b16 %v2764
  %v3284 = vunpack.c.l.b16 %v2765
  %v3285 = vunpack.c.l.b16 %v2766
  %v3286 = vunpack.c.l.b16 %v2767
  %v3287 = vunpack.c.l.b16 %v2768
  %v3288 = vunpack.c.l.b16 %v2769
  %v3289 = vunpack.c.l.b16 %v2770
  %v3290 = vunpack.c.l.b16 %v2771
  %v3291 = vunpack.c.l.b16 %v2772
  %v3292 = vunpack.c.l.b16 %v2773
  %v3293 = vunpack.c.l.b16 %v2774
  %v3294 = vunpack.c.l.b16 %v2775
  %v3295 = vunpack.c.l.b16 %v2776
  %v3296 = vunpack.c.l.b16 %v2777
  %v3297 = vunpack.c.l.b16 %v2778
  %v3298 = vunpack.c.l.b16 %v2779
  %v3299 = vunpack.c.l.b16 %v2780
  %v3300 = vunpack.c.l.b16 %v2781
  %v3301 = vunpack.c.l.b16 %v2782
  %v3302 = vunpack.c.l.b16 %v2783
  %v3303 = vunpack.c.l.b16 %v2784
  %v3304 = vunpack.c.l.b16 %v2785
  %v3305 = vunpack.c.l.b16 %v2786
  %v3306 = vunpack.c.l.b16 %v2787
  %v3307 = vunpack.c.l.b16 %v2788
  %v3308 = vunpack.c.l.b16 %v2789
  %v3309 = vunpack.c.l.b16 %v2790
  %v3310 = vunpack.c.l.b16 %v2791
  %v3311 = vunpack.c.l.b16 %v2792
  %v3312 = vunpack.c.l.b16 %v2793
  %v3313 = vunpack.c.l.b16 %v2794
  %v3314 = vunpack.c.l.b16 %v2795
  %v3315 = vunpack.c.l.b16 %v2796
  %v3316 = vunpack.c.l.b16 %v2797
  %v3317 = vunpack.c.l.b16 %v2798
  %v3318 = vunpack.c.l.b16 %v2799
  %v3319 = vunpack.c.l.b16 %v2800
  %v3320 = vunpack.c.l.b16 %v2801
  %v3321 = vunpack.c.l.b16 %v2802
  %v3322 = vunpack.c.l.b16 %v2803
  %v3323 = vunpack.c.l.b16 %v2804
  %v3324 = vunpack.c.l.b16 %v2805
  %v3325 = vunpack.c.l.b16 %v2806
  %v3326 = vunpack.c.l.b16 %v2807
  %v3327 = vunpack.c.l.b16 %v2808
  %v3328 = vunpack.c.l.b16 %v2809
  %v3329 = vunpack.c.l.b16 %v2810
  %v3330 = vunpack.c.l.b16 %v2811
  %v3331 = vunpack.c.l.b16 %v2812
  %v3332 = vunpack.c.l.b16 %v2813
  %v3333 = vunpack.c.l.b16 %v2814
  %v3334 = vunpack.c.l.b16 %v2815
  %v3335 = vunpack.c.l.b16 %v2816
  %v3336 = vunpack.c.l.b16 %v2817
  %v3337 = vunpack.c.l.b16 %v2818
  %v3338 = vunpack.c.l.b16 %v2819
  %v3339 = vunpack.c.l.b16 %v2820
  %v3340 = vunpack.c.l.b16 %v2821
  %v3341 = vunpack.c.l.b16 %v2822
  %v3342 = vunpack.c.l.b16 %v2823
  %v3343 = vunpack.c.l.b16 %v2824
  %v3344 = vunpack.c.l.b16 %v2825
  %v3345 = vunpack.c.l.b16 %v2826
  %v3346 = vunpack.c.l.b16 %v2827
  %v3347 = vunpack.c.l.b16 %v2828
  %v3348 = vunpack.c.l.b16 %v2829
  %v3349 = vunpack.c.l.b16 %v2830
  %v3350 = vunpack.c.l.b16 %v2831
  %v3351 = vunpack.c.l.b16 %v2832
  %v3352 = vunpack.c.l.b16 %v2833
  %v3353 = vunpack.c.l.b16 %v2834
  %v3354 = vunpack.c.l.b16 %v2835
  %v3355 = vunpack.c.l.b16 %v2836
  %v3356 = vunpack.c.l.b16 %v2837
  %v3357 = vunpack.c.l.b16 %v2838
  %v3358 = vunpack.c.l.b16 %v2839
  %v3359 = vunpack.c.l.b16 %v2840
  %v3360 = vunpack.c.l.b16 %v2841
  %v3361 = vunpack.c.l.b16 %v2842
  %v3362 = vunpack.c.l.b16 %v2843
  %v3363 = vunpack.c.l.b16 %v2844
  %v3364 = vunpack.c.l.b16 %v2845
  %v3365 = vunpack.c.l.b16 %v2846
  %v3366 = vunpack.c.l.b16 %v2847
  %v3367 = vunpack.c.l.b16 %v2848
  %v3368 = vunpack.c.l.b16 %v2849
  %v3369 = vunpack.c.l.b16 %v2850
  %v3370 = vunpack.c.l.b16 %v2851
  %v3371 = vunpack.c.l.b16 %v2852
  %v3372 = vunpack.c.l.b16 %v2853
  %v3373 = vunpack.c.l.b16 %v2854
  %v3374 = vunpack.c.l.b16 %v2855
  %v3375 = vunpack.c.l.b16 %v2856
  %v3376 = vunpack.c.l.b16 %v2857
  %v3377 = vunpack.c.l.b16 %v2858
  %v3378 = vunpack.c.l.b16 %v2859
  %v3379 = vunpack.c.l.b16 %v2860
  %v3380 = vunpack.c.l.b16 %v2861
  %v3381 = vunpack.c.l.b16 %v2862
  %v3382 = vunpack.c.l.b16 %v2863
  %v3383 = vunpack.c.l.b16 %v2864
  %v3384 = vunpack.c.l.b16 %v2865
  %v3385 = vunpack.c.l.b16 %v2866
  %v3386 = vunpack.c.l.b16 %v2867
  %v3387 = vunpack.c.l.b16 %v2868
  %v3388 = vunpack.c.l.b16 %v2869
  %v3389 = vunpack.c.l.b16 %v2870
  %v3390 = vunpack.c.l.b16 %v2871
  %v3391 = vunpack.c.l.b16 %v2872
  %v3392 = vunpack.c.l.b16 %v2873
  %v3393 = vunpack.c.l.b16 %v2874
  %v3394 = vunpack.c.l.b16 %v2875
  %v3395 = vunpack.c.l.b16 %v2876
  %v3396 = vunpack.c.l.b16 %v2877
  %v3397 = vunpack.c.l.b16 %v2878
  %v3398 = vunpack.c.l.b16 %v2879
  %v3399 = vunpack.c.l.b16 %v2880
  %v3400 = vunpack.c.l.b16 %v2881
  %v3401 = vunpack.c.l.b16 %v2882
  %v3402 = vunpack.c.l.b16 %v2883
  %v3403 = vunpack.c.l.b16 %v2884
  %v3404 = vunpack.c.l.b16 %v2885
  %v3405 = vunpack.c.l.b16 %v2886
  %v3406 = vunpack.c.l.b16 %v2887
  %v3407 = vunpack.c.l.b16 %v2888
  %v3408 = vunpack.c.l.b16 %v2889
  %v3409 = vunpack.c.l.b16 %v2890
  %v3410 = vunpack.c.l.b16 %v2891
  %v3411 = vunpack.c.l.b16 %v2892
  %v3412 = vunpack.c.l.b16 %v2893
  %v3413 = vunpack.c.l.b16 %v2894
  %v3414 = vunpack.c.l.b16 %v2895
  %v3415 = vunpack.c.l.b16 %v2896
  %v3416 = vunpack.c.l.b16 %v2897
  %v3417 = vunpack.c.l.b16 %v2898
  %v3418 = vunpack.c.l.b16 %v2899
  %v3419 = vpack.c.b16 %v3164, %v3163
  %v3420 = vpack.c.b16 %v3166, %v3165
  %v3421 = vpack.c.b16 %v3168, %v3167
  %v3422 = vpack.c.b16 %v3170, %v3169
  %v3423 = vpack.c.b16 %v3172, %v3171
  %v3424 = vpack.c.b16 %v3174, %v3173
  %v3425 = vpack.c.b16 %v3176, %v3175
  %v3426 = vpack.c.b16 %v3178, %v3177
  %v3427 = vpack.c.b16 %v3180, %v3179
  %v3428 = vpack.c.b16 %v3182, %v3181
  %v3429 = vpack.c.b16 %v3184, %v3183
  %v3430 = vpack.c.b16 %v3186, %v3185
  %v3431 = vpack.c.b16 %v3188, %v3187
  %v3432 = vpack.c.b16 %v3190, %v3189
  %v3433 = vpack.c.b16 %v3192, %v3191
  %v3434 = vpack.c.b16 %v3194, %v3193
  %v3435 = vpack.c.b16 %v3196, %v3195
  %v3436 = vpack.c.b16 %v3198, %v3197
  %v3437 = vpack.c.b16 %v3200, %v3199
  %v3438 = vpack.c.b16 %v3202, %v3201
  %v3439 = vpack.c.b16 %v3204, %v3203
  %v3440 = vpack.c.b16 %v3206, %v3205
  %v3441 = vpack.c.b16 %v3208, %v3207
  %v3442 = vpack.c.b16 %v3210, %v3209
  %v3443 = vpack.c.b16 %v3212, %v3211
  %v3444 = vpack.c.b16 %v3214, %v3213
  %v3445 = vpack.c.b16 %v3216, %v3215
  %v3446 = vpack.c.b16 %v3218, %v3217
  %v3447 = vpack.c.b16 %v3220, %v3219
  %v3448 = vpack.c.b16 %v3222, %v3221
  %v3449 = vpack.c.b16 %v3224, %v3223
  %v3450 = vpack.c.b16 %v3226, %v3225
  %v3451 = vpack.c.b16 %v3228, %v3227
  %v3452 = vpack.c.b16 %v3230, %v3229
  %v3453 = vpack.c.b16 %v3232, %v3231
  %v3454 = vpack.c.b16 %v3234, %v3233
  %v3455 = vpack.c.b16 %v3236, %v3235
  %v3456 = vpack.c.b16 %v3238, %v3237
  %v3457 = vpack.c.b16 %v3240, %v3239
  %v3458 = vpack.c.b16 %v3242, %v3241
  %v3459 = vpack.c.b16 %v3244, %v3243
  %v3460 = vpack.c.b16 %v3246, %v3245
  %v3461 = vpack.c.b16 %v3248, %v3247
  %v3462 = vpack.c.b16 %v3250, %v3249
  %v3463 = vpack.c.b16 %v3252, %v3251
  %v3464 = vpack.c.b16 %v3254, %v3253
  %v3465 = vpack.c.b16 %v3256, %v3255
  %v3466 = vpack.c.b16 %v3258, %v3257
  %v3467 = vpack.c.b16 %v3260, %v3259
  %v3468 = vpack.c.b16 %v3262, %v3261
  %v3469 = vpack.c.b16 %v3264, %v3263
  %v3470 = vpack.c.b16 %v3266, %v3265
  %v3471 = vpack.c.b16 %v3268, %v3267
  %v3472 = vpack.c.b16 %v3270, %v3269
  %v3473 = vpack.c.b16 %v3272, %v3271
  %v3474 = vpack.c.b16 %v3274, %v3273
  %v3475 = vpack.c.b16 %v3276, %v3275
  %v3476 = vpack.c.b16 %v3278, %v3277
  %v3477 = vpack.c.b16 %v3280, %v3279
  %v3478 = vpack.c.b16 %v3282, %v3281
  %v3479 = vpack.c.b16 %v3284, %v3283
  %v3480 = vpack.c.b16 %v3286, %v3285
  %v3481 = vpack.c.b16 %v3288, %v3287
  %v3482 = vpack.c.b16 %v3290, %v3289
  %v3483 = vpack.c.b16 %v3292, %v3291
  %v3484 = vpack.c.b16 %v3294, %v3293
  %v3485 = vpack.c.b16 %v3296, %v3295
  %v3486 = vpack.c.b16 %v3298, %v3297
  %v3487 = vpack.c.b16 %v3300, %v3299
  %v3488 = vpack.c.b16 %v3302, %v3301
  %v3489 = vpack.c.b16 %v3304, %v3303
  %v3490 = vpack.c.b16 %v3306, %v3305
  %v3491 = vpack.c.b16 %v3308, %v3307
  %v3492 = vpack.c.b16 %v3310, %v3309
  %v3493 = vpack.c.b16 %v3312, %v3311
  %v3494 = vpack.c.b16 %v3314, %v3313
  %v3495 = vpack.c.b16 %v3316, %v3315
  %v3496 = vpack.c.b16 %v3318, %v3317
  %v3497 = vpack.c.b16 %v3320, %v3319
  %v3498 = vpack.c.b16 %v3322, %v3321
  %v3499 = vpack.c.b16 %v3324, %v3323
  %v3500 = vpack.c.b16 %v3326, %v3325
  %v3501 = vpack.c.b16 %v3328, %v3327
  %v3502 = vpack.c.b16 %v3330, %v3329
  %v3503 = vpack.c.b16 %v3332, %v3331
  %v3504 = vpack.c.b16 %v3334, %v3333
  %v3505 = vpack.c.b16 %v3336, %v3335
  %v3506 = vpack.c.b16 %v3338, %v3337
  %v3507 = vpack.c.b16 %v3340, %v3339
  %v3508 = vpack.c.b16 %v3342, %v3341
  %v3509 = vpack.c.b16 %v3344, %v3343
  %v3510 = vpack.c.b16 %v3346, %v3345
  %v3511 = vpack.c.b16 %v3348, %v3347
  %v3512 = vpack.c.b16 %v3350, %v3349
  %v3513 = vpack.c.b16 %v3352, %v3351
  %v3514 = vpack.c.b16 %v3354, %v3353
  %v3515 = vpack.c.b16 %v3356, %v3355
  %v3516 = vpack.c.b16 %v3358, %v3357
  %v3517 = vpack.c.b16 %v3360, %v3359
  %v3518 = vpack.c.b16 %v3362, %v3361
  %v3519 = vpack.c.b16 %v3364, %v3363
  %v3520 = vpack.c.b16 %v3366, %v3365
  %v3521 = vpack.c.b16 %v3368, %v3367
  %v3522 = vpack.c.b16 %v3370, %v3369
  %v3523 = vpack.c.b16 %v3372, %v3371
  %v3524 = vpack.c.b16 %v3374, %v3373
  %v3525 = vpack.c.b16 %v3376, %v3375
  %v3526 = vpack.c.b16 %v3378, %v3377
  %v3527 = vpack.c.b16 %v3380, %v3379
  %v3528 = vpack.c.b16 %v3382, %v3381
  %v3529 = vpack.c.b16 %v3384, %v3383
  %v3530 = vpack.c.b16 %v3386, %v3385
  %v3531 = vpack.c.b16 %v3388, %v3387
  %v3532 = vpack.c.b16 %v3390, %v3389
  %v3533 = vpack.c.b16 %v3392, %v3391
  %v3534 = vpack.c.b16 %v3394, %v3393
  %v3535 = vpack.c.b16 %v3396, %v3395
  %v3536 = vpack.c.b16 %v3398, %v3397
  %v3537 = vpack.c.b16 %v3400, %v3399
  %v3538 = vpack.c.b16 %v3402, %v3401
  %v3539 = vpack.c.b16 %v3404, %v3403
  %v3540 = vpack.c.b16 %v3406, %v3405
  %v3541 = vpack.c.b16 %v3408, %v3407
  %v3542 = vpack.c.b16 %v3410, %v3409
  %v3543 = vpack.c.b16 %v3412, %v3411
  %v3544 = vpack.c.b16 %v3414, %v3413
  %v3545 = vpack.c.b16 %v3416, %v3415
  %v3546 = vpack.c.b16 %v3418, %v3417
  %3675 = vmatprep.subr.bf16.mxu0 0
  %3676 = vmatpush1.bf16.msra.mxu0 %v3426
  %3677 = vmatprep.subr.bf16.mxu0 0
  %3678 = vmatpush1.bf16.msra.mxu0 %v3425
  %3679 = vmatprep.subr.bf16.mxu0 0
  %3680 = vmatpush1.bf16.msra.mxu0 %v3424
  %3681 = vmatprep.subr.bf16.mxu0 0
  %3682 = vmatpush1.bf16.msra.mxu0 %v3423
  %3683 = vmatprep.subr.bf16.mxu0 0
  %3684 = vmatpush1.bf16.msra.mxu0 %v3422
  %3685 = vmatprep.subr.bf16.mxu0 0
  %3686 = vmatpush1.bf16.msra.mxu0 %v3421
  %3687 = vmatprep.subr.bf16.mxu0 0
  %3688 = vmatpush1.bf16.msra.mxu0 %v3420
  %3689 = vmatprep.subr.bf16.mxu0 0
  %3690 = vmatpush1.bf16.msra.mxu0 %v3419
  %3691 = vmatprep.subr.bf16.mxu0 0
  %3692 = vmatpush2.bf16.msra.mxu0 %v3434
  %3693 = vmatprep.subr.bf16.mxu0 0
  %3694 = vmatpush2.bf16.msra.mxu0 %v3433
  %3695 = vmatprep.subr.bf16.mxu0 0
  %3696 = vmatpush2.bf16.msra.mxu0 %v3432
  %3697 = vmatprep.subr.bf16.mxu0 0
  %3698 = vmatpush2.bf16.msra.mxu0 %v3431
  %3699 = vmatprep.subr.bf16.mxu0 0
  %3700 = vmatpush2.bf16.msra.mxu0 %v3430
  %3701 = vmatprep.subr.bf16.mxu0 0
  %3702 = vmatpush2.bf16.msra.mxu0 %v3429
  %3703 = vmatprep.subr.bf16.mxu0 0
  %3704 = vmatpush2.bf16.msra.mxu0 %v3428
  %3705 = vmatprep.subr.bf16.mxu0 0
  %3706 = vmatpush2.bf16.msra.mxu0 %v3427
  %3707 = vmatprep.mubr.bf16.mxu0 %v2629
  %3708 = vmatmul.mubr.bf16.gmra.mxu0 %v2628
  %v3709 = vpop.f32.mrf.mxu0
  %v3710 = vadd.f32 %v2905, %v3709
  %v3711 = vpop.f32.mrf.mxu0
  %v3712 = vpop.f32.mrf.mxu0
  %v3713 = vadd.f32 %v2905, %v3712
  %v3714 = vpop.f32.mrf.mxu0
  %3715 = vdwg.mxu0
  %3716 = vmatprep.subr.bf16.mxu0 0
  %3717 = vmatpush1.bf16.msra.mxu0 %v3442
  %3718 = vmatprep.subr.bf16.mxu0 0
  %3719 = vmatpush1.bf16.msra.mxu0 %v3441
  %3720 = vmatprep.subr.bf16.mxu0 0
  %3721 = vmatpush1.bf16.msra.mxu0 %v3440
  %3722 = vmatprep.subr.bf16.mxu0 0
  %3723 = vmatpush1.bf16.msra.mxu0 %v3439
  %3724 = vmatprep.subr.bf16.mxu0 0
  %3725 = vmatpush1.bf16.msra.mxu0 %v3438
  %3726 = vmatprep.subr.bf16.mxu0 0
  %3727 = vmatpush1.bf16.msra.mxu0 %v3437
  %3728 = vmatprep.subr.bf16.mxu0 0
  %3729 = vmatpush1.bf16.msra.mxu0 %v3436
  %3730 = vmatprep.subr.bf16.mxu0 0
  %3731 = vmatpush1.bf16.msra.mxu0 %v3435
  %3732 = vmatprep.subr.bf16.mxu0 0
  %3733 = vmatpush2.bf16.msra.mxu0 %v3450
  %3734 = vmatprep.subr.bf16.mxu0 0
  %3735 = vmatpush2.bf16.msra.mxu0 %v3449
  %3736 = vmatprep.subr.bf16.mxu0 0
  %3737 = vmatpush2.bf16.msra.mxu0 %v3448
  %3738 = vmatprep.subr.bf16.mxu0 0
  %3739 = vmatpush2.bf16.msra.mxu0 %v3447
  %3740 = vmatprep.subr.bf16.mxu0 0
  %3741 = vmatpush2.bf16.msra.mxu0 %v3446
  %3742 = vmatprep.subr.bf16.mxu0 0
  %3743 = vmatpush2.bf16.msra.mxu0 %v3445
  %3744 = vmatprep.subr.bf16.mxu0 0
  %3745 = vmatpush2.bf16.msra.mxu0 %v3444
  %3746 = vmatprep.subr.bf16.mxu0 0
  %3747 = vmatpush2.bf16.msra.mxu0 %v3443
  %3748 = vmatprep.mubr.bf16.mxu0 %v2631
  %3749 = vmatmul.mubr.bf16.gmra.mxu0 %v2630
  %v3750 = vpop.f32.mrf.mxu0
  %v3751 = vadd.f32 %v3710, %v3750
  %v3752 = vpop.f32.mrf.mxu0
  %v3753 = vpop.f32.mrf.mxu0
  %v3754 = vadd.f32 %v3713, %v3753
  %v3755 = vpop.f32.mrf.mxu0
  %3756 = vdwg.mxu0
  %3757 = vmatprep.subr.bf16.mxu0 0
  %3758 = vmatpush1.bf16.msra.mxu0 %v3458
  %3759 = vmatprep.subr.bf16.mxu0 0
  %3760 = vmatpush1.bf16.msra.mxu0 %v3457
  %3761 = vmatprep.subr.bf16.mxu0 0
  %3762 = vmatpush1.bf16.msra.mxu0 %v3456
  %3763 = vmatprep.subr.bf16.mxu0 0
  %3764 = vmatpush1.bf16.msra.mxu0 %v3455
  %3765 = vmatprep.subr.bf16.mxu0 0
  %3766 = vmatpush1.bf16.msra.mxu0 %v3454
  %3767 = vmatprep.subr.bf16.mxu0 0
  %3768 = vmatpush1.bf16.msra.mxu0 %v3453
  %3769 = vmatprep.subr.bf16.mxu0 0
  %3770 = vmatpush1.bf16.msra.mxu0 %v3452
  %3771 = vmatprep.subr.bf16.mxu0 0
  %3772 = vmatpush1.bf16.msra.mxu0 %v3451
  %3773 = vmatprep.subr.bf16.mxu0 0
  %3774 = vmatpush2.bf16.msra.mxu0 %v3466
  %3775 = vmatprep.subr.bf16.mxu0 0
  %3776 = vmatpush2.bf16.msra.mxu0 %v3465
  %3777 = vmatprep.subr.bf16.mxu0 0
  %3778 = vmatpush2.bf16.msra.mxu0 %v3464
  %3779 = vmatprep.subr.bf16.mxu0 0
  %3780 = vmatpush2.bf16.msra.mxu0 %v3463
  %3781 = vmatprep.subr.bf16.mxu0 0
  %3782 = vmatpush2.bf16.msra.mxu0 %v3462
  %3783 = vmatprep.subr.bf16.mxu0 0
  %3784 = vmatpush2.bf16.msra.mxu0 %v3461
  %3785 = vmatprep.subr.bf16.mxu0 0
  %3786 = vmatpush2.bf16.msra.mxu0 %v3460
  %3787 = vmatprep.subr.bf16.mxu0 0
  %3788 = vmatpush2.bf16.msra.mxu0 %v3459
  %3789 = vmatprep.mubr.bf16.mxu0 %v2633
  %3790 = vmatmul.mubr.bf16.gmra.mxu0 %v2632
  %v3791 = vpop.f32.mrf.mxu0
  %v3792 = vadd.f32 %v3751, %v3791
  %v3793 = vpop.f32.mrf.mxu0
  %v3794 = vpop.f32.mrf.mxu0
  %v3795 = vadd.f32 %v3754, %v3794
  %v3796 = vpop.f32.mrf.mxu0
  %3797 = vdwg.mxu0
  %3798 = vmatprep.subr.bf16.mxu0 0
  %3799 = vmatpush1.bf16.msra.mxu0 %v3474
  %3800 = vmatprep.subr.bf16.mxu0 0
  %3801 = vmatpush1.bf16.msra.mxu0 %v3473
  %3802 = vmatprep.subr.bf16.mxu0 0
  %3803 = vmatpush1.bf16.msra.mxu0 %v3472
  %3804 = vmatprep.subr.bf16.mxu0 0
  %3805 = vmatpush1.bf16.msra.mxu0 %v3471
  %3806 = vmatprep.subr.bf16.mxu0 0
  %3807 = vmatpush1.bf16.msra.mxu0 %v3470
  %3808 = vmatprep.subr.bf16.mxu0 0
  %3809 = vmatpush1.bf16.msra.mxu0 %v3469
  %3810 = vmatprep.subr.bf16.mxu0 0
  %3811 = vmatpush1.bf16.msra.mxu0 %v3468
  %3812 = vmatprep.subr.bf16.mxu0 0
  %3813 = vmatpush1.bf16.msra.mxu0 %v3467
  %3814 = vmatprep.subr.bf16.mxu0 0
  %3815 = vmatpush2.bf16.msra.mxu0 %v3482
  %3816 = vmatprep.subr.bf16.mxu0 0
  %3817 = vmatpush2.bf16.msra.mxu0 %v3481
  %3818 = vmatprep.subr.bf16.mxu0 0
  %3819 = vmatpush2.bf16.msra.mxu0 %v3480
  %3820 = vmatprep.subr.bf16.mxu0 0
  %3821 = vmatpush2.bf16.msra.mxu0 %v3479
  %3822 = vmatprep.subr.bf16.mxu0 0
  %3823 = vmatpush2.bf16.msra.mxu0 %v3478
  %3824 = vmatprep.subr.bf16.mxu0 0
  %3825 = vmatpush2.bf16.msra.mxu0 %v3477
  %3826 = vmatprep.subr.bf16.mxu0 0
  %3827 = vmatpush2.bf16.msra.mxu0 %v3476
  %3828 = vmatprep.subr.bf16.mxu0 0
  %3829 = vmatpush2.bf16.msra.mxu0 %v3475
  %3830 = vmatprep.mubr.bf16.mxu0 %v2635
  %3831 = vmatmul.mubr.bf16.gmra.mxu0 %v2634
  %v3832 = vpop.f32.mrf.mxu0
  %v3833 = vadd.f32 %v3792, %v3832
  %v3834 = vpop.f32.mrf.mxu0
  %v3835 = vpop.f32.mrf.mxu0
  %v3836 = vadd.f32 %v3795, %v3835
  %v3837 = vpop.f32.mrf.mxu0
  %3838 = vdwg.mxu0
  %3839 = vmatprep.subr.bf16.mxu0 0
  %3840 = vmatpush1.bf16.msra.mxu0 %v3490
  %3841 = vmatprep.subr.bf16.mxu0 0
  %3842 = vmatpush1.bf16.msra.mxu0 %v3489
  %3843 = vmatprep.subr.bf16.mxu0 0
  %3844 = vmatpush1.bf16.msra.mxu0 %v3488
  %3845 = vmatprep.subr.bf16.mxu0 0
  %3846 = vmatpush1.bf16.msra.mxu0 %v3487
  %3847 = vmatprep.subr.bf16.mxu0 0
  %3848 = vmatpush1.bf16.msra.mxu0 %v3486
  %3849 = vmatprep.subr.bf16.mxu0 0
  %3850 = vmatpush1.bf16.msra.mxu0 %v3485
  %3851 = vmatprep.subr.bf16.mxu0 0
  %3852 = vmatpush1.bf16.msra.mxu0 %v3484
  %3853 = vmatprep.subr.bf16.mxu0 0
  %3854 = vmatpush1.bf16.msra.mxu0 %v3483
  %3855 = vmatprep.subr.bf16.mxu0 0
  %3856 = vmatpush2.bf16.msra.mxu0 %v3498
  %3857 = vmatprep.subr.bf16.mxu0 0
  %3858 = vmatpush2.bf16.msra.mxu0 %v3497
  %3859 = vmatprep.subr.bf16.mxu0 0
  %3860 = vmatpush2.bf16.msra.mxu0 %v3496
  %3861 = vmatprep.subr.bf16.mxu0 0
  %3862 = vmatpush2.bf16.msra.mxu0 %v3495
  %3863 = vmatprep.subr.bf16.mxu0 0
  %3864 = vmatpush2.bf16.msra.mxu0 %v3494
  %3865 = vmatprep.subr.bf16.mxu0 0
  %3866 = vmatpush2.bf16.msra.mxu0 %v3493
  %3867 = vmatprep.subr.bf16.mxu0 0
  %3868 = vmatpush2.bf16.msra.mxu0 %v3492
  %3869 = vmatprep.subr.bf16.mxu0 0
  %3870 = vmatpush2.bf16.msra.mxu0 %v3491
  %3871 = vmatprep.mubr.bf16.mxu0 %v2637
  %3872 = vmatmul.mubr.bf16.gmra.mxu0 %v2636
  %v3873 = vpop.f32.mrf.mxu0
  %v3874 = vadd.f32 %v3833, %v3873
  %v3875 = vpop.f32.mrf.mxu0
  %v3876 = vpop.f32.mrf.mxu0
  %v3877 = vadd.f32 %v3836, %v3876
  %v3878 = vpop.f32.mrf.mxu0
  %3879 = vdwg.mxu0
  %3880 = vmatprep.subr.bf16.mxu0 0
  %3881 = vmatpush1.bf16.msra.mxu0 %v3506
  %3882 = vmatprep.subr.bf16.mxu0 0
  %3883 = vmatpush1.bf16.msra.mxu0 %v3505
  %3884 = vmatprep.subr.bf16.mxu0 0
  %3885 = vmatpush1.bf16.msra.mxu0 %v3504
  %3886 = vmatprep.subr.bf16.mxu0 0
  %3887 = vmatpush1.bf16.msra.mxu0 %v3503
  %3888 = vmatprep.subr.bf16.mxu0 0
  %3889 = vmatpush1.bf16.msra.mxu0 %v3502
  %3890 = vmatprep.subr.bf16.mxu0 0
  %3891 = vmatpush1.bf16.msra.mxu0 %v3501
  %3892 = vmatprep.subr.bf16.mxu0 0
  %3893 = vmatpush1.bf16.msra.mxu0 %v3500
  %3894 = vmatprep.subr.bf16.mxu0 0
  %3895 = vmatpush1.bf16.msra.mxu0 %v3499
  %3896 = vmatprep.subr.bf16.mxu0 0
  %3897 = vmatpush2.bf16.msra.mxu0 %v3514
  %3898 = vmatprep.subr.bf16.mxu0 0
  %3899 = vmatpush2.bf16.msra.mxu0 %v3513
  %3900 = vmatprep.subr.bf16.mxu0 0
  %3901 = vmatpush2.bf16.msra.mxu0 %v3512
  %3902 = vmatprep.subr.bf16.mxu0 0
  %3903 = vmatpush2.bf16.msra.mxu0 %v3511
  %3904 = vmatprep.subr.bf16.mxu0 0
  %3905 = vmatpush2.bf16.msra.mxu0 %v3510
  %3906 = vmatprep.subr.bf16.mxu0 0
  %3907 = vmatpush2.bf16.msra.mxu0 %v3509
  %3908 = vmatprep.subr.bf16.mxu0 0
  %3909 = vmatpush2.bf16.msra.mxu0 %v3508
  %3910 = vmatprep.subr.bf16.mxu0 0
  %3911 = vmatpush2.bf16.msra.mxu0 %v3507
  %3912 = vmatprep.mubr.bf16.mxu0 %v2639
  %3913 = vmatmul.mubr.bf16.gmra.mxu0 %v2638
  %v3914 = vpop.f32.mrf.mxu0
  %v3915 = vadd.f32 %v3874, %v3914
  %v3916 = vpop.f32.mrf.mxu0
  %v3917 = vpop.f32.mrf.mxu0
  %v3918 = vadd.f32 %v3877, %v3917
  %v3919 = vpop.f32.mrf.mxu0
  %3920 = vdwg.mxu0
  %3921 = vmatprep.subr.bf16.mxu0 0
  %3922 = vmatpush1.bf16.msra.mxu0 %v3522
  %3923 = vmatprep.subr.bf16.mxu0 0
  %3924 = vmatpush1.bf16.msra.mxu0 %v3521
  %3925 = vmatprep.subr.bf16.mxu0 0
  %3926 = vmatpush1.bf16.msra.mxu0 %v3520
  %3927 = vmatprep.subr.bf16.mxu0 0
  %3928 = vmatpush1.bf16.msra.mxu0 %v3519
  %3929 = vmatprep.subr.bf16.mxu0 0
  %3930 = vmatpush1.bf16.msra.mxu0 %v3518
  %3931 = vmatprep.subr.bf16.mxu0 0
  %3932 = vmatpush1.bf16.msra.mxu0 %v3517
  %3933 = vmatprep.subr.bf16.mxu0 0
  %3934 = vmatpush1.bf16.msra.mxu0 %v3516
  %3935 = vmatprep.subr.bf16.mxu0 0
  %3936 = vmatpush1.bf16.msra.mxu0 %v3515
  %3937 = vmatprep.subr.bf16.mxu0 0
  %3938 = vmatpush2.bf16.msra.mxu0 %v3530
  %3939 = vmatprep.subr.bf16.mxu0 0
  %3940 = vmatpush2.bf16.msra.mxu0 %v3529
  %3941 = vmatprep.subr.bf16.mxu0 0
  %3942 = vmatpush2.bf16.msra.mxu0 %v3528
  %3943 = vmatprep.subr.bf16.mxu0 0
  %3944 = vmatpush2.bf16.msra.mxu0 %v3527
  %3945 = vmatprep.subr.bf16.mxu0 0
  %3946 = vmatpush2.bf16.msra.mxu0 %v3526
  %3947 = vmatprep.subr.bf16.mxu0 0
  %3948 = vmatpush2.bf16.msra.mxu0 %v3525
  %3949 = vmatprep.subr.bf16.mxu0 0
  %3950 = vmatpush2.bf16.msra.mxu0 %v3524
  %3951 = vmatprep.subr.bf16.mxu0 0
  %3952 = vmatpush2.bf16.msra.mxu0 %v3523
  %3953 = vmatprep.mubr.bf16.mxu0 %v2641
  %3954 = vmatmul.mubr.bf16.gmra.mxu0 %v2640
  %v3955 = vpop.f32.mrf.mxu0
  %v3956 = vadd.f32 %v3915, %v3955
  %v3957 = vpop.f32.mrf.mxu0
  %v3958 = vpop.f32.mrf.mxu0
  %v3959 = vadd.f32 %v3918, %v3958
  %v3960 = vpop.f32.mrf.mxu0
  %3961 = vdwg.mxu0
  %3962 = vmatprep.subr.bf16.mxu0 0
  %3963 = vmatpush1.bf16.msra.mxu0 %v3538
  %3964 = vmatprep.subr.bf16.mxu0 0
  %3965 = vmatpush1.bf16.msra.mxu0 %v3537
  %3966 = vmatprep.subr.bf16.mxu0 0
  %3967 = vmatpush1.bf16.msra.mxu0 %v3536
  %3968 = vmatprep.subr.bf16.mxu0 0
  %3969 = vmatpush1.bf16.msra.mxu0 %v3535
  %3970 = vmatprep.subr.bf16.mxu0 0
  %3971 = vmatpush1.bf16.msra.mxu0 %v3534
  %3972 = vmatprep.subr.bf16.mxu0 0
  %3973 = vmatpush1.bf16.msra.mxu0 %v3533
  %3974 = vmatprep.subr.bf16.mxu0 0
  %3975 = vmatpush1.bf16.msra.mxu0 %v3532
  %3976 = vmatprep.subr.bf16.mxu0 0
  %3977 = vmatpush1.bf16.msra.mxu0 %v3531
  %3978 = vmatprep.subr.bf16.mxu0 0
  %3979 = vmatpush2.bf16.msra.mxu0 %v3546
  %3980 = vmatprep.subr.bf16.mxu0 0
  %3981 = vmatpush2.bf16.msra.mxu0 %v3545
  %3982 = vmatprep.subr.bf16.mxu0 0
  %3983 = vmatpush2.bf16.msra.mxu0 %v3544
  %3984 = vmatprep.subr.bf16.mxu0 0
  %3985 = vmatpush2.bf16.msra.mxu0 %v3543
  %3986 = vmatprep.subr.bf16.mxu0 0
  %3987 = vmatpush2.bf16.msra.mxu0 %v3542
  %3988 = vmatprep.subr.bf16.mxu0 0
  %3989 = vmatpush2.bf16.msra.mxu0 %v3541
  %3990 = vmatprep.subr.bf16.mxu0 0
  %3991 = vmatpush2.bf16.msra.mxu0 %v3540
  %3992 = vmatprep.subr.bf16.mxu0 0
  %3993 = vmatpush2.bf16.msra.mxu0 %v3539
  %3994 = vmatprep.mubr.bf16.mxu0 %v2643
  %3995 = vmatmul.mubr.bf16.gmra.mxu0 %v2642
  %v3996 = vpop.f32.mrf.mxu0
  %v3997 = vadd.f32 %v3956, %v3996
  %v3998 = vpop.f32.mrf.mxu0
  %v3999 = vpop.f32.mrf.mxu0
  %v4000 = vadd.f32 %v3959, %v3999
  %v4001 = vpop.f32.mrf.mxu0
  %4002 = vdwg.mxu0
  %v4003 = vadd.f32 %v2066, %v3997
  %v4004 = vadd.f32 %v2067, %v4000
  %v4005 = vld [vmem:[%s37] sm:$0x1]
  %v4006 = vld [vmem:[%s39] sm:$0x1]
  %v4007 = vsel %vm394, %v4003, 0.0
  %4008 = vadd.xlane.f32.xlu0 %v4007
  %v4009 = vpop.xlane.xlu0 %4008
  %v4010 = vsel %vm394, %v4004, 0.0
  %4011 = vadd.xlane.f32.xlu0 %v4010
  %v4012 = vpop.xlane.xlu0 %4011
  %v4013 = vmul.f32 %v4009, %v2031
  %v4014 = vmul.f32 %v4012, %v2031
  %v4015 = vsub.f32 %v4003, %v4013
  %v4016 = vsub.f32 %v4004, %v4014
  %v4017 = vmul.f32 %v4015, %v4015
  %v4018 = vmul.f32 %v4016, %v4016
  %v4019 = vsel %vm394, %v4017, 0.0
  %4020 = vadd.xlane.f32.xlu0 %v4019
  %v4021 = vpop.xlane.xlu0 %4020
  %v4022 = vsel %vm394, %v4018, 0.0
  %4023 = vadd.xlane.f32.xlu0 %v4022
  %v4024 = vpop.xlane.xlu0 %4023
  %v4025 = vmul.f32 %v4021, %v2031
  %v4026 = vmul.f32 %v4024, %v2031
  %v4027 = vadd.f32 %v4025, 1e-05
  %v4028 = vadd.f32 %v4026, 1e-05
  %v4029 = vrsqrt.pop %v4027
  %v4030 = vrsqrt.pop %v4028
  %v4031 = vmul.f32 %v4015, %v4029
  %v4032 = vmul.f32 %v4016, %v4030
  %v4034 = vlaneseq
  %v4035 = vshrl.u32 %v4034, 7
  %v4036 = vsub.s32 0, %v4035
  %v4037 = vrot.slane %v4005, %v4036
  %v4039 = vmul.f32 %v4031, %v4037
  %v4040 = vmul.f32 %v4032, %v4037
  %v4042 = vlaneseq
  %v4043 = vshrl.u32 %v4042, 7
  %v4044 = vsub.s32 0, %v4043
  %v4045 = vrot.slane %v4006, %v4044
  %v4047 = vadd.f32 %v4039, %v4045
  %v4048 = vadd.f32 %v4040, %v4045
  %v4049 = vld [vmem:[%s41] sm:$0xff]
  %v4050 = vld [vmem:[%s41 + $0x8] sm:$0xff]
  %v4051 = vld [vmem:[%s43] sm:$0x1]
  %v4053 = vlaneseq
  %v4054 = vshrl.u32 %v4053, 7
  %v4055 = vsub.s32 0, %v4054
  %v4056 = vrot.slane %v4051, %v4055
  %v4059 = vsel %vm394, %v4047, 0
  %v4062 = vsel %vm394, %v4048, 0
  %4064 = vmatprep.subr.mxu0 0.0
  %4065 = vmatpush1.msra.mxu0 0.0
  %4066 = vmatprep.subr.mxu0 0.0
  %4067 = vmatpush1.msra.mxu0 0.0
  %4068 = vmatprep.subr.mxu0 0.0
  %4069 = vmatpush1.msra.mxu0 0.0
  %4070 = vmatprep.subr.mxu0 0.0
  %4071 = vmatpush1.msra.mxu0 0.0
  %4072 = vmatprep.subr.mxu0 0.0
  %4073 = vmatpush1.msra.mxu0 0.0
  %4074 = vmatprep.subr.mxu0 0.0
  %4075 = vmatpush1.msra.mxu0 0.0
  %4076 = vmatprep.subr.mxu0 0.0
  %4077 = vmatpush1.msra.mxu0 0.0
  %4078 = vmatprep.subr.mxu0 0.0
  %4079 = vmatpush1.msra.mxu0 0.0
  %4080 = vmatprep.subr.mxu0 0.0
  %4081 = vmatpush1.msra.mxu0 0.0
  %4082 = vmatprep.subr.mxu0 0.0
  %4083 = vmatpush1.msra.mxu0 0.0
  %4084 = vmatprep.subr.mxu0 0.0
  %4085 = vmatpush1.msra.mxu0 0.0
  %4086 = vmatprep.subr.mxu0 0.0
  %4087 = vmatpush1.msra.mxu0 0.0
  %4088 = vmatprep.subr.mxu0 0.0
  %4089 = vmatpush1.msra.mxu0 0.0
  %4090 = vmatprep.subr.mxu0 0.0
  %4091 = vmatpush1.msra.mxu0 0.0
  %4092 = vmatprep.subr.mxu0 0.0
  %4093 = vmatpush1.msra.mxu0 %v4050
  %4094 = vmatprep.subr.mxu0 0.0
  %4095 = vmatpush1.msra.mxu0 %v4049
  %4096 = vmatprep.subr.mxu0 0.0
  %4097 = vmatpush2.msra.mxu0 0.0
  %4098 = vmatprep.subr.mxu0 0.0
  %4099 = vmatpush2.msra.mxu0 0.0
  %4100 = vmatprep.subr.mxu0 0.0
  %4101 = vmatpush2.msra.mxu0 0.0
  %4102 = vmatprep.subr.mxu0 0.0
  %4103 = vmatpush2.msra.mxu0 0.0
  %4104 = vmatprep.subr.mxu0 0.0
  %4105 = vmatpush2.msra.mxu0 0.0
  %4106 = vmatprep.subr.mxu0 0.0
  %4107 = vmatpush2.msra.mxu0 0.0
  %4108 = vmatprep.subr.mxu0 0.0
  %4109 = vmatpush2.msra.mxu0 0.0
  %4110 = vmatprep.subr.mxu0 0.0
  %4111 = vmatpush2.msra.mxu0 0.0
  %4112 = vmatprep.subr.mxu0 0.0
  %4113 = vmatpush2.msra.mxu0 0.0
  %4114 = vmatprep.subr.mxu0 0.0
  %4115 = vmatpush2.msra.mxu0 0.0
  %4116 = vmatprep.subr.mxu0 0.0
  %4117 = vmatpush2.msra.mxu0 0.0
  %4118 = vmatprep.subr.mxu0 0.0
  %4119 = vmatpush2.msra.mxu0 0.0
  %4120 = vmatprep.subr.mxu0 0.0
  %4121 = vmatpush2.msra.mxu0 0.0
  %4122 = vmatprep.subr.mxu0 0.0
  %4123 = vmatpush2.msra.mxu0 0.0
  %4124 = vmatprep.subr.mxu0 0.0
  %4125 = vmatpush2.msra.mxu0 0.0
  %4126 = vmatprep.subr.mxu0 0.0
  %4127 = vmatpush2.msra.mxu0 0.0
  %4128 = vmatprep.mubr.f32.mxu0 0.0
  %4129 = vmatmul.mubr.f32.gmra.mxu0 %v4059
  %v4130 = vpop.f32.mrf.mxu0
  %v4131 = vadd.f32 %v4056, %v4130
  %v4132 = vpop.f32.mrf.mxu0
  %4133 = vmatprep.mubr.f32.mxu0 0.0
  %4134 = vmatmul.mubr.f32.gmra.mxu0 %v4062
  %v4135 = vpop.f32.mrf.mxu0
  %v4136 = vadd.f32 %v4056, %v4135
  %v4137 = vpop.f32.mrf.mxu0
  %4138 = vdwg.mxu0
  %v4139 = vld [vmem:[%s45] sm:$0xff]
  %v4140 = vld [vmem:[%s45 + $0x8] sm:$0xff]
  %v4141 = vld [vmem:[%s47] sm:$0x1]
  %v4143 = vlaneseq
  %v4144 = vshrl.u32 %v4143, 7
  %v4145 = vsub.s32 0, %v4144
  %v4146 = vrot.slane %v4141, %v4145
  %4148 = vmatprep.subr.mxu0 0.0
  %4149 = vmatpush1.msra.mxu0 0.0
  %4150 = vmatprep.subr.mxu0 0.0
  %4151 = vmatpush1.msra.mxu0 0.0
  %4152 = vmatprep.subr.mxu0 0.0
  %4153 = vmatpush1.msra.mxu0 0.0
  %4154 = vmatprep.subr.mxu0 0.0
  %4155 = vmatpush1.msra.mxu0 0.0
  %4156 = vmatprep.subr.mxu0 0.0
  %4157 = vmatpush1.msra.mxu0 0.0
  %4158 = vmatprep.subr.mxu0 0.0
  %4159 = vmatpush1.msra.mxu0 0.0
  %4160 = vmatprep.subr.mxu0 0.0
  %4161 = vmatpush1.msra.mxu0 0.0
  %4162 = vmatprep.subr.mxu0 0.0
  %4163 = vmatpush1.msra.mxu0 0.0
  %4164 = vmatprep.subr.mxu0 0.0
  %4165 = vmatpush1.msra.mxu0 0.0
  %4166 = vmatprep.subr.mxu0 0.0
  %4167 = vmatpush1.msra.mxu0 0.0
  %4168 = vmatprep.subr.mxu0 0.0
  %4169 = vmatpush1.msra.mxu0 0.0
  %4170 = vmatprep.subr.mxu0 0.0
  %4171 = vmatpush1.msra.mxu0 0.0
  %4172 = vmatprep.subr.mxu0 0.0
  %4173 = vmatpush1.msra.mxu0 0.0
  %4174 = vmatprep.subr.mxu0 0.0
  %4175 = vmatpush1.msra.mxu0 0.0
  %4176 = vmatprep.subr.mxu0 0.0
  %4177 = vmatpush1.msra.mxu0 %v4140
  %4178 = vmatprep.subr.mxu0 0.0
  %4179 = vmatpush1.msra.mxu0 %v4139
  %4180 = vmatprep.subr.mxu0 0.0
  %4181 = vmatpush2.msra.mxu0 0.0
  %4182 = vmatprep.subr.mxu0 0.0
  %4183 = vmatpush2.msra.mxu0 0.0
  %4184 = vmatprep.subr.mxu0 0.0
  %4185 = vmatpush2.msra.mxu0 0.0
  %4186 = vmatprep.subr.mxu0 0.0
  %4187 = vmatpush2.msra.mxu0 0.0
  %4188 = vmatprep.subr.mxu0 0.0
  %4189 = vmatpush2.msra.mxu0 0.0
  %4190 = vmatprep.subr.mxu0 0.0
  %4191 = vmatpush2.msra.mxu0 0.0
  %4192 = vmatprep.subr.mxu0 0.0
  %4193 = vmatpush2.msra.mxu0 0.0
  %4194 = vmatprep.subr.mxu0 0.0
  %4195 = vmatpush2.msra.mxu0 0.0
  %4196 = vmatprep.subr.mxu0 0.0
  %4197 = vmatpush2.msra.mxu0 0.0
  %4198 = vmatprep.subr.mxu0 0.0
  %4199 = vmatpush2.msra.mxu0 0.0
  %4200 = vmatprep.subr.mxu0 0.0
  %4201 = vmatpush2.msra.mxu0 0.0
  %4202 = vmatprep.subr.mxu0 0.0
  %4203 = vmatpush2.msra.mxu0 0.0
  %4204 = vmatprep.subr.mxu0 0.0
  %4205 = vmatpush2.msra.mxu0 0.0
  %4206 = vmatprep.subr.mxu0 0.0
  %4207 = vmatpush2.msra.mxu0 0.0
  %4208 = vmatprep.subr.mxu0 0.0
  %4209 = vmatpush2.msra.mxu0 0.0
  %4210 = vmatprep.subr.mxu0 0.0
  %4211 = vmatpush2.msra.mxu0 0.0
  %4212 = vmatprep.mubr.f32.mxu0 0.0
  %4213 = vmatmul.mubr.f32.gmra.mxu0 %v4059
  %v4214 = vpop.f32.mrf.mxu0
  %v4215 = vadd.f32 %v4146, %v4214
  %v4216 = vpop.f32.mrf.mxu0
  %4217 = vmatprep.mubr.f32.mxu0 0.0
  %4218 = vmatmul.mubr.f32.gmra.mxu0 %v4062
  %v4219 = vpop.f32.mrf.mxu0
  %v4220 = vadd.f32 %v4146, %v4219
  %v4221 = vpop.f32.mrf.mxu0
  %4222 = vdwg.mxu0
  %v4223 = vld [vmem:[%s49] sm:$0xff]
  %v4224 = vld [vmem:[%s49 + $0x8] sm:$0xff]
  %v4225 = vld [vmem:[%s51] sm:$0x1]
  %v4227 = vlaneseq
  %v4228 = vshrl.u32 %v4227, 7
  %v4229 = vsub.s32 0, %v4228
  %v4230 = vrot.slane %v4225, %v4229
  %4232 = vmatprep.subr.mxu0 0.0
  %4233 = vmatpush1.msra.mxu0 0.0
  %4234 = vmatprep.subr.mxu0 0.0
  %4235 = vmatpush1.msra.mxu0 0.0
  %4236 = vmatprep.subr.mxu0 0.0
  %4237 = vmatpush1.msra.mxu0 0.0
  %4238 = vmatprep.subr.mxu0 0.0
  %4239 = vmatpush1.msra.mxu0 0.0
  %4240 = vmatprep.subr.mxu0 0.0
  %4241 = vmatpush1.msra.mxu0 0.0
  %4242 = vmatprep.subr.mxu0 0.0
  %4243 = vmatpush1.msra.mxu0 0.0
  %4244 = vmatprep.subr.mxu0 0.0
  %4245 = vmatpush1.msra.mxu0 0.0
  %4246 = vmatprep.subr.mxu0 0.0
  %4247 = vmatpush1.msra.mxu0 0.0
  %4248 = vmatprep.subr.mxu0 0.0
  %4249 = vmatpush1.msra.mxu0 0.0
  %4250 = vmatprep.subr.mxu0 0.0
  %4251 = vmatpush1.msra.mxu0 0.0
  %4252 = vmatprep.subr.mxu0 0.0
  %4253 = vmatpush1.msra.mxu0 0.0
  %4254 = vmatprep.subr.mxu0 0.0
  %4255 = vmatpush1.msra.mxu0 0.0
  %4256 = vmatprep.subr.mxu0 0.0
  %4257 = vmatpush1.msra.mxu0 0.0
  %4258 = vmatprep.subr.mxu0 0.0
  %4259 = vmatpush1.msra.mxu0 0.0
  %4260 = vmatprep.subr.mxu0 0.0
  %4261 = vmatpush1.msra.mxu0 %v4224
  %4262 = vmatprep.subr.mxu0 0.0
  %4263 = vmatpush1.msra.mxu0 %v4223
  %4264 = vmatprep.subr.mxu0 0.0
  %4265 = vmatpush2.msra.mxu0 0.0
  %4266 = vmatprep.subr.mxu0 0.0
  %4267 = vmatpush2.msra.mxu0 0.0
  %4268 = vmatprep.subr.mxu0 0.0
  %4269 = vmatpush2.msra.mxu0 0.0
  %4270 = vmatprep.subr.mxu0 0.0
  %4271 = vmatpush2.msra.mxu0 0.0
  %4272 = vmatprep.subr.mxu0 0.0
  %4273 = vmatpush2.msra.mxu0 0.0
  %4274 = vmatprep.subr.mxu0 0.0
  %4275 = vmatpush2.msra.mxu0 0.0
  %4276 = vmatprep.subr.mxu0 0.0
  %4277 = vmatpush2.msra.mxu0 0.0
  %4278 = vmatprep.subr.mxu0 0.0
  %4279 = vmatpush2.msra.mxu0 0.0
  %4280 = vmatprep.subr.mxu0 0.0
  %4281 = vmatpush2.msra.mxu0 0.0
  %4282 = vmatprep.subr.mxu0 0.0
  %4283 = vmatpush2.msra.mxu0 0.0
  %4284 = vmatprep.subr.mxu0 0.0
  %4285 = vmatpush2.msra.mxu0 0.0
  %4286 = vmatprep.subr.mxu0 0.0
  %4287 = vmatpush2.msra.mxu0 0.0
  %4288 = vmatprep.subr.mxu0 0.0
  %4289 = vmatpush2.msra.mxu0 0.0
  %4290 = vmatprep.subr.mxu0 0.0
  %4291 = vmatpush2.msra.mxu0 0.0
  %4292 = vmatprep.subr.mxu0 0.0
  %4293 = vmatpush2.msra.mxu0 0.0
  %4294 = vmatprep.subr.mxu0 0.0
  %4295 = vmatpush2.msra.mxu0 0.0
  %4296 = vmatprep.mubr.f32.mxu0 0.0
  %4297 = vmatmul.mubr.f32.gmra.mxu0 %v4059
  %v4298 = vpop.f32.mrf.mxu0
  %v4299 = vadd.f32 %v4230, %v4298
  %v4300 = vpop.f32.mrf.mxu0
  %4301 = vmatprep.mubr.f32.mxu0 0.0
  %4302 = vmatmul.mubr.f32.gmra.mxu0 %v4062
  %v4303 = vpop.f32.mrf.mxu0
  %v4304 = vadd.f32 %v4230, %v4303
  %v4305 = vpop.f32.mrf.mxu0
  %4306 = vdwg.mxu0
  %v4307 = vmul.f32 %v4131, %v644
  %v4308 = vmul.f32 %v4136, %v644
  %v4310 = vsel %vm394, %v4307, 0
  %v4313 = vsel %vm394, %v4215, 0
  %4315 = vmatprep.subr.mxu0 0.0
  %4316 = vmatpush1.xpose.msra.mxu0 0.0
  %4317 = vmatprep.subr.mxu0 0.0
  %4318 = vmatpush1.xpose.msra.mxu0 0.0
  %4319 = vmatprep.subr.mxu0 0.0
  %4320 = vmatpush1.xpose.msra.mxu0 0.0
  %4321 = vmatprep.subr.mxu0 0.0
  %4322 = vmatpush1.xpose.msra.mxu0 0.0
  %4323 = vmatprep.subr.mxu0 0.0
  %4324 = vmatpush1.xpose.msra.mxu0 0.0
  %4325 = vmatprep.subr.mxu0 0.0
  %4326 = vmatpush1.xpose.msra.mxu0 0.0
  %4327 = vmatprep.subr.mxu0 0.0
  %4328 = vmatpush1.xpose.msra.mxu0 0.0
  %4329 = vmatprep.subr.mxu0 0.0
  %4330 = vmatpush1.xpose.msra.mxu0 0.0
  %4331 = vmatprep.subr.mxu0 0.0
  %4332 = vmatpush1.xpose.msra.mxu0 0.0
  %4333 = vmatprep.subr.mxu0 0.0
  %4334 = vmatpush1.xpose.msra.mxu0 0.0
  %4335 = vmatprep.subr.mxu0 0.0
  %4336 = vmatpush1.xpose.msra.mxu0 0.0
  %4337 = vmatprep.subr.mxu0 0.0
  %4338 = vmatpush1.xpose.msra.mxu0 0.0
  %4339 = vmatprep.subr.mxu0 0.0
  %4340 = vmatpush1.xpose.msra.mxu0 0.0
  %4341 = vmatprep.subr.mxu0 0.0
  %4342 = vmatpush1.xpose.msra.mxu0 0.0
  %4343 = vmatprep.subr.mxu0 0.0
  %4344 = vmatpush1.xpose.msra.mxu0 0.0
  %4345 = vmatprep.subr.mxu0 0.0
  %4346 = vmatpush1.xpose.msra.mxu0 %v4313
  %4347 = vmatprep.subr.mxu0 0.0
  %4348 = vmatpush2.xpose.msra.mxu0 0.0
  %4349 = vmatprep.subr.mxu0 0.0
  %4350 = vmatpush2.xpose.msra.mxu0 0.0
  %4351 = vmatprep.subr.mxu0 0.0
  %4352 = vmatpush2.xpose.msra.mxu0 0.0
  %4353 = vmatprep.subr.mxu0 0.0
  %4354 = vmatpush2.xpose.msra.mxu0 0.0
  %4355 = vmatprep.subr.mxu0 0.0
  %4356 = vmatpush2.xpose.msra.mxu0 0.0
  %4357 = vmatprep.subr.mxu0 0.0
  %4358 = vmatpush2.xpose.msra.mxu0 0.0
  %4359 = vmatprep.subr.mxu0 0.0
  %4360 = vmatpush2.xpose.msra.mxu0 0.0
  %4361 = vmatprep.subr.mxu0 0.0
  %4362 = vmatpush2.xpose.msra.mxu0 0.0
  %4363 = vmatprep.subr.mxu0 0.0
  %4364 = vmatpush2.xpose.msra.mxu0 0.0
  %4365 = vmatprep.subr.mxu0 0.0
  %4366 = vmatpush2.xpose.msra.mxu0 0.0
  %4367 = vmatprep.subr.mxu0 0.0
  %4368 = vmatpush2.xpose.msra.mxu0 0.0
  %4369 = vmatprep.subr.mxu0 0.0
  %4370 = vmatpush2.xpose.msra.mxu0 0.0
  %4371 = vmatprep.subr.mxu0 0.0
  %4372 = vmatpush2.xpose.msra.mxu0 0.0
  %4373 = vmatprep.subr.mxu0 0.0
  %4374 = vmatpush2.xpose.msra.mxu0 0.0
  %4375 = vmatprep.subr.mxu0 0.0
  %4376 = vmatpush2.xpose.msra.mxu0 0.0
  %4377 = vmatprep.subr.mxu0 0.0
  %4378 = vmatpush2.xpose.msra.mxu0 0.0
  %4379 = vmatprep.mubr.f32.mxu0 0.0
  %4380 = vmatmul.mubr.f32.gmra.mxu0 %v4310
  %v4381 = vpop.f32.mrf.mxu0
  %v4382 = vadd.f32 0.0, %v4381
  %v4383 = vpop.f32.mrf.mxu0
  %4384 = vdwg.mxu0
  %v4386 = vsel %vm394, %v4308, 0
  %v4389 = vsel %vm394, %v4220, 0
  %4391 = vmatprep.subr.mxu0 0.0
  %4392 = vmatpush1.xpose.msra.mxu0 0.0
  %4393 = vmatprep.subr.mxu0 0.0
  %4394 = vmatpush1.xpose.msra.mxu0 0.0
  %4395 = vmatprep.subr.mxu0 0.0
  %4396 = vmatpush1.xpose.msra.mxu0 0.0
  %4397 = vmatprep.subr.mxu0 0.0
  %4398 = vmatpush1.xpose.msra.mxu0 0.0
  %4399 = vmatprep.subr.mxu0 0.0
  %4400 = vmatpush1.xpose.msra.mxu0 0.0
  %4401 = vmatprep.subr.mxu0 0.0
  %4402 = vmatpush1.xpose.msra.mxu0 0.0
  %4403 = vmatprep.subr.mxu0 0.0
  %4404 = vmatpush1.xpose.msra.mxu0 0.0
  %4405 = vmatprep.subr.mxu0 0.0
  %4406 = vmatpush1.xpose.msra.mxu0 0.0
  %4407 = vmatprep.subr.mxu0 0.0
  %4408 = vmatpush1.xpose.msra.mxu0 0.0
  %4409 = vmatprep.subr.mxu0 0.0
  %4410 = vmatpush1.xpose.msra.mxu0 0.0
  %4411 = vmatprep.subr.mxu0 0.0
  %4412 = vmatpush1.xpose.msra.mxu0 0.0
  %4413 = vmatprep.subr.mxu0 0.0
  %4414 = vmatpush1.xpose.msra.mxu0 0.0
  %4415 = vmatprep.subr.mxu0 0.0
  %4416 = vmatpush1.xpose.msra.mxu0 0.0
  %4417 = vmatprep.subr.mxu0 0.0
  %4418 = vmatpush1.xpose.msra.mxu0 0.0
  %4419 = vmatprep.subr.mxu0 0.0
  %4420 = vmatpush1.xpose.msra.mxu0 0.0
  %4421 = vmatprep.subr.mxu0 0.0
  %4422 = vmatpush1.xpose.msra.mxu0 %v4389
  %4423 = vmatprep.subr.mxu0 0.0
  %4424 = vmatpush2.xpose.msra.mxu0 0.0
  %4425 = vmatprep.subr.mxu0 0.0
  %4426 = vmatpush2.xpose.msra.mxu0 0.0
  %4427 = vmatprep.subr.mxu0 0.0
  %4428 = vmatpush2.xpose.msra.mxu0 0.0
  %4429 = vmatprep.subr.mxu0 0.0
  %4430 = vmatpush2.xpose.msra.mxu0 0.0
  %4431 = vmatprep.subr.mxu0 0.0
  %4432 = vmatpush2.xpose.msra.mxu0 0.0
  %4433 = vmatprep.subr.mxu0 0.0
  %4434 = vmatpush2.xpose.msra.mxu0 0.0
  %4435 = vmatprep.subr.mxu0 0.0
  %4436 = vmatpush2.xpose.msra.mxu0 0.0
  %4437 = vmatprep.subr.mxu0 0.0
  %4438 = vmatpush2.xpose.msra.mxu0 0.0
  %4439 = vmatprep.subr.mxu0 0.0
  %4440 = vmatpush2.xpose.msra.mxu0 0.0
  %4441 = vmatprep.subr.mxu0 0.0
  %4442 = vmatpush2.xpose.msra.mxu0 0.0
  %4443 = vmatprep.subr.mxu0 0.0
  %4444 = vmatpush2.xpose.msra.mxu0 0.0
  %4445 = vmatprep.subr.mxu0 0.0
  %4446 = vmatpush2.xpose.msra.mxu0 0.0
  %4447 = vmatprep.subr.mxu0 0.0
  %4448 = vmatpush2.xpose.msra.mxu0 0.0
  %4449 = vmatprep.subr.mxu0 0.0
  %4450 = vmatpush2.xpose.msra.mxu0 0.0
  %4451 = vmatprep.subr.mxu0 0.0
  %4452 = vmatpush2.xpose.msra.mxu0 0.0
  %4453 = vmatprep.subr.mxu0 0.0
  %4454 = vmatpush2.xpose.msra.mxu0 0.0
  %4455 = vmatprep.mubr.f32.mxu0 0.0
  %4456 = vmatmul.mubr.f32.gmra.mxu0 %v4386
  %v4457 = vpop.f32.mrf.mxu0
  %v4458 = vadd.f32 0.0, %v4457
  %v4459 = vpop.f32.mrf.mxu0
  %4460 = vdwg.mxu0
  %v4461 = vsel %vm799, %v4382, -inf
  %4462 = vmax.xlane.f32.xlu0 %v4461
  %v4463 = vpop.xlane.xlu0 %4462
  %v4464 = vsel %vm799, %v4458, -inf
  %4465 = vmax.xlane.f32.xlu0 %v4464
  %v4466 = vpop.xlane.xlu0 %4465
  %v4467 = vsub.f32 %v4382, %v4463
  %v4468 = vsub.f32 %v4458, %v4466
  %v4469 = vmul.f32 %v4467, 1.442695
  %v4470 = vpow.pop %v4469
  %v4471 = vmul.f32 %v4468, 1.442695
  %v4472 = vpow.pop %v4471
  %v4473 = vsel %vm799, %v4470, 0.0
  %4474 = vadd.xlane.f32.xlu0 %v4473
  %v4475 = vpop.xlane.xlu0 %4474
  %v4476 = vsel %vm799, %v4472, 0.0
  %4477 = vadd.xlane.f32.xlu0 %v4476
  %v4478 = vpop.xlane.xlu0 %4477
  %v4479 = vrcp.pop %v4475
  %v4480 = vrcp.pop %v4478
  %v4481 = vmul.f32 %v4470, %v4479
  %v4482 = vmul.f32 %v4472, %v4480
  %v4483 = vmul.f32 %v4299, %v369
  %v4484 = vmul.f32 %v4304, %v369
  %v4485 = vmul.f32 %v4131, %v824
  %v4486 = vmul.f32 %v4136, %v824
  %v4488 = vsel %vm394, %v4485, 0
  %4490 = vmatprep.subr.mxu0 0.0
  %4491 = vmatpush1.xpose.msra.mxu0 0.0
  %4492 = vmatprep.subr.mxu0 0.0
  %4493 = vmatpush1.xpose.msra.mxu0 0.0
  %4494 = vmatprep.subr.mxu0 0.0
  %4495 = vmatpush1.xpose.msra.mxu0 0.0
  %4496 = vmatprep.subr.mxu0 0.0
  %4497 = vmatpush1.xpose.msra.mxu0 0.0
  %4498 = vmatprep.subr.mxu0 0.0
  %4499 = vmatpush1.xpose.msra.mxu0 0.0
  %4500 = vmatprep.subr.mxu0 0.0
  %4501 = vmatpush1.xpose.msra.mxu0 0.0
  %4502 = vmatprep.subr.mxu0 0.0
  %4503 = vmatpush1.xpose.msra.mxu0 0.0
  %4504 = vmatprep.subr.mxu0 0.0
  %4505 = vmatpush1.xpose.msra.mxu0 0.0
  %4506 = vmatprep.subr.mxu0 0.0
  %4507 = vmatpush1.xpose.msra.mxu0 0.0
  %4508 = vmatprep.subr.mxu0 0.0
  %4509 = vmatpush1.xpose.msra.mxu0 0.0
  %4510 = vmatprep.subr.mxu0 0.0
  %4511 = vmatpush1.xpose.msra.mxu0 0.0
  %4512 = vmatprep.subr.mxu0 0.0
  %4513 = vmatpush1.xpose.msra.mxu0 0.0
  %4514 = vmatprep.subr.mxu0 0.0
  %4515 = vmatpush1.xpose.msra.mxu0 0.0
  %4516 = vmatprep.subr.mxu0 0.0
  %4517 = vmatpush1.xpose.msra.mxu0 0.0
  %4518 = vmatprep.subr.mxu0 0.0
  %4519 = vmatpush1.xpose.msra.mxu0 0.0
  %4520 = vmatprep.subr.mxu0 0.0
  %4521 = vmatpush1.xpose.msra.mxu0 %v4313
  %4522 = vmatprep.subr.mxu0 0.0
  %4523 = vmatpush2.xpose.msra.mxu0 0.0
  %4524 = vmatprep.subr.mxu0 0.0
  %4525 = vmatpush2.xpose.msra.mxu0 0.0
  %4526 = vmatprep.subr.mxu0 0.0
  %4527 = vmatpush2.xpose.msra.mxu0 0.0
  %4528 = vmatprep.subr.mxu0 0.0
  %4529 = vmatpush2.xpose.msra.mxu0 0.0
  %4530 = vmatprep.subr.mxu0 0.0
  %4531 = vmatpush2.xpose.msra.mxu0 0.0
  %4532 = vmatprep.subr.mxu0 0.0
  %4533 = vmatpush2.xpose.msra.mxu0 0.0
  %4534 = vmatprep.subr.mxu0 0.0
  %4535 = vmatpush2.xpose.msra.mxu0 0.0
  %4536 = vmatprep.subr.mxu0 0.0
  %4537 = vmatpush2.xpose.msra.mxu0 0.0
  %4538 = vmatprep.subr.mxu0 0.0
  %4539 = vmatpush2.xpose.msra.mxu0 0.0
  %4540 = vmatprep.subr.mxu0 0.0
  %4541 = vmatpush2.xpose.msra.mxu0 0.0
  %4542 = vmatprep.subr.mxu0 0.0
  %4543 = vmatpush2.xpose.msra.mxu0 0.0
  %4544 = vmatprep.subr.mxu0 0.0
  %4545 = vmatpush2.xpose.msra.mxu0 0.0
  %4546 = vmatprep.subr.mxu0 0.0
  %4547 = vmatpush2.xpose.msra.mxu0 0.0
  %4548 = vmatprep.subr.mxu0 0.0
  %4549 = vmatpush2.xpose.msra.mxu0 0.0
  %4550 = vmatprep.subr.mxu0 0.0
  %4551 = vmatpush2.xpose.msra.mxu0 0.0
  %4552 = vmatprep.subr.mxu0 0.0
  %4553 = vmatpush2.xpose.msra.mxu0 0.0
  %4554 = vmatprep.mubr.f32.mxu0 0.0
  %4555 = vmatmul.mubr.f32.gmra.mxu0 %v4488
  %v4556 = vpop.f32.mrf.mxu0
  %v4557 = vadd.f32 0.0, %v4556
  %v4558 = vpop.f32.mrf.mxu0
  %4559 = vdwg.mxu0
  %v4561 = vsel %vm394, %v4486, 0
  %4563 = vmatprep.subr.mxu0 0.0
  %4564 = vmatpush1.xpose.msra.mxu0 0.0
  %4565 = vmatprep.subr.mxu0 0.0
  %4566 = vmatpush1.xpose.msra.mxu0 0.0
  %4567 = vmatprep.subr.mxu0 0.0
  %4568 = vmatpush1.xpose.msra.mxu0 0.0
  %4569 = vmatprep.subr.mxu0 0.0
  %4570 = vmatpush1.xpose.msra.mxu0 0.0
  %4571 = vmatprep.subr.mxu0 0.0
  %4572 = vmatpush1.xpose.msra.mxu0 0.0
  %4573 = vmatprep.subr.mxu0 0.0
  %4574 = vmatpush1.xpose.msra.mxu0 0.0
  %4575 = vmatprep.subr.mxu0 0.0
  %4576 = vmatpush1.xpose.msra.mxu0 0.0
  %4577 = vmatprep.subr.mxu0 0.0
  %4578 = vmatpush1.xpose.msra.mxu0 0.0
  %4579 = vmatprep.subr.mxu0 0.0
  %4580 = vmatpush1.xpose.msra.mxu0 0.0
  %4581 = vmatprep.subr.mxu0 0.0
  %4582 = vmatpush1.xpose.msra.mxu0 0.0
  %4583 = vmatprep.subr.mxu0 0.0
  %4584 = vmatpush1.xpose.msra.mxu0 0.0
  %4585 = vmatprep.subr.mxu0 0.0
  %4586 = vmatpush1.xpose.msra.mxu0 0.0
  %4587 = vmatprep.subr.mxu0 0.0
  %4588 = vmatpush1.xpose.msra.mxu0 0.0
  %4589 = vmatprep.subr.mxu0 0.0
  %4590 = vmatpush1.xpose.msra.mxu0 0.0
  %4591 = vmatprep.subr.mxu0 0.0
  %4592 = vmatpush1.xpose.msra.mxu0 0.0
  %4593 = vmatprep.subr.mxu0 0.0
  %4594 = vmatpush1.xpose.msra.mxu0 %v4389
  %4595 = vmatprep.subr.mxu0 0.0
  %4596 = vmatpush2.xpose.msra.mxu0 0.0
  %4597 = vmatprep.subr.mxu0 0.0
  %4598 = vmatpush2.xpose.msra.mxu0 0.0
  %4599 = vmatprep.subr.mxu0 0.0
  %4600 = vmatpush2.xpose.msra.mxu0 0.0
  %4601 = vmatprep.subr.mxu0 0.0
  %4602 = vmatpush2.xpose.msra.mxu0 0.0
  %4603 = vmatprep.subr.mxu0 0.0
  %4604 = vmatpush2.xpose.msra.mxu0 0.0
  %4605 = vmatprep.subr.mxu0 0.0
  %4606 = vmatpush2.xpose.msra.mxu0 0.0
  %4607 = vmatprep.subr.mxu0 0.0
  %4608 = vmatpush2.xpose.msra.mxu0 0.0
  %4609 = vmatprep.subr.mxu0 0.0
  %4610 = vmatpush2.xpose.msra.mxu0 0.0
  %4611 = vmatprep.subr.mxu0 0.0
  %4612 = vmatpush2.xpose.msra.mxu0 0.0
  %4613 = vmatprep.subr.mxu0 0.0
  %4614 = vmatpush2.xpose.msra.mxu0 0.0
  %4615 = vmatprep.subr.mxu0 0.0
  %4616 = vmatpush2.xpose.msra.mxu0 0.0
  %4617 = vmatprep.subr.mxu0 0.0
  %4618 = vmatpush2.xpose.msra.mxu0 0.0
  %4619 = vmatprep.subr.mxu0 0.0
  %4620 = vmatpush2.xpose.msra.mxu0 0.0
  %4621 = vmatprep.subr.mxu0 0.0
  %4622 = vmatpush2.xpose.msra.mxu0 0.0
  %4623 = vmatprep.subr.mxu0 0.0
  %4624 = vmatpush2.xpose.msra.mxu0 0.0
  %4625 = vmatprep.subr.mxu0 0.0
  %4626 = vmatpush2.xpose.msra.mxu0 0.0
  %4627 = vmatprep.mubr.f32.mxu0 0.0
  %4628 = vmatmul.mubr.f32.gmra.mxu0 %v4561
  %v4629 = vpop.f32.mrf.mxu0
  %v4630 = vadd.f32 0.0, %v4629
  %v4631 = vpop.f32.mrf.mxu0
  %4632 = vdwg.mxu0
  %v4633 = vsel %vm799, %v4557, -inf
  %4634 = vmax.xlane.f32.xlu0 %v4633
  %v4635 = vpop.xlane.xlu0 %4634
  %v4636 = vsel %vm799, %v4630, -inf
  %4637 = vmax.xlane.f32.xlu0 %v4636
  %v4638 = vpop.xlane.xlu0 %4637
  %v4639 = vsub.f32 %v4557, %v4635
  %v4640 = vsub.f32 %v4630, %v4638
  %v4641 = vmul.f32 %v4639, 1.442695
  %v4642 = vpow.pop %v4641
  %v4643 = vmul.f32 %v4640, 1.442695
  %v4644 = vpow.pop %v4643
  %v4645 = vsel %vm799, %v4642, 0.0
  %4646 = vadd.xlane.f32.xlu0 %v4645
  %v4647 = vpop.xlane.xlu0 %4646
  %v4648 = vsel %vm799, %v4644, 0.0
  %4649 = vadd.xlane.f32.xlu0 %v4648
  %v4650 = vpop.xlane.xlu0 %4649
  %v4651 = vrcp.pop %v4647
  %v4652 = vrcp.pop %v4650
  %v4653 = vmul.f32 %v4642, %v4651
  %v4654 = vmul.f32 %v4644, %v4652
  %v4655 = vmul.f32 %v4299, %v374
  %v4656 = vmul.f32 %v4304, %v374
  %v4658 = vsel %vm799, %v4653, 0
  %4660 = vmatprep.subr.mxu0 0.0
  %4661 = vmatpush1.msra.mxu0 0.0
  %4662 = vmatprep.subr.mxu0 0.0
  %4663 = vmatpush1.msra.mxu0 0.0
  %4664 = vmatprep.subr.mxu0 0.0
  %4665 = vmatpush1.msra.mxu0 0.0
  %4666 = vmatprep.subr.mxu0 0.0
  %4667 = vmatpush1.msra.mxu0 0.0
  %4668 = vmatprep.subr.mxu0 0.0
  %4669 = vmatpush1.msra.mxu0 0.0
  %4670 = vmatprep.subr.mxu0 0.0
  %4671 = vmatpush1.msra.mxu0 0.0
  %4672 = vmatprep.subr.mxu0 0.0
  %4673 = vmatpush1.msra.mxu0 0.0
  %4674 = vmatprep.subr.mxu0 0.0
  %4675 = vmatpush1.msra.mxu0 0.0
  %4676 = vmatprep.subr.mxu0 0.0
  %4677 = vmatpush1.msra.mxu0 0.0
  %4678 = vmatprep.subr.mxu0 0.0
  %4679 = vmatpush1.msra.mxu0 0.0
  %4680 = vmatprep.subr.mxu0 0.0
  %4681 = vmatpush1.msra.mxu0 0.0
  %4682 = vmatprep.subr.mxu0 0.0
  %4683 = vmatpush1.msra.mxu0 0.0
  %4684 = vmatprep.subr.mxu0 0.0
  %4685 = vmatpush1.msra.mxu0 0.0
  %4686 = vmatprep.subr.mxu0 0.0
  %4687 = vmatpush1.msra.mxu0 0.0
  %4688 = vmatprep.subr.mxu0 0.0
  %4689 = vmatpush1.msra.mxu0 0.0
  %4690 = vmatprep.subr.mxu0 0.0
  %4691 = vmatpush1.msra.mxu0 %v4655
  %4692 = vmatprep.subr.mxu0 0.0
  %4693 = vmatpush2.msra.mxu0 0.0
  %4694 = vmatprep.subr.mxu0 0.0
  %4695 = vmatpush2.msra.mxu0 0.0
  %4696 = vmatprep.subr.mxu0 0.0
  %4697 = vmatpush2.msra.mxu0 0.0
  %4698 = vmatprep.subr.mxu0 0.0
  %4699 = vmatpush2.msra.mxu0 0.0
  %4700 = vmatprep.subr.mxu0 0.0
  %4701 = vmatpush2.msra.mxu0 0.0
  %4702 = vmatprep.subr.mxu0 0.0
  %4703 = vmatpush2.msra.mxu0 0.0
  %4704 = vmatprep.subr.mxu0 0.0
  %4705 = vmatpush2.msra.mxu0 0.0
  %4706 = vmatprep.subr.mxu0 0.0
  %4707 = vmatpush2.msra.mxu0 0.0
  %4708 = vmatprep.subr.mxu0 0.0
  %4709 = vmatpush2.msra.mxu0 0.0
  %4710 = vmatprep.subr.mxu0 0.0
  %4711 = vmatpush2.msra.mxu0 0.0
  %4712 = vmatprep.subr.mxu0 0.0
  %4713 = vmatpush2.msra.mxu0 0.0
  %4714 = vmatprep.subr.mxu0 0.0
  %4715 = vmatpush2.msra.mxu0 0.0
  %4716 = vmatprep.subr.mxu0 0.0
  %4717 = vmatpush2.msra.mxu0 0.0
  %4718 = vmatprep.subr.mxu0 0.0
  %4719 = vmatpush2.msra.mxu0 0.0
  %4720 = vmatprep.subr.mxu0 0.0
  %4721 = vmatpush2.msra.mxu0 0.0
  %4722 = vmatprep.subr.mxu0 0.0
  %4723 = vmatpush2.msra.mxu0 0.0
  %4724 = vmatprep.mubr.f32.mxu0 0.0
  %4725 = vmatmul.mubr.f32.gmra.mxu0 %v4658
  %v4726 = vpop.f32.mrf.mxu0
  %v4727 = vadd.f32 0.0, %v4726
  %v4728 = vpop.f32.mrf.mxu0
  %4729 = vdwg.mxu0
  %v4731 = vsel %vm799, %v4654, 0
  %4733 = vmatprep.subr.mxu0 0.0
  %4734 = vmatpush1.msra.mxu0 0.0
  %4735 = vmatprep.subr.mxu0 0.0
  %4736 = vmatpush1.msra.mxu0 0.0
  %4737 = vmatprep.subr.mxu0 0.0
  %4738 = vmatpush1.msra.mxu0 0.0
  %4739 = vmatprep.subr.mxu0 0.0
  %4740 = vmatpush1.msra.mxu0 0.0
  %4741 = vmatprep.subr.mxu0 0.0
  %4742 = vmatpush1.msra.mxu0 0.0
  %4743 = vmatprep.subr.mxu0 0.0
  %4744 = vmatpush1.msra.mxu0 0.0
  %4745 = vmatprep.subr.mxu0 0.0
  %4746 = vmatpush1.msra.mxu0 0.0
  %4747 = vmatprep.subr.mxu0 0.0
  %4748 = vmatpush1.msra.mxu0 0.0
  %4749 = vmatprep.subr.mxu0 0.0
  %4750 = vmatpush1.msra.mxu0 0.0
  %4751 = vmatprep.subr.mxu0 0.0
  %4752 = vmatpush1.msra.mxu0 0.0
  %4753 = vmatprep.subr.mxu0 0.0
  %4754 = vmatpush1.msra.mxu0 0.0
  %4755 = vmatprep.subr.mxu0 0.0
  %4756 = vmatpush1.msra.mxu0 0.0
  %4757 = vmatprep.subr.mxu0 0.0
  %4758 = vmatpush1.msra.mxu0 0.0
  %4759 = vmatprep.subr.mxu0 0.0
  %4760 = vmatpush1.msra.mxu0 0.0
  %4761 = vmatprep.subr.mxu0 0.0
  %4762 = vmatpush1.msra.mxu0 0.0
  %4763 = vmatprep.subr.mxu0 0.0
  %4764 = vmatpush1.msra.mxu0 %v4656
  %4765 = vmatprep.subr.mxu0 0.0
  %4766 = vmatpush2.msra.mxu0 0.0
  %4767 = vmatprep.subr.mxu0 0.0
  %4768 = vmatpush2.msra.mxu0 0.0
  %4769 = vmatprep.subr.mxu0 0.0
  %4770 = vmatpush2.msra.mxu0 0.0
  %4771 = vmatprep.subr.mxu0 0.0
  %4772 = vmatpush2.msra.mxu0 0.0
  %4773 = vmatprep.subr.mxu0 0.0
  %4774 = vmatpush2.msra.mxu0 0.0
  %4775 = vmatprep.subr.mxu0 0.0
  %4776 = vmatpush2.msra.mxu0 0.0
  %4777 = vmatprep.subr.mxu0 0.0
  %4778 = vmatpush2.msra.mxu0 0.0
  %4779 = vmatprep.subr.mxu0 0.0
  %4780 = vmatpush2.msra.mxu0 0.0
  %4781 = vmatprep.subr.mxu0 0.0
  %4782 = vmatpush2.msra.mxu0 0.0
  %4783 = vmatprep.subr.mxu0 0.0
  %4784 = vmatpush2.msra.mxu0 0.0
  %4785 = vmatprep.subr.mxu0 0.0
  %4786 = vmatpush2.msra.mxu0 0.0
  %4787 = vmatprep.subr.mxu0 0.0
  %4788 = vmatpush2.msra.mxu0 0.0
  %4789 = vmatprep.subr.mxu0 0.0
  %4790 = vmatpush2.msra.mxu0 0.0
  %4791 = vmatprep.subr.mxu0 0.0
  %4792 = vmatpush2.msra.mxu0 0.0
  %4793 = vmatprep.subr.mxu0 0.0
  %4794 = vmatpush2.msra.mxu0 0.0
  %4795 = vmatprep.subr.mxu0 0.0
  %4796 = vmatpush2.msra.mxu0 0.0
  %4797 = vmatprep.mubr.f32.mxu0 0.0
  %4798 = vmatmul.mubr.f32.gmra.mxu0 %v4731
  %v4799 = vpop.f32.mrf.mxu0
  %v4800 = vadd.f32 0.0, %v4799
  %v4801 = vpop.f32.mrf.mxu0
  %4802 = vdwg.mxu0
  %v4804 = vsel %vm799, %v4481, 0
  %4806 = vmatprep.subr.mxu0 0.0
  %4807 = vmatpush1.msra.mxu0 0.0
  %4808 = vmatprep.subr.mxu0 0.0
  %4809 = vmatpush1.msra.mxu0 0.0
  %4810 = vmatprep.subr.mxu0 0.0
  %4811 = vmatpush1.msra.mxu0 0.0
  %4812 = vmatprep.subr.mxu0 0.0
  %4813 = vmatpush1.msra.mxu0 0.0
  %4814 = vmatprep.subr.mxu0 0.0
  %4815 = vmatpush1.msra.mxu0 0.0
  %4816 = vmatprep.subr.mxu0 0.0
  %4817 = vmatpush1.msra.mxu0 0.0
  %4818 = vmatprep.subr.mxu0 0.0
  %4819 = vmatpush1.msra.mxu0 0.0
  %4820 = vmatprep.subr.mxu0 0.0
  %4821 = vmatpush1.msra.mxu0 0.0
  %4822 = vmatprep.subr.mxu0 0.0
  %4823 = vmatpush1.msra.mxu0 0.0
  %4824 = vmatprep.subr.mxu0 0.0
  %4825 = vmatpush1.msra.mxu0 0.0
  %4826 = vmatprep.subr.mxu0 0.0
  %4827 = vmatpush1.msra.mxu0 0.0
  %4828 = vmatprep.subr.mxu0 0.0
  %4829 = vmatpush1.msra.mxu0 0.0
  %4830 = vmatprep.subr.mxu0 0.0
  %4831 = vmatpush1.msra.mxu0 0.0
  %4832 = vmatprep.subr.mxu0 0.0
  %4833 = vmatpush1.msra.mxu0 0.0
  %4834 = vmatprep.subr.mxu0 0.0
  %4835 = vmatpush1.msra.mxu0 0.0
  %4836 = vmatprep.subr.mxu0 0.0
  %4837 = vmatpush1.msra.mxu0 %v4483
  %4838 = vmatprep.subr.mxu0 0.0
  %4839 = vmatpush2.msra.mxu0 0.0
  %4840 = vmatprep.subr.mxu0 0.0
  %4841 = vmatpush2.msra.mxu0 0.0
  %4842 = vmatprep.subr.mxu0 0.0
  %4843 = vmatpush2.msra.mxu0 0.0
  %4844 = vmatprep.subr.mxu0 0.0
  %4845 = vmatpush2.msra.mxu0 0.0
  %4846 = vmatprep.subr.mxu0 0.0
  %4847 = vmatpush2.msra.mxu0 0.0
  %4848 = vmatprep.subr.mxu0 0.0
  %4849 = vmatpush2.msra.mxu0 0.0
  %4850 = vmatprep.subr.mxu0 0.0
  %4851 = vmatpush2.msra.mxu0 0.0
  %4852 = vmatprep.subr.mxu0 0.0
  %4853 = vmatpush2.msra.mxu0 0.0
  %4854 = vmatprep.subr.mxu0 0.0
  %4855 = vmatpush2.msra.mxu0 0.0
  %4856 = vmatprep.subr.mxu0 0.0
  %4857 = vmatpush2.msra.mxu0 0.0
  %4858 = vmatprep.subr.mxu0 0.0
  %4859 = vmatpush2.msra.mxu0 0.0
  %4860 = vmatprep.subr.mxu0 0.0
  %4861 = vmatpush2.msra.mxu0 0.0
  %4862 = vmatprep.subr.mxu0 0.0
  %4863 = vmatpush2.msra.mxu0 0.0
  %4864 = vmatprep.subr.mxu0 0.0
  %4865 = vmatpush2.msra.mxu0 0.0
  %4866 = vmatprep.subr.mxu0 0.0
  %4867 = vmatpush2.msra.mxu0 0.0
  %4868 = vmatprep.subr.mxu0 0.0
  %4869 = vmatpush2.msra.mxu0 0.0
  %4870 = vmatprep.mubr.f32.mxu0 0.0
  %4871 = vmatmul.mubr.f32.gmra.mxu0 %v4804
  %v4872 = vpop.f32.mrf.mxu0
  %v4873 = vadd.f32 %v4727, %v4872
  %v4874 = vpop.f32.mrf.mxu0
  %4875 = vdwg.mxu0
  %v4877 = vsel %vm799, %v4482, 0
  %4879 = vmatprep.subr.mxu0 0.0
  %4880 = vmatpush1.msra.mxu0 0.0
  %4881 = vmatprep.subr.mxu0 0.0
  %4882 = vmatpush1.msra.mxu0 0.0
  %4883 = vmatprep.subr.mxu0 0.0
  %4884 = vmatpush1.msra.mxu0 0.0
  %4885 = vmatprep.subr.mxu0 0.0
  %4886 = vmatpush1.msra.mxu0 0.0
  %4887 = vmatprep.subr.mxu0 0.0
  %4888 = vmatpush1.msra.mxu0 0.0
  %4889 = vmatprep.subr.mxu0 0.0
  %4890 = vmatpush1.msra.mxu0 0.0
  %4891 = vmatprep.subr.mxu0 0.0
  %4892 = vmatpush1.msra.mxu0 0.0
  %4893 = vmatprep.subr.mxu0 0.0
  %4894 = vmatpush1.msra.mxu0 0.0
  %4895 = vmatprep.subr.mxu0 0.0
  %4896 = vmatpush1.msra.mxu0 0.0
  %4897 = vmatprep.subr.mxu0 0.0
  %4898 = vmatpush1.msra.mxu0 0.0
  %4899 = vmatprep.subr.mxu0 0.0
  %4900 = vmatpush1.msra.mxu0 0.0
  %4901 = vmatprep.subr.mxu0 0.0
  %4902 = vmatpush1.msra.mxu0 0.0
  %4903 = vmatprep.subr.mxu0 0.0
  %4904 = vmatpush1.msra.mxu0 0.0
  %4905 = vmatprep.subr.mxu0 0.0
  %4906 = vmatpush1.msra.mxu0 0.0
  %4907 = vmatprep.subr.mxu0 0.0
  %4908 = vmatpush1.msra.mxu0 0.0
  %4909 = vmatprep.subr.mxu0 0.0
  %4910 = vmatpush1.msra.mxu0 %v4484
  %4911 = vmatprep.subr.mxu0 0.0
  %4912 = vmatpush2.msra.mxu0 0.0
  %4913 = vmatprep.subr.mxu0 0.0
  %4914 = vmatpush2.msra.mxu0 0.0
  %4915 = vmatprep.subr.mxu0 0.0
  %4916 = vmatpush2.msra.mxu0 0.0
  %4917 = vmatprep.subr.mxu0 0.0
  %4918 = vmatpush2.msra.mxu0 0.0
  %4919 = vmatprep.subr.mxu0 0.0
  %4920 = vmatpush2.msra.mxu0 0.0
  %4921 = vmatprep.subr.mxu0 0.0
  %4922 = vmatpush2.msra.mxu0 0.0
  %4923 = vmatprep.subr.mxu0 0.0
  %4924 = vmatpush2.msra.mxu0 0.0
  %4925 = vmatprep.subr.mxu0 0.0
  %4926 = vmatpush2.msra.mxu0 0.0
  %4927 = vmatprep.subr.mxu0 0.0
  %4928 = vmatpush2.msra.mxu0 0.0
  %4929 = vmatprep.subr.mxu0 0.0
  %4930 = vmatpush2.msra.mxu0 0.0
  %4931 = vmatprep.subr.mxu0 0.0
  %4932 = vmatpush2.msra.mxu0 0.0
  %4933 = vmatprep.subr.mxu0 0.0
  %4934 = vmatpush2.msra.mxu0 0.0
  %4935 = vmatprep.subr.mxu0 0.0
  %4936 = vmatpush2.msra.mxu0 0.0
  %4937 = vmatprep.subr.mxu0 0.0
  %4938 = vmatpush2.msra.mxu0 0.0
  %4939 = vmatprep.subr.mxu0 0.0
  %4940 = vmatpush2.msra.mxu0 0.0
  %4941 = vmatprep.subr.mxu0 0.0
  %4942 = vmatpush2.msra.mxu0 0.0
  %4943 = vmatprep.mubr.f32.mxu0 0.0
  %4944 = vmatmul.mubr.f32.gmra.mxu0 %v4877
  %v4945 = vpop.f32.mrf.mxu0
  %v4946 = vadd.f32 %v4800, %v4945
  %v4947 = vpop.f32.mrf.mxu0
  %4948 = vdwg.mxu0
  %v4949 = vmul.f32 %v4131, %v1289
  %v4950 = vmul.f32 %v4136, %v1289
  %v4952 = vsel %vm394, %v4949, 0
  %4954 = vmatprep.subr.mxu0 0.0
  %4955 = vmatpush1.xpose.msra.mxu0 0.0
  %4956 = vmatprep.subr.mxu0 0.0
  %4957 = vmatpush1.xpose.msra.mxu0 0.0
  %4958 = vmatprep.subr.mxu0 0.0
  %4959 = vmatpush1.xpose.msra.mxu0 0.0
  %4960 = vmatprep.subr.mxu0 0.0
  %4961 = vmatpush1.xpose.msra.mxu0 0.0
  %4962 = vmatprep.subr.mxu0 0.0
  %4963 = vmatpush1.xpose.msra.mxu0 0.0
  %4964 = vmatprep.subr.mxu0 0.0
  %4965 = vmatpush1.xpose.msra.mxu0 0.0
  %4966 = vmatprep.subr.mxu0 0.0
  %4967 = vmatpush1.xpose.msra.mxu0 0.0
  %4968 = vmatprep.subr.mxu0 0.0
  %4969 = vmatpush1.xpose.msra.mxu0 0.0
  %4970 = vmatprep.subr.mxu0 0.0
  %4971 = vmatpush1.xpose.msra.mxu0 0.0
  %4972 = vmatprep.subr.mxu0 0.0
  %4973 = vmatpush1.xpose.msra.mxu0 0.0
  %4974 = vmatprep.subr.mxu0 0.0
  %4975 = vmatpush1.xpose.msra.mxu0 0.0
  %4976 = vmatprep.subr.mxu0 0.0
  %4977 = vmatpush1.xpose.msra.mxu0 0.0
  %4978 = vmatprep.subr.mxu0 0.0
  %4979 = vmatpush1.xpose.msra.mxu0 0.0
  %4980 = vmatprep.subr.mxu0 0.0
  %4981 = vmatpush1.xpose.msra.mxu0 0.0
  %4982 = vmatprep.subr.mxu0 0.0
  %4983 = vmatpush1.xpose.msra.mxu0 0.0
  %4984 = vmatprep.subr.mxu0 0.0
  %4985 = vmatpush1.xpose.msra.mxu0 %v4313
  %4986 = vmatprep.subr.mxu0 0.0
  %4987 = vmatpush2.xpose.msra.mxu0 0.0
  %4988 = vmatprep.subr.mxu0 0.0
  %4989 = vmatpush2.xpose.msra.mxu0 0.0
  %4990 = vmatprep.subr.mxu0 0.0
  %4991 = vmatpush2.xpose.msra.mxu0 0.0
  %4992 = vmatprep.subr.mxu0 0.0
  %4993 = vmatpush2.xpose.msra.mxu0 0.0
  %4994 = vmatprep.subr.mxu0 0.0
  %4995 = vmatpush2.xpose.msra.mxu0 0.0
  %4996 = vmatprep.subr.mxu0 0.0
  %4997 = vmatpush2.xpose.msra.mxu0 0.0
  %4998 = vmatprep.subr.mxu0 0.0
  %4999 = vmatpush2.xpose.msra.mxu0 0.0
  %5000 = vmatprep.subr.mxu0 0.0
  %5001 = vmatpush2.xpose.msra.mxu0 0.0
  %5002 = vmatprep.subr.mxu0 0.0
  %5003 = vmatpush2.xpose.msra.mxu0 0.0
  %5004 = vmatprep.subr.mxu0 0.0
  %5005 = vmatpush2.xpose.msra.mxu0 0.0
  %5006 = vmatprep.subr.mxu0 0.0
  %5007 = vmatpush2.xpose.msra.mxu0 0.0
  %5008 = vmatprep.subr.mxu0 0.0
  %5009 = vmatpush2.xpose.msra.mxu0 0.0
  %5010 = vmatprep.subr.mxu0 0.0
  %5011 = vmatpush2.xpose.msra.mxu0 0.0
  %5012 = vmatprep.subr.mxu0 0.0
  %5013 = vmatpush2.xpose.msra.mxu0 0.0
  %5014 = vmatprep.subr.mxu0 0.0
  %5015 = vmatpush2.xpose.msra.mxu0 0.0
  %5016 = vmatprep.subr.mxu0 0.0
  %5017 = vmatpush2.xpose.msra.mxu0 0.0
  %5018 = vmatprep.mubr.f32.mxu0 0.0
  %5019 = vmatmul.mubr.f32.gmra.mxu0 %v4952
  %v5020 = vpop.f32.mrf.mxu0
  %v5021 = vadd.f32 0.0, %v5020
  %v5022 = vpop.f32.mrf.mxu0
  %5023 = vdwg.mxu0
  %v5025 = vsel %vm394, %v4950, 0
  %5027 = vmatprep.subr.mxu0 0.0
  %5028 = vmatpush1.xpose.msra.mxu0 0.0
  %5029 = vmatprep.subr.mxu0 0.0
  %5030 = vmatpush1.xpose.msra.mxu0 0.0
  %5031 = vmatprep.subr.mxu0 0.0
  %5032 = vmatpush1.xpose.msra.mxu0 0.0
  %5033 = vmatprep.subr.mxu0 0.0
  %5034 = vmatpush1.xpose.msra.mxu0 0.0
  %5035 = vmatprep.subr.mxu0 0.0
  %5036 = vmatpush1.xpose.msra.mxu0 0.0
  %5037 = vmatprep.subr.mxu0 0.0
  %5038 = vmatpush1.xpose.msra.mxu0 0.0
  %5039 = vmatprep.subr.mxu0 0.0
  %5040 = vmatpush1.xpose.msra.mxu0 0.0
  %5041 = vmatprep.subr.mxu0 0.0
  %5042 = vmatpush1.xpose.msra.mxu0 0.0
  %5043 = vmatprep.subr.mxu0 0.0
  %5044 = vmatpush1.xpose.msra.mxu0 0.0
  %5045 = vmatprep.subr.mxu0 0.0
  %5046 = vmatpush1.xpose.msra.mxu0 0.0
  %5047 = vmatprep.subr.mxu0 0.0
  %5048 = vmatpush1.xpose.msra.mxu0 0.0
  %5049 = vmatprep.subr.mxu0 0.0
  %5050 = vmatpush1.xpose.msra.mxu0 0.0
  %5051 = vmatprep.subr.mxu0 0.0
  %5052 = vmatpush1.xpose.msra.mxu0 0.0
  %5053 = vmatprep.subr.mxu0 0.0
  %5054 = vmatpush1.xpose.msra.mxu0 0.0
  %5055 = vmatprep.subr.mxu0 0.0
  %5056 = vmatpush1.xpose.msra.mxu0 0.0
  %5057 = vmatprep.subr.mxu0 0.0
  %5058 = vmatpush1.xpose.msra.mxu0 %v4389
  %5059 = vmatprep.subr.mxu0 0.0
  %5060 = vmatpush2.xpose.msra.mxu0 0.0
  %5061 = vmatprep.subr.mxu0 0.0
  %5062 = vmatpush2.xpose.msra.mxu0 0.0
  %5063 = vmatprep.subr.mxu0 0.0
  %5064 = vmatpush2.xpose.msra.mxu0 0.0
  %5065 = vmatprep.subr.mxu0 0.0
  %5066 = vmatpush2.xpose.msra.mxu0 0.0
  %5067 = vmatprep.subr.mxu0 0.0
  %5068 = vmatpush2.xpose.msra.mxu0 0.0
  %5069 = vmatprep.subr.mxu0 0.0
  %5070 = vmatpush2.xpose.msra.mxu0 0.0
  %5071 = vmatprep.subr.mxu0 0.0
  %5072 = vmatpush2.xpose.msra.mxu0 0.0
  %5073 = vmatprep.subr.mxu0 0.0
  %5074 = vmatpush2.xpose.msra.mxu0 0.0
  %5075 = vmatprep.subr.mxu0 0.0
  %5076 = vmatpush2.xpose.msra.mxu0 0.0
  %5077 = vmatprep.subr.mxu0 0.0
  %5078 = vmatpush2.xpose.msra.mxu0 0.0
  %5079 = vmatprep.subr.mxu0 0.0
  %5080 = vmatpush2.xpose.msra.mxu0 0.0
  %5081 = vmatprep.subr.mxu0 0.0
  %5082 = vmatpush2.xpose.msra.mxu0 0.0
  %5083 = vmatprep.subr.mxu0 0.0
  %5084 = vmatpush2.xpose.msra.mxu0 0.0
  %5085 = vmatprep.subr.mxu0 0.0
  %5086 = vmatpush2.xpose.msra.mxu0 0.0
  %5087 = vmatprep.subr.mxu0 0.0
  %5088 = vmatpush2.xpose.msra.mxu0 0.0
  %5089 = vmatprep.subr.mxu0 0.0
  %5090 = vmatpush2.xpose.msra.mxu0 0.0
  %5091 = vmatprep.mubr.f32.mxu0 0.0
  %5092 = vmatmul.mubr.f32.gmra.mxu0 %v5025
  %v5093 = vpop.f32.mrf.mxu0
  %v5094 = vadd.f32 0.0, %v5093
  %v5095 = vpop.f32.mrf.mxu0
  %5096 = vdwg.mxu0
  %v5097 = vsel %vm799, %v5021, -inf
  %5098 = vmax.xlane.f32.xlu0 %v5097
  %v5099 = vpop.xlane.xlu0 %5098
  %v5100 = vsel %vm799, %v5094, -inf
  %5101 = vmax.xlane.f32.xlu0 %v5100
  %v5102 = vpop.xlane.xlu0 %5101
  %v5103 = vsub.f32 %v5021, %v5099
  %v5104 = vsub.f32 %v5094, %v5102
  %v5105 = vmul.f32 %v5103, 1.442695
  %v5106 = vpow.pop %v5105
  %v5107 = vmul.f32 %v5104, 1.442695
  %v5108 = vpow.pop %v5107
  %v5109 = vsel %vm799, %v5106, 0.0
  %5110 = vadd.xlane.f32.xlu0 %v5109
  %v5111 = vpop.xlane.xlu0 %5110
  %v5112 = vsel %vm799, %v5108, 0.0
  %5113 = vadd.xlane.f32.xlu0 %v5112
  %v5114 = vpop.xlane.xlu0 %5113
  %v5115 = vrcp.pop %v5111
  %v5116 = vrcp.pop %v5114
  %v5117 = vmul.f32 %v5106, %v5115
  %v5118 = vmul.f32 %v5108, %v5116
  %v5119 = vmul.f32 %v4299, %v379
  %v5120 = vmul.f32 %v4304, %v379
  %v5122 = vsel %vm799, %v5117, 0
  %5124 = vmatprep.subr.mxu0 0.0
  %5125 = vmatpush1.msra.mxu0 0.0
  %5126 = vmatprep.subr.mxu0 0.0
  %5127 = vmatpush1.msra.mxu0 0.0
  %5128 = vmatprep.subr.mxu0 0.0
  %5129 = vmatpush1.msra.mxu0 0.0
  %5130 = vmatprep.subr.mxu0 0.0
  %5131 = vmatpush1.msra.mxu0 0.0
  %5132 = vmatprep.subr.mxu0 0.0
  %5133 = vmatpush1.msra.mxu0 0.0
  %5134 = vmatprep.subr.mxu0 0.0
  %5135 = vmatpush1.msra.mxu0 0.0
  %5136 = vmatprep.subr.mxu0 0.0
  %5137 = vmatpush1.msra.mxu0 0.0
  %5138 = vmatprep.subr.mxu0 0.0
  %5139 = vmatpush1.msra.mxu0 0.0
  %5140 = vmatprep.subr.mxu0 0.0
  %5141 = vmatpush1.msra.mxu0 0.0
  %5142 = vmatprep.subr.mxu0 0.0
  %5143 = vmatpush1.msra.mxu0 0.0
  %5144 = vmatprep.subr.mxu0 0.0
  %5145 = vmatpush1.msra.mxu0 0.0
  %5146 = vmatprep.subr.mxu0 0.0
  %5147 = vmatpush1.msra.mxu0 0.0
  %5148 = vmatprep.subr.mxu0 0.0
  %5149 = vmatpush1.msra.mxu0 0.0
  %5150 = vmatprep.subr.mxu0 0.0
  %5151 = vmatpush1.msra.mxu0 0.0
  %5152 = vmatprep.subr.mxu0 0.0
  %5153 = vmatpush1.msra.mxu0 0.0
  %5154 = vmatprep.subr.mxu0 0.0
  %5155 = vmatpush1.msra.mxu0 %v5119
  %5156 = vmatprep.subr.mxu0 0.0
  %5157 = vmatpush2.msra.mxu0 0.0
  %5158 = vmatprep.subr.mxu0 0.0
  %5159 = vmatpush2.msra.mxu0 0.0
  %5160 = vmatprep.subr.mxu0 0.0
  %5161 = vmatpush2.msra.mxu0 0.0
  %5162 = vmatprep.subr.mxu0 0.0
  %5163 = vmatpush2.msra.mxu0 0.0
  %5164 = vmatprep.subr.mxu0 0.0
  %5165 = vmatpush2.msra.mxu0 0.0
  %5166 = vmatprep.subr.mxu0 0.0
  %5167 = vmatpush2.msra.mxu0 0.0
  %5168 = vmatprep.subr.mxu0 0.0
  %5169 = vmatpush2.msra.mxu0 0.0
  %5170 = vmatprep.subr.mxu0 0.0
  %5171 = vmatpush2.msra.mxu0 0.0
  %5172 = vmatprep.subr.mxu0 0.0
  %5173 = vmatpush2.msra.mxu0 0.0
  %5174 = vmatprep.subr.mxu0 0.0
  %5175 = vmatpush2.msra.mxu0 0.0
  %5176 = vmatprep.subr.mxu0 0.0
  %5177 = vmatpush2.msra.mxu0 0.0
  %5178 = vmatprep.subr.mxu0 0.0
  %5179 = vmatpush2.msra.mxu0 0.0
  %5180 = vmatprep.subr.mxu0 0.0
  %5181 = vmatpush2.msra.mxu0 0.0
  %5182 = vmatprep.subr.mxu0 0.0
  %5183 = vmatpush2.msra.mxu0 0.0
  %5184 = vmatprep.subr.mxu0 0.0
  %5185 = vmatpush2.msra.mxu0 0.0
  %5186 = vmatprep.subr.mxu0 0.0
  %5187 = vmatpush2.msra.mxu0 0.0
  %5188 = vmatprep.mubr.f32.mxu0 0.0
  %5189 = vmatmul.mubr.f32.gmra.mxu0 %v5122
  %v5190 = vpop.f32.mrf.mxu0
  %v5191 = vadd.f32 0.0, %v5190
  %v5192 = vpop.f32.mrf.mxu0
  %5193 = vdwg.mxu0
  %v5195 = vsel %vm799, %v5118, 0
  %5197 = vmatprep.subr.mxu0 0.0
  %5198 = vmatpush1.msra.mxu0 0.0
  %5199 = vmatprep.subr.mxu0 0.0
  %5200 = vmatpush1.msra.mxu0 0.0
  %5201 = vmatprep.subr.mxu0 0.0
  %5202 = vmatpush1.msra.mxu0 0.0
  %5203 = vmatprep.subr.mxu0 0.0
  %5204 = vmatpush1.msra.mxu0 0.0
  %5205 = vmatprep.subr.mxu0 0.0
  %5206 = vmatpush1.msra.mxu0 0.0
  %5207 = vmatprep.subr.mxu0 0.0
  %5208 = vmatpush1.msra.mxu0 0.0
  %5209 = vmatprep.subr.mxu0 0.0
  %5210 = vmatpush1.msra.mxu0 0.0
  %5211 = vmatprep.subr.mxu0 0.0
  %5212 = vmatpush1.msra.mxu0 0.0
  %5213 = vmatprep.subr.mxu0 0.0
  %5214 = vmatpush1.msra.mxu0 0.0
  %5215 = vmatprep.subr.mxu0 0.0
  %5216 = vmatpush1.msra.mxu0 0.0
  %5217 = vmatprep.subr.mxu0 0.0
  %5218 = vmatpush1.msra.mxu0 0.0
  %5219 = vmatprep.subr.mxu0 0.0
  %5220 = vmatpush1.msra.mxu0 0.0
  %5221 = vmatprep.subr.mxu0 0.0
  %5222 = vmatpush1.msra.mxu0 0.0
  %5223 = vmatprep.subr.mxu0 0.0
  %5224 = vmatpush1.msra.mxu0 0.0
  %5225 = vmatprep.subr.mxu0 0.0
  %5226 = vmatpush1.msra.mxu0 0.0
  %5227 = vmatprep.subr.mxu0 0.0
  %5228 = vmatpush1.msra.mxu0 %v5120
  %5229 = vmatprep.subr.mxu0 0.0
  %5230 = vmatpush2.msra.mxu0 0.0
  %5231 = vmatprep.subr.mxu0 0.0
  %5232 = vmatpush2.msra.mxu0 0.0
  %5233 = vmatprep.subr.mxu0 0.0
  %5234 = vmatpush2.msra.mxu0 0.0
  %5235 = vmatprep.subr.mxu0 0.0
  %5236 = vmatpush2.msra.mxu0 0.0
  %5237 = vmatprep.subr.mxu0 0.0
  %5238 = vmatpush2.msra.mxu0 0.0
  %5239 = vmatprep.subr.mxu0 0.0
  %5240 = vmatpush2.msra.mxu0 0.0
  %5241 = vmatprep.subr.mxu0 0.0
  %5242 = vmatpush2.msra.mxu0 0.0
  %5243 = vmatprep.subr.mxu0 0.0
  %5244 = vmatpush2.msra.mxu0 0.0
  %5245 = vmatprep.subr.mxu0 0.0
  %5246 = vmatpush2.msra.mxu0 0.0
  %5247 = vmatprep.subr.mxu0 0.0
  %5248 = vmatpush2.msra.mxu0 0.0
  %5249 = vmatprep.subr.mxu0 0.0
  %5250 = vmatpush2.msra.mxu0 0.0
  %5251 = vmatprep.subr.mxu0 0.0
  %5252 = vmatpush2.msra.mxu0 0.0
  %5253 = vmatprep.subr.mxu0 0.0
  %5254 = vmatpush2.msra.mxu0 0.0
  %5255 = vmatprep.subr.mxu0 0.0
  %5256 = vmatpush2.msra.mxu0 0.0
  %5257 = vmatprep.subr.mxu0 0.0
  %5258 = vmatpush2.msra.mxu0 0.0
  %5259 = vmatprep.subr.mxu0 0.0
  %5260 = vmatpush2.msra.mxu0 0.0
  %5261 = vmatprep.mubr.f32.mxu0 0.0
  %5262 = vmatmul.mubr.f32.gmra.mxu0 %v5195
  %v5263 = vpop.f32.mrf.mxu0
  %v5264 = vadd.f32 0.0, %v5263
  %v5265 = vpop.f32.mrf.mxu0
  %5266 = vdwg.mxu0
  %v5267 = vadd.f32 %v4873, %v5191
  %v5268 = vadd.f32 %v4946, %v5264
  %v5269 = vmul.f32 %v4131, %v1610
  %v5270 = vmul.f32 %v4136, %v1610
  %v5272 = vsel %vm394, %v5269, 0
  %5274 = vmatprep.subr.mxu0 0.0
  %5275 = vmatpush1.xpose.msra.mxu0 0.0
  %5276 = vmatprep.subr.mxu0 0.0
  %5277 = vmatpush1.xpose.msra.mxu0 0.0
  %5278 = vmatprep.subr.mxu0 0.0
  %5279 = vmatpush1.xpose.msra.mxu0 0.0
  %5280 = vmatprep.subr.mxu0 0.0
  %5281 = vmatpush1.xpose.msra.mxu0 0.0
  %5282 = vmatprep.subr.mxu0 0.0
  %5283 = vmatpush1.xpose.msra.mxu0 0.0
  %5284 = vmatprep.subr.mxu0 0.0
  %5285 = vmatpush1.xpose.msra.mxu0 0.0
  %5286 = vmatprep.subr.mxu0 0.0
  %5287 = vmatpush1.xpose.msra.mxu0 0.0
  %5288 = vmatprep.subr.mxu0 0.0
  %5289 = vmatpush1.xpose.msra.mxu0 0.0
  %5290 = vmatprep.subr.mxu0 0.0
  %5291 = vmatpush1.xpose.msra.mxu0 0.0
  %5292 = vmatprep.subr.mxu0 0.0
  %5293 = vmatpush1.xpose.msra.mxu0 0.0
  %5294 = vmatprep.subr.mxu0 0.0
  %5295 = vmatpush1.xpose.msra.mxu0 0.0
  %5296 = vmatprep.subr.mxu0 0.0
  %5297 = vmatpush1.xpose.msra.mxu0 0.0
  %5298 = vmatprep.subr.mxu0 0.0
  %5299 = vmatpush1.xpose.msra.mxu0 0.0
  %5300 = vmatprep.subr.mxu0 0.0
  %5301 = vmatpush1.xpose.msra.mxu0 0.0
  %5302 = vmatprep.subr.mxu0 0.0
  %5303 = vmatpush1.xpose.msra.mxu0 0.0
  %5304 = vmatprep.subr.mxu0 0.0
  %5305 = vmatpush1.xpose.msra.mxu0 %v4313
  %5306 = vmatprep.subr.mxu0 0.0
  %5307 = vmatpush2.xpose.msra.mxu0 0.0
  %5308 = vmatprep.subr.mxu0 0.0
  %5309 = vmatpush2.xpose.msra.mxu0 0.0
  %5310 = vmatprep.subr.mxu0 0.0
  %5311 = vmatpush2.xpose.msra.mxu0 0.0
  %5312 = vmatprep.subr.mxu0 0.0
  %5313 = vmatpush2.xpose.msra.mxu0 0.0
  %5314 = vmatprep.subr.mxu0 0.0
  %5315 = vmatpush2.xpose.msra.mxu0 0.0
  %5316 = vmatprep.subr.mxu0 0.0
  %5317 = vmatpush2.xpose.msra.mxu0 0.0
  %5318 = vmatprep.subr.mxu0 0.0
  %5319 = vmatpush2.xpose.msra.mxu0 0.0
  %5320 = vmatprep.subr.mxu0 0.0
  %5321 = vmatpush2.xpose.msra.mxu0 0.0
  %5322 = vmatprep.subr.mxu0 0.0
  %5323 = vmatpush2.xpose.msra.mxu0 0.0
  %5324 = vmatprep.subr.mxu0 0.0
  %5325 = vmatpush2.xpose.msra.mxu0 0.0
  %5326 = vmatprep.subr.mxu0 0.0
  %5327 = vmatpush2.xpose.msra.mxu0 0.0
  %5328 = vmatprep.subr.mxu0 0.0
  %5329 = vmatpush2.xpose.msra.mxu0 0.0
  %5330 = vmatprep.subr.mxu0 0.0
  %5331 = vmatpush2.xpose.msra.mxu0 0.0
  %5332 = vmatprep.subr.mxu0 0.0
  %5333 = vmatpush2.xpose.msra.mxu0 0.0
  %5334 = vmatprep.subr.mxu0 0.0
  %5335 = vmatpush2.xpose.msra.mxu0 0.0
  %5336 = vmatprep.subr.mxu0 0.0
  %5337 = vmatpush2.xpose.msra.mxu0 0.0
  %5338 = vmatprep.mubr.f32.mxu0 0.0
  %5339 = vmatmul.mubr.f32.gmra.mxu0 %v5272
  %v5340 = vpop.f32.mrf.mxu0
  %v5341 = vadd.f32 0.0, %v5340
  %v5342 = vpop.f32.mrf.mxu0
  %5343 = vdwg.mxu0
  %v5345 = vsel %vm394, %v5270, 0
  %5347 = vmatprep.subr.mxu0 0.0
  %5348 = vmatpush1.xpose.msra.mxu0 0.0
  %5349 = vmatprep.subr.mxu0 0.0
  %5350 = vmatpush1.xpose.msra.mxu0 0.0
  %5351 = vmatprep.subr.mxu0 0.0
  %5352 = vmatpush1.xpose.msra.mxu0 0.0
  %5353 = vmatprep.subr.mxu0 0.0
  %5354 = vmatpush1.xpose.msra.mxu0 0.0
  %5355 = vmatprep.subr.mxu0 0.0
  %5356 = vmatpush1.xpose.msra.mxu0 0.0
  %5357 = vmatprep.subr.mxu0 0.0
  %5358 = vmatpush1.xpose.msra.mxu0 0.0
  %5359 = vmatprep.subr.mxu0 0.0
  %5360 = vmatpush1.xpose.msra.mxu0 0.0
  %5361 = vmatprep.subr.mxu0 0.0
  %5362 = vmatpush1.xpose.msra.mxu0 0.0
  %5363 = vmatprep.subr.mxu0 0.0
  %5364 = vmatpush1.xpose.msra.mxu0 0.0
  %5365 = vmatprep.subr.mxu0 0.0
  %5366 = vmatpush1.xpose.msra.mxu0 0.0
  %5367 = vmatprep.subr.mxu0 0.0
  %5368 = vmatpush1.xpose.msra.mxu0 0.0
  %5369 = vmatprep.subr.mxu0 0.0
  %5370 = vmatpush1.xpose.msra.mxu0 0.0
  %5371 = vmatprep.subr.mxu0 0.0
  %5372 = vmatpush1.xpose.msra.mxu0 0.0
  %5373 = vmatprep.subr.mxu0 0.0
  %5374 = vmatpush1.xpose.msra.mxu0 0.0
  %5375 = vmatprep.subr.mxu0 0.0
  %5376 = vmatpush1.xpose.msra.mxu0 0.0
  %5377 = vmatprep.subr.mxu0 0.0
  %5378 = vmatpush1.xpose.msra.mxu0 %v4389
  %5379 = vmatprep.subr.mxu0 0.0
  %5380 = vmatpush2.xpose.msra.mxu0 0.0
  %5381 = vmatprep.subr.mxu0 0.0
  %5382 = vmatpush2.xpose.msra.mxu0 0.0
  %5383 = vmatprep.subr.mxu0 0.0
  %5384 = vmatpush2.xpose.msra.mxu0 0.0
  %5385 = vmatprep.subr.mxu0 0.0
  %5386 = vmatpush2.xpose.msra.mxu0 0.0
  %5387 = vmatprep.subr.mxu0 0.0
  %5388 = vmatpush2.xpose.msra.mxu0 0.0
  %5389 = vmatprep.subr.mxu0 0.0
  %5390 = vmatpush2.xpose.msra.mxu0 0.0
  %5391 = vmatprep.subr.mxu0 0.0
  %5392 = vmatpush2.xpose.msra.mxu0 0.0
  %5393 = vmatprep.subr.mxu0 0.0
  %5394 = vmatpush2.xpose.msra.mxu0 0.0
  %5395 = vmatprep.subr.mxu0 0.0
  %5396 = vmatpush2.xpose.msra.mxu0 0.0
  %5397 = vmatprep.subr.mxu0 0.0
  %5398 = vmatpush2.xpose.msra.mxu0 0.0
  %5399 = vmatprep.subr.mxu0 0.0
  %5400 = vmatpush2.xpose.msra.mxu0 0.0
  %5401 = vmatprep.subr.mxu0 0.0
  %5402 = vmatpush2.xpose.msra.mxu0 0.0
  %5403 = vmatprep.subr.mxu0 0.0
  %5404 = vmatpush2.xpose.msra.mxu0 0.0
  %5405 = vmatprep.subr.mxu0 0.0
  %5406 = vmatpush2.xpose.msra.mxu0 0.0
  %5407 = vmatprep.subr.mxu0 0.0
  %5408 = vmatpush2.xpose.msra.mxu0 0.0
  %5409 = vmatprep.subr.mxu0 0.0
  %5410 = vmatpush2.xpose.msra.mxu0 0.0
  %5411 = vmatprep.mubr.f32.mxu0 0.0
  %5412 = vmatmul.mubr.f32.gmra.mxu0 %v5345
  %v5413 = vpop.f32.mrf.mxu0
  %v5414 = vadd.f32 0.0, %v5413
  %v5415 = vpop.f32.mrf.mxu0
  %5416 = vdwg.mxu0
  %v5417 = vsel %vm799, %v5341, -inf
  %5418 = vmax.xlane.f32.xlu0 %v5417
  %v5419 = vpop.xlane.xlu0 %5418
  %v5420 = vsel %vm799, %v5414, -inf
  %5421 = vmax.xlane.f32.xlu0 %v5420
  %v5422 = vpop.xlane.xlu0 %5421
  %v5423 = vsub.f32 %v5341, %v5419
  %v5424 = vsub.f32 %v5414, %v5422
  %v5425 = vmul.f32 %v5423, 1.442695
  %v5426 = vpow.pop %v5425
  %v5427 = vmul.f32 %v5424, 1.442695
  %v5428 = vpow.pop %v5427
  %v5429 = vsel %vm799, %v5426, 0.0
  %5430 = vadd.xlane.f32.xlu0 %v5429
  %v5431 = vpop.xlane.xlu0 %5430
  %v5432 = vsel %vm799, %v5428, 0.0
  %5433 = vadd.xlane.f32.xlu0 %v5432
  %v5434 = vpop.xlane.xlu0 %5433
  %v5435 = vrcp.pop %v5431
  %v5436 = vrcp.pop %v5434
  %v5437 = vmul.f32 %v5426, %v5435
  %v5438 = vmul.f32 %v5428, %v5436
  %v5439 = vmul.f32 %v4299, %v384
  %v5440 = vmul.f32 %v4304, %v384
  %v5442 = vsel %vm799, %v5437, 0
  %5444 = vmatprep.subr.mxu0 0.0
  %5445 = vmatpush1.msra.mxu0 0.0
  %5446 = vmatprep.subr.mxu0 0.0
  %5447 = vmatpush1.msra.mxu0 0.0
  %5448 = vmatprep.subr.mxu0 0.0
  %5449 = vmatpush1.msra.mxu0 0.0
  %5450 = vmatprep.subr.mxu0 0.0
  %5451 = vmatpush1.msra.mxu0 0.0
  %5452 = vmatprep.subr.mxu0 0.0
  %5453 = vmatpush1.msra.mxu0 0.0
  %5454 = vmatprep.subr.mxu0 0.0
  %5455 = vmatpush1.msra.mxu0 0.0
  %5456 = vmatprep.subr.mxu0 0.0
  %5457 = vmatpush1.msra.mxu0 0.0
  %5458 = vmatprep.subr.mxu0 0.0
  %5459 = vmatpush1.msra.mxu0 0.0
  %5460 = vmatprep.subr.mxu0 0.0
  %5461 = vmatpush1.msra.mxu0 0.0
  %5462 = vmatprep.subr.mxu0 0.0
  %5463 = vmatpush1.msra.mxu0 0.0
  %5464 = vmatprep.subr.mxu0 0.0
  %5465 = vmatpush1.msra.mxu0 0.0
  %5466 = vmatprep.subr.mxu0 0.0
  %5467 = vmatpush1.msra.mxu0 0.0
  %5468 = vmatprep.subr.mxu0 0.0
  %5469 = vmatpush1.msra.mxu0 0.0
  %5470 = vmatprep.subr.mxu0 0.0
  %5471 = vmatpush1.msra.mxu0 0.0
  %5472 = vmatprep.subr.mxu0 0.0
  %5473 = vmatpush1.msra.mxu0 0.0
  %5474 = vmatprep.subr.mxu0 0.0
  %5475 = vmatpush1.msra.mxu0 %v5439
  %5476 = vmatprep.subr.mxu0 0.0
  %5477 = vmatpush2.msra.mxu0 0.0
  %5478 = vmatprep.subr.mxu0 0.0
  %5479 = vmatpush2.msra.mxu0 0.0
  %5480 = vmatprep.subr.mxu0 0.0
  %5481 = vmatpush2.msra.mxu0 0.0
  %5482 = vmatprep.subr.mxu0 0.0
  %5483 = vmatpush2.msra.mxu0 0.0
  %5484 = vmatprep.subr.mxu0 0.0
  %5485 = vmatpush2.msra.mxu0 0.0
  %5486 = vmatprep.subr.mxu0 0.0
  %5487 = vmatpush2.msra.mxu0 0.0
  %5488 = vmatprep.subr.mxu0 0.0
  %5489 = vmatpush2.msra.mxu0 0.0
  %5490 = vmatprep.subr.mxu0 0.0
  %5491 = vmatpush2.msra.mxu0 0.0
  %5492 = vmatprep.subr.mxu0 0.0
  %5493 = vmatpush2.msra.mxu0 0.0
  %5494 = vmatprep.subr.mxu0 0.0
  %5495 = vmatpush2.msra.mxu0 0.0
  %5496 = vmatprep.subr.mxu0 0.0
  %5497 = vmatpush2.msra.mxu0 0.0
  %5498 = vmatprep.subr.mxu0 0.0
  %5499 = vmatpush2.msra.mxu0 0.0
  %5500 = vmatprep.subr.mxu0 0.0
  %5501 = vmatpush2.msra.mxu0 0.0
  %5502 = vmatprep.subr.mxu0 0.0
  %5503 = vmatpush2.msra.mxu0 0.0
  %5504 = vmatprep.subr.mxu0 0.0
  %5505 = vmatpush2.msra.mxu0 0.0
  %5506 = vmatprep.subr.mxu0 0.0
  %5507 = vmatpush2.msra.mxu0 0.0
  %5508 = vmatprep.mubr.f32.mxu0 0.0
  %5509 = vmatmul.mubr.f32.gmra.mxu0 %v5442
  %v5510 = vpop.f32.mrf.mxu0
  %v5511 = vadd.f32 0.0, %v5510
  %v5512 = vpop.f32.mrf.mxu0
  %5513 = vdwg.mxu0
  %v5515 = vsel %vm799, %v5438, 0
  %5517 = vmatprep.subr.mxu0 0.0
  %5518 = vmatpush1.msra.mxu0 0.0
  %5519 = vmatprep.subr.mxu0 0.0
  %5520 = vmatpush1.msra.mxu0 0.0
  %5521 = vmatprep.subr.mxu0 0.0
  %5522 = vmatpush1.msra.mxu0 0.0
  %5523 = vmatprep.subr.mxu0 0.0
  %5524 = vmatpush1.msra.mxu0 0.0
  %5525 = vmatprep.subr.mxu0 0.0
  %5526 = vmatpush1.msra.mxu0 0.0
  %5527 = vmatprep.subr.mxu0 0.0
  %5528 = vmatpush1.msra.mxu0 0.0
  %5529 = vmatprep.subr.mxu0 0.0
  %5530 = vmatpush1.msra.mxu0 0.0
  %5531 = vmatprep.subr.mxu0 0.0
  %5532 = vmatpush1.msra.mxu0 0.0
  %5533 = vmatprep.subr.mxu0 0.0
  %5534 = vmatpush1.msra.mxu0 0.0
  %5535 = vmatprep.subr.mxu0 0.0
  %5536 = vmatpush1.msra.mxu0 0.0
  %5537 = vmatprep.subr.mxu0 0.0
  %5538 = vmatpush1.msra.mxu0 0.0
  %5539 = vmatprep.subr.mxu0 0.0
  %5540 = vmatpush1.msra.mxu0 0.0
  %5541 = vmatprep.subr.mxu0 0.0
  %5542 = vmatpush1.msra.mxu0 0.0
  %5543 = vmatprep.subr.mxu0 0.0
  %5544 = vmatpush1.msra.mxu0 0.0
  %5545 = vmatprep.subr.mxu0 0.0
  %5546 = vmatpush1.msra.mxu0 0.0
  %5547 = vmatprep.subr.mxu0 0.0
  %5548 = vmatpush1.msra.mxu0 %v5440
  %5549 = vmatprep.subr.mxu0 0.0
  %5550 = vmatpush2.msra.mxu0 0.0
  %5551 = vmatprep.subr.mxu0 0.0
  %5552 = vmatpush2.msra.mxu0 0.0
  %5553 = vmatprep.subr.mxu0 0.0
  %5554 = vmatpush2.msra.mxu0 0.0
  %5555 = vmatprep.subr.mxu0 0.0
  %5556 = vmatpush2.msra.mxu0 0.0
  %5557 = vmatprep.subr.mxu0 0.0
  %5558 = vmatpush2.msra.mxu0 0.0
  %5559 = vmatprep.subr.mxu0 0.0
  %5560 = vmatpush2.msra.mxu0 0.0
  %5561 = vmatprep.subr.mxu0 0.0
  %5562 = vmatpush2.msra.mxu0 0.0
  %5563 = vmatprep.subr.mxu0 0.0
  %5564 = vmatpush2.msra.mxu0 0.0
  %5565 = vmatprep.subr.mxu0 0.0
  %5566 = vmatpush2.msra.mxu0 0.0
  %5567 = vmatprep.subr.mxu0 0.0
  %5568 = vmatpush2.msra.mxu0 0.0
  %5569 = vmatprep.subr.mxu0 0.0
  %5570 = vmatpush2.msra.mxu0 0.0
  %5571 = vmatprep.subr.mxu0 0.0
  %5572 = vmatpush2.msra.mxu0 0.0
  %5573 = vmatprep.subr.mxu0 0.0
  %5574 = vmatpush2.msra.mxu0 0.0
  %5575 = vmatprep.subr.mxu0 0.0
  %5576 = vmatpush2.msra.mxu0 0.0
  %5577 = vmatprep.subr.mxu0 0.0
  %5578 = vmatpush2.msra.mxu0 0.0
  %5579 = vmatprep.subr.mxu0 0.0
  %5580 = vmatpush2.msra.mxu0 0.0
  %5581 = vmatprep.mubr.f32.mxu0 0.0
  %5582 = vmatmul.mubr.f32.gmra.mxu0 %v5515
  %v5583 = vpop.f32.mrf.mxu0
  %v5584 = vadd.f32 0.0, %v5583
  %v5585 = vpop.f32.mrf.mxu0
  %5586 = vdwg.mxu0
  %v5587 = vadd.f32 %v5267, %v5511
  %v5588 = vadd.f32 %v5268, %v5584
  %v5589 = vld [vmem:[%s53] sm:$0xff]
  %v5590 = vld [vmem:[%s53 + $0x8] sm:$0xff]
  %v5591 = vld [vmem:[%s55] sm:$0x1]
  %v5593 = vlaneseq
  %v5594 = vshrl.u32 %v5593, 7
  %v5595 = vsub.s32 0, %v5594
  %v5596 = vrot.slane %v5591, %v5595
  %v5599 = vsel %vm394, %v5587, 0
  %v5602 = vsel %vm394, %v5588, 0
  %5604 = vmatprep.subr.mxu0 0.0
  %5605 = vmatpush1.msra.mxu0 0.0
  %5606 = vmatprep.subr.mxu0 0.0
  %5607 = vmatpush1.msra.mxu0 0.0
  %5608 = vmatprep.subr.mxu0 0.0
  %5609 = vmatpush1.msra.mxu0 0.0
  %5610 = vmatprep.subr.mxu0 0.0
  %5611 = vmatpush1.msra.mxu0 0.0
  %5612 = vmatprep.subr.mxu0 0.0
  %5613 = vmatpush1.msra.mxu0 0.0
  %5614 = vmatprep.subr.mxu0 0.0
  %5615 = vmatpush1.msra.mxu0 0.0
  %5616 = vmatprep.subr.mxu0 0.0
  %5617 = vmatpush1.msra.mxu0 0.0
  %5618 = vmatprep.subr.mxu0 0.0
  %5619 = vmatpush1.msra.mxu0 0.0
  %5620 = vmatprep.subr.mxu0 0.0
  %5621 = vmatpush1.msra.mxu0 0.0
  %5622 = vmatprep.subr.mxu0 0.0
  %5623 = vmatpush1.msra.mxu0 0.0
  %5624 = vmatprep.subr.mxu0 0.0
  %5625 = vmatpush1.msra.mxu0 0.0
  %5626 = vmatprep.subr.mxu0 0.0
  %5627 = vmatpush1.msra.mxu0 0.0
  %5628 = vmatprep.subr.mxu0 0.0
  %5629 = vmatpush1.msra.mxu0 0.0
  %5630 = vmatprep.subr.mxu0 0.0
  %5631 = vmatpush1.msra.mxu0 0.0
  %5632 = vmatprep.subr.mxu0 0.0
  %5633 = vmatpush1.msra.mxu0 %v5590
  %5634 = vmatprep.subr.mxu0 0.0
  %5635 = vmatpush1.msra.mxu0 %v5589
  %5636 = vmatprep.subr.mxu0 0.0
  %5637 = vmatpush2.msra.mxu0 0.0
  %5638 = vmatprep.subr.mxu0 0.0
  %5639 = vmatpush2.msra.mxu0 0.0
  %5640 = vmatprep.subr.mxu0 0.0
  %5641 = vmatpush2.msra.mxu0 0.0
  %5642 = vmatprep.subr.mxu0 0.0
  %5643 = vmatpush2.msra.mxu0 0.0
  %5644 = vmatprep.subr.mxu0 0.0
  %5645 = vmatpush2.msra.mxu0 0.0
  %5646 = vmatprep.subr.mxu0 0.0
  %5647 = vmatpush2.msra.mxu0 0.0
  %5648 = vmatprep.subr.mxu0 0.0
  %5649 = vmatpush2.msra.mxu0 0.0
  %5650 = vmatprep.subr.mxu0 0.0
  %5651 = vmatpush2.msra.mxu0 0.0
  %5652 = vmatprep.subr.mxu0 0.0
  %5653 = vmatpush2.msra.mxu0 0.0
  %5654 = vmatprep.subr.mxu0 0.0
  %5655 = vmatpush2.msra.mxu0 0.0
  %5656 = vmatprep.subr.mxu0 0.0
  %5657 = vmatpush2.msra.mxu0 0.0
  %5658 = vmatprep.subr.mxu0 0.0
  %5659 = vmatpush2.msra.mxu0 0.0
  %5660 = vmatprep.subr.mxu0 0.0
  %5661 = vmatpush2.msra.mxu0 0.0
  %5662 = vmatprep.subr.mxu0 0.0
  %5663 = vmatpush2.msra.mxu0 0.0
  %5664 = vmatprep.subr.mxu0 0.0
  %5665 = vmatpush2.msra.mxu0 0.0
  %5666 = vmatprep.subr.mxu0 0.0
  %5667 = vmatpush2.msra.mxu0 0.0
  %5668 = vmatprep.mubr.f32.mxu0 0.0
  %5669 = vmatmul.mubr.f32.gmra.mxu0 %v5599
  %v5670 = vpop.f32.mrf.mxu0
  %v5671 = vadd.f32 %v5596, %v5670
  %v5672 = vpop.f32.mrf.mxu0
  %5673 = vmatprep.mubr.f32.mxu0 0.0
  %5674 = vmatmul.mubr.f32.gmra.mxu0 %v5602
  %v5675 = vpop.f32.mrf.mxu0
  %v5676 = vadd.f32 %v5596, %v5675
  %v5677 = vpop.f32.mrf.mxu0
  %5678 = vdwg.mxu0
  %v5679 = vadd.f32 %v4047, %v5671
  %v5680 = vadd.f32 %v4048, %v5676
  %v5681 = vld [vmem:[%s57] sm:$0x1]
  %v5682 = vld [vmem:[%s59] sm:$0x1]
  %v5683 = vsel %vm394, %v5679, 0.0
  %5684 = vadd.xlane.f32.xlu0 %v5683
  %v5685 = vpop.xlane.xlu0 %5684
  %v5686 = vsel %vm394, %v5680, 0.0
  %5687 = vadd.xlane.f32.xlu0 %v5686
  %v5688 = vpop.xlane.xlu0 %5687
  %v5689 = vmul.f32 %v5685, %v2031
  %v5690 = vmul.f32 %v5688, %v2031
  %v5691 = vsub.f32 %v5679, %v5689
  %v5692 = vsub.f32 %v5680, %v5690
  %v5693 = vmul.f32 %v5691, %v5691
  %v5694 = vmul.f32 %v5692, %v5692
  %v5695 = vsel %vm394, %v5693, 0.0
  %5696 = vadd.xlane.f32.xlu0 %v5695
  %v5697 = vpop.xlane.xlu0 %5696
  %v5698 = vsel %vm394, %v5694, 0.0
  %5699 = vadd.xlane.f32.xlu0 %v5698
  %v5700 = vpop.xlane.xlu0 %5699
  %v5701 = vmul.f32 %v5697, %v2031
  %v5702 = vmul.f32 %v5700, %v2031
  %v5703 = vadd.f32 %v5701, 1e-05
  %v5704 = vadd.f32 %v5702, 1e-05
  %v5705 = vrsqrt.pop %v5703
  %v5706 = vrsqrt.pop %v5704
  %v5707 = vmul.f32 %v5691, %v5705
  %v5708 = vmul.f32 %v5692, %v5706
  %v5710 = vlaneseq
  %v5711 = vshrl.u32 %v5710, 7
  %v5712 = vsub.s32 0, %v5711
  %v5713 = vrot.slane %v5681, %v5712
  %v5715 = vmul.f32 %v5707, %v5713
  %v5716 = vmul.f32 %v5708, %v5713
  %v5718 = vlaneseq
  %v5719 = vshrl.u32 %v5718, 7
  %v5720 = vsub.s32 0, %v5719
  %v5721 = vrot.slane %v5682, %v5720
  %v5723 = vadd.f32 %v5715, %v5721
  %v5724 = vadd.f32 %v5716, %v5721
  %v5725 = vpack.c.bf16 %v5724, %v5723
  %v5726 = vld [vmem:[%s61] sm:$0xff]
  %v5727 = vld [vmem:[%s61 + $0x8] sm:$0xff]
  %v5728 = vld [vmem:[%s61 + $0x10] sm:$0xff]
  %v5729 = vld [vmem:[%s61 + $0x18] sm:$0xff]
  %v5730 = vld [vmem:[%s61 + $0x20] sm:$0xff]
  %v5731 = vld [vmem:[%s61 + $0x28] sm:$0xff]
  %v5732 = vld [vmem:[%s61 + $0x30] sm:$0xff]
  %v5733 = vld [vmem:[%s61 + $0x38] sm:$0xff]
  %v5734 = vld [vmem:[%s61 + $0x40] sm:$0xff]
  %v5735 = vld [vmem:[%s61 + $0x48] sm:$0xff]
  %v5736 = vld [vmem:[%s61 + $0x50] sm:$0xff]
  %v5737 = vld [vmem:[%s61 + $0x58] sm:$0xff]
  %v5738 = vld [vmem:[%s61 + $0x60] sm:$0xff]
  %v5739 = vld [vmem:[%s61 + $0x68] sm:$0xff]
  %v5740 = vld [vmem:[%s61 + $0x70] sm:$0xff]
  %v5741 = vld [vmem:[%s61 + $0x78] sm:$0xff]
  %v5742 = vld [vmem:[%s63] sm:$0xff]
  %v5743 = vld [vmem:[%s63 + $0x8] sm:$0xff]
  %v5746 = vlaneseq
  %v5747 = vshrl.u32 %v5746, 7
  %v5748 = vsub.s32 0, %v5747
  %v5749 = vrot.slane %v5742, %v5748
  %v5750 = vlaneseq
  %v5751 = vshrl.u32 %v5750, 7
  %v5752 = vsub.s32 1, %v5751
  %v5753 = vrot.slane %v5742, %v5752
  %v5754 = vlaneseq
  %v5755 = vshrl.u32 %v5754, 7
  %v5756 = vsub.s32 2, %v5755
  %v5757 = vrot.slane %v5742, %v5756
  %v5758 = vlaneseq
  %v5759 = vshrl.u32 %v5758, 7
  %v5760 = vsub.s32 3, %v5759
  %v5761 = vrot.slane %v5742, %v5760
  %v5762 = vlaneseq
  %v5763 = vshrl.u32 %v5762, 7
  %v5764 = vsub.s32 4, %v5763
  %v5765 = vrot.slane %v5742, %v5764
  %v5766 = vlaneseq
  %v5767 = vshrl.u32 %v5766, 7
  %v5768 = vsub.s32 5, %v5767
  %v5769 = vrot.slane %v5742, %v5768
  %v5770 = vlaneseq
  %v5771 = vshrl.u32 %v5770, 7
  %v5772 = vsub.s32 6, %v5771
  %v5773 = vrot.slane %v5742, %v5772
  %v5774 = vlaneseq
  %v5775 = vshrl.u32 %v5774, 7
  %v5776 = vsub.s32 7, %v5775
  %v5777 = vrot.slane %v5742, %v5776
  %v5778 = vlaneseq
  %v5779 = vshrl.u32 %v5778, 7
  %v5780 = vsub.s32 0, %v5779
  %v5781 = vrot.slane %v5743, %v5780
  %v5782 = vlaneseq
  %v5783 = vshrl.u32 %v5782, 7
  %v5784 = vsub.s32 1, %v5783
  %v5785 = vrot.slane %v5743, %v5784
  %v5786 = vlaneseq
  %v5787 = vshrl.u32 %v5786, 7
  %v5788 = vsub.s32 2, %v5787
  %v5789 = vrot.slane %v5743, %v5788
  %v5790 = vlaneseq
  %v5791 = vshrl.u32 %v5790, 7
  %v5792 = vsub.s32 3, %v5791
  %v5793 = vrot.slane %v5743, %v5792
  %v5794 = vlaneseq
  %v5795 = vshrl.u32 %v5794, 7
  %v5796 = vsub.s32 4, %v5795
  %v5797 = vrot.slane %v5743, %v5796
  %v5798 = vlaneseq
  %v5799 = vshrl.u32 %v5798, 7
  %v5800 = vsub.s32 5, %v5799
  %v5801 = vrot.slane %v5743, %v5800
  %v5802 = vlaneseq
  %v5803 = vshrl.u32 %v5802, 7
  %v5804 = vsub.s32 6, %v5803
  %v5805 = vrot.slane %v5743, %v5804
  %v5806 = vlaneseq
  %v5807 = vshrl.u32 %v5806, 7
  %v5808 = vsub.s32 7, %v5807
  %v5809 = vrot.slane %v5743, %v5808
  %v5842 = vunpack.c.l.b16 %v5726
  %v5843 = vunpack.c.h.b16 %v5726
  %v5844 = vunpack.c.l.b16 %v5727
  %v5845 = vunpack.c.h.b16 %v5727
  %v5846 = vunpack.c.l.b16 %v5728
  %v5847 = vunpack.c.h.b16 %v5728
  %v5848 = vunpack.c.l.b16 %v5729
  %v5849 = vunpack.c.h.b16 %v5729
  %v5850 = vunpack.c.l.b16 %v5730
  %v5851 = vunpack.c.h.b16 %v5730
  %v5852 = vunpack.c.l.b16 %v5731
  %v5853 = vunpack.c.h.b16 %v5731
  %v5854 = vunpack.c.l.b16 %v5732
  %v5855 = vunpack.c.h.b16 %v5732
  %v5856 = vunpack.c.l.b16 %v5733
  %v5857 = vunpack.c.h.b16 %v5733
  %v5858 = vunpack.c.l.b16 %v5734
  %v5859 = vunpack.c.h.b16 %v5734
  %v5860 = vunpack.c.l.b16 %v5735
  %v5861 = vunpack.c.h.b16 %v5735
  %v5862 = vunpack.c.l.b16 %v5736
  %v5863 = vunpack.c.h.b16 %v5736
  %v5864 = vunpack.c.l.b16 %v5737
  %v5865 = vunpack.c.h.b16 %v5737
  %v5866 = vunpack.c.l.b16 %v5738
  %v5867 = vunpack.c.h.b16 %v5738
  %v5868 = vunpack.c.l.b16 %v5739
  %v5869 = vunpack.c.h.b16 %v5739
  %v5870 = vunpack.c.l.b16 %v5740
  %v5871 = vunpack.c.h.b16 %v5740
  %v5872 = vunpack.c.l.b16 %v5741
  %v5873 = vunpack.c.h.b16 %v5741
  %v5874 = vpack.c.b16 %v5858, %v5842
  %v5875 = vpack.c.b16 %v5859, %v5843
  %v5876 = vpack.c.b16 %v5860, %v5844
  %v5877 = vpack.c.b16 %v5861, %v5845
  %v5878 = vpack.c.b16 %v5862, %v5846
  %v5879 = vpack.c.b16 %v5863, %v5847
  %v5880 = vpack.c.b16 %v5864, %v5848
  %v5881 = vpack.c.b16 %v5865, %v5849
  %v5882 = vpack.c.b16 %v5866, %v5850
  %v5883 = vpack.c.b16 %v5867, %v5851
  %v5884 = vpack.c.b16 %v5868, %v5852
  %v5885 = vpack.c.b16 %v5869, %v5853
  %v5886 = vpack.c.b16 %v5870, %v5854
  %v5887 = vpack.c.b16 %v5871, %v5855
  %v5888 = vpack.c.b16 %v5872, %v5856
  %v5889 = vpack.c.b16 %v5873, %v5857
  %v5907 = vsel %vm394, %v5725, 0
  %5909 = vmatprep.subr.bf16.mxu0 0
  %5910 = vmatpush1.bf16.msra.mxu0 0
  %5911 = vmatprep.subr.bf16.mxu0 0
  %5912 = vmatpush1.bf16.msra.mxu0 0
  %5913 = vmatprep.subr.bf16.mxu0 0
  %5914 = vmatpush1.bf16.msra.mxu0 0
  %5915 = vmatprep.subr.bf16.mxu0 0
  %5916 = vmatpush1.bf16.msra.mxu0 0
  %5917 = vmatprep.subr.bf16.mxu0 0
  %5918 = vmatpush1.bf16.msra.mxu0 0
  %5919 = vmatprep.subr.bf16.mxu0 0
  %5920 = vmatpush1.bf16.msra.mxu0 0
  %5921 = vmatprep.subr.bf16.mxu0 0
  %5922 = vmatpush1.bf16.msra.mxu0 0
  %5923 = vmatprep.subr.bf16.mxu0 %v5875
  %5924 = vmatpush1.bf16.msra.mxu0 %v5874
  %5925 = vmatprep.subr.bf16.mxu0 0
  %5926 = vmatpush2.bf16.msra.mxu0 0
  %5927 = vmatprep.subr.bf16.mxu0 0
  %5928 = vmatpush2.bf16.msra.mxu0 0
  %5929 = vmatprep.subr.bf16.mxu0 0
  %5930 = vmatpush2.bf16.msra.mxu0 0
  %5931 = vmatprep.subr.bf16.mxu0 0
  %5932 = vmatpush2.bf16.msra.mxu0 0
  %5933 = vmatprep.subr.bf16.mxu0 0
  %5934 = vmatpush2.bf16.msra.mxu0 0
  %5935 = vmatprep.subr.bf16.mxu0 0
  %5936 = vmatpush2.bf16.msra.mxu0 0
  %5937 = vmatprep.subr.bf16.mxu0 0
  %5938 = vmatpush2.bf16.msra.mxu0 0
  %5939 = vmatprep.subr.bf16.mxu0 0
  %5940 = vmatpush2.bf16.msra.mxu0 0
  %5941 = vmatprep.mubr.bf16.mxu0 0
  %5942 = vmatmul.mubr.bf16.gmra.mxu0 %v5907
  %v5943 = vpop.f32.mrf.mxu0
  %v5944 = vadd.f32 %v5749, %v5943
  %v5945 = vpop.f32.mrf.mxu0
  %v5946 = vadd.f32 %v5753, %v5945
  %v5947 = vpop.f32.mrf.mxu0
  %v5948 = vadd.f32 %v5749, %v5947
  %v5949 = vpop.f32.mrf.mxu0
  %v5950 = vadd.f32 %v5753, %v5949
  %5951 = vdwg.mxu0
  %5952 = vmatprep.subr.bf16.mxu0 0
  %5953 = vmatpush1.bf16.msra.mxu0 0
  %5954 = vmatprep.subr.bf16.mxu0 0
  %5955 = vmatpush1.bf16.msra.mxu0 0
  %5956 = vmatprep.subr.bf16.mxu0 0
  %5957 = vmatpush1.bf16.msra.mxu0 0
  %5958 = vmatprep.subr.bf16.mxu0 0
  %5959 = vmatpush1.bf16.msra.mxu0 0
  %5960 = vmatprep.subr.bf16.mxu0 0
  %5961 = vmatpush1.bf16.msra.mxu0 0
  %5962 = vmatprep.subr.bf16.mxu0 0
  %5963 = vmatpush1.bf16.msra.mxu0 0
  %5964 = vmatprep.subr.bf16.mxu0 0
  %5965 = vmatpush1.bf16.msra.mxu0 0
  %5966 = vmatprep.subr.bf16.mxu0 %v5877
  %5967 = vmatpush1.bf16.msra.mxu0 %v5876
  %5968 = vmatprep.subr.bf16.mxu0 0
  %5969 = vmatpush2.bf16.msra.mxu0 0
  %5970 = vmatprep.subr.bf16.mxu0 0
  %5971 = vmatpush2.bf16.msra.mxu0 0
  %5972 = vmatprep.subr.bf16.mxu0 0
  %5973 = vmatpush2.bf16.msra.mxu0 0
  %5974 = vmatprep.subr.bf16.mxu0 0
  %5975 = vmatpush2.bf16.msra.mxu0 0
  %5976 = vmatprep.subr.bf16.mxu0 0
  %5977 = vmatpush2.bf16.msra.mxu0 0
  %5978 = vmatprep.subr.bf16.mxu0 0
  %5979 = vmatpush2.bf16.msra.mxu0 0
  %5980 = vmatprep.subr.bf16.mxu0 0
  %5981 = vmatpush2.bf16.msra.mxu0 0
  %5982 = vmatprep.subr.bf16.mxu0 0
  %5983 = vmatpush2.bf16.msra.mxu0 0
  %5984 = vmatprep.mubr.bf16.mxu0 0
  %5985 = vmatmul.mubr.bf16.gmra.mxu0 %v5907
  %v5986 = vpop.f32.mrf.mxu0
  %v5987 = vadd.f32 %v5757, %v5986
  %v5988 = vpop.f32.mrf.mxu0
  %v5989 = vadd.f32 %v5761, %v5988
  %v5990 = vpop.f32.mrf.mxu0
  %v5991 = vadd.f32 %v5757, %v5990
  %v5992 = vpop.f32.mrf.mxu0
  %v5993 = vadd.f32 %v5761, %v5992
  %5994 = vdwg.mxu0
  %5995 = vmatprep.subr.bf16.mxu0 0
  %5996 = vmatpush1.bf16.msra.mxu0 0
  %5997 = vmatprep.subr.bf16.mxu0 0
  %5998 = vmatpush1.bf16.msra.mxu0 0
  %5999 = vmatprep.subr.bf16.mxu0 0
  %6000 = vmatpush1.bf16.msra.mxu0 0
  %6001 = vmatprep.subr.bf16.mxu0 0
  %6002 = vmatpush1.bf16.msra.mxu0 0
  %6003 = vmatprep.subr.bf16.mxu0 0
  %6004 = vmatpush1.bf16.msra.mxu0 0
  %6005 = vmatprep.subr.bf16.mxu0 0
  %6006 = vmatpush1.bf16.msra.mxu0 0
  %6007 = vmatprep.subr.bf16.mxu0 0
  %6008 = vmatpush1.bf16.msra.mxu0 0
  %6009 = vmatprep.subr.bf16.mxu0 %v5879
  %6010 = vmatpush1.bf16.msra.mxu0 %v5878
  %6011 = vmatprep.subr.bf16.mxu0 0
  %6012 = vmatpush2.bf16.msra.mxu0 0
  %6013 = vmatprep.subr.bf16.mxu0 0
  %6014 = vmatpush2.bf16.msra.mxu0 0
  %6015 = vmatprep.subr.bf16.mxu0 0
  %6016 = vmatpush2.bf16.msra.mxu0 0
  %6017 = vmatprep.subr.bf16.mxu0 0
  %6018 = vmatpush2.bf16.msra.mxu0 0
  %6019 = vmatprep.subr.bf16.mxu0 0
  %6020 = vmatpush2.bf16.msra.mxu0 0
  %6021 = vmatprep.subr.bf16.mxu0 0
  %6022 = vmatpush2.bf16.msra.mxu0 0
  %6023 = vmatprep.subr.bf16.mxu0 0
  %6024 = vmatpush2.bf16.msra.mxu0 0
  %6025 = vmatprep.subr.bf16.mxu0 0
  %6026 = vmatpush2.bf16.msra.mxu0 0
  %6027 = vmatprep.mubr.bf16.mxu0 0
  %6028 = vmatmul.mubr.bf16.gmra.mxu0 %v5907
  %v6029 = vpop.f32.mrf.mxu0
  %v6030 = vadd.f32 %v5765, %v6029
  %v6031 = vpop.f32.mrf.mxu0
  %v6032 = vadd.f32 %v5769, %v6031
  %v6033 = vpop.f32.mrf.mxu0
  %v6034 = vadd.f32 %v5765, %v6033
  %v6035 = vpop.f32.mrf.mxu0
  %v6036 = vadd.f32 %v5769, %v6035
  %6037 = vdwg.mxu0
  %6038 = vmatprep.subr.bf16.mxu0 0
  %6039 = vmatpush1.bf16.msra.mxu0 0
  %6040 = vmatprep.subr.bf16.mxu0 0
  %6041 = vmatpush1.bf16.msra.mxu0 0
  %6042 = vmatprep.subr.bf16.mxu0 0
  %6043 = vmatpush1.bf16.msra.mxu0 0
  %6044 = vmatprep.subr.bf16.mxu0 0
  %6045 = vmatpush1.bf16.msra.mxu0 0
  %6046 = vmatprep.subr.bf16.mxu0 0
  %6047 = vmatpush1.bf16.msra.mxu0 0
  %6048 = vmatprep.subr.bf16.mxu0 0
  %6049 = vmatpush1.bf16.msra.mxu0 0
  %6050 = vmatprep.subr.bf16.mxu0 0
  %6051 = vmatpush1.bf16.msra.mxu0 0
  %6052 = vmatprep.subr.bf16.mxu0 %v5881
  %6053 = vmatpush1.bf16.msra.mxu0 %v5880
  %6054 = vmatprep.subr.bf16.mxu0 0
  %6055 = vmatpush2.bf16.msra.mxu0 0
  %6056 = vmatprep.subr.bf16.mxu0 0
  %6057 = vmatpush2.bf16.msra.mxu0 0
  %6058 = vmatprep.subr.bf16.mxu0 0
  %6059 = vmatpush2.bf16.msra.mxu0 0
  %6060 = vmatprep.subr.bf16.mxu0 0
  %6061 = vmatpush2.bf16.msra.mxu0 0
  %6062 = vmatprep.subr.bf16.mxu0 0
  %6063 = vmatpush2.bf16.msra.mxu0 0
  %6064 = vmatprep.subr.bf16.mxu0 0
  %6065 = vmatpush2.bf16.msra.mxu0 0
  %6066 = vmatprep.subr.bf16.mxu0 0
  %6067 = vmatpush2.bf16.msra.mxu0 0
  %6068 = vmatprep.subr.bf16.mxu0 0
  %6069 = vmatpush2.bf16.msra.mxu0 0
  %6070 = vmatprep.mubr.bf16.mxu0 0
  %6071 = vmatmul.mubr.bf16.gmra.mxu0 %v5907
  %v6072 = vpop.f32.mrf.mxu0
  %v6073 = vadd.f32 %v5773, %v6072
  %v6074 = vpop.f32.mrf.mxu0
  %v6075 = vadd.f32 %v5777, %v6074
  %v6076 = vpop.f32.mrf.mxu0
  %v6077 = vadd.f32 %v5773, %v6076
  %v6078 = vpop.f32.mrf.mxu0
  %v6079 = vadd.f32 %v5777, %v6078
  %6080 = vdwg.mxu0
  %6081 = vmatprep.subr.bf16.mxu0 0
  %6082 = vmatpush1.bf16.msra.mxu0 0
  %6083 = vmatprep.subr.bf16.mxu0 0
  %6084 = vmatpush1.bf16.msra.mxu0 0
  %6085 = vmatprep.subr.bf16.mxu0 0
  %6086 = vmatpush1.bf16.msra.mxu0 0
  %6087 = vmatprep.subr.bf16.mxu0 0
  %6088 = vmatpush1.bf16.msra.mxu0 0
  %6089 = vmatprep.subr.bf16.mxu0 0
  %6090 = vmatpush1.bf16.msra.mxu0 0
  %6091 = vmatprep.subr.bf16.mxu0 0
  %6092 = vmatpush1.bf16.msra.mxu0 0
  %6093 = vmatprep.subr.bf16.mxu0 0
  %6094 = vmatpush1.bf16.msra.mxu0 0
  %6095 = vmatprep.subr.bf16.mxu0 %v5883
  %6096 = vmatpush1.bf16.msra.mxu0 %v5882
  %6097 = vmatprep.subr.bf16.mxu0 0
  %6098 = vmatpush2.bf16.msra.mxu0 0
  %6099 = vmatprep.subr.bf16.mxu0 0
  %6100 = vmatpush2.bf16.msra.mxu0 0
  %6101 = vmatprep.subr.bf16.mxu0 0
  %6102 = vmatpush2.bf16.msra.mxu0 0
  %6103 = vmatprep.subr.bf16.mxu0 0
  %6104 = vmatpush2.bf16.msra.mxu0 0
  %6105 = vmatprep.subr.bf16.mxu0 0
  %6106 = vmatpush2.bf16.msra.mxu0 0
  %6107 = vmatprep.subr.bf16.mxu0 0
  %6108 = vmatpush2.bf16.msra.mxu0 0
  %6109 = vmatprep.subr.bf16.mxu0 0
  %6110 = vmatpush2.bf16.msra.mxu0 0
  %6111 = vmatprep.subr.bf16.mxu0 0
  %6112 = vmatpush2.bf16.msra.mxu0 0
  %6113 = vmatprep.mubr.bf16.mxu0 0
  %6114 = vmatmul.mubr.bf16.gmra.mxu0 %v5907
  %v6115 = vpop.f32.mrf.mxu0
  %v6116 = vadd.f32 %v5781, %v6115
  %v6117 = vpop.f32.mrf.mxu0
  %v6118 = vadd.f32 %v5785, %v6117
  %v6119 = vpop.f32.mrf.mxu0
  %v6120 = vadd.f32 %v5781, %v6119
  %v6121 = vpop.f32.mrf.mxu0
  %v6122 = vadd.f32 %v5785, %v6121
  %6123 = vdwg.mxu0
  %6124 = vmatprep.subr.bf16.mxu0 0
  %6125 = vmatpush1.bf16.msra.mxu0 0
  %6126 = vmatprep.subr.bf16.mxu0 0
  %6127 = vmatpush1.bf16.msra.mxu0 0
  %6128 = vmatprep.subr.bf16.mxu0 0
  %6129 = vmatpush1.bf16.msra.mxu0 0
  %6130 = vmatprep.subr.bf16.mxu0 0
  %6131 = vmatpush1.bf16.msra.mxu0 0
  %6132 = vmatprep.subr.bf16.mxu0 0
  %6133 = vmatpush1.bf16.msra.mxu0 0
  %6134 = vmatprep.subr.bf16.mxu0 0
  %6135 = vmatpush1.bf16.msra.mxu0 0
  %6136 = vmatprep.subr.bf16.mxu0 0
  %6137 = vmatpush1.bf16.msra.mxu0 0
  %6138 = vmatprep.subr.bf16.mxu0 %v5885
  %6139 = vmatpush1.bf16.msra.mxu0 %v5884
  %6140 = vmatprep.subr.bf16.mxu0 0
  %6141 = vmatpush2.bf16.msra.mxu0 0
  %6142 = vmatprep.subr.bf16.mxu0 0
  %6143 = vmatpush2.bf16.msra.mxu0 0
  %6144 = vmatprep.subr.bf16.mxu0 0
  %6145 = vmatpush2.bf16.msra.mxu0 0
  %6146 = vmatprep.subr.bf16.mxu0 0
  %6147 = vmatpush2.bf16.msra.mxu0 0
  %6148 = vmatprep.subr.bf16.mxu0 0
  %6149 = vmatpush2.bf16.msra.mxu0 0
  %6150 = vmatprep.subr.bf16.mxu0 0
  %6151 = vmatpush2.bf16.msra.mxu0 0
  %6152 = vmatprep.subr.bf16.mxu0 0
  %6153 = vmatpush2.bf16.msra.mxu0 0
  %6154 = vmatprep.subr.bf16.mxu0 0
  %6155 = vmatpush2.bf16.msra.mxu0 0
  %6156 = vmatprep.mubr.bf16.mxu0 0
  %6157 = vmatmul.mubr.bf16.gmra.mxu0 %v5907
  %v6158 = vpop.f32.mrf.mxu0
  %v6159 = vadd.f32 %v5789, %v6158
  %v6160 = vpop.f32.mrf.mxu0
  %v6161 = vadd.f32 %v5793, %v6160
  %v6162 = vpop.f32.mrf.mxu0
  %v6163 = vadd.f32 %v5789, %v6162
  %v6164 = vpop.f32.mrf.mxu0
  %v6165 = vadd.f32 %v5793, %v6164
  %6166 = vdwg.mxu0
  %6167 = vmatprep.subr.bf16.mxu0 0
  %6168 = vmatpush1.bf16.msra.mxu0 0
  %6169 = vmatprep.subr.bf16.mxu0 0
  %6170 = vmatpush1.bf16.msra.mxu0 0
  %6171 = vmatprep.subr.bf16.mxu0 0
  %6172 = vmatpush1.bf16.msra.mxu0 0
  %6173 = vmatprep.subr.bf16.mxu0 0
  %6174 = vmatpush1.bf16.msra.mxu0 0
  %6175 = vmatprep.subr.bf16.mxu0 0
  %6176 = vmatpush1.bf16.msra.mxu0 0
  %6177 = vmatprep.subr.bf16.mxu0 0
  %6178 = vmatpush1.bf16.msra.mxu0 0
  %6179 = vmatprep.subr.bf16.mxu0 0
  %6180 = vmatpush1.bf16.msra.mxu0 0
  %6181 = vmatprep.subr.bf16.mxu0 %v5887
  %6182 = vmatpush1.bf16.msra.mxu0 %v5886
  %6183 = vmatprep.subr.bf16.mxu0 0
  %6184 = vmatpush2.bf16.msra.mxu0 0
  %6185 = vmatprep.subr.bf16.mxu0 0
  %6186 = vmatpush2.bf16.msra.mxu0 0
  %6187 = vmatprep.subr.bf16.mxu0 0
  %6188 = vmatpush2.bf16.msra.mxu0 0
  %6189 = vmatprep.subr.bf16.mxu0 0
  %6190 = vmatpush2.bf16.msra.mxu0 0
  %6191 = vmatprep.subr.bf16.mxu0 0
  %6192 = vmatpush2.bf16.msra.mxu0 0
  %6193 = vmatprep.subr.bf16.mxu0 0
  %6194 = vmatpush2.bf16.msra.mxu0 0
  %6195 = vmatprep.subr.bf16.mxu0 0
  %6196 = vmatpush2.bf16.msra.mxu0 0
  %6197 = vmatprep.subr.bf16.mxu0 0
  %6198 = vmatpush2.bf16.msra.mxu0 0
  %6199 = vmatprep.mubr.bf16.mxu0 0
  %6200 = vmatmul.mubr.bf16.gmra.mxu0 %v5907
  %v6201 = vpop.f32.mrf.mxu0
  %v6202 = vadd.f32 %v5797, %v6201
  %v6203 = vpop.f32.mrf.mxu0
  %v6204 = vadd.f32 %v5801, %v6203
  %v6205 = vpop.f32.mrf.mxu0
  %v6206 = vadd.f32 %v5797, %v6205
  %v6207 = vpop.f32.mrf.mxu0
  %v6208 = vadd.f32 %v5801, %v6207
  %6209 = vdwg.mxu0
  %6210 = vmatprep.subr.bf16.mxu0 0
  %6211 = vmatpush1.bf16.msra.mxu0 0
  %6212 = vmatprep.subr.bf16.mxu0 0
  %6213 = vmatpush1.bf16.msra.mxu0 0
  %6214 = vmatprep.subr.bf16.mxu0 0
  %6215 = vmatpush1.bf16.msra.mxu0 0
  %6216 = vmatprep.subr.bf16.mxu0 0
  %6217 = vmatpush1.bf16.msra.mxu0 0
  %6218 = vmatprep.subr.bf16.mxu0 0
  %6219 = vmatpush1.bf16.msra.mxu0 0
  %6220 = vmatprep.subr.bf16.mxu0 0
  %6221 = vmatpush1.bf16.msra.mxu0 0
  %6222 = vmatprep.subr.bf16.mxu0 0
  %6223 = vmatpush1.bf16.msra.mxu0 0
  %6224 = vmatprep.subr.bf16.mxu0 %v5889
  %6225 = vmatpush1.bf16.msra.mxu0 %v5888
  %6226 = vmatprep.subr.bf16.mxu0 0
  %6227 = vmatpush2.bf16.msra.mxu0 0
  %6228 = vmatprep.subr.bf16.mxu0 0
  %6229 = vmatpush2.bf16.msra.mxu0 0
  %6230 = vmatprep.subr.bf16.mxu0 0
  %6231 = vmatpush2.bf16.msra.mxu0 0
  %6232 = vmatprep.subr.bf16.mxu0 0
  %6233 = vmatpush2.bf16.msra.mxu0 0
  %6234 = vmatprep.subr.bf16.mxu0 0
  %6235 = vmatpush2.bf16.msra.mxu0 0
  %6236 = vmatprep.subr.bf16.mxu0 0
  %6237 = vmatpush2.bf16.msra.mxu0 0
  %6238 = vmatprep.subr.bf16.mxu0 0
  %6239 = vmatpush2.bf16.msra.mxu0 0
  %6240 = vmatprep.subr.bf16.mxu0 0
  %6241 = vmatpush2.bf16.msra.mxu0 0
  %6242 = vmatprep.mubr.bf16.mxu0 0
  %6243 = vmatmul.mubr.bf16.gmra.mxu0 %v5907
  %v6244 = vpop.f32.mrf.mxu0
  %v6245 = vadd.f32 %v5805, %v6244
  %v6246 = vpop.f32.mrf.mxu0
  %v6247 = vadd.f32 %v5809, %v6246
  %v6248 = vpop.f32.mrf.mxu0
  %v6249 = vadd.f32 %v5805, %v6248
  %v6250 = vpop.f32.mrf.mxu0
  %v6251 = vadd.f32 %v5809, %v6250
  %6252 = vdwg.mxu0
  %v6253 = vmax.f32 %v5944, 0.0
  %v6254 = vmax.f32 %v5946, 0.0
  %v6255 = vmax.f32 %v5987, 0.0
  %v6256 = vmax.f32 %v5989, 0.0
  %v6257 = vmax.f32 %v6030, 0.0
  %v6258 = vmax.f32 %v6032, 0.0
  %v6259 = vmax.f32 %v6073, 0.0
  %v6260 = vmax.f32 %v6075, 0.0
  %v6261 = vmax.f32 %v6116, 0.0
  %v6262 = vmax.f32 %v6118, 0.0
  %v6263 = vmax.f32 %v6159, 0.0
  %v6264 = vmax.f32 %v6161, 0.0
  %v6265 = vmax.f32 %v6202, 0.0
  %v6266 = vmax.f32 %v6204, 0.0
  %v6267 = vmax.f32 %v6245, 0.0
  %v6268 = vmax.f32 %v6247, 0.0
  %v6269 = vmax.f32 %v5948, 0.0
  %v6270 = vmax.f32 %v5950, 0.0
  %v6271 = vmax.f32 %v5991, 0.0
  %v6272 = vmax.f32 %v5993, 0.0
  %v6273 = vmax.f32 %v6034, 0.0
  %v6274 = vmax.f32 %v6036, 0.0
  %v6275 = vmax.f32 %v6077, 0.0
  %v6276 = vmax.f32 %v6079, 0.0
  %v6277 = vmax.f32 %v6120, 0.0
  %v6278 = vmax.f32 %v6122, 0.0
  %v6279 = vmax.f32 %v6163, 0.0
  %v6280 = vmax.f32 %v6165, 0.0
  %v6281 = vmax.f32 %v6206, 0.0
  %v6282 = vmax.f32 %v6208, 0.0
  %v6283 = vmax.f32 %v6249, 0.0
  %v6284 = vmax.f32 %v6251, 0.0
  %v6285 = vpack.c.bf16 %v6269, %v6253
  %v6286 = vpack.c.bf16 %v6270, %v6254
  %v6287 = vpack.c.bf16 %v6271, %v6255
  %v6288 = vpack.c.bf16 %v6272, %v6256
  %v6289 = vpack.c.bf16 %v6273, %v6257
  %v6290 = vpack.c.bf16 %v6274, %v6258
  %v6291 = vpack.c.bf16 %v6275, %v6259
  %v6292 = vpack.c.bf16 %v6276, %v6260
  %v6293 = vpack.c.bf16 %v6277, %v6261
  %v6294 = vpack.c.bf16 %v6278, %v6262
  %v6295 = vpack.c.bf16 %v6279, %v6263
  %v6296 = vpack.c.bf16 %v6280, %v6264
  %v6297 = vpack.c.bf16 %v6281, %v6265
  %v6298 = vpack.c.bf16 %v6282, %v6266
  %v6299 = vpack.c.bf16 %v6283, %v6267
  %v6300 = vpack.c.bf16 %v6284, %v6268
  %v6301 = vld [vmem:[%s65] sm:$0xf]
  %v6302 = vld [vmem:[%s65 + $0x4] sm:$0xf]
  %v6303 = vld [vmem:[%s65 + $0x8] sm:$0xf]
  %v6304 = vld [vmem:[%s65 + $0xc] sm:$0xf]
  %v6305 = vld [vmem:[%s65 + $0x10] sm:$0xf]
  %v6306 = vld [vmem:[%s65 + $0x14] sm:$0xf]
  %v6307 = vld [vmem:[%s65 + $0x18] sm:$0xf]
  %v6308 = vld [vmem:[%s65 + $0x1c] sm:$0xf]
  %v6309 = vld [vmem:[%s65 + $0x20] sm:$0xf]
  %v6310 = vld [vmem:[%s65 + $0x24] sm:$0xf]
  %v6311 = vld [vmem:[%s65 + $0x28] sm:$0xf]
  %v6312 = vld [vmem:[%s65 + $0x2c] sm:$0xf]
  %v6313 = vld [vmem:[%s65 + $0x30] sm:$0xf]
  %v6314 = vld [vmem:[%s65 + $0x34] sm:$0xf]
  %v6315 = vld [vmem:[%s65 + $0x38] sm:$0xf]
  %v6316 = vld [vmem:[%s65 + $0x3c] sm:$0xf]
  %v6317 = vld [vmem:[%s65 + $0x40] sm:$0xf]
  %v6318 = vld [vmem:[%s65 + $0x44] sm:$0xf]
  %v6319 = vld [vmem:[%s65 + $0x48] sm:$0xf]
  %v6320 = vld [vmem:[%s65 + $0x4c] sm:$0xf]
  %v6321 = vld [vmem:[%s65 + $0x50] sm:$0xf]
  %v6322 = vld [vmem:[%s65 + $0x54] sm:$0xf]
  %v6323 = vld [vmem:[%s65 + $0x58] sm:$0xf]
  %v6324 = vld [vmem:[%s65 + $0x5c] sm:$0xf]
  %v6325 = vld [vmem:[%s65 + $0x60] sm:$0xf]
  %v6326 = vld [vmem:[%s65 + $0x64] sm:$0xf]
  %v6327 = vld [vmem:[%s65 + $0x68] sm:$0xf]
  %v6328 = vld [vmem:[%s65 + $0x6c] sm:$0xf]
  %v6329 = vld [vmem:[%s65 + $0x70] sm:$0xf]
  %v6330 = vld [vmem:[%s65 + $0x74] sm:$0xf]
  %v6331 = vld [vmem:[%s65 + $0x78] sm:$0xf]
  %v6332 = vld [vmem:[%s65 + $0x7c] sm:$0xf]
  %v6333 = vld [vmem:[%s65 + $0x80] sm:$0xf]
  %v6334 = vld [vmem:[%s65 + $0x84] sm:$0xf]
  %v6335 = vld [vmem:[%s65 + $0x88] sm:$0xf]
  %v6336 = vld [vmem:[%s65 + $0x8c] sm:$0xf]
  %v6337 = vld [vmem:[%s65 + $0x90] sm:$0xf]
  %v6338 = vld [vmem:[%s65 + $0x94] sm:$0xf]
  %v6339 = vld [vmem:[%s65 + $0x98] sm:$0xf]
  %v6340 = vld [vmem:[%s65 + $0x9c] sm:$0xf]
  %v6341 = vld [vmem:[%s65 + $0xa0] sm:$0xf]
  %v6342 = vld [vmem:[%s65 + $0xa4] sm:$0xf]
  %v6343 = vld [vmem:[%s65 + $0xa8] sm:$0xf]
  %v6344 = vld [vmem:[%s65 + $0xac] sm:$0xf]
  %v6345 = vld [vmem:[%s65 + $0xb0] sm:$0xf]
  %v6346 = vld [vmem:[%s65 + $0xb4] sm:$0xf]
  %v6347 = vld [vmem:[%s65 + $0xb8] sm:$0xf]
  %v6348 = vld [vmem:[%s65 + $0xbc] sm:$0xf]
  %v6349 = vld [vmem:[%s65 + $0xc0] sm:$0xf]
  %v6350 = vld [vmem:[%s65 + $0xc4] sm:$0xf]
  %v6351 = vld [vmem:[%s65 + $0xc8] sm:$0xf]
  %v6352 = vld [vmem:[%s65 + $0xcc] sm:$0xf]
  %v6353 = vld [vmem:[%s65 + $0xd0] sm:$0xf]
  %v6354 = vld [vmem:[%s65 + $0xd4] sm:$0xf]
  %v6355 = vld [vmem:[%s65 + $0xd8] sm:$0xf]
  %v6356 = vld [vmem:[%s65 + $0xdc] sm:$0xf]
  %v6357 = vld [vmem:[%s65 + $0xe0] sm:$0xf]
  %v6358 = vld [vmem:[%s65 + $0xe4] sm:$0xf]
  %v6359 = vld [vmem:[%s65 + $0xe8] sm:$0xf]
  %v6360 = vld [vmem:[%s65 + $0xec] sm:$0xf]
  %v6361 = vld [vmem:[%s65 + $0xf0] sm:$0xf]
  %v6362 = vld [vmem:[%s65 + $0xf4] sm:$0xf]
  %v6363 = vld [vmem:[%s65 + $0xf8] sm:$0xf]
  %v6364 = vld [vmem:[%s65 + $0xfc] sm:$0xf]
  %v6365 = vld [vmem:[%s65 + $0x100] sm:$0xf]
  %v6366 = vld [vmem:[%s65 + $0x104] sm:$0xf]
  %v6367 = vld [vmem:[%s65 + $0x108] sm:$0xf]
  %v6368 = vld [vmem:[%s65 + $0x10c] sm:$0xf]
  %v6369 = vld [vmem:[%s65 + $0x110] sm:$0xf]
  %v6370 = vld [vmem:[%s65 + $0x114] sm:$0xf]
  %v6371 = vld [vmem:[%s65 + $0x118] sm:$0xf]
  %v6372 = vld [vmem:[%s65 + $0x11c] sm:$0xf]
  %v6373 = vld [vmem:[%s65 + $0x120] sm:$0xf]
  %v6374 = vld [vmem:[%s65 + $0x124] sm:$0xf]
  %v6375 = vld [vmem:[%s65 + $0x128] sm:$0xf]
  %v6376 = vld [vmem:[%s65 + $0x12c] sm:$0xf]
  %v6377 = vld [vmem:[%s65 + $0x130] sm:$0xf]
  %v6378 = vld [vmem:[%s65 + $0x134] sm:$0xf]
  %v6379 = vld [vmem:[%s65 + $0x138] sm:$0xf]
  %v6380 = vld [vmem:[%s65 + $0x13c] sm:$0xf]
  %v6381 = vld [vmem:[%s65 + $0x140] sm:$0xf]
  %v6382 = vld [vmem:[%s65 + $0x144] sm:$0xf]
  %v6383 = vld [vmem:[%s65 + $0x148] sm:$0xf]
  %v6384 = vld [vmem:[%s65 + $0x14c] sm:$0xf]
  %v6385 = vld [vmem:[%s65 + $0x150] sm:$0xf]
  %v6386 = vld [vmem:[%s65 + $0x154] sm:$0xf]
  %v6387 = vld [vmem:[%s65 + $0x158] sm:$0xf]
  %v6388 = vld [vmem:[%s65 + $0x15c] sm:$0xf]
  %v6389 = vld [vmem:[%s65 + $0x160] sm:$0xf]
  %v6390 = vld [vmem:[%s65 + $0x164] sm:$0xf]
  %v6391 = vld [vmem:[%s65 + $0x168] sm:$0xf]
  %v6392 = vld [vmem:[%s65 + $0x16c] sm:$0xf]
  %v6393 = vld [vmem:[%s65 + $0x170] sm:$0xf]
  %v6394 = vld [vmem:[%s65 + $0x174] sm:$0xf]
  %v6395 = vld [vmem:[%s65 + $0x178] sm:$0xf]
  %v6396 = vld [vmem:[%s65 + $0x17c] sm:$0xf]
  %v6397 = vld [vmem:[%s65 + $0x180] sm:$0xf]
  %v6398 = vld [vmem:[%s65 + $0x184] sm:$0xf]
  %v6399 = vld [vmem:[%s65 + $0x188] sm:$0xf]
  %v6400 = vld [vmem:[%s65 + $0x18c] sm:$0xf]
  %v6401 = vld [vmem:[%s65 + $0x190] sm:$0xf]
  %v6402 = vld [vmem:[%s65 + $0x194] sm:$0xf]
  %v6403 = vld [vmem:[%s65 + $0x198] sm:$0xf]
  %v6404 = vld [vmem:[%s65 + $0x19c] sm:$0xf]
  %v6405 = vld [vmem:[%s65 + $0x1a0] sm:$0xf]
  %v6406 = vld [vmem:[%s65 + $0x1a4] sm:$0xf]
  %v6407 = vld [vmem:[%s65 + $0x1a8] sm:$0xf]
  %v6408 = vld [vmem:[%s65 + $0x1ac] sm:$0xf]
  %v6409 = vld [vmem:[%s65 + $0x1b0] sm:$0xf]
  %v6410 = vld [vmem:[%s65 + $0x1b4] sm:$0xf]
  %v6411 = vld [vmem:[%s65 + $0x1b8] sm:$0xf]
  %v6412 = vld [vmem:[%s65 + $0x1bc] sm:$0xf]
  %v6413 = vld [vmem:[%s65 + $0x1c0] sm:$0xf]
  %v6414 = vld [vmem:[%s65 + $0x1c4] sm:$0xf]
  %v6415 = vld [vmem:[%s65 + $0x1c8] sm:$0xf]
  %v6416 = vld [vmem:[%s65 + $0x1cc] sm:$0xf]
  %v6417 = vld [vmem:[%s65 + $0x1d0] sm:$0xf]
  %v6418 = vld [vmem:[%s65 + $0x1d4] sm:$0xf]
  %v6419 = vld [vmem:[%s65 + $0x1d8] sm:$0xf]
  %v6420 = vld [vmem:[%s65 + $0x1dc] sm:$0xf]
  %v6421 = vld [vmem:[%s65 + $0x1e0] sm:$0xf]
  %v6422 = vld [vmem:[%s65 + $0x1e4] sm:$0xf]
  %v6423 = vld [vmem:[%s65 + $0x1e8] sm:$0xf]
  %v6424 = vld [vmem:[%s65 + $0x1ec] sm:$0xf]
  %v6425 = vld [vmem:[%s65 + $0x1f0] sm:$0xf]
  %v6426 = vld [vmem:[%s65 + $0x1f4] sm:$0xf]
  %v6427 = vld [vmem:[%s65 + $0x1f8] sm:$0xf]
  %v6428 = vld [vmem:[%s65 + $0x1fc] sm:$0xf]
  %v6429 = vld [vmem:[%s65 + $0x200] sm:$0xf]
  %v6430 = vld [vmem:[%s65 + $0x204] sm:$0xf]
  %v6431 = vld [vmem:[%s65 + $0x208] sm:$0xf]
  %v6432 = vld [vmem:[%s65 + $0x20c] sm:$0xf]
  %v6433 = vld [vmem:[%s65 + $0x210] sm:$0xf]
  %v6434 = vld [vmem:[%s65 + $0x214] sm:$0xf]
  %v6435 = vld [vmem:[%s65 + $0x218] sm:$0xf]
  %v6436 = vld [vmem:[%s65 + $0x21c] sm:$0xf]
  %v6437 = vld [vmem:[%s65 + $0x220] sm:$0xf]
  %v6438 = vld [vmem:[%s65 + $0x224] sm:$0xf]
  %v6439 = vld [vmem:[%s65 + $0x228] sm:$0xf]
  %v6440 = vld [vmem:[%s65 + $0x22c] sm:$0xf]
  %v6441 = vld [vmem:[%s65 + $0x230] sm:$0xf]
  %v6442 = vld [vmem:[%s65 + $0x234] sm:$0xf]
  %v6443 = vld [vmem:[%s65 + $0x238] sm:$0xf]
  %v6444 = vld [vmem:[%s65 + $0x23c] sm:$0xf]
  %v6445 = vld [vmem:[%s65 + $0x240] sm:$0xf]
  %v6446 = vld [vmem:[%s65 + $0x244] sm:$0xf]
  %v6447 = vld [vmem:[%s65 + $0x248] sm:$0xf]
  %v6448 = vld [vmem:[%s65 + $0x24c] sm:$0xf]
  %v6449 = vld [vmem:[%s65 + $0x250] sm:$0xf]
  %v6450 = vld [vmem:[%s65 + $0x254] sm:$0xf]
  %v6451 = vld [vmem:[%s65 + $0x258] sm:$0xf]
  %v6452 = vld [vmem:[%s65 + $0x25c] sm:$0xf]
  %v6453 = vld [vmem:[%s65 + $0x260] sm:$0xf]
  %v6454 = vld [vmem:[%s65 + $0x264] sm:$0xf]
  %v6455 = vld [vmem:[%s65 + $0x268] sm:$0xf]
  %v6456 = vld [vmem:[%s65 + $0x26c] sm:$0xf]
  %v6457 = vld [vmem:[%s65 + $0x270] sm:$0xf]
  %v6458 = vld [vmem:[%s65 + $0x274] sm:$0xf]
  %v6459 = vld [vmem:[%s65 + $0x278] sm:$0xf]
  %v6460 = vld [vmem:[%s65 + $0x27c] sm:$0xf]
  %v6461 = vld [vmem:[%s65 + $0x280] sm:$0xf]
  %v6462 = vld [vmem:[%s65 + $0x284] sm:$0xf]
  %v6463 = vld [vmem:[%s65 + $0x288] sm:$0xf]
  %v6464 = vld [vmem:[%s65 + $0x28c] sm:$0xf]
  %v6465 = vld [vmem:[%s65 + $0x290] sm:$0xf]
  %v6466 = vld [vmem:[%s65 + $0x294] sm:$0xf]
  %v6467 = vld [vmem:[%s65 + $0x298] sm:$0xf]
  %v6468 = vld [vmem:[%s65 + $0x29c] sm:$0xf]
  %v6469 = vld [vmem:[%s65 + $0x2a0] sm:$0xf]
  %v6470 = vld [vmem:[%s65 + $0x2a4] sm:$0xf]
  %v6471 = vld [vmem:[%s65 + $0x2a8] sm:$0xf]
  %v6472 = vld [vmem:[%s65 + $0x2ac] sm:$0xf]
  %v6473 = vld [vmem:[%s65 + $0x2b0] sm:$0xf]
  %v6474 = vld [vmem:[%s65 + $0x2b4] sm:$0xf]
  %v6475 = vld [vmem:[%s65 + $0x2b8] sm:$0xf]
  %v6476 = vld [vmem:[%s65 + $0x2bc] sm:$0xf]
  %v6477 = vld [vmem:[%s65 + $0x2c0] sm:$0xf]
  %v6478 = vld [vmem:[%s65 + $0x2c4] sm:$0xf]
  %v6479 = vld [vmem:[%s65 + $0x2c8] sm:$0xf]
  %v6480 = vld [vmem:[%s65 + $0x2cc] sm:$0xf]
  %v6481 = vld [vmem:[%s65 + $0x2d0] sm:$0xf]
  %v6482 = vld [vmem:[%s65 + $0x2d4] sm:$0xf]
  %v6483 = vld [vmem:[%s65 + $0x2d8] sm:$0xf]
  %v6484 = vld [vmem:[%s65 + $0x2dc] sm:$0xf]
  %v6485 = vld [vmem:[%s65 + $0x2e0] sm:$0xf]
  %v6486 = vld [vmem:[%s65 + $0x2e4] sm:$0xf]
  %v6487 = vld [vmem:[%s65 + $0x2e8] sm:$0xf]
  %v6488 = vld [vmem:[%s65 + $0x2ec] sm:$0xf]
  %v6489 = vld [vmem:[%s65 + $0x2f0] sm:$0xf]
  %v6490 = vld [vmem:[%s65 + $0x2f4] sm:$0xf]
  %v6491 = vld [vmem:[%s65 + $0x2f8] sm:$0xf]
  %v6492 = vld [vmem:[%s65 + $0x2fc] sm:$0xf]
  %v6493 = vld [vmem:[%s65 + $0x300] sm:$0xf]
  %v6494 = vld [vmem:[%s65 + $0x304] sm:$0xf]
  %v6495 = vld [vmem:[%s65 + $0x308] sm:$0xf]
  %v6496 = vld [vmem:[%s65 + $0x30c] sm:$0xf]
  %v6497 = vld [vmem:[%s65 + $0x310] sm:$0xf]
  %v6498 = vld [vmem:[%s65 + $0x314] sm:$0xf]
  %v6499 = vld [vmem:[%s65 + $0x318] sm:$0xf]
  %v6500 = vld [vmem:[%s65 + $0x31c] sm:$0xf]
  %v6501 = vld [vmem:[%s65 + $0x320] sm:$0xf]
  %v6502 = vld [vmem:[%s65 + $0x324] sm:$0xf]
  %v6503 = vld [vmem:[%s65 + $0x328] sm:$0xf]
  %v6504 = vld [vmem:[%s65 + $0x32c] sm:$0xf]
  %v6505 = vld [vmem:[%s65 + $0x330] sm:$0xf]
  %v6506 = vld [vmem:[%s65 + $0x334] sm:$0xf]
  %v6507 = vld [vmem:[%s65 + $0x338] sm:$0xf]
  %v6508 = vld [vmem:[%s65 + $0x33c] sm:$0xf]
  %v6509 = vld [vmem:[%s65 + $0x340] sm:$0xf]
  %v6510 = vld [vmem:[%s65 + $0x344] sm:$0xf]
  %v6511 = vld [vmem:[%s65 + $0x348] sm:$0xf]
  %v6512 = vld [vmem:[%s65 + $0x34c] sm:$0xf]
  %v6513 = vld [vmem:[%s65 + $0x350] sm:$0xf]
  %v6514 = vld [vmem:[%s65 + $0x354] sm:$0xf]
  %v6515 = vld [vmem:[%s65 + $0x358] sm:$0xf]
  %v6516 = vld [vmem:[%s65 + $0x35c] sm:$0xf]
  %v6517 = vld [vmem:[%s65 + $0x360] sm:$0xf]
  %v6518 = vld [vmem:[%s65 + $0x364] sm:$0xf]
  %v6519 = vld [vmem:[%s65 + $0x368] sm:$0xf]
  %v6520 = vld [vmem:[%s65 + $0x36c] sm:$0xf]
  %v6521 = vld [vmem:[%s65 + $0x370] sm:$0xf]
  %v6522 = vld [vmem:[%s65 + $0x374] sm:$0xf]
  %v6523 = vld [vmem:[%s65 + $0x378] sm:$0xf]
  %v6524 = vld [vmem:[%s65 + $0x37c] sm:$0xf]
  %v6525 = vld [vmem:[%s65 + $0x380] sm:$0xf]
  %v6526 = vld [vmem:[%s65 + $0x384] sm:$0xf]
  %v6527 = vld [vmem:[%s65 + $0x388] sm:$0xf]
  %v6528 = vld [vmem:[%s65 + $0x38c] sm:$0xf]
  %v6529 = vld [vmem:[%s65 + $0x390] sm:$0xf]
  %v6530 = vld [vmem:[%s65 + $0x394] sm:$0xf]
  %v6531 = vld [vmem:[%s65 + $0x398] sm:$0xf]
  %v6532 = vld [vmem:[%s65 + $0x39c] sm:$0xf]
  %v6533 = vld [vmem:[%s65 + $0x3a0] sm:$0xf]
  %v6534 = vld [vmem:[%s65 + $0x3a4] sm:$0xf]
  %v6535 = vld [vmem:[%s65 + $0x3a8] sm:$0xf]
  %v6536 = vld [vmem:[%s65 + $0x3ac] sm:$0xf]
  %v6537 = vld [vmem:[%s65 + $0x3b0] sm:$0xf]
  %v6538 = vld [vmem:[%s65 + $0x3b4] sm:$0xf]
  %v6539 = vld [vmem:[%s65 + $0x3b8] sm:$0xf]
  %v6540 = vld [vmem:[%s65 + $0x3bc] sm:$0xf]
  %v6541 = vld [vmem:[%s65 + $0x3c0] sm:$0xf]
  %v6542 = vld [vmem:[%s65 + $0x3c4] sm:$0xf]
  %v6543 = vld [vmem:[%s65 + $0x3c8] sm:$0xf]
  %v6544 = vld [vmem:[%s65 + $0x3cc] sm:$0xf]
  %v6545 = vld [vmem:[%s65 + $0x3d0] sm:$0xf]
  %v6546 = vld [vmem:[%s65 + $0x3d4] sm:$0xf]
  %v6547 = vld [vmem:[%s65 + $0x3d8] sm:$0xf]
  %v6548 = vld [vmem:[%s65 + $0x3dc] sm:$0xf]
  %v6549 = vld [vmem:[%s65 + $0x3e0] sm:$0xf]
  %v6550 = vld [vmem:[%s65 + $0x3e4] sm:$0xf]
  %v6551 = vld [vmem:[%s65 + $0x3e8] sm:$0xf]
  %v6552 = vld [vmem:[%s65 + $0x3ec] sm:$0xf]
  %v6553 = vld [vmem:[%s65 + $0x3f0] sm:$0xf]
  %v6554 = vld [vmem:[%s65 + $0x3f4] sm:$0xf]
  %v6555 = vld [vmem:[%s65 + $0x3f8] sm:$0xf]
  %v6556 = vld [vmem:[%s65 + $0x3fc] sm:$0xf]
  %v6557 = vld [vmem:[%s67] sm:$0x1]
  %v6559 = vlaneseq
  %v6560 = vshrl.u32 %v6559, 7
  %v6561 = vsub.s32 0, %v6560
  %v6562 = vrot.slane %v6557, %v6561
  %v6820 = vunpack.c.l.b16 %v6301
  %v6821 = vunpack.c.l.b16 %v6302
  %v6822 = vunpack.c.l.b16 %v6303
  %v6823 = vunpack.c.l.b16 %v6304
  %v6824 = vunpack.c.l.b16 %v6305
  %v6825 = vunpack.c.l.b16 %v6306
  %v6826 = vunpack.c.l.b16 %v6307
  %v6827 = vunpack.c.l.b16 %v6308
  %v6828 = vunpack.c.l.b16 %v6309
  %v6829 = vunpack.c.l.b16 %v6310
  %v6830 = vunpack.c.l.b16 %v6311
  %v6831 = vunpack.c.l.b16 %v6312
  %v6832 = vunpack.c.l.b16 %v6313
  %v6833 = vunpack.c.l.b16 %v6314
  %v6834 = vunpack.c.l.b16 %v6315
  %v6835 = vunpack.c.l.b16 %v6316
  %v6836 = vunpack.c.l.b16 %v6317
  %v6837 = vunpack.c.l.b16 %v6318
  %v6838 = vunpack.c.l.b16 %v6319
  %v6839 = vunpack.c.l.b16 %v6320
  %v6840 = vunpack.c.l.b16 %v6321
  %v6841 = vunpack.c.l.b16 %v6322
  %v6842 = vunpack.c.l.b16 %v6323
  %v6843 = vunpack.c.l.b16 %v6324
  %v6844 = vunpack.c.l.b16 %v6325
  %v6845 = vunpack.c.l.b16 %v6326
  %v6846 = vunpack.c.l.b16 %v6327
  %v6847 = vunpack.c.l.b16 %v6328
  %v6848 = vunpack.c.l.b16 %v6329
  %v6849 = vunpack.c.l.b16 %v6330
  %v6850 = vunpack.c.l.b16 %v6331
  %v6851 = vunpack.c.l.b16 %v6332
  %v6852 = vunpack.c.l.b16 %v6333
  %v6853 = vunpack.c.l.b16 %v6334
  %v6854 = vunpack.c.l.b16 %v6335
  %v6855 = vunpack.c.l.b16 %v6336
  %v6856 = vunpack.c.l.b16 %v6337
  %v6857 = vunpack.c.l.b16 %v6338
  %v6858 = vunpack.c.l.b16 %v6339
  %v6859 = vunpack.c.l.b16 %v6340
  %v6860 = vunpack.c.l.b16 %v6341
  %v6861 = vunpack.c.l.b16 %v6342
  %v6862 = vunpack.c.l.b16 %v6343
  %v6863 = vunpack.c.l.b16 %v6344
  %v6864 = vunpack.c.l.b16 %v6345
  %v6865 = vunpack.c.l.b16 %v6346
  %v6866 = vunpack.c.l.b16 %v6347
  %v6867 = vunpack.c.l.b16 %v6348
  %v6868 = vunpack.c.l.b16 %v6349
  %v6869 = vunpack.c.l.b16 %v6350
  %v6870 = vunpack.c.l.b16 %v6351
  %v6871 = vunpack.c.l.b16 %v6352
  %v6872 = vunpack.c.l.b16 %v6353
  %v6873 = vunpack.c.l.b16 %v6354
  %v6874 = vunpack.c.l.b16 %v6355
  %v6875 = vunpack.c.l.b16 %v6356
  %v6876 = vunpack.c.l.b16 %v6357
  %v6877 = vunpack.c.l.b16 %v6358
  %v6878 = vunpack.c.l.b16 %v6359
  %v6879 = vunpack.c.l.b16 %v6360
  %v6880 = vunpack.c.l.b16 %v6361
  %v6881 = vunpack.c.l.b16 %v6362
  %v6882 = vunpack.c.l.b16 %v6363
  %v6883 = vunpack.c.l.b16 %v6364
  %v6884 = vunpack.c.l.b16 %v6365
  %v6885 = vunpack.c.l.b16 %v6366
  %v6886 = vunpack.c.l.b16 %v6367
  %v6887 = vunpack.c.l.b16 %v6368
  %v6888 = vunpack.c.l.b16 %v6369
  %v6889 = vunpack.c.l.b16 %v6370
  %v6890 = vunpack.c.l.b16 %v6371
  %v6891 = vunpack.c.l.b16 %v6372
  %v6892 = vunpack.c.l.b16 %v6373
  %v6893 = vunpack.c.l.b16 %v6374
  %v6894 = vunpack.c.l.b16 %v6375
  %v6895 = vunpack.c.l.b16 %v6376
  %v6896 = vunpack.c.l.b16 %v6377
  %v6897 = vunpack.c.l.b16 %v6378
  %v6898 = vunpack.c.l.b16 %v6379
  %v6899 = vunpack.c.l.b16 %v6380
  %v6900 = vunpack.c.l.b16 %v6381
  %v6901 = vunpack.c.l.b16 %v6382
  %v6902 = vunpack.c.l.b16 %v6383
  %v6903 = vunpack.c.l.b16 %v6384
  %v6904 = vunpack.c.l.b16 %v6385
  %v6905 = vunpack.c.l.b16 %v6386
  %v6906 = vunpack.c.l.b16 %v6387
  %v6907 = vunpack.c.l.b16 %v6388
  %v6908 = vunpack.c.l.b16 %v6389
  %v6909 = vunpack.c.l.b16 %v6390
  %v6910 = vunpack.c.l.b16 %v6391
  %v6911 = vunpack.c.l.b16 %v6392
  %v6912 = vunpack.c.l.b16 %v6393
  %v6913 = vunpack.c.l.b16 %v6394
  %v6914 = vunpack.c.l.b16 %v6395
  %v6915 = vunpack.c.l.b16 %v6396
  %v6916 = vunpack.c.l.b16 %v6397
  %v6917 = vunpack.c.l.b16 %v6398
  %v6918 = vunpack.c.l.b16 %v6399
  %v6919 = vunpack.c.l.b16 %v6400
  %v6920 = vunpack.c.l.b16 %v6401
  %v6921 = vunpack.c.l.b16 %v6402
  %v6922 = vunpack.c.l.b16 %v6403
  %v6923 = vunpack.c.l.b16 %v6404
  %v6924 = vunpack.c.l.b16 %v6405
  %v6925 = vunpack.c.l.b16 %v6406
  %v6926 = vunpack.c.l.b16 %v6407
  %v6927 = vunpack.c.l.b16 %v6408
  %v6928 = vunpack.c.l.b16 %v6409
  %v6929 = vunpack.c.l.b16 %v6410
  %v6930 = vunpack.c.l.b16 %v6411
  %v6931 = vunpack.c.l.b16 %v6412
  %v6932 = vunpack.c.l.b16 %v6413
  %v6933 = vunpack.c.l.b16 %v6414
  %v6934 = vunpack.c.l.b16 %v6415
  %v6935 = vunpack.c.l.b16 %v6416
  %v6936 = vunpack.c.l.b16 %v6417
  %v6937 = vunpack.c.l.b16 %v6418
  %v6938 = vunpack.c.l.b16 %v6419
  %v6939 = vunpack.c.l.b16 %v6420
  %v6940 = vunpack.c.l.b16 %v6421
  %v6941 = vunpack.c.l.b16 %v6422
  %v6942 = vunpack.c.l.b16 %v6423
  %v6943 = vunpack.c.l.b16 %v6424
  %v6944 = vunpack.c.l.b16 %v6425
  %v6945 = vunpack.c.l.b16 %v6426
  %v6946 = vunpack.c.l.b16 %v6427
  %v6947 = vunpack.c.l.b16 %v6428
  %v6948 = vunpack.c.l.b16 %v6429
  %v6949 = vunpack.c.l.b16 %v6430
  %v6950 = vunpack.c.l.b16 %v6431
  %v6951 = vunpack.c.l.b16 %v6432
  %v6952 = vunpack.c.l.b16 %v6433
  %v6953 = vunpack.c.l.b16 %v6434
  %v6954 = vunpack.c.l.b16 %v6435
  %v6955 = vunpack.c.l.b16 %v6436
  %v6956 = vunpack.c.l.b16 %v6437
  %v6957 = vunpack.c.l.b16 %v6438
  %v6958 = vunpack.c.l.b16 %v6439
  %v6959 = vunpack.c.l.b16 %v6440
  %v6960 = vunpack.c.l.b16 %v6441
  %v6961 = vunpack.c.l.b16 %v6442
  %v6962 = vunpack.c.l.b16 %v6443
  %v6963 = vunpack.c.l.b16 %v6444
  %v6964 = vunpack.c.l.b16 %v6445
  %v6965 = vunpack.c.l.b16 %v6446
  %v6966 = vunpack.c.l.b16 %v6447
  %v6967 = vunpack.c.l.b16 %v6448
  %v6968 = vunpack.c.l.b16 %v6449
  %v6969 = vunpack.c.l.b16 %v6450
  %v6970 = vunpack.c.l.b16 %v6451
  %v6971 = vunpack.c.l.b16 %v6452
  %v6972 = vunpack.c.l.b16 %v6453
  %v6973 = vunpack.c.l.b16 %v6454
  %v6974 = vunpack.c.l.b16 %v6455
  %v6975 = vunpack.c.l.b16 %v6456
  %v6976 = vunpack.c.l.b16 %v6457
  %v6977 = vunpack.c.l.b16 %v6458
  %v6978 = vunpack.c.l.b16 %v6459
  %v6979 = vunpack.c.l.b16 %v6460
  %v6980 = vunpack.c.l.b16 %v6461
  %v6981 = vunpack.c.l.b16 %v6462
  %v6982 = vunpack.c.l.b16 %v6463
  %v6983 = vunpack.c.l.b16 %v6464
  %v6984 = vunpack.c.l.b16 %v6465
  %v6985 = vunpack.c.l.b16 %v6466
  %v6986 = vunpack.c.l.b16 %v6467
  %v6987 = vunpack.c.l.b16 %v6468
  %v6988 = vunpack.c.l.b16 %v6469
  %v6989 = vunpack.c.l.b16 %v6470
  %v6990 = vunpack.c.l.b16 %v6471
  %v6991 = vunpack.c.l.b16 %v6472
  %v6992 = vunpack.c.l.b16 %v6473
  %v6993 = vunpack.c.l.b16 %v6474
  %v6994 = vunpack.c.l.b16 %v6475
  %v6995 = vunpack.c.l.b16 %v6476
  %v6996 = vunpack.c.l.b16 %v6477
  %v6997 = vunpack.c.l.b16 %v6478
  %v6998 = vunpack.c.l.b16 %v6479
  %v6999 = vunpack.c.l.b16 %v6480
  %v7000 = vunpack.c.l.b16 %v6481
  %v7001 = vunpack.c.l.b16 %v6482
  %v7002 = vunpack.c.l.b16 %v6483
  %v7003 = vunpack.c.l.b16 %v6484
  %v7004 = vunpack.c.l.b16 %v6485
  %v7005 = vunpack.c.l.b16 %v6486
  %v7006 = vunpack.c.l.b16 %v6487
  %v7007 = vunpack.c.l.b16 %v6488
  %v7008 = vunpack.c.l.b16 %v6489
  %v7009 = vunpack.c.l.b16 %v6490
  %v7010 = vunpack.c.l.b16 %v6491
  %v7011 = vunpack.c.l.b16 %v6492
  %v7012 = vunpack.c.l.b16 %v6493
  %v7013 = vunpack.c.l.b16 %v6494
  %v7014 = vunpack.c.l.b16 %v6495
  %v7015 = vunpack.c.l.b16 %v6496
  %v7016 = vunpack.c.l.b16 %v6497
  %v7017 = vunpack.c.l.b16 %v6498
  %v7018 = vunpack.c.l.b16 %v6499
  %v7019 = vunpack.c.l.b16 %v6500
  %v7020 = vunpack.c.l.b16 %v6501
  %v7021 = vunpack.c.l.b16 %v6502
  %v7022 = vunpack.c.l.b16 %v6503
  %v7023 = vunpack.c.l.b16 %v6504
  %v7024 = vunpack.c.l.b16 %v6505
  %v7025 = vunpack.c.l.b16 %v6506
  %v7026 = vunpack.c.l.b16 %v6507
  %v7027 = vunpack.c.l.b16 %v6508
  %v7028 = vunpack.c.l.b16 %v6509
  %v7029 = vunpack.c.l.b16 %v6510
  %v7030 = vunpack.c.l.b16 %v6511
  %v7031 = vunpack.c.l.b16 %v6512
  %v7032 = vunpack.c.l.b16 %v6513
  %v7033 = vunpack.c.l.b16 %v6514
  %v7034 = vunpack.c.l.b16 %v6515
  %v7035 = vunpack.c.l.b16 %v6516
  %v7036 = vunpack.c.l.b16 %v6517
  %v7037 = vunpack.c.l.b16 %v6518
  %v7038 = vunpack.c.l.b16 %v6519
  %v7039 = vunpack.c.l.b16 %v6520
  %v7040 = vunpack.c.l.b16 %v6521
  %v7041 = vunpack.c.l.b16 %v6522
  %v7042 = vunpack.c.l.b16 %v6523
  %v7043 = vunpack.c.l.b16 %v6524
  %v7044 = vunpack.c.l.b16 %v6525
  %v7045 = vunpack.c.l.b16 %v6526
  %v7046 = vunpack.c.l.b16 %v6527
  %v7047 = vunpack.c.l.b16 %v6528
  %v7048 = vunpack.c.l.b16 %v6529
  %v7049 = vunpack.c.l.b16 %v6530
  %v7050 = vunpack.c.l.b16 %v6531
  %v7051 = vunpack.c.l.b16 %v6532
  %v7052 = vunpack.c.l.b16 %v6533
  %v7053 = vunpack.c.l.b16 %v6534
  %v7054 = vunpack.c.l.b16 %v6535
  %v7055 = vunpack.c.l.b16 %v6536
  %v7056 = vunpack.c.l.b16 %v6537
  %v7057 = vunpack.c.l.b16 %v6538
  %v7058 = vunpack.c.l.b16 %v6539
  %v7059 = vunpack.c.l.b16 %v6540
  %v7060 = vunpack.c.l.b16 %v6541
  %v7061 = vunpack.c.l.b16 %v6542
  %v7062 = vunpack.c.l.b16 %v6543
  %v7063 = vunpack.c.l.b16 %v6544
  %v7064 = vunpack.c.l.b16 %v6545
  %v7065 = vunpack.c.l.b16 %v6546
  %v7066 = vunpack.c.l.b16 %v6547
  %v7067 = vunpack.c.l.b16 %v6548
  %v7068 = vunpack.c.l.b16 %v6549
  %v7069 = vunpack.c.l.b16 %v6550
  %v7070 = vunpack.c.l.b16 %v6551
  %v7071 = vunpack.c.l.b16 %v6552
  %v7072 = vunpack.c.l.b16 %v6553
  %v7073 = vunpack.c.l.b16 %v6554
  %v7074 = vunpack.c.l.b16 %v6555
  %v7075 = vunpack.c.l.b16 %v6556
  %v7076 = vpack.c.b16 %v6821, %v6820
  %v7077 = vpack.c.b16 %v6823, %v6822
  %v7078 = vpack.c.b16 %v6825, %v6824
  %v7079 = vpack.c.b16 %v6827, %v6826
  %v7080 = vpack.c.b16 %v6829, %v6828
  %v7081 = vpack.c.b16 %v6831, %v6830
  %v7082 = vpack.c.b16 %v6833, %v6832
  %v7083 = vpack.c.b16 %v6835, %v6834
  %v7084 = vpack.c.b16 %v6837, %v6836
  %v7085 = vpack.c.b16 %v6839, %v6838
  %v7086 = vpack.c.b16 %v6841, %v6840
  %v7087 = vpack.c.b16 %v6843, %v6842
  %v7088 = vpack.c.b16 %v6845, %v6844
  %v7089 = vpack.c.b16 %v6847, %v6846
  %v7090 = vpack.c.b16 %v6849, %v6848
  %v7091 = vpack.c.b16 %v6851, %v6850
  %v7092 = vpack.c.b16 %v6853, %v6852
  %v7093 = vpack.c.b16 %v6855, %v6854
  %v7094 = vpack.c.b16 %v6857, %v6856
  %v7095 = vpack.c.b16 %v6859, %v6858
  %v7096 = vpack.c.b16 %v6861, %v6860
  %v7097 = vpack.c.b16 %v6863, %v6862
  %v7098 = vpack.c.b16 %v6865, %v6864
  %v7099 = vpack.c.b16 %v6867, %v6866
  %v7100 = vpack.c.b16 %v6869, %v6868
  %v7101 = vpack.c.b16 %v6871, %v6870
  %v7102 = vpack.c.b16 %v6873, %v6872
  %v7103 = vpack.c.b16 %v6875, %v6874
  %v7104 = vpack.c.b16 %v6877, %v6876
  %v7105 = vpack.c.b16 %v6879, %v6878
  %v7106 = vpack.c.b16 %v6881, %v6880
  %v7107 = vpack.c.b16 %v6883, %v6882
  %v7108 = vpack.c.b16 %v6885, %v6884
  %v7109 = vpack.c.b16 %v6887, %v6886
  %v7110 = vpack.c.b16 %v6889, %v6888
  %v7111 = vpack.c.b16 %v6891, %v6890
  %v7112 = vpack.c.b16 %v6893, %v6892
  %v7113 = vpack.c.b16 %v6895, %v6894
  %v7114 = vpack.c.b16 %v6897, %v6896
  %v7115 = vpack.c.b16 %v6899, %v6898
  %v7116 = vpack.c.b16 %v6901, %v6900
  %v7117 = vpack.c.b16 %v6903, %v6902
  %v7118 = vpack.c.b16 %v6905, %v6904
  %v7119 = vpack.c.b16 %v6907, %v6906
  %v7120 = vpack.c.b16 %v6909, %v6908
  %v7121 = vpack.c.b16 %v6911, %v6910
  %v7122 = vpack.c.b16 %v6913, %v6912
  %v7123 = vpack.c.b16 %v6915, %v6914
  %v7124 = vpack.c.b16 %v6917, %v6916
  %v7125 = vpack.c.b16 %v6919, %v6918
  %v7126 = vpack.c.b16 %v6921, %v6920
  %v7127 = vpack.c.b16 %v6923, %v6922
  %v7128 = vpack.c.b16 %v6925, %v6924
  %v7129 = vpack.c.b16 %v6927, %v6926
  %v7130 = vpack.c.b16 %v6929, %v6928
  %v7131 = vpack.c.b16 %v6931, %v6930
  %v7132 = vpack.c.b16 %v6933, %v6932
  %v7133 = vpack.c.b16 %v6935, %v6934
  %v7134 = vpack.c.b16 %v6937, %v6936
  %v7135 = vpack.c.b16 %v6939, %v6938
  %v7136 = vpack.c.b16 %v6941, %v6940
  %v7137 = vpack.c.b16 %v6943, %v6942
  %v7138 = vpack.c.b16 %v6945, %v6944
  %v7139 = vpack.c.b16 %v6947, %v6946
  %v7140 = vpack.c.b16 %v6949, %v6948
  %v7141 = vpack.c.b16 %v6951, %v6950
  %v7142 = vpack.c.b16 %v6953, %v6952
  %v7143 = vpack.c.b16 %v6955, %v6954
  %v7144 = vpack.c.b16 %v6957, %v6956
  %v7145 = vpack.c.b16 %v6959, %v6958
  %v7146 = vpack.c.b16 %v6961, %v6960
  %v7147 = vpack.c.b16 %v6963, %v6962
  %v7148 = vpack.c.b16 %v6965, %v6964
  %v7149 = vpack.c.b16 %v6967, %v6966
  %v7150 = vpack.c.b16 %v6969, %v6968
  %v7151 = vpack.c.b16 %v6971, %v6970
  %v7152 = vpack.c.b16 %v6973, %v6972
  %v7153 = vpack.c.b16 %v6975, %v6974
  %v7154 = vpack.c.b16 %v6977, %v6976
  %v7155 = vpack.c.b16 %v6979, %v6978
  %v7156 = vpack.c.b16 %v6981, %v6980
  %v7157 = vpack.c.b16 %v6983, %v6982
  %v7158 = vpack.c.b16 %v6985, %v6984
  %v7159 = vpack.c.b16 %v6987, %v6986
  %v7160 = vpack.c.b16 %v6989, %v6988
  %v7161 = vpack.c.b16 %v6991, %v6990
  %v7162 = vpack.c.b16 %v6993, %v6992
  %v7163 = vpack.c.b16 %v6995, %v6994
  %v7164 = vpack.c.b16 %v6997, %v6996
  %v7165 = vpack.c.b16 %v6999, %v6998
  %v7166 = vpack.c.b16 %v7001, %v7000
  %v7167 = vpack.c.b16 %v7003, %v7002
  %v7168 = vpack.c.b16 %v7005, %v7004
  %v7169 = vpack.c.b16 %v7007, %v7006
  %v7170 = vpack.c.b16 %v7009, %v7008
  %v7171 = vpack.c.b16 %v7011, %v7010
  %v7172 = vpack.c.b16 %v7013, %v7012
  %v7173 = vpack.c.b16 %v7015, %v7014
  %v7174 = vpack.c.b16 %v7017, %v7016
  %v7175 = vpack.c.b16 %v7019, %v7018
  %v7176 = vpack.c.b16 %v7021, %v7020
  %v7177 = vpack.c.b16 %v7023, %v7022
  %v7178 = vpack.c.b16 %v7025, %v7024
  %v7179 = vpack.c.b16 %v7027, %v7026
  %v7180 = vpack.c.b16 %v7029, %v7028
  %v7181 = vpack.c.b16 %v7031, %v7030
  %v7182 = vpack.c.b16 %v7033, %v7032
  %v7183 = vpack.c.b16 %v7035, %v7034
  %v7184 = vpack.c.b16 %v7037, %v7036
  %v7185 = vpack.c.b16 %v7039, %v7038
  %v7186 = vpack.c.b16 %v7041, %v7040
  %v7187 = vpack.c.b16 %v7043, %v7042
  %v7188 = vpack.c.b16 %v7045, %v7044
  %v7189 = vpack.c.b16 %v7047, %v7046
  %v7190 = vpack.c.b16 %v7049, %v7048
  %v7191 = vpack.c.b16 %v7051, %v7050
  %v7192 = vpack.c.b16 %v7053, %v7052
  %v7193 = vpack.c.b16 %v7055, %v7054
  %v7194 = vpack.c.b16 %v7057, %v7056
  %v7195 = vpack.c.b16 %v7059, %v7058
  %v7196 = vpack.c.b16 %v7061, %v7060
  %v7197 = vpack.c.b16 %v7063, %v7062
  %v7198 = vpack.c.b16 %v7065, %v7064
  %v7199 = vpack.c.b16 %v7067, %v7066
  %v7200 = vpack.c.b16 %v7069, %v7068
  %v7201 = vpack.c.b16 %v7071, %v7070
  %v7202 = vpack.c.b16 %v7073, %v7072
  %v7203 = vpack.c.b16 %v7075, %v7074
  %7332 = vmatprep.subr.bf16.mxu0 0
  %7333 = vmatpush1.bf16.msra.mxu0 %v7083
  %7334 = vmatprep.subr.bf16.mxu0 0
  %7335 = vmatpush1.bf16.msra.mxu0 %v7082
  %7336 = vmatprep.subr.bf16.mxu0 0
  %7337 = vmatpush1.bf16.msra.mxu0 %v7081
  %7338 = vmatprep.subr.bf16.mxu0 0
  %7339 = vmatpush1.bf16.msra.mxu0 %v7080
  %7340 = vmatprep.subr.bf16.mxu0 0
  %7341 = vmatpush1.bf16.msra.mxu0 %v7079
  %7342 = vmatprep.subr.bf16.mxu0 0
  %7343 = vmatpush1.bf16.msra.mxu0 %v7078
  %7344 = vmatprep.subr.bf16.mxu0 0
  %7345 = vmatpush1.bf16.msra.mxu0 %v7077
  %7346 = vmatprep.subr.bf16.mxu0 0
  %7347 = vmatpush1.bf16.msra.mxu0 %v7076
  %7348 = vmatprep.subr.bf16.mxu0 0
  %7349 = vmatpush2.bf16.msra.mxu0 %v7091
  %7350 = vmatprep.subr.bf16.mxu0 0
  %7351 = vmatpush2.bf16.msra.mxu0 %v7090
  %7352 = vmatprep.subr.bf16.mxu0 0
  %7353 = vmatpush2.bf16.msra.mxu0 %v7089
  %7354 = vmatprep.subr.bf16.mxu0 0
  %7355 = vmatpush2.bf16.msra.mxu0 %v7088
  %7356 = vmatprep.subr.bf16.mxu0 0
  %7357 = vmatpush2.bf16.msra.mxu0 %v7087
  %7358 = vmatprep.subr.bf16.mxu0 0
  %7359 = vmatpush2.bf16.msra.mxu0 %v7086
  %7360 = vmatprep.subr.bf16.mxu0 0
  %7361 = vmatpush2.bf16.msra.mxu0 %v7085
  %7362 = vmatprep.subr.bf16.mxu0 0
  %7363 = vmatpush2.bf16.msra.mxu0 %v7084
  %7364 = vmatprep.mubr.bf16.mxu0 %v6286
  %7365 = vmatmul.mubr.bf16.gmra.mxu0 %v6285
  %v7366 = vpop.f32.mrf.mxu0
  %v7367 = vadd.f32 %v6562, %v7366
  %v7368 = vpop.f32.mrf.mxu0
  %v7369 = vpop.f32.mrf.mxu0
  %v7370 = vadd.f32 %v6562, %v7369
  %v7371 = vpop.f32.mrf.mxu0
  %7372 = vdwg.mxu0
  %7373 = vmatprep.subr.bf16.mxu0 0
  %7374 = vmatpush1.bf16.msra.mxu0 %v7099
  %7375 = vmatprep.subr.bf16.mxu0 0
  %7376 = vmatpush1.bf16.msra.mxu0 %v7098
  %7377 = vmatprep.subr.bf16.mxu0 0
  %7378 = vmatpush1.bf16.msra.mxu0 %v7097
  %7379 = vmatprep.subr.bf16.mxu0 0
  %7380 = vmatpush1.bf16.msra.mxu0 %v7096
  %7381 = vmatprep.subr.bf16.mxu0 0
  %7382 = vmatpush1.bf16.msra.mxu0 %v7095
  %7383 = vmatprep.subr.bf16.mxu0 0
  %7384 = vmatpush1.bf16.msra.mxu0 %v7094
  %7385 = vmatprep.subr.bf16.mxu0 0
  %7386 = vmatpush1.bf16.msra.mxu0 %v7093
  %7387 = vmatprep.subr.bf16.mxu0 0
  %7388 = vmatpush1.bf16.msra.mxu0 %v7092
  %7389 = vmatprep.subr.bf16.mxu0 0
  %7390 = vmatpush2.bf16.msra.mxu0 %v7107
  %7391 = vmatprep.subr.bf16.mxu0 0
  %7392 = vmatpush2.bf16.msra.mxu0 %v7106
  %7393 = vmatprep.subr.bf16.mxu0 0
  %7394 = vmatpush2.bf16.msra.mxu0 %v7105
  %7395 = vmatprep.subr.bf16.mxu0 0
  %7396 = vmatpush2.bf16.msra.mxu0 %v7104
  %7397 = vmatprep.subr.bf16.mxu0 0
  %7398 = vmatpush2.bf16.msra.mxu0 %v7103
  %7399 = vmatprep.subr.bf16.mxu0 0
  %7400 = vmatpush2.bf16.msra.mxu0 %v7102
  %7401 = vmatprep.subr.bf16.mxu0 0
  %7402 = vmatpush2.bf16.msra.mxu0 %v7101
  %7403 = vmatprep.subr.bf16.mxu0 0
  %7404 = vmatpush2.bf16.msra.mxu0 %v7100
  %7405 = vmatprep.mubr.bf16.mxu0 %v6288
  %7406 = vmatmul.mubr.bf16.gmra.mxu0 %v6287
  %v7407 = vpop.f32.mrf.mxu0
  %v7408 = vadd.f32 %v7367, %v7407
  %v7409 = vpop.f32.mrf.mxu0
  %v7410 = vpop.f32.mrf.mxu0
  %v7411 = vadd.f32 %v7370, %v7410
  %v7412 = vpop.f32.mrf.mxu0
  %7413 = vdwg.mxu0
  %7414 = vmatprep.subr.bf16.mxu0 0
  %7415 = vmatpush1.bf16.msra.mxu0 %v7115
  %7416 = vmatprep.subr.bf16.mxu0 0
  %7417 = vmatpush1.bf16.msra.mxu0 %v7114
  %7418 = vmatprep.subr.bf16.mxu0 0
  %7419 = vmatpush1.bf16.msra.mxu0 %v7113
  %7420 = vmatprep.subr.bf16.mxu0 0
  %7421 = vmatpush1.bf16.msra.mxu0 %v7112
  %7422 = vmatprep.subr.bf16.mxu0 0
  %7423 = vmatpush1.bf16.msra.mxu0 %v7111
  %7424 = vmatprep.subr.bf16.mxu0 0
  %7425 = vmatpush1.bf16.msra.mxu0 %v7110
  %7426 = vmatprep.subr.bf16.mxu0 0
  %7427 = vmatpush1.bf16.msra.mxu0 %v7109
  %7428 = vmatprep.subr.bf16.mxu0 0
  %7429 = vmatpush1.bf16.msra.mxu0 %v7108
  %7430 = vmatprep.subr.bf16.mxu0 0
  %7431 = vmatpush2.bf16.msra.mxu0 %v7123
  %7432 = vmatprep.subr.bf16.mxu0 0
  %7433 = vmatpush2.bf16.msra.mxu0 %v7122
  %7434 = vmatprep.subr.bf16.mxu0 0
  %7435 = vmatpush2.bf16.msra.mxu0 %v7121
  %7436 = vmatprep.subr.bf16.mxu0 0
  %7437 = vmatpush2.bf16.msra.mxu0 %v7120
  %7438 = vmatprep.subr.bf16.mxu0 0
  %7439 = vmatpush2.bf16.msra.mxu0 %v7119
  %7440 = vmatprep.subr.bf16.mxu0 0
  %7441 = vmatpush2.bf16.msra.mxu0 %v7118
  %7442 = vmatprep.subr.bf16.mxu0 0
  %7443 = vmatpush2.bf16.msra.mxu0 %v7117
  %7444 = vmatprep.subr.bf16.mxu0 0
  %7445 = vmatpush2.bf16.msra.mxu0 %v7116
  %7446 = vmatprep.mubr.bf16.mxu0 %v6290
  %7447 = vmatmul.mubr.bf16.gmra.mxu0 %v6289
  %v7448 = vpop.f32.mrf.mxu0
  %v7449 = vadd.f32 %v7408, %v7448
  %v7450 = vpop.f32.mrf.mxu0
  %v7451 = vpop.f32.mrf.mxu0
  %v7452 = vadd.f32 %v7411, %v7451
  %v7453 = vpop.f32.mrf.mxu0
  %7454 = vdwg.mxu0
  %7455 = vmatprep.subr.bf16.mxu0 0
  %7456 = vmatpush1.bf16.msra.mxu0 %v7131
  %7457 = vmatprep.subr.bf16.mxu0 0
  %7458 = vmatpush1.bf16.msra.mxu0 %v7130
  %7459 = vmatprep.subr.bf16.mxu0 0
  %7460 = vmatpush1.bf16.msra.mxu0 %v7129
  %7461 = vmatprep.subr.bf16.mxu0 0
  %7462 = vmatpush1.bf16.msra.mxu0 %v7128
  %7463 = vmatprep.subr.bf16.mxu0 0
  %7464 = vmatpush1.bf16.msra.mxu0 %v7127
  %7465 = vmatprep.subr.bf16.mxu0 0
  %7466 = vmatpush1.bf16.msra.mxu0 %v7126
  %7467 = vmatprep.subr.bf16.mxu0 0
  %7468 = vmatpush1.bf16.msra.mxu0 %v7125
  %7469 = vmatprep.subr.bf16.mxu0 0
  %7470 = vmatpush1.bf16.msra.mxu0 %v7124
  %7471 = vmatprep.subr.bf16.mxu0 0
  %7472 = vmatpush2.bf16.msra.mxu0 %v7139
  %7473 = vmatprep.subr.bf16.mxu0 0
  %7474 = vmatpush2.bf16.msra.mxu0 %v7138
  %7475 = vmatprep.subr.bf16.mxu0 0
  %7476 = vmatpush2.bf16.msra.mxu0 %v7137
  %7477 = vmatprep.subr.bf16.mxu0 0
  %7478 = vmatpush2.bf16.msra.mxu0 %v7136
  %7479 = vmatprep.subr.bf16.mxu0 0
  %7480 = vmatpush2.bf16.msra.mxu0 %v7135
  %7481 = vmatprep.subr.bf16.mxu0 0
  %7482 = vmatpush2.bf16.msra.mxu0 %v7134
  %7483 = vmatprep.subr.bf16.mxu0 0
  %7484 = vmatpush2.bf16.msra.mxu0 %v7133
  %7485 = vmatprep.subr.bf16.mxu0 0
  %7486 = vmatpush2.bf16.msra.mxu0 %v7132
  %7487 = vmatprep.mubr.bf16.mxu0 %v6292
  %7488 = vmatmul.mubr.bf16.gmra.mxu0 %v6291
  %v7489 = vpop.f32.mrf.mxu0
  %v7490 = vadd.f32 %v7449, %v7489
  %v7491 = vpop.f32.mrf.mxu0
  %v7492 = vpop.f32.mrf.mxu0
  %v7493 = vadd.f32 %v7452, %v7492
  %v7494 = vpop.f32.mrf.mxu0
  %7495 = vdwg.mxu0
  %7496 = vmatprep.subr.bf16.mxu0 0
  %7497 = vmatpush1.bf16.msra.mxu0 %v7147
  %7498 = vmatprep.subr.bf16.mxu0 0
  %7499 = vmatpush1.bf16.msra.mxu0 %v7146
  %7500 = vmatprep.subr.bf16.mxu0 0
  %7501 = vmatpush1.bf16.msra.mxu0 %v7145
  %7502 = vmatprep.subr.bf16.mxu0 0
  %7503 = vmatpush1.bf16.msra.mxu0 %v7144
  %7504 = vmatprep.subr.bf16.mxu0 0
  %7505 = vmatpush1.bf16.msra.mxu0 %v7143
  %7506 = vmatprep.subr.bf16.mxu0 0
  %7507 = vmatpush1.bf16.msra.mxu0 %v7142
  %7508 = vmatprep.subr.bf16.mxu0 0
  %7509 = vmatpush1.bf16.msra.mxu0 %v7141
  %7510 = vmatprep.subr.bf16.mxu0 0
  %7511 = vmatpush1.bf16.msra.mxu0 %v7140
  %7512 = vmatprep.subr.bf16.mxu0 0
  %7513 = vmatpush2.bf16.msra.mxu0 %v7155
  %7514 = vmatprep.subr.bf16.mxu0 0
  %7515 = vmatpush2.bf16.msra.mxu0 %v7154
  %7516 = vmatprep.subr.bf16.mxu0 0
  %7517 = vmatpush2.bf16.msra.mxu0 %v7153
  %7518 = vmatprep.subr.bf16.mxu0 0
  %7519 = vmatpush2.bf16.msra.mxu0 %v7152
  %7520 = vmatprep.subr.bf16.mxu0 0
  %7521 = vmatpush2.bf16.msra.mxu0 %v7151
  %7522 = vmatprep.subr.bf16.mxu0 0
  %7523 = vmatpush2.bf16.msra.mxu0 %v7150
  %7524 = vmatprep.subr.bf16.mxu0 0
  %7525 = vmatpush2.bf16.msra.mxu0 %v7149
  %7526 = vmatprep.subr.bf16.mxu0 0
  %7527 = vmatpush2.bf16.msra.mxu0 %v7148
  %7528 = vmatprep.mubr.bf16.mxu0 %v6294
  %7529 = vmatmul.mubr.bf16.gmra.mxu0 %v6293
  %v7530 = vpop.f32.mrf.mxu0
  %v7531 = vadd.f32 %v7490, %v7530
  %v7532 = vpop.f32.mrf.mxu0
  %v7533 = vpop.f32.mrf.mxu0
  %v7534 = vadd.f32 %v7493, %v7533
  %v7535 = vpop.f32.mrf.mxu0
  %7536 = vdwg.mxu0
  %7537 = vmatprep.subr.bf16.mxu0 0
  %7538 = vmatpush1.bf16.msra.mxu0 %v7163
  %7539 = vmatprep.subr.bf16.mxu0 0
  %7540 = vmatpush1.bf16.msra.mxu0 %v7162
  %7541 = vmatprep.subr.bf16.mxu0 0
  %7542 = vmatpush1.bf16.msra.mxu0 %v7161
  %7543 = vmatprep.subr.bf16.mxu0 0
  %7544 = vmatpush1.bf16.msra.mxu0 %v7160
  %7545 = vmatprep.subr.bf16.mxu0 0
  %7546 = vmatpush1.bf16.msra.mxu0 %v7159
  %7547 = vmatprep.subr.bf16.mxu0 0
  %7548 = vmatpush1.bf16.msra.mxu0 %v7158
  %7549 = vmatprep.subr.bf16.mxu0 0
  %7550 = vmatpush1.bf16.msra.mxu0 %v7157
  %7551 = vmatprep.subr.bf16.mxu0 0
  %7552 = vmatpush1.bf16.msra.mxu0 %v7156
  %7553 = vmatprep.subr.bf16.mxu0 0
  %7554 = vmatpush2.bf16.msra.mxu0 %v7171
  %7555 = vmatprep.subr.bf16.mxu0 0
  %7556 = vmatpush2.bf16.msra.mxu0 %v7170
  %7557 = vmatprep.subr.bf16.mxu0 0
  %7558 = vmatpush2.bf16.msra.mxu0 %v7169
  %7559 = vmatprep.subr.bf16.mxu0 0
  %7560 = vmatpush2.bf16.msra.mxu0 %v7168
  %7561 = vmatprep.subr.bf16.mxu0 0
  %7562 = vmatpush2.bf16.msra.mxu0 %v7167
  %7563 = vmatprep.subr.bf16.mxu0 0
  %7564 = vmatpush2.bf16.msra.mxu0 %v7166
  %7565 = vmatprep.subr.bf16.mxu0 0
  %7566 = vmatpush2.bf16.msra.mxu0 %v7165
  %7567 = vmatprep.subr.bf16.mxu0 0
  %7568 = vmatpush2.bf16.msra.mxu0 %v7164
  %7569 = vmatprep.mubr.bf16.mxu0 %v6296
  %7570 = vmatmul.mubr.bf16.gmra.mxu0 %v6295
  %v7571 = vpop.f32.mrf.mxu0
  %v7572 = vadd.f32 %v7531, %v7571
  %v7573 = vpop.f32.mrf.mxu0
  %v7574 = vpop.f32.mrf.mxu0
  %v7575 = vadd.f32 %v7534, %v7574
  %v7576 = vpop.f32.mrf.mxu0
  %7577 = vdwg.mxu0
  %7578 = vmatprep.subr.bf16.mxu0 0
  %7579 = vmatpush1.bf16.msra.mxu0 %v7179
  %7580 = vmatprep.subr.bf16.mxu0 0
  %7581 = vmatpush1.bf16.msra.mxu0 %v7178
  %7582 = vmatprep.subr.bf16.mxu0 0
  %7583 = vmatpush1.bf16.msra.mxu0 %v7177
  %7584 = vmatprep.subr.bf16.mxu0 0
  %7585 = vmatpush1.bf16.msra.mxu0 %v7176
  %7586 = vmatprep.subr.bf16.mxu0 0
  %7587 = vmatpush1.bf16.msra.mxu0 %v7175
  %7588 = vmatprep.subr.bf16.mxu0 0
  %7589 = vmatpush1.bf16.msra.mxu0 %v7174
  %7590 = vmatprep.subr.bf16.mxu0 0
  %7591 = vmatpush1.bf16.msra.mxu0 %v7173
  %7592 = vmatprep.subr.bf16.mxu0 0
  %7593 = vmatpush1.bf16.msra.mxu0 %v7172
  %7594 = vmatprep.subr.bf16.mxu0 0
  %7595 = vmatpush2.bf16.msra.mxu0 %v7187
  %7596 = vmatprep.subr.bf16.mxu0 0
  %7597 = vmatpush2.bf16.msra.mxu0 %v7186
  %7598 = vmatprep.subr.bf16.mxu0 0
  %7599 = vmatpush2.bf16.msra.mxu0 %v7185
  %7600 = vmatprep.subr.bf16.mxu0 0
  %7601 = vmatpush2.bf16.msra.mxu0 %v7184
  %7602 = vmatprep.subr.bf16.mxu0 0
  %7603 = vmatpush2.bf16.msra.mxu0 %v7183
  %7604 = vmatprep.subr.bf16.mxu0 0
  %7605 = vmatpush2.bf16.msra.mxu0 %v7182
  %7606 = vmatprep.subr.bf16.mxu0 0
  %7607 = vmatpush2.bf16.msra.mxu0 %v7181
  %7608 = vmatprep.subr.bf16.mxu0 0
  %7609 = vmatpush2.bf16.msra.mxu0 %v7180
  %7610 = vmatprep.mubr.bf16.mxu0 %v6298
  %7611 = vmatmul.mubr.bf16.gmra.mxu0 %v6297
  %v7612 = vpop.f32.mrf.mxu0
  %v7613 = vadd.f32 %v7572, %v7612
  %v7614 = vpop.f32.mrf.mxu0
  %v7615 = vpop.f32.mrf.mxu0
  %v7616 = vadd.f32 %v7575, %v7615
  %v7617 = vpop.f32.mrf.mxu0
  %7618 = vdwg.mxu0
  %7619 = vmatprep.subr.bf16.mxu0 0
  %7620 = vmatpush1.bf16.msra.mxu0 %v7195
  %7621 = vmatprep.subr.bf16.mxu0 0
  %7622 = vmatpush1.bf16.msra.mxu0 %v7194
  %7623 = vmatprep.subr.bf16.mxu0 0
  %7624 = vmatpush1.bf16.msra.mxu0 %v7193
  %7625 = vmatprep.subr.bf16.mxu0 0
  %7626 = vmatpush1.bf16.msra.mxu0 %v7192
  %7627 = vmatprep.subr.bf16.mxu0 0
  %7628 = vmatpush1.bf16.msra.mxu0 %v7191
  %7629 = vmatprep.subr.bf16.mxu0 0
  %7630 = vmatpush1.bf16.msra.mxu0 %v7190
  %7631 = vmatprep.subr.bf16.mxu0 0
  %7632 = vmatpush1.bf16.msra.mxu0 %v7189
  %7633 = vmatprep.subr.bf16.mxu0 0
  %7634 = vmatpush1.bf16.msra.mxu0 %v7188
  %7635 = vmatprep.subr.bf16.mxu0 0
  %7636 = vmatpush2.bf16.msra.mxu0 %v7203
  %7637 = vmatprep.subr.bf16.mxu0 0
  %7638 = vmatpush2.bf16.msra.mxu0 %v7202
  %7639 = vmatprep.subr.bf16.mxu0 0
  %7640 = vmatpush2.bf16.msra.mxu0 %v7201
  %7641 = vmatprep.subr.bf16.mxu0 0
  %7642 = vmatpush2.bf16.msra.mxu0 %v7200
  %7643 = vmatprep.subr.bf16.mxu0 0
  %7644 = vmatpush2.bf16.msra.mxu0 %v7199
  %7645 = vmatprep.subr.bf16.mxu0 0
  %7646 = vmatpush2.bf16.msra.mxu0 %v7198
  %7647 = vmatprep.subr.bf16.mxu0 0
  %7648 = vmatpush2.bf16.msra.mxu0 %v7197
  %7649 = vmatprep.subr.bf16.mxu0 0
  %7650 = vmatpush2.bf16.msra.mxu0 %v7196
  %7651 = vmatprep.mubr.bf16.mxu0 %v6300
  %7652 = vmatmul.mubr.bf16.gmra.mxu0 %v6299
  %v7653 = vpop.f32.mrf.mxu0
  %v7654 = vadd.f32 %v7613, %v7653
  %v7655 = vpop.f32.mrf.mxu0
  %v7656 = vpop.f32.mrf.mxu0
  %v7657 = vadd.f32 %v7616, %v7656
  %v7658 = vpop.f32.mrf.mxu0
  %7659 = vdwg.mxu0
  %v7660 = vadd.f32 %v5723, %v7654
  %v7661 = vadd.f32 %v5724, %v7657
  %v7662 = vld [vmem:[%s69] sm:$0x1]
  %v7663 = vld [vmem:[%s71] sm:$0x1]
  %v7664 = vsel %vm394, %v7660, 0.0
  %7665 = vadd.xlane.f32.xlu0 %v7664
  %v7666 = vpop.xlane.xlu0 %7665
  %v7667 = vsel %vm394, %v7661, 0.0
  %7668 = vadd.xlane.f32.xlu0 %v7667
  %v7669 = vpop.xlane.xlu0 %7668
  %v7670 = vmul.f32 %v7666, %v2031
  %v7671 = vmul.f32 %v7669, %v2031
  %v7672 = vsub.f32 %v7660, %v7670
  %v7673 = vsub.f32 %v7661, %v7671
  %v7674 = vmul.f32 %v7672, %v7672
  %v7675 = vmul.f32 %v7673, %v7673
  %v7676 = vsel %vm394, %v7674, 0.0
  %7677 = vadd.xlane.f32.xlu0 %v7676
  %v7678 = vpop.xlane.xlu0 %7677
  %v7679 = vsel %vm394, %v7675, 0.0
  %7680 = vadd.xlane.f32.xlu0 %v7679
  %v7681 = vpop.xlane.xlu0 %7680
  %v7682 = vmul.f32 %v7678, %v2031
  %v7683 = vmul.f32 %v7681, %v2031
  %v7684 = vadd.f32 %v7682, 1e-05
  %v7685 = vadd.f32 %v7683, 1e-05
  %v7686 = vrsqrt.pop %v7684
  %v7687 = vrsqrt.pop %v7685
  %v7688 = vmul.f32 %v7672, %v7686
  %v7689 = vmul.f32 %v7673, %v7687
  %v7691 = vlaneseq
  %v7692 = vshrl.u32 %v7691, 7
  %v7693 = vsub.s32 0, %v7692
  %v7694 = vrot.slane %v7662, %v7693
  %v7696 = vmul.f32 %v7688, %v7694
  %v7697 = vmul.f32 %v7689, %v7694
  %v7699 = vlaneseq
  %v7700 = vshrl.u32 %v7699, 7
  %v7701 = vsub.s32 0, %v7700
  %v7702 = vrot.slane %v7663, %v7701
  %v7704 = vadd.f32 %v7696, %v7702
  %v7705 = vadd.f32 %v7697, %v7702
  %v7706 = vlaneseq
  %v7707 = vshrl.u32 %v7706, 7
  %v7708 = vmul.u32 %v7707, 8
  %vm7709 = vcmp.ge.s32.totalorder %v178, %v7708
  %v7710 = vadd.s32 %v7707, 1
  %v7711 = vmul.u32 %v7710, 8
  %vm7712 = vcmp.lt.s32.totalorder %v178, %v7711
  %vm7713 = vmand %vm7709, %vm7712
  %v7714 = vsel %vm7713, 1, 0
  %v7715 = vcvt.s32.f32 %v7714
  %v7716 = vmul.f32 %v7715, 0.125
  %v7718 = vsel %vm394, %v7716, 0
  %7720 = vmatprep.subr.mxu0 0.0
  %7721 = vmatpush1.msra.mxu0 0.0
  %7722 = vmatprep.subr.mxu0 0.0
  %7723 = vmatpush1.msra.mxu0 0.0
  %7724 = vmatprep.subr.mxu0 0.0
  %7725 = vmatpush1.msra.mxu0 0.0
  %7726 = vmatprep.subr.mxu0 0.0
  %7727 = vmatpush1.msra.mxu0 0.0
  %7728 = vmatprep.subr.mxu0 0.0
  %7729 = vmatpush1.msra.mxu0 0.0
  %7730 = vmatprep.subr.mxu0 0.0
  %7731 = vmatpush1.msra.mxu0 0.0
  %7732 = vmatprep.subr.mxu0 0.0
  %7733 = vmatpush1.msra.mxu0 0.0
  %7734 = vmatprep.subr.mxu0 0.0
  %7735 = vmatpush1.msra.mxu0 0.0
  %7736 = vmatprep.subr.mxu0 0.0
  %7737 = vmatpush1.msra.mxu0 0.0
  %7738 = vmatprep.subr.mxu0 0.0
  %7739 = vmatpush1.msra.mxu0 0.0
  %7740 = vmatprep.subr.mxu0 0.0
  %7741 = vmatpush1.msra.mxu0 0.0
  %7742 = vmatprep.subr.mxu0 0.0
  %7743 = vmatpush1.msra.mxu0 0.0
  %7744 = vmatprep.subr.mxu0 0.0
  %7745 = vmatpush1.msra.mxu0 0.0
  %7746 = vmatprep.subr.mxu0 0.0
  %7747 = vmatpush1.msra.mxu0 0.0
  %7748 = vmatprep.subr.mxu0 0.0
  %7749 = vmatpush1.msra.mxu0 %v7705
  %7750 = vmatprep.subr.mxu0 0.0
  %7751 = vmatpush1.msra.mxu0 %v7704
  %7752 = vmatprep.subr.mxu0 0.0
  %7753 = vmatpush2.msra.mxu0 0.0
  %7754 = vmatprep.subr.mxu0 0.0
  %7755 = vmatpush2.msra.mxu0 0.0
  %7756 = vmatprep.subr.mxu0 0.0
  %7757 = vmatpush2.msra.mxu0 0.0
  %7758 = vmatprep.subr.mxu0 0.0
  %7759 = vmatpush2.msra.mxu0 0.0
  %7760 = vmatprep.subr.mxu0 0.0
  %7761 = vmatpush2.msra.mxu0 0.0
  %7762 = vmatprep.subr.mxu0 0.0
  %7763 = vmatpush2.msra.mxu0 0.0
  %7764 = vmatprep.subr.mxu0 0.0
  %7765 = vmatpush2.msra.mxu0 0.0
  %7766 = vmatprep.subr.mxu0 0.0
  %7767 = vmatpush2.msra.mxu0 0.0
  %7768 = vmatprep.subr.mxu0 0.0
  %7769 = vmatpush2.msra.mxu0 0.0
  %7770 = vmatprep.subr.mxu0 0.0
  %7771 = vmatpush2.msra.mxu0 0.0
  %7772 = vmatprep.subr.mxu0 0.0
  %7773 = vmatpush2.msra.mxu0 0.0
  %7774 = vmatprep.subr.mxu0 0.0
  %7775 = vmatpush2.msra.mxu0 0.0
  %7776 = vmatprep.subr.mxu0 0.0
  %7777 = vmatpush2.msra.mxu0 0.0
  %7778 = vmatprep.subr.mxu0 0.0
  %7779 = vmatpush2.msra.mxu0 0.0
  %7780 = vmatprep.subr.mxu0 0.0
  %7781 = vmatpush2.msra.mxu0 0.0
  %7782 = vmatprep.subr.mxu0 0.0
  %7783 = vmatpush2.msra.mxu0 0.0
  %7784 = vmatprep.mubr.f32.mxu0 0.0
  %7785 = vmatmul.mubr.f32.gmra.mxu0 %v7718
  %v7786 = vpop.f32.mrf.mxu0
  %v7787 = vadd.f32 0.0, %v7786
  %v7788 = vpop.f32.mrf.mxu0
  %7789 = vdwg.mxu0
  %v7790 = vmul.f32 %v7787, %v362
  %v7791 = vld [vmem:[%s73] sm:$0xff]
  %v7792 = vld [vmem:[%s73 + $0x8] sm:$0xff]
  %v7793 = vld [vmem:[%s75] sm:$0x1]
  %v7795 = vlaneseq
  %v7796 = vshrl.u32 %v7795, 7
  %v7797 = vsub.s32 0, %v7796
  %v7798 = vrot.slane %v7793, %v7797
  %v7801 = vsel %vm394, %v7790, 0
  %7803 = vmatprep.subr.mxu0 0.0
  %7804 = vmatpush1.msra.mxu0 0.0
  %7805 = vmatprep.subr.mxu0 0.0
  %7806 = vmatpush1.msra.mxu0 0.0
  %7807 = vmatprep.subr.mxu0 0.0
  %7808 = vmatpush1.msra.mxu0 0.0
  %7809 = vmatprep.subr.mxu0 0.0
  %7810 = vmatpush1.msra.mxu0 0.0
  %7811 = vmatprep.subr.mxu0 0.0
  %7812 = vmatpush1.msra.mxu0 0.0
  %7813 = vmatprep.subr.mxu0 0.0
  %7814 = vmatpush1.msra.mxu0 0.0
  %7815 = vmatprep.subr.mxu0 0.0
  %7816 = vmatpush1.msra.mxu0 0.0
  %7817 = vmatprep.subr.mxu0 0.0
  %7818 = vmatpush1.msra.mxu0 0.0
  %7819 = vmatprep.subr.mxu0 0.0
  %7820 = vmatpush1.msra.mxu0 0.0
  %7821 = vmatprep.subr.mxu0 0.0
  %7822 = vmatpush1.msra.mxu0 0.0
  %7823 = vmatprep.subr.mxu0 0.0
  %7824 = vmatpush1.msra.mxu0 0.0
  %7825 = vmatprep.subr.mxu0 0.0
  %7826 = vmatpush1.msra.mxu0 0.0
  %7827 = vmatprep.subr.mxu0 0.0
  %7828 = vmatpush1.msra.mxu0 0.0
  %7829 = vmatprep.subr.mxu0 0.0
  %7830 = vmatpush1.msra.mxu0 0.0
  %7831 = vmatprep.subr.mxu0 0.0
  %7832 = vmatpush1.msra.mxu0 %v7792
  %7833 = vmatprep.subr.mxu0 0.0
  %7834 = vmatpush1.msra.mxu0 %v7791
  %7835 = vmatprep.subr.mxu0 0.0
  %7836 = vmatpush2.msra.mxu0 0.0
  %7837 = vmatprep.subr.mxu0 0.0
  %7838 = vmatpush2.msra.mxu0 0.0
  %7839 = vmatprep.subr.mxu0 0.0
  %7840 = vmatpush2.msra.mxu0 0.0
  %7841 = vmatprep.subr.mxu0 0.0
  %7842 = vmatpush2.msra.mxu0 0.0
  %7843 = vmatprep.subr.mxu0 0.0
  %7844 = vmatpush2.msra.mxu0 0.0
  %7845 = vmatprep.subr.mxu0 0.0
  %7846 = vmatpush2.msra.mxu0 0.0
  %7847 = vmatprep.subr.mxu0 0.0
  %7848 = vmatpush2.msra.mxu0 0.0
  %7849 = vmatprep.subr.mxu0 0.0
  %7850 = vmatpush2.msra.mxu0 0.0
  %7851 = vmatprep.subr.mxu0 0.0
  %7852 = vmatpush2.msra.mxu0 0.0
  %7853 = vmatprep.subr.mxu0 0.0
  %7854 = vmatpush2.msra.mxu0 0.0
  %7855 = vmatprep.subr.mxu0 0.0
  %7856 = vmatpush2.msra.mxu0 0.0
  %7857 = vmatprep.subr.mxu0 0.0
  %7858 = vmatpush2.msra.mxu0 0.0
  %7859 = vmatprep.subr.mxu0 0.0
  %7860 = vmatpush2.msra.mxu0 0.0
  %7861 = vmatprep.subr.mxu0 0.0
  %7862 = vmatpush2.msra.mxu0 0.0
  %7863 = vmatprep.subr.mxu0 0.0
  %7864 = vmatpush2.msra.mxu0 0.0
  %7865 = vmatprep.subr.mxu0 0.0
  %7866 = vmatpush2.msra.mxu0 0.0
  %7867 = vmatprep.mubr.f32.mxu0 0.0
  %7868 = vmatmul.mubr.f32.gmra.mxu0 %v7801
  %v7869 = vpop.f32.mrf.mxu0
  %v7870 = vadd.f32 %v7798, %v7869
  %v7871 = vpop.f32.mrf.mxu0
  %7872 = vdwg.mxu0
  %v7873 = vmax.f32 %v7870, 0.0
  %v7874 = vld [vmem:[%s77] sm:$0xff]
  %v7875 = vld [vmem:[%s77 + $0x8] sm:$0xff]
  %v7876 = vld [vmem:[%s77 + $0x10] sm:$0xff]
  %v7877 = vld [vmem:[%s77 + $0x18] sm:$0xff]
  %v7878 = vld [vmem:[%s79] sm:$0x1]
  %v7880 = vlaneseq
  %v7881 = vshrl.u32 %v7880, 7
  %v7882 = vsub.s32 0, %v7881
  %v7883 = vrot.slane %v7878, %v7882
  %vm7885 = vcmask 261120
  %v7887 = vsel %vm7885, %v7873, 0
  %7889 = vmatprep.subr.mxu0 0.0
  %7890 = vmatpush1.msra.mxu0 0.0
  %7891 = vmatprep.subr.mxu0 0.0
  %7892 = vmatpush1.msra.mxu0 0.0
  %7893 = vmatprep.subr.mxu0 0.0
  %7894 = vmatpush1.msra.mxu0 0.0
  %7895 = vmatprep.subr.mxu0 0.0
  %7896 = vmatpush1.msra.mxu0 0.0
  %7897 = vmatprep.subr.mxu0 0.0
  %7898 = vmatpush1.msra.mxu0 0.0
  %7899 = vmatprep.subr.mxu0 0.0
  %7900 = vmatpush1.msra.mxu0 0.0
  %7901 = vmatprep.subr.mxu0 0.0
  %7902 = vmatpush1.msra.mxu0 0.0
  %7903 = vmatprep.subr.mxu0 0.0
  %7904 = vmatpush1.msra.mxu0 0.0
  %7905 = vmatprep.subr.mxu0 0.0
  %7906 = vmatpush1.msra.mxu0 0.0
  %7907 = vmatprep.subr.mxu0 0.0
  %7908 = vmatpush1.msra.mxu0 0.0
  %7909 = vmatprep.subr.mxu0 0.0
  %7910 = vmatpush1.msra.mxu0 0.0
  %7911 = vmatprep.subr.mxu0 0.0
  %7912 = vmatpush1.msra.mxu0 0.0
  %7913 = vmatprep.subr.mxu0 0.0
  %7914 = vmatpush1.msra.mxu0 %v7877
  %7915 = vmatprep.subr.mxu0 0.0
  %7916 = vmatpush1.msra.mxu0 %v7876
  %7917 = vmatprep.subr.mxu0 0.0
  %7918 = vmatpush1.msra.mxu0 %v7875
  %7919 = vmatprep.subr.mxu0 0.0
  %7920 = vmatpush1.msra.mxu0 %v7874
  %7921 = vmatprep.subr.mxu0 0.0
  %7922 = vmatpush2.msra.mxu0 0.0
  %7923 = vmatprep.subr.mxu0 0.0
  %7924 = vmatpush2.msra.mxu0 0.0
  %7925 = vmatprep.subr.mxu0 0.0
  %7926 = vmatpush2.msra.mxu0 0.0
  %7927 = vmatprep.subr.mxu0 0.0
  %7928 = vmatpush2.msra.mxu0 0.0
  %7929 = vmatprep.subr.mxu0 0.0
  %7930 = vmatpush2.msra.mxu0 0.0
  %7931 = vmatprep.subr.mxu0 0.0
  %7932 = vmatpush2.msra.mxu0 0.0
  %7933 = vmatprep.subr.mxu0 0.0
  %7934 = vmatpush2.msra.mxu0 0.0
  %7935 = vmatprep.subr.mxu0 0.0
  %7936 = vmatpush2.msra.mxu0 0.0
  %7937 = vmatprep.subr.mxu0 0.0
  %7938 = vmatpush2.msra.mxu0 0.0
  %7939 = vmatprep.subr.mxu0 0.0
  %7940 = vmatpush2.msra.mxu0 0.0
  %7941 = vmatprep.subr.mxu0 0.0
  %7942 = vmatpush2.msra.mxu0 0.0
  %7943 = vmatprep.subr.mxu0 0.0
  %7944 = vmatpush2.msra.mxu0 0.0
  %7945 = vmatprep.subr.mxu0 0.0
  %7946 = vmatpush2.msra.mxu0 0.0
  %7947 = vmatprep.subr.mxu0 0.0
  %7948 = vmatpush2.msra.mxu0 0.0
  %7949 = vmatprep.subr.mxu0 0.0
  %7950 = vmatpush2.msra.mxu0 0.0
  %7951 = vmatprep.subr.mxu0 0.0
  %7952 = vmatpush2.msra.mxu0 0.0
  %7953 = vmatprep.mubr.f32.mxu0 0.0
  %7954 = vmatmul.mubr.f32.gmra.mxu0 %v7887
  %v7955 = vpop.f32.mrf.mxu0
  %v7956 = vadd.f32 %v7883, %v7955
  %v7957 = vpop.f32.mrf.mxu0
  %7958 = vdwg.mxu0
  %v7959 = vmax.f32 %v7956, 0.0
  %v7960 = vld [vmem:[%s81] sm:$0xff]
  %v7961 = vld [vmem:[%s81 + $0x8] sm:$0xff]
  %v7962 = vld [vmem:[%s83] sm:$0x1]
  %v7964 = vlaneseq
  %v7965 = vshrl.u32 %v7964, 7
  %v7966 = vsub.s32 0, %v7965
  %v7967 = vrot.slane %v7962, %v7966
  %v7970 = vsel %vm394, %v7959, 0
  %7972 = vmatprep.subr.mxu0 0.0
  %7973 = vmatpush1.msra.mxu0 0.0
  %7974 = vmatprep.subr.mxu0 0.0
  %7975 = vmatpush1.msra.mxu0 0.0
  %7976 = vmatprep.subr.mxu0 0.0
  %7977 = vmatpush1.msra.mxu0 0.0
  %7978 = vmatprep.subr.mxu0 0.0
  %7979 = vmatpush1.msra.mxu0 0.0
  %7980 = vmatprep.subr.mxu0 0.0
  %7981 = vmatpush1.msra.mxu0 0.0
  %7982 = vmatprep.subr.mxu0 0.0
  %7983 = vmatpush1.msra.mxu0 0.0
  %7984 = vmatprep.subr.mxu0 0.0
  %7985 = vmatpush1.msra.mxu0 0.0
  %7986 = vmatprep.subr.mxu0 0.0
  %7987 = vmatpush1.msra.mxu0 0.0
  %7988 = vmatprep.subr.mxu0 0.0
  %7989 = vmatpush1.msra.mxu0 0.0
  %7990 = vmatprep.subr.mxu0 0.0
  %7991 = vmatpush1.msra.mxu0 0.0
  %7992 = vmatprep.subr.mxu0 0.0
  %7993 = vmatpush1.msra.mxu0 0.0
  %7994 = vmatprep.subr.mxu0 0.0
  %7995 = vmatpush1.msra.mxu0 0.0
  %7996 = vmatprep.subr.mxu0 0.0
  %7997 = vmatpush1.msra.mxu0 0.0
  %7998 = vmatprep.subr.mxu0 0.0
  %7999 = vmatpush1.msra.mxu0 0.0
  %8000 = vmatprep.subr.mxu0 0.0
  %8001 = vmatpush1.msra.mxu0 %v7961
  %8002 = vmatprep.subr.mxu0 0.0
  %8003 = vmatpush1.msra.mxu0 %v7960
  %8004 = vmatprep.subr.mxu0 0.0
  %8005 = vmatpush2.msra.mxu0 0.0
  %8006 = vmatprep.subr.mxu0 0.0
  %8007 = vmatpush2.msra.mxu0 0.0
  %8008 = vmatprep.subr.mxu0 0.0
  %8009 = vmatpush2.msra.mxu0 0.0
  %8010 = vmatprep.subr.mxu0 0.0
  %8011 = vmatpush2.msra.mxu0 0.0
  %8012 = vmatprep.subr.mxu0 0.0
  %8013 = vmatpush2.msra.mxu0 0.0
  %8014 = vmatprep.subr.mxu0 0.0
  %8015 = vmatpush2.msra.mxu0 0.0
  %8016 = vmatprep.subr.mxu0 0.0
  %8017 = vmatpush2.msra.mxu0 0.0
  %8018 = vmatprep.subr.mxu0 0.0
  %8019 = vmatpush2.msra.mxu0 0.0
  %8020 = vmatprep.subr.mxu0 0.0
  %8021 = vmatpush2.msra.mxu0 0.0
  %8022 = vmatprep.subr.mxu0 0.0
  %8023 = vmatpush2.msra.mxu0 0.0
  %8024 = vmatprep.subr.mxu0 0.0
  %8025 = vmatpush2.msra.mxu0 0.0
  %8026 = vmatprep.subr.mxu0 0.0
  %8027 = vmatpush2.msra.mxu0 0.0
  %8028 = vmatprep.subr.mxu0 0.0
  %8029 = vmatpush2.msra.mxu0 0.0
  %8030 = vmatprep.subr.mxu0 0.0
  %8031 = vmatpush2.msra.mxu0 0.0
  %8032 = vmatprep.subr.mxu0 0.0
  %8033 = vmatpush2.msra.mxu0 0.0
  %8034 = vmatprep.subr.mxu0 0.0
  %8035 = vmatpush2.msra.mxu0 0.0
  %8036 = vmatprep.mubr.f32.mxu0 0.0
  %8037 = vmatmul.mubr.f32.gmra.mxu0 %v7970
  %v8038 = vpop.f32.mrf.mxu0
  %v8039 = vadd.f32 %v7967, %v8038
  %v8040 = vpop.f32.mrf.mxu0
  %8041 = vdwg.mxu0
  %8042 = vst [vmem:[%s85] sm:$0x3] %v8039
  // Predicated region
  $region170: #{forward.1} parent=0 // pred_check
    _
  $region171: #{forward.1} parent=0 // pred_check_branch
    %8044 = sbr.rel (0) target = $region173
  $region172: #{forward.1} parent=0 // pred_region
    _
  $region173: #{forward.1} parent=0 // pred_fallthru
    _
  // Predicated region
  $region174: #{forward.1} parent=0 // pred_check
    _
  $region175: #{forward.1} parent=0 // pred_check_branch
    %8046 = sbr.rel (0) target = $region177
  $region176: #{forward.1} parent=0 // pred_region
    _
  $region177: #{forward.1} parent=0 // pred_fallthru
    _

</llo_original>
